<compile_context>
chip_gen: v5e
topology: v5e:2x2
jax: 0.10.0
libtpu: 0.0.40
codegen_flags: <defaults>
</compile_context>

<pallas_src>
import functools

import jax
import jax.numpy as jnp
from jax import lax
from jax.experimental import pallas as pl
from jax.experimental.pallas import tpu as pltpu

KT = 9   # temporal kernel size
PAD = 4  # temporal padding


def _t_out(t_in, stride):
    return (t_in + 2 * PAD - (KT - 1) - 1) // stride + 1


# ----------------------------------------------------------------------------
# One ST-GCN block on a single sample (traced inside the fused kernel).
#   y = ReLU( TemporalConv9x1_stride( ReLU( BN( GraphConv1x1(x, A) ) ) ) )
# BatchNorm in eval mode with default running stats == identity; residual=False.
# TODO(synk): if real BatchNorm statistics are ever loaded, fold gamma/beta/mean/var
#             into WgT/bg and WtT/bt instead of treating BN as identity.
# ----------------------------------------------------------------------------
def _block_body(h_in, kron_aT, wgT, bg, wt_ref, bt, pad_refs, *, T_in, stride, V, Cout):
    # ---- spatial graph conv: one adjacency matmul + one channel-mix matmul ----
    g = jnp.dot(kron_aT, h_in, preferred_element_type=jnp.float32)          # (T*V, Cin)
    h = jnp.dot(g.astype(jnp.bfloat16), wgT, preferred_element_type=jnp.float32)
    h = jnp.maximum(h + bg, 0.0).astype(jnp.bfloat16)                       # BN(eval)=id, ReLU

    T_out = _t_out(T_in, stride)
    acc = jnp.zeros((T_out * V, Cout), jnp.float32)

    if stride == 1:
        hpad_ref, = pad_refs
        lo, hi = PAD * V, (PAD + T_in) * V
        # zero only the PAD rows; the interior is fully overwritten below
        hpad_ref[0:lo, :] = jnp.zeros((lo, Cout), jnp.bfloat16)
        hpad_ref[lo:hi, :] = h
        hpad_ref[hi:hi + PAD * V, :] = jnp.zeros((PAD * V, Cout), jnp.bfloat16)
        # im2col: 9 contiguous slabs -> 9 big MXU matmuls
        for k in range(KT):
            slab = hpad_ref[k * V:(k + T_out) * V, :]
            acc = acc + jnp.dot(slab, wt_ref[k], preferred_element_type=jnp.float32)
    else:  # stride == 2: even/odd time-phase buffers keep every im2col slab contiguous
        even_ref, odd_ref = pad_refs
        half = PAD // 2
        th = (T_in + 2 * PAD) // 2
        z = jnp.zeros((half * V, Cout), jnp.bfloat16)
        for buf in (even_ref, odd_ref):
            buf[0:half * V, :] = z
            buf[(half + T_in // 2) * V:th * V, :] = z
        for t in range(T_in):
            dst = even_ref if t % 2 == 0 else odd_ref
            s = half + t // 2
            dst[s * V:(s + 1) * V, :] = lax.slice(h, (t * V, 0), ((t + 1) * V, Cout))
        for k in range(KT):
            src = even_ref if k % 2 == 0 else odd_ref
            m = k // 2
            slab = src[m * V:(m + T_out) * V, :]
            acc = acc + jnp.dot(slab, wt_ref[k], preferred_element_type=jnp.float32)

    # second BN (eval) identity; residual=False; final ReLU
    return jnp.maximum(acc + bt, 0.0)


# ----------------------------------------------------------------------------
# Fused kernel: 3 ST-GCN blocks + temporal mean pool, grid over batch.
# ----------------------------------------------------------------------------
def _stgcn_fused_kernel(x_ref, k1_ref, k2_ref, k3_ref,
                        wg1_ref, bg1_ref, wt1_ref, bt1_ref,
                        wg2_ref, bg2_ref, wt2_ref, bt2_ref,
                        wg3_ref, bg3_ref, wt3_ref, bt3_ref,
                        pooled_ref, *pads, T, V, strides, couts):
    t1 = _t_out(T, strides[0])
    t2 = _t_out(t1, strides[1])
    t3 = _t_out(t2, strides[2])

    # carve per-block padded-activation scratch refs out of *pads
    pad_refs, i = [], 0
    for s in strides:
        n = 1 if s == 1 else 2
        pad_refs.append(tuple(pads[i:i + n]))
        i += n

    x = x_ref[0].astype(jnp.bfloat16)                   # (T*V, Cin), rows (t, v)

    h1 = _block_body(x, k1_ref[...], wg1_ref[...], bg1_ref[...], wt1_ref, bt1_ref[...],
                     pad_refs[0], T_in=T, stride=strides[0], V=V, Cout=couts[0])
    h2 = _block_body(h1.astype(jnp.bfloat16), k2_ref[...], wg2_ref[...], bg2_ref[...],
                     wt2_ref, bt2_ref[...], pad_refs[1],
                     T_in=t1, stride=strides[1], V=V, Cout=couts[1])
    h3 = _block_body(h2.astype(jnp.bfloat16), k3_ref[...], wg3_ref[...], bg3_ref[...],
                     wt3_ref, bt3_ref[...], pad_refs[2],
                     T_in=t2, stride=strides[2], V=V, Cout=couts[2])

    # AdaptiveAvgPool2d((1, None)) on the NCHW view == mean over time -> (V, Cout3)
    # (per-sample `lengths` are not used by AdaptiveAvgPool2d, matching the reference)
    pooled = lax.slice(h3, (0, 0), (V, couts[2]))
    for t in range(1, t3):
        pooled = pooled + lax.slice(h3, (t * V, 0), ((t + 1) * V, couts[2]))
    pooled_ref[0] = pooled * (1.0 / t3)


# ----------------------------------------------------------------------------
# Classifier head: Linear(V*C -> 32), ReLU, Dropout(eval)=id, Linear(32 -> 1).
# Features arrive flattened in (v*C + c) order; W1 was pre-permuted to match the
# PyTorch (c*V + v) flatten, so no transpose is needed anywhere.
# ----------------------------------------------------------------------------
def _classifier_kernel(x_ref, w1_ref, b1_ref, w2_ref, b2_ref, o_ref):
    h = jnp.dot(x_ref[...].astype(jnp.bfloat16), w1_ref[...],
                preferred_element_type=jnp.float32) + b1_ref[...]
    h = jnp.maximum(h, 0.0)
    o_ref[...] = jnp.dot(h.astype(jnp.bfloat16), w2_ref[...],
                         preferred_element_type=jnp.float32) + b2_ref[...]


# ----------------------------------------------------------------------------
# Full model
# ----------------------------------------------------------------------------
def calculate_lengths_after_conv(lengths, kernel_size, stride, padding):
    return [(l + 2 * padding - (kernel_size - 1) - 1) // stride + 1 for l in lengths]


def stgcn_forward(x, lengths, params):
    """x: (N, T, V, C_in) -> (N, 1)."""
    N, T, V, Cin = x.shape
    blocks = params["blocks"]
    A_T = params["A_T"]

    strides = tuple(b["stride"] for b in blocks)
    couts = tuple(b["WgT"].shape[1] for b in blocks)
    C3 = couts[-1]

    # static per-block input lengths and block-diagonal adjacencies kron(I_T, A^T)
    t_ins = [T]
    for s in strides[:-1]:
        t_ins.append(_t_out(t_ins[-1], s))
    for t_in, s in zip(t_ins, strides):
        if s == 2:
            assert t_in % 2 == 0, "stride-2 temporal conv expects an even T"
    krons = [jnp.kron(jnp.eye(t_in, dtype=jnp.float32), A_T).astype(jnp.bfloat16)
             for t_in in t_ins]

    # t-major 2-D activation layout (row = t*V + v); pure metadata reshape, no copy
    x2 = x.reshape(N, T * V, Cin)

    kernel = functools.partial(_stgcn_fused_kernel, T=T, V=V,
                               strides=strides, couts=couts)

    def const_map(rank):
        return lambda n: (0,) * rank

    in_specs = [pl.BlockSpec((1, T * V, Cin), lambda n: (n, 0, 0))]
    operands = [x2]
    for t_in, kr in zip(t_ins, krons):
        in_specs.append(pl.BlockSpec((t_in * V, t_in * V), const_map(2)))
        operands.append(kr)
    for b in blocks:
        cin_b, cout_b = b["WgT"].shape
        in_specs += [pl.BlockSpec((cin_b, cout_b), const_map(2)),
                     pl.BlockSpec((1, cout_b), const_map(2)),
                     pl.BlockSpec((KT, cout_b, cout_b), const_map(3)),
                     pl.BlockSpec((1, cout_b), const_map(2))]
        operands += [b["WgT"], b["bg"], b["WtT"], b["bt"]]

    # padded-activation VMEM scratch (bf16 MXU operands), per block
    scratch_shapes = []
    for t_in, s, c in zip(t_ins, strides, couts):
        tp = t_in + 2 * PAD
        if s == 1:
            scratch_shapes.append(pltpu.VMEM((tp * V, c), jnp.bfloat16))
        else:
            scratch_shapes += [pltpu.VMEM(((tp // 2) * V, c), jnp.bfloat16)] * 2

    pooled = pl.pallas_call(
        kernel,
        out_shape=jax.ShapeDtypeStruct((N, V, C3), jnp.float32),
        grid_spec=pltpu.PrefetchScalarGridSpec(
            num_scalar_prefetch=0,
            grid=(N,),
            in_specs=in_specs,
            out_specs=pl.BlockSpec((1, V, C3), lambda n: (n, 0, 0)),
            scratch_shapes=scratch_shapes,
        ),
        compiler_params=pltpu.CompilerParams(dimension_semantics=("parallel",)),
    )(*operands)

    # `lengths` bookkeeping of the reference forward (i in {3, 6} never triggers
    # for the 3-block model; kept for fidelity).
    for i in range(len(blocks)):
        if i in {3, 6}:
            lengths = calculate_lengths_after_conv(lengths, kernel_size=9, stride=2, padding=4)

    feats = pooled.reshape(N, V * C3)                    # metadata reshape, 8 KB
    vmem_spec = pl.BlockSpec(memory_space=pltpu.MemorySpace.VMEM)
    return pl.pallas_call(
        _classifier_kernel,
        out_shape=jax.ShapeDtypeStruct((N, 1), jnp.float32),
        in_specs=[vmem_spec] * 5,
        out_specs=vmem_spec,
    )(feats, params["W1p"], params["b1"], params["W2p"], params["b2"])


def init_params(key, in_channels, out_channels, V):
    # Deterministic synthetic parameters (shapes follow the nn.Module __init__).
    # Normalized adjacency with self-loops on a ring graph of V joints.
    A = jnp.eye(V) + jnp.roll(jnp.eye(V), 1, axis=1) + jnp.roll(jnp.eye(V), -1, axis=1)
    A = A / A.sum(axis=0, keepdims=True)

    cfg = [(in_channels, 128, 1), (128, 256, 2), (256, out_channels, 1)]
    keys = jax.random.split(key, 4 * len(cfg) + 4)

    blocks = []
    ki = 0
    for (cin, cout, s) in cfg:
        Wg = jax.random.normal(keys[ki + 0], (cout, cin), jnp.float32) / jnp.sqrt(cin)
        bg = 0.01 * jax.random.normal(keys[ki + 1], (cout,), jnp.float32)
        Wt = jax.random.normal(keys[ki + 2], (cout, cout, KT), jnp.float32) / jnp.sqrt(cout * KT)
        bt = 0.01 * jax.random.normal(keys[ki + 3], (cout,), jnp.float32)
        ki += 4
        blocks.append(dict(
            WgT=Wg.T.astype(jnp.bfloat16),                         # (Cin, Cout)
            bg=bg.reshape(1, -1),                                  # (1, Cout) f32
            WtT=jnp.transpose(Wt, (2, 1, 0)).astype(jnp.bfloat16),  # (KT, Cout, Cout), [k]=W[:,:,k]^T
            bt=bt.reshape(1, -1),
            stride=s,
        ))

    F = out_channels * V
    W1 = jax.random.normal(keys[ki + 0], (32, F), jnp.float32) / jnp.sqrt(F)
    b1 = 0.01 * jax.random.normal(keys[ki + 1], (32,), jnp.float32)
    W2 = jax.random.normal(keys[ki + 2], (1, 32), jnp.float32) / jnp.sqrt(32.0)
    b2 = 0.01 * jax.random.normal(keys[ki + 3], (1,), jnp.float32)

    # PyTorch flattens pooled features in (c*V + v) order; our kernel produces
    # (v*C + c) order, so permute W1's input index once at init (no runtime transpose).
    W1p = W1.reshape(32, out_channels, V).transpose(2, 1, 0).reshape(V * out_channels, 32)

    return dict(
        A_T=A.T,
        blocks=blocks,
        W1p=W1p.astype(jnp.bfloat16),
        b1=b1.reshape(1, -1),
        W2p=W2.T.astype(jnp.bfloat16),
        b2=b2.reshape(1, -1),
    )


if __name__ == "__main__":
    N, T, V, C_in, C_out = 2, 8, 16, 4, 64

    key = jax.random.PRNGKey(0)
    k_param, k_x = jax.random.split(key)
    params = init_params(k_param, C_in, C_out, V)

    x = jax.random.normal(k_x, (N, T, V, C_in), jnp.float32)
    lengths = [T] * N

    out = stgcn_forward(x, lengths, params)
    out = jax.block_until_ready(out)
    assert out.shape == (N, 1), out.shape
    print("KERNEL_OK")
</pallas_src>

<mosaic_0001>
module attributes {stable_mosaic.version = 11 : i64} {
  func.func @_stgcn_fused_kernel(%arg0: i32, %arg1: memref<1x128x4xf32, #tpu.memory_space<vmem>>, %arg2: memref<128x128xbf16, #tpu.memory_space<vmem>>, %arg3: memref<128x128xbf16, #tpu.memory_space<vmem>>, %arg4: memref<64x64xbf16, #tpu.memory_space<vmem>>, %arg5: memref<4x128xbf16, #tpu.memory_space<vmem>>, %arg6: memref<1x128xf32, #tpu.memory_space<vmem>>, %arg7: memref<9x128x128xbf16, #tpu.memory_space<vmem>>, %arg8: memref<1x128xf32, #tpu.memory_space<vmem>>, %arg9: memref<128x256xbf16, #tpu.memory_space<vmem>>, %arg10: memref<1x256xf32, #tpu.memory_space<vmem>>, %arg11: memref<9x256x256xbf16, #tpu.memory_space<vmem>>, %arg12: memref<1x256xf32, #tpu.memory_space<vmem>>, %arg13: memref<256x64xbf16, #tpu.memory_space<vmem>>, %arg14: memref<1x64xf32, #tpu.memory_space<vmem>>, %arg15: memref<9x64x64xbf16, #tpu.memory_space<vmem>>, %arg16: memref<1x64xf32, #tpu.memory_space<vmem>>, %arg17: memref<1x16x64xf32, #tpu.memory_space<vmem>>, %arg18: memref<256x128xbf16, #tpu.memory_space<vmem>>, %arg19: memref<128x256xbf16, #tpu.memory_space<vmem>>, %arg20: memref<128x256xbf16, #tpu.memory_space<vmem>>, %arg21: memref<192x64xbf16, #tpu.memory_space<vmem>>) attributes {dimension_semantics = [#tpu.dimension_semantics<parallel>], iteration_bounds = array<i64: 2>, scalar_prefetch = 0 : i64, scratch_operands = 4 : i64, tpu.core_type = #tpu.core_type<tc>, window_params = [{transform_indices = @transform_0, window_bounds = array<i64: 1, 128, 4>}, {pipeline_mode = #tpu.pipeline_mode<synchronous>, transform_indices = @transform_1, window_bounds = array<i64: 128, 128>}, {pipeline_mode = #tpu.pipeline_mode<synchronous>, transform_indices = @transform_2, window_bounds = array<i64: 128, 128>}, {pipeline_mode = #tpu.pipeline_mode<synchronous>, transform_indices = @transform_3, window_bounds = array<i64: 64, 64>}, {pipeline_mode = #tpu.pipeline_mode<synchronous>, transform_indices = @transform_4, window_bounds = array<i64: 4, 128>}, {pipeline_mode = #tpu.pipeline_mode<synchronous>, transform_indices = @transform_5, window_bounds = array<i64: 1, 128>}, {pipeline_mode = #tpu.pipeline_mode<synchronous>, transform_indices = @transform_6, window_bounds = array<i64: 9, 128, 128>}, {pipeline_mode = #tpu.pipeline_mode<synchronous>, transform_indices = @transform_7, window_bounds = array<i64: 1, 128>}, {pipeline_mode = #tpu.pipeline_mode<synchronous>, transform_indices = @transform_8, window_bounds = array<i64: 128, 256>}, {pipeline_mode = #tpu.pipeline_mode<synchronous>, transform_indices = @transform_9, window_bounds = array<i64: 1, 256>}, {pipeline_mode = #tpu.pipeline_mode<synchronous>, transform_indices = @transform_10, window_bounds = array<i64: 9, 256, 256>}, {pipeline_mode = #tpu.pipeline_mode<synchronous>, transform_indices = @transform_11, window_bounds = array<i64: 1, 256>}, {pipeline_mode = #tpu.pipeline_mode<synchronous>, transform_indices = @transform_12, window_bounds = array<i64: 256, 64>}, {pipeline_mode = #tpu.pipeline_mode<synchronous>, transform_indices = @transform_13, window_bounds = array<i64: 1, 64>}, {pipeline_mode = #tpu.pipeline_mode<synchronous>, transform_indices = @transform_14, window_bounds = array<i64: 9, 64, 64>}, {pipeline_mode = #tpu.pipeline_mode<synchronous>, transform_indices = @transform_15, window_bounds = array<i64: 1, 64>}, {transform_indices = @transform_16, window_bounds = array<i64: 1, 16, 64>}]} {
    %c0 = arith.constant 0 : index
    %c0_0 = arith.constant 0 : index
    %c0_1 = arith.constant 0 : index
    %0 = vector.load %arg1[%c0, %c0_0, %c0_1] : memref<1x128x4xf32, #tpu.memory_space<vmem>>, vector<1x128x4xf32>
    %1 = vector.shape_cast %0 : vector<1x128x4xf32> to vector<128x4xf32>
    %2 = arith.truncf %1 : vector<128x4xf32> to vector<128x4xbf16>
    %c0_2 = arith.constant 0 : index
    %c0_3 = arith.constant 0 : index
    %3 = vector.load %arg2[%c0_2, %c0_3] : memref<128x128xbf16, #tpu.memory_space<vmem>>, vector<128x128xbf16>
    %c0_4 = arith.constant 0 : index
    %c0_5 = arith.constant 0 : index
    %4 = vector.load %arg5[%c0_4, %c0_5] : memref<4x128xbf16, #tpu.memory_space<vmem>>, vector<4x128xbf16>
    %c0_6 = arith.constant 0 : index
    %c0_7 = arith.constant 0 : index
    %5 = vector.load %arg6[%c0_6, %c0_7] : memref<1x128xf32, #tpu.memory_space<vmem>>, vector<1x128xf32>
    %c0_8 = arith.constant 0 : index
    %c0_9 = arith.constant 0 : index
    %6 = vector.load %arg8[%c0_8, %c0_9] : memref<1x128xf32, #tpu.memory_space<vmem>>, vector<1x128xf32>
    %cst = arith.constant dense<0.000000e+00> : vector<128x4xf32>
    %7 = tpu.matmul %3, %2, %cst {dimension_numbers = #tpu.dot_dimension_numbers<[1], [0], [0], [1], [0, 0, 1, 1], [], []>} : vector<128x128xbf16>, vector<128x4xbf16>, vector<128x4xf32> -> vector<128x4xf32>
    %8 = arith.truncf %7 : vector<128x4xf32> to vector<128x4xbf16>
    %cst_10 = arith.constant dense<0.000000e+00> : vector<128x128xf32>
    %9 = tpu.matmul %8, %4, %cst_10 {dimension_numbers = #tpu.dot_dimension_numbers<[1], [0], [0], [1], [0, 0, 1, 1], [], []>} : vector<128x4xbf16>, vector<4x128xbf16>, vector<128x128xf32> -> vector<128x128xf32>
    %10 = vector.broadcast %5 : vector<1x128xf32> to vector<128x128xf32>
    %11 = arith.addf %9, %10 : vector<128x128xf32>
    %cst_11 = arith.constant 0.000000e+00 : f32
    %12 = vector.broadcast %cst_11 : f32 to vector<128x128xf32>
    %13 = arith.maximumf %11, %12 : vector<128x128xf32>
    %14 = arith.truncf %13 : vector<128x128xf32> to vector<128x128xbf16>
    %cst_12 = arith.constant 0.000000e+00 : f32
    %15 = vector.broadcast %cst_12 : f32 to vector<128x128xf32>
    %cst_13 = arith.constant 0.000000e+00 : bf16
    %16 = vector.broadcast %cst_13 : bf16 to vector<64x128xbf16>
    %c0_14 = arith.constant 0 : index
    %c0_15 = arith.constant 0 : index
    %17 = vector.load %arg18[%c0_14, %c0_15] : memref<256x128xbf16, #tpu.memory_space<vmem>>, vector<64x128xbf16>
    tpu.vector_store %arg18[%c0_14, %c0_15], %16 {strides = array<i32>} : memref<256x128xbf16, #tpu.memory_space<vmem>>, vector<64x128xbf16>,
    %c64 = arith.constant 64 : index
    %c0_16 = arith.constant 0 : index
    %18 = vector.load %arg18[%c64, %c0_16] : memref<256x128xbf16, #tpu.memory_space<vmem>>, vector<128x128xbf16>
    tpu.vector_store %arg18[%c64, %c0_16], %14 {strides = array<i32>} : memref<256x128xbf16, #tpu.memory_space<vmem>>, vector<128x128xbf16>,
    %cst_17 = arith.constant 0.000000e+00 : bf16
    %19 = vector.broadcast %cst_17 : bf16 to vector<64x128xbf16>
    %c192 = arith.constant 192 : index
    %c0_18 = arith.constant 0 : index
    %20 = vector.load %arg18[%c192, %c0_18] : memref<256x128xbf16, #tpu.memory_space<vmem>>, vector<64x128xbf16>
    tpu.vector_store %arg18[%c192, %c0_18], %19 {strides = array<i32>} : memref<256x128xbf16, #tpu.memory_space<vmem>>, vector<64x128xbf16>,
    %c0_19 = arith.constant 0 : index
    %c0_20 = arith.constant 0 : index
    %21 = vector.load %arg18[%c0_19, %c0_20] : memref<256x128xbf16, #tpu.memory_space<vmem>>, vector<128x128xbf16>
    %c0_21 = arith.constant 0 : index
    %c0_22 = arith.constant 0 : index
    %c0_23 = arith.constant 0 : index
    %22 = vector.load %arg7[%c0_21, %c0_22, %c0_23] : memref<9x128x128xbf16, #tpu.memory_space<vmem>>, vector<1x128x128xbf16>
    %23 = vector.shape_cast %22 : vector<1x128x128xbf16> to vector<128x128xbf16>
    %cst_24 = arith.constant dense<0.000000e+00> : vector<128x128xf32>
    %24 = tpu.matmul %21, %23, %cst_24 {dimension_numbers = #tpu.dot_dimension_numbers<[1], [0], [0], [1], [0, 0, 1, 1], [], []>} : vector<128x128xbf16>, vector<128x128xbf16>, vector<128x128xf32> -> vector<128x128xf32>
    %25 = arith.addf %15, %24 : vector<128x128xf32>
    %c16 = arith.constant 16 : index
    %c0_25 = arith.constant 0 : index
    %26 = vector.load %arg18[%c16, %c0_25] : memref<256x128xbf16, #tpu.memory_space<vmem>>, vector<128x128xbf16>
    %c1 = arith.constant 1 : index
    %c0_26 = arith.constant 0 : index
    %c0_27 = arith.constant 0 : index
    %27 = vector.load %arg7[%c1, %c0_26, %c0_27] : memref<9x128x128xbf16, #tpu.memory_space<vmem>>, vector<1x128x128xbf16>
    %28 = vector.shape_cast %27 : vector<1x128x128xbf16> to vector<128x128xbf16>
    %cst_28 = arith.constant dense<0.000000e+00> : vector<128x128xf32>
    %29 = tpu.matmul %26, %28, %cst_28 {dimension_numbers = #tpu.dot_dimension_numbers<[1], [0], [0], [1], [0, 0, 1, 1], [], []>} : vector<128x128xbf16>, vector<128x128xbf16>, vector<128x128xf32> -> vector<128x128xf32>
    %30 = arith.addf %25, %29 : vector<128x128xf32>
    %c32 = arith.constant 32 : index
    %c0_29 = arith.constant 0 : index
    %31 = vector.load %arg18[%c32, %c0_29] : memref<256x128xbf16, #tpu.memory_space<vmem>>, vector<128x128xbf16>
    %c2 = arith.constant 2 : index
    %c0_30 = arith.constant 0 : index
    %c0_31 = arith.constant 0 : index
    %32 = vector.load %arg7[%c2, %c0_30, %c0_31] : memref<9x128x128xbf16, #tpu.memory_space<vmem>>, vector<1x128x128xbf16>
    %33 = vector.shape_cast %32 : vector<1x128x128xbf16> to vector<128x128xbf16>
    %cst_32 = arith.constant dense<0.000000e+00> : vector<128x128xf32>
    %34 = tpu.matmul %31, %33, %cst_32 {dimension_numbers = #tpu.dot_dimension_numbers<[1], [0], [0], [1], [0, 0, 1, 1], [], []>} : vector<128x128xbf16>, vector<128x128xbf16>, vector<128x128xf32> -> vector<128x128xf32>
    %35 = arith.addf %30, %34 : vector<128x128xf32>
    %c48 = arith.constant 48 : index
    %c0_33 = arith.constant 0 : index
    %36 = vector.load %arg18[%c48, %c0_33] : memref<256x128xbf16, #tpu.memory_space<vmem>>, vector<128x128xbf16>
    %c3 = arith.constant 3 : index
    %c0_34 = arith.constant 0 : index
    %c0_35 = arith.constant 0 : index
    %37 = vector.load %arg7[%c3, %c0_34, %c0_35] : memref<9x128x128xbf16, #tpu.memory_space<vmem>>, vector<1x128x128xbf16>
    %38 = vector.shape_cast %37 : vector<1x128x128xbf16> to vector<128x128xbf16>
    %cst_36 = arith.constant dense<0.000000e+00> : vector<128x128xf32>
    %39 = tpu.matmul %36, %38, %cst_36 {dimension_numbers = #tpu.dot_dimension_numbers<[1], [0], [0], [1], [0, 0, 1, 1], [], []>} : vector<128x128xbf16>, vector<128x128xbf16>, vector<128x128xf32> -> vector<128x128xf32>
    %40 = arith.addf %35, %39 : vector<128x128xf32>
    %c64_37 = arith.constant 64 : index
    %c0_38 = arith.constant 0 : index
    %41 = vector.load %arg18[%c64_37, %c0_38] : memref<256x128xbf16, #tpu.memory_space<vmem>>, vector<128x128xbf16>
    %c4 = arith.constant 4 : index
    %c0_39 = arith.constant 0 : index
    %c0_40 = arith.constant 0 : index
    %42 = vector.load %arg7[%c4, %c0_39, %c0_40] : memref<9x128x128xbf16, #tpu.memory_space<vmem>>, vector<1x128x128xbf16>
    %43 = vector.shape_cast %42 : vector<1x128x128xbf16> to vector<128x128xbf16>
    %cst_41 = arith.constant dense<0.000000e+00> : vector<128x128xf32>
    %44 = tpu.matmul %41, %43, %cst_41 {dimension_numbers = #tpu.dot_dimension_numbers<[1], [0], [0], [1], [0, 0, 1, 1], [], []>} : vector<128x128xbf16>, vector<128x128xbf16>, vector<128x128xf32> -> vector<128x128xf32>
    %45 = arith.addf %40, %44 : vector<128x128xf32>
    %c80 = arith.constant 80 : index
    %c0_42 = arith.constant 0 : index
    %46 = vector.load %arg18[%c80, %c0_42] : memref<256x128xbf16, #tpu.memory_space<vmem>>, vector<128x128xbf16>
    %c5 = arith.constant 5 : index
    %c0_43 = arith.constant 0 : index
    %c0_44 = arith.constant 0 : index
    %47 = vector.load %arg7[%c5, %c0_43, %c0_44] : memref<9x128x128xbf16, #tpu.memory_space<vmem>>, vector<1x128x128xbf16>
    %48 = vector.shape_cast %47 : vector<1x128x128xbf16> to vector<128x128xbf16>
    %cst_45 = arith.constant dense<0.000000e+00> : vector<128x128xf32>
    %49 = tpu.matmul %46, %48, %cst_45 {dimension_numbers = #tpu.dot_dimension_numbers<[1], [0], [0], [1], [0, 0, 1, 1], [], []>} : vector<128x128xbf16>, vector<128x128xbf16>, vector<128x128xf32> -> vector<128x128xf32>
    %50 = arith.addf %45, %49 : vector<128x128xf32>
    %c96 = arith.constant 96 : index
    %c0_46 = arith.constant 0 : index
    %51 = vector.load %arg18[%c96, %c0_46] : memref<256x128xbf16, #tpu.memory_space<vmem>>, vector<128x128xbf16>
    %c6 = arith.constant 6 : index
    %c0_47 = arith.constant 0 : index
    %c0_48 = arith.constant 0 : index
    %52 = vector.load %arg7[%c6, %c0_47, %c0_48] : memref<9x128x128xbf16, #tpu.memory_space<vmem>>, vector<1x128x128xbf16>
    %53 = vector.shape_cast %52 : vector<1x128x128xbf16> to vector<128x128xbf16>
    %cst_49 = arith.constant dense<0.000000e+00> : vector<128x128xf32>
    %54 = tpu.matmul %51, %53, %cst_49 {dimension_numbers = #tpu.dot_dimension_numbers<[1], [0], [0], [1], [0, 0, 1, 1], [], []>} : vector<128x128xbf16>, vector<128x128xbf16>, vector<128x128xf32> -> vector<128x128xf32>
    %55 = arith.addf %50, %54 : vector<128x128xf32>
    %c112 = arith.constant 112 : index
    %c0_50 = arith.constant 0 : index
    %56 = vector.load %arg18[%c112, %c0_50] : memref<256x128xbf16, #tpu.memory_space<vmem>>, vector<128x128xbf16>
    %c7 = arith.constant 7 : index
    %c0_51 = arith.constant 0 : index
    %c0_52 = arith.constant 0 : index
    %57 = vector.load %arg7[%c7, %c0_51, %c0_52] : memref<9x128x128xbf16, #tpu.memory_space<vmem>>, vector<1x128x128xbf16>
    %58 = vector.shape_cast %57 : vector<1x128x128xbf16> to vector<128x128xbf16>
    %cst_53 = arith.constant dense<0.000000e+00> : vector<128x128xf32>
    %59 = tpu.matmul %56, %58, %cst_53 {dimension_numbers = #tpu.dot_dimension_numbers<[1], [0], [0], [1], [0, 0, 1, 1], [], []>} : vector<128x128xbf16>, vector<128x128xbf16>, vector<128x128xf32> -> vector<128x128xf32>
    %60 = arith.addf %55, %59 : vector<128x128xf32>
    %c128 = arith.constant 128 : index
    %c0_54 = arith.constant 0 : index
    %61 = vector.load %arg18[%c128, %c0_54] : memref<256x128xbf16, #tpu.memory_space<vmem>>, vector<128x128xbf16>
    %c8 = arith.constant 8 : index
    %c0_55 = arith.constant 0 : index
    %c0_56 = arith.constant 0 : index
    %62 = vector.load %arg7[%c8, %c0_55, %c0_56] : memref<9x128x128xbf16, #tpu.memory_space<vmem>>, vector<1x128x128xbf16>
    %63 = vector.shape_cast %62 : vector<1x128x128xbf16> to vector<128x128xbf16>
    %cst_57 = arith.constant dense<0.000000e+00> : vector<128x128xf32>
    %64 = tpu.matmul %61, %63, %cst_57 {dimension_numbers = #tpu.dot_dimension_numbers<[1], [0], [0], [1], [0, 0, 1, 1], [], []>} : vector<128x128xbf16>, vector<128x128xbf16>, vector<128x128xf32> -> vector<128x128xf32>
    %65 = arith.addf %60, %64 : vector<128x128xf32>
    %66 = vector.broadcast %6 : vector<1x128xf32> to vector<128x128xf32>
    %67 = arith.addf %65, %66 : vector<128x128xf32>
    %cst_58 = arith.constant 0.000000e+00 : f32
    %68 = vector.broadcast %cst_58 : f32 to vector<128x128xf32>
    %69 = arith.maximumf %67, %68 : vector<128x128xf32>
    %70 = arith.truncf %69 : vector<128x128xf32> to vector<128x128xbf16>
    %c0_59 = arith.constant 0 : index
    %c0_60 = arith.constant 0 : index
    %71 = vector.load %arg3[%c0_59, %c0_60] : memref<128x128xbf16, #tpu.memory_space<vmem>>, vector<128x128xbf16>
    %c0_61 = arith.constant 0 : index
    %c0_62 = arith.constant 0 : index
    %72 = vector.load %arg9[%c0_61, %c0_62] : memref<128x256xbf16, #tpu.memory_space<vmem>>, vector<128x256xbf16>
    %c0_63 = arith.constant 0 : index
    %c0_64 = arith.constant 0 : index
    %73 = vector.load %arg10[%c0_63, %c0_64] : memref<1x256xf32, #tpu.memory_space<vmem>>, vector<1x256xf32>
    %c0_65 = arith.constant 0 : index
    %c0_66 = arith.constant 0 : index
    %74 = vector.load %arg12[%c0_65, %c0_66] : memref<1x256xf32, #tpu.memory_space<vmem>>, vector<1x256xf32>
    %cst_67 = arith.constant dense<0.000000e+00> : vector<128x128xf32>
    %75 = tpu.matmul %71, %70, %cst_67 {dimension_numbers = #tpu.dot_dimension_numbers<[1], [0], [0], [1], [0, 0, 1, 1], [], []>} : vector<128x128xbf16>, vector<128x128xbf16>, vector<128x128xf32> -> vector<128x128xf32>
    %76 = arith.truncf %75 : vector<128x128xf32> to vector<128x128xbf16>
    %cst_68 = arith.constant dense<0.000000e+00> : vector<128x256xf32>
    %77 = tpu.matmul %76, %72, %cst_68 {dimension_numbers = #tpu.dot_dimension_numbers<[1], [0], [0], [1], [0, 0, 1, 1], [], []>} : vector<128x128xbf16>, vector<128x256xbf16>, vector<128x256xf32> -> vector<128x256xf32>
    %78 = vector.broadcast %73 : vector<1x256xf32> to vector<128x256xf32>
    %79 = arith.addf %77, %78 : vector<128x256xf32>
    %cst_69 = arith.constant 0.000000e+00 : f32
    %80 = vector.broadcast %cst_69 : f32 to vector<128x256xf32>
    %81 = arith.maximumf %79, %80 : vector<128x256xf32>
    %82 = arith.truncf %81 : vector<128x256xf32> to vector<128x256xbf16>
    %cst_70 = arith.constant 0.000000e+00 : f32
    %83 = vector.broadcast %cst_70 : f32 to vector<64x256xf32>
    %cst_71 = arith.constant 0.000000e+00 : bf16
    %84 = vector.broadcast %cst_71 : bf16 to vector<32x256xbf16>
    %c0_72 = arith.constant 0 : index
    %c0_73 = arith.constant 0 : index
    %85 = vector.load %arg19[%c0_72, %c0_73] : memref<128x256xbf16, #tpu.memory_space<vmem>>, vector<32x256xbf16>
    tpu.vector_store %arg19[%c0_72, %c0_73], %84 {strides = array<i32>} : memref<128x256xbf16, #tpu.memory_space<vmem>>, vector<32x256xbf16>,
    %c96_74 = arith.constant 96 : index
    %c0_75 = arith.constant 0 : index
    %86 = vector.load %arg19[%c96_74, %c0_75] : memref<128x256xbf16, #tpu.memory_space<vmem>>, vector<32x256xbf16>
    tpu.vector_store %arg19[%c96_74, %c0_75], %84 {strides = array<i32>} : memref<128x256xbf16, #tpu.memory_space<vmem>>, vector<32x256xbf16>,
    %c0_76 = arith.constant 0 : index
    %c0_77 = arith.constant 0 : index
    %87 = vector.load %arg20[%c0_76, %c0_77] : memref<128x256xbf16, #tpu.memory_space<vmem>>, vector<32x256xbf16>
    tpu.vector_store %arg20[%c0_76, %c0_77], %84 {strides = array<i32>} : memref<128x256xbf16, #tpu.memory_space<vmem>>, vector<32x256xbf16>,
    %c96_78 = arith.constant 96 : index
    %c0_79 = arith.constant 0 : index
    %88 = vector.load %arg20[%c96_78, %c0_79] : memref<128x256xbf16, #tpu.memory_space<vmem>>, vector<32x256xbf16>
    tpu.vector_store %arg20[%c96_78, %c0_79], %84 {strides = array<i32>} : memref<128x256xbf16, #tpu.memory_space<vmem>>, vector<32x256xbf16>,
    %89 = vector.extract_strided_slice %82 {offsets = [0, 0], sizes = [16, 256], strides = [1, 1]} : vector<128x256xbf16> to vector<16x256xbf16>
    %c32_80 = arith.constant 32 : index
    %c0_81 = arith.constant 0 : index
    %90 = vector.load %arg19[%c32_80, %c0_81] : memref<128x256xbf16, #tpu.memory_space<vmem>>, vector<16x256xbf16>
    tpu.vector_store %arg19[%c32_80, %c0_81], %89 {strides = array<i32>} : memref<128x256xbf16, #tpu.memory_space<vmem>>, vector<16x256xbf16>,
    %91 = vector.extract_strided_slice %82 {offsets = [16, 0], sizes = [16, 256], strides = [1, 1]} : vector<128x256xbf16> to vector<16x256xbf16>
    %c32_82 = arith.constant 32 : index
    %c0_83 = arith.constant 0 : index
    %92 = vector.load %arg20[%c32_82, %c0_83] : memref<128x256xbf16, #tpu.memory_space<vmem>>, vector<16x256xbf16>
    tpu.vector_store %arg20[%c32_82, %c0_83], %91 {strides = array<i32>} : memref<128x256xbf16, #tpu.memory_space<vmem>>, vector<16x256xbf16>,
    %93 = vector.extract_strided_slice %82 {offsets = [32, 0], sizes = [16, 256], strides = [1, 1]} : vector<128x256xbf16> to vector<16x256xbf16>
    %c48_84 = arith.constant 48 : index
    %c0_85 = arith.constant 0 : index
    %94 = vector.load %arg19[%c48_84, %c0_85] : memref<128x256xbf16, #tpu.memory_space<vmem>>, vector<16x256xbf16>
    tpu.vector_store %arg19[%c48_84, %c0_85], %93 {strides = array<i32>} : memref<128x256xbf16, #tpu.memory_space<vmem>>, vector<16x256xbf16>,
    %95 = vector.extract_strided_slice %82 {offsets = [48, 0], sizes = [16, 256], strides = [1, 1]} : vector<128x256xbf16> to vector<16x256xbf16>
    %c48_86 = arith.constant 48 : index
    %c0_87 = arith.constant 0 : index
    %96 = vector.load %arg20[%c48_86, %c0_87] : memref<128x256xbf16, #tpu.memory_space<vmem>>, vector<16x256xbf16>
    tpu.vector_store %arg20[%c48_86, %c0_87], %95 {strides = array<i32>} : memref<128x256xbf16, #tpu.memory_space<vmem>>, vector<16x256xbf16>,
    %97 = vector.extract_strided_slice %82 {offsets = [64, 0], sizes = [16, 256], strides = [1, 1]} : vector<128x256xbf16> to vector<16x256xbf16>
    %c64_88 = arith.constant 64 : index
    %c0_89 = arith.constant 0 : index
    %98 = vector.load %arg19[%c64_88, %c0_89] : memref<128x256xbf16, #tpu.memory_space<vmem>>, vector<16x256xbf16>
    tpu.vector_store %arg19[%c64_88, %c0_89], %97 {strides = array<i32>} : memref<128x256xbf16, #tpu.memory_space<vmem>>, vector<16x256xbf16>,
    %99 = vector.extract_strided_slice %82 {offsets = [80, 0], sizes = [16, 256], strides = [1, 1]} : vector<128x256xbf16> to vector<16x256xbf16>
    %c64_90 = arith.constant 64 : index
    %c0_91 = arith.constant 0 : index
    %100 = vector.load %arg20[%c64_90, %c0_91] : memref<128x256xbf16, #tpu.memory_space<vmem>>, vector<16x256xbf16>
    tpu.vector_store %arg20[%c64_90, %c0_91], %99 {strides = array<i32>} : memref<128x256xbf16, #tpu.memory_space<vmem>>, vector<16x256xbf16>,
    %101 = vector.extract_strided_slice %82 {offsets = [96, 0], sizes = [16, 256], strides = [1, 1]} : vector<128x256xbf16> to vector<16x256xbf16>
    %c80_92 = arith.constant 80 : index
    %c0_93 = arith.constant 0 : index
    %102 = vector.load %arg19[%c80_92, %c0_93] : memref<128x256xbf16, #tpu.memory_space<vmem>>, vector<16x256xbf16>
    tpu.vector_store %arg19[%c80_92, %c0_93], %101 {strides = array<i32>} : memref<128x256xbf16, #tpu.memory_space<vmem>>, vector<16x256xbf16>,
    %103 = vector.extract_strided_slice %82 {offsets = [112, 0], sizes = [16, 256], strides = [1, 1]} : vector<128x256xbf16> to vector<16x256xbf16>
    %c80_94 = arith.constant 80 : index
    %c0_95 = arith.constant 0 : index
    %104 = vector.load %arg20[%c80_94, %c0_95] : memref<128x256xbf16, #tpu.memory_space<vmem>>, vector<16x256xbf16>
    tpu.vector_store %arg20[%c80_94, %c0_95], %103 {strides = array<i32>} : memref<128x256xbf16, #tpu.memory_space<vmem>>, vector<16x256xbf16>,
    %c0_96 = arith.constant 0 : index
    %c0_97 = arith.constant 0 : index
    %105 = vector.load %arg19[%c0_96, %c0_97] : memref<128x256xbf16, #tpu.memory_space<vmem>>, vector<64x256xbf16>
    %c0_98 = arith.constant 0 : index
    %c0_99 = arith.constant 0 : index
    %c0_100 = arith.constant 0 : index
    %106 = vector.load %arg11[%c0_98, %c0_99, %c0_100] : memref<9x256x256xbf16, #tpu.memory_space<vmem>>, vector<1x256x256xbf16>
    %107 = vector.shape_cast %106 : vector<1x256x256xbf16> to vector<256x256xbf16>
    %cst_101 = arith.constant dense<0.000000e+00> : vector<64x256xf32>
    %108 = tpu.matmul %105, %107, %cst_101 {dimension_numbers = #tpu.dot_dimension_numbers<[1], [0], [0], [1], [0, 0, 1, 1], [], []>} : vector<64x256xbf16>, vector<256x256xbf16>, vector<64x256xf32> -> vector<64x256xf32>
    %109 = arith.addf %83, %108 : vector<64x256xf32>
    %c0_102 = arith.constant 0 : index
    %c0_103 = arith.constant 0 : index
    %110 = vector.load %arg20[%c0_102, %c0_103] : memref<128x256xbf16, #tpu.memory_space<vmem>>, vector<64x256xbf16>
    %c1_104 = arith.constant 1 : index
    %c0_105 = arith.constant 0 : index
    %c0_106 = arith.constant 0 : index
    %111 = vector.load %arg11[%c1_104, %c0_105, %c0_106] : memref<9x256x256xbf16, #tpu.memory_space<vmem>>, vector<1x256x256xbf16>
    %112 = vector.shape_cast %111 : vector<1x256x256xbf16> to vector<256x256xbf16>
    %cst_107 = arith.constant dense<0.000000e+00> : vector<64x256xf32>
    %113 = tpu.matmul %110, %112, %cst_107 {dimension_numbers = #tpu.dot_dimension_numbers<[1], [0], [0], [1], [0, 0, 1, 1], [], []>} : vector<64x256xbf16>, vector<256x256xbf16>, vector<64x256xf32> -> vector<64x256xf32>
    %114 = arith.addf %109, %113 : vector<64x256xf32>
    %c16_108 = arith.constant 16 : index
    %c0_109 = arith.constant 0 : index
    %115 = vector.load %arg19[%c16_108, %c0_109] : memref<128x256xbf16, #tpu.memory_space<vmem>>, vector<64x256xbf16>
    %c2_110 = arith.constant 2 : index
    %c0_111 = arith.constant 0 : index
    %c0_112 = arith.constant 0 : index
    %116 = vector.load %arg11[%c2_110, %c0_111, %c0_112] : memref<9x256x256xbf16, #tpu.memory_space<vmem>>, vector<1x256x256xbf16>
    %117 = vector.shape_cast %116 : vector<1x256x256xbf16> to vector<256x256xbf16>
    %cst_113 = arith.constant dense<0.000000e+00> : vector<64x256xf32>
    %118 = tpu.matmul %115, %117, %cst_113 {dimension_numbers = #tpu.dot_dimension_numbers<[1], [0], [0], [1], [0, 0, 1, 1], [], []>} : vector<64x256xbf16>, vector<256x256xbf16>, vector<64x256xf32> -> vector<64x256xf32>
    %119 = arith.addf %114, %118 : vector<64x256xf32>
    %c16_114 = arith.constant 16 : index
    %c0_115 = arith.constant 0 : index
    %120 = vector.load %arg20[%c16_114, %c0_115] : memref<128x256xbf16, #tpu.memory_space<vmem>>, vector<64x256xbf16>
    %c3_116 = arith.constant 3 : index
    %c0_117 = arith.constant 0 : index
    %c0_118 = arith.constant 0 : index
    %121 = vector.load %arg11[%c3_116, %c0_117, %c0_118] : memref<9x256x256xbf16, #tpu.memory_space<vmem>>, vector<1x256x256xbf16>
    %122 = vector.shape_cast %121 : vector<1x256x256xbf16> to vector<256x256xbf16>
    %cst_119 = arith.constant dense<0.000000e+00> : vector<64x256xf32>
    %123 = tpu.matmul %120, %122, %cst_119 {dimension_numbers = #tpu.dot_dimension_numbers<[1], [0], [0], [1], [0, 0, 1, 1], [], []>} : vector<64x256xbf16>, vector<256x256xbf16>, vector<64x256xf32> -> vector<64x256xf32>
    %124 = arith.addf %119, %123 : vector<64x256xf32>
    %c32_120 = arith.constant 32 : index
    %c0_121 = arith.constant 0 : index
    %125 = vector.load %arg19[%c32_120, %c0_121] : memref<128x256xbf16, #tpu.memory_space<vmem>>, vector<64x256xbf16>
    %c4_122 = arith.constant 4 : index
    %c0_123 = arith.constant 0 : index
    %c0_124 = arith.constant 0 : index
    %126 = vector.load %arg11[%c4_122, %c0_123, %c0_124] : memref<9x256x256xbf16, #tpu.memory_space<vmem>>, vector<1x256x256xbf16>
    %127 = vector.shape_cast %126 : vector<1x256x256xbf16> to vector<256x256xbf16>
    %cst_125 = arith.constant dense<0.000000e+00> : vector<64x256xf32>
    %128 = tpu.matmul %125, %127, %cst_125 {dimension_numbers = #tpu.dot_dimension_numbers<[1], [0], [0], [1], [0, 0, 1, 1], [], []>} : vector<64x256xbf16>, vector<256x256xbf16>, vector<64x256xf32> -> vector<64x256xf32>
    %129 = arith.addf %124, %128 : vector<64x256xf32>
    %c32_126 = arith.constant 32 : index
    %c0_127 = arith.constant 0 : index
    %130 = vector.load %arg20[%c32_126, %c0_127] : memref<128x256xbf16, #tpu.memory_space<vmem>>, vector<64x256xbf16>
    %c5_128 = arith.constant 5 : index
    %c0_129 = arith.constant 0 : index
    %c0_130 = arith.constant 0 : index
    %131 = vector.load %arg11[%c5_128, %c0_129, %c0_130] : memref<9x256x256xbf16, #tpu.memory_space<vmem>>, vector<1x256x256xbf16>
    %132 = vector.shape_cast %131 : vector<1x256x256xbf16> to vector<256x256xbf16>
    %cst_131 = arith.constant dense<0.000000e+00> : vector<64x256xf32>
    %133 = tpu.matmul %130, %132, %cst_131 {dimension_numbers = #tpu.dot_dimension_numbers<[1], [0], [0], [1], [0, 0, 1, 1], [], []>} : vector<64x256xbf16>, vector<256x256xbf16>, vector<64x256xf32> -> vector<64x256xf32>
    %134 = arith.addf %129, %133 : vector<64x256xf32>
    %c48_132 = arith.constant 48 : index
    %c0_133 = arith.constant 0 : index
    %135 = vector.load %arg19[%c48_132, %c0_133] : memref<128x256xbf16, #tpu.memory_space<vmem>>, vector<64x256xbf16>
    %c6_134 = arith.constant 6 : index
    %c0_135 = arith.constant 0 : index
    %c0_136 = arith.constant 0 : index
    %136 = vector.load %arg11[%c6_134, %c0_135, %c0_136] : memref<9x256x256xbf16, #tpu.memory_space<vmem>>, vector<1x256x256xbf16>
    %137 = vector.shape_cast %136 : vector<1x256x256xbf16> to vector<256x256xbf16>
    %cst_137 = arith.constant dense<0.000000e+00> : vector<64x256xf32>
    %138 = tpu.matmul %135, %137, %cst_137 {dimension_numbers = #tpu.dot_dimension_numbers<[1], [0], [0], [1], [0, 0, 1, 1], [], []>} : vector<64x256xbf16>, vector<256x256xbf16>, vector<64x256xf32> -> vector<64x256xf32>
    %139 = arith.addf %134, %138 : vector<64x256xf32>
    %c48_138 = arith.constant 48 : index
    %c0_139 = arith.constant 0 : index
    %140 = vector.load %arg20[%c48_138, %c0_139] : memref<128x256xbf16, #tpu.memory_space<vmem>>, vector<64x256xbf16>
    %c7_140 = arith.constant 7 : index
    %c0_141 = arith.constant 0 : index
    %c0_142 = arith.constant 0 : index
    %141 = vector.load %arg11[%c7_140, %c0_141, %c0_142] : memref<9x256x256xbf16, #tpu.memory_space<vmem>>, vector<1x256x256xbf16>
    %142 = vector.shape_cast %141 : vector<1x256x256xbf16> to vector<256x256xbf16>
    %cst_143 = arith.constant dense<0.000000e+00> : vector<64x256xf32>
    %143 = tpu.matmul %140, %142, %cst_143 {dimension_numbers = #tpu.dot_dimension_numbers<[1], [0], [0], [1], [0, 0, 1, 1], [], []>} : vector<64x256xbf16>, vector<256x256xbf16>, vector<64x256xf32> -> vector<64x256xf32>
    %144 = arith.addf %139, %143 : vector<64x256xf32>
    %c64_144 = arith.constant 64 : index
    %c0_145 = arith.constant 0 : index
    %145 = vector.load %arg19[%c64_144, %c0_145] : memref<128x256xbf16, #tpu.memory_space<vmem>>, vector<64x256xbf16>
    %c8_146 = arith.constant 8 : index
    %c0_147 = arith.constant 0 : index
    %c0_148 = arith.constant 0 : index
    %146 = vector.load %arg11[%c8_146, %c0_147, %c0_148] : memref<9x256x256xbf16, #tpu.memory_space<vmem>>, vector<1x256x256xbf16>
    %147 = vector.shape_cast %146 : vector<1x256x256xbf16> to vector<256x256xbf16>
    %cst_149 = arith.constant dense<0.000000e+00> : vector<64x256xf32>
    %148 = tpu.matmul %145, %147, %cst_149 {dimension_numbers = #tpu.dot_dimension_numbers<[1], [0], [0], [1], [0, 0, 1, 1], [], []>} : vector<64x256xbf16>, vector<256x256xbf16>, vector<64x256xf32> -> vector<64x256xf32>
    %149 = arith.addf %144, %148 : vector<64x256xf32>
    %150 = vector.broadcast %74 : vector<1x256xf32> to vector<64x256xf32>
    %151 = arith.addf %149, %150 : vector<64x256xf32>
    %cst_150 = arith.constant 0.000000e+00 : f32
    %152 = vector.broadcast %cst_150 : f32 to vector<64x256xf32>
    %153 = arith.maximumf %151, %152 : vector<64x256xf32>
    %154 = arith.truncf %153 : vector<64x256xf32> to vector<64x256xbf16>
    %c0_151 = arith.constant 0 : index
    %c0_152 = arith.constant 0 : index
    %155 = vector.load %arg4[%c0_151, %c0_152] : memref<64x64xbf16, #tpu.memory_space<vmem>>, vector<64x64xbf16>
    %c0_153 = arith.constant 0 : index
    %c0_154 = arith.constant 0 : index
    %156 = vector.load %arg13[%c0_153, %c0_154] : memref<256x64xbf16, #tpu.memory_space<vmem>>, vector<256x64xbf16>
    %c0_155 = arith.constant 0 : index
    %c0_156 = arith.constant 0 : index
    %157 = vector.load %arg14[%c0_155, %c0_156] : memref<1x64xf32, #tpu.memory_space<vmem>>, vector<1x64xf32>
    %c0_157 = arith.constant 0 : index
    %c0_158 = arith.constant 0 : index
    %158 = vector.load %arg16[%c0_157, %c0_158] : memref<1x64xf32, #tpu.memory_space<vmem>>, vector<1x64xf32>
    %cst_159 = arith.constant dense<0.000000e+00> : vector<64x256xf32>
    %159 = tpu.matmul %155, %154, %cst_159 {dimension_numbers = #tpu.dot_dimension_numbers<[1], [0], [0], [1], [0, 0, 1, 1], [], []>} : vector<64x64xbf16>, vector<64x256xbf16>, vector<64x256xf32> -> vector<64x256xf32>
    %160 = arith.truncf %159 : vector<64x256xf32> to vector<64x256xbf16>
    %cst_160 = arith.constant dense<0.000000e+00> : vector<64x64xf32>
    %161 = tpu.matmul %160, %156, %cst_160 {dimension_numbers = #tpu.dot_dimension_numbers<[1], [0], [0], [1], [0, 0, 1, 1], [], []>} : vector<64x256xbf16>, vector<256x64xbf16>, vector<64x64xf32> -> vector<64x64xf32>
    %162 = vector.broadcast %157 : vector<1x64xf32> to vector<64x64xf32>
    %163 = arith.addf %161, %162 : vector<64x64xf32>
    %cst_161 = arith.constant 0.000000e+00 : f32
    %164 = vector.broadcast %cst_161 : f32 to vector<64x64xf32>
    %165 = arith.maximumf %163, %164 : vector<64x64xf32>
    %166 = arith.truncf %165 : vector<64x64xf32> to vector<64x64xbf16>
    %cst_162 = arith.constant 0.000000e+00 : f32
    %167 = vector.broadcast %cst_162 : f32 to vector<64x64xf32>
    %cst_163 = arith.constant 0.000000e+00 : bf16
    %168 = vector.broadcast %cst_163 : bf16 to vector<64x64xbf16>
    %c0_164 = arith.constant 0 : index
    %c0_165 = arith.constant 0 : index
    %169 = vector.load %arg21[%c0_164, %c0_165] : memref<192x64xbf16, #tpu.memory_space<vmem>>, vector<64x64xbf16>
    tpu.vector_store %arg21[%c0_164, %c0_165], %168 {strides = array<i32>} : memref<192x64xbf16, #tpu.memory_space<vmem>>, vector<64x64xbf16>,
    %c64_166 = arith.constant 64 : index
    %c0_167 = arith.constant 0 : index
    %170 = vector.load %arg21[%c64_166, %c0_167] : memref<192x64xbf16, #tpu.memory_space<vmem>>, vector<64x64xbf16>
    tpu.vector_store %arg21[%c64_166, %c0_167], %166 {strides = array<i32>} : memref<192x64xbf16, #tpu.memory_space<vmem>>, vector<64x64xbf16>,
    %cst_168 = arith.constant 0.000000e+00 : bf16
    %171 = vector.broadcast %cst_168 : bf16 to vector<64x64xbf16>
    %c128_169 = arith.constant 128 : index
    %c0_170 = arith.constant 0 : index
    %172 = vector.load %arg21[%c128_169, %c0_170] : memref<192x64xbf16, #tpu.memory_space<vmem>>, vector<64x64xbf16>
    tpu.vector_store %arg21[%c128_169, %c0_170], %171 {strides = array<i32>} : memref<192x64xbf16, #tpu.memory_space<vmem>>, vector<64x64xbf16>,
    %c0_171 = arith.constant 0 : index
    %c0_172 = arith.constant 0 : index
    %173 = vector.load %arg21[%c0_171, %c0_172] : memref<192x64xbf16, #tpu.memory_space<vmem>>, vector<64x64xbf16>
    %c0_173 = arith.constant 0 : index
    %c0_174 = arith.constant 0 : index
    %c0_175 = arith.constant 0 : index
    %174 = vector.load %arg15[%c0_173, %c0_174, %c0_175] : memref<9x64x64xbf16, #tpu.memory_space<vmem>>, vector<1x64x64xbf16>
    %175 = vector.shape_cast %174 : vector<1x64x64xbf16> to vector<64x64xbf16>
    %cst_176 = arith.constant dense<0.000000e+00> : vector<64x64xf32>
    %176 = tpu.matmul %173, %175, %cst_176 {dimension_numbers = #tpu.dot_dimension_numbers<[1], [0], [0], [1], [0, 0, 1, 1], [], []>} : vector<64x64xbf16>, vector<64x64xbf16>, vector<64x64xf32> -> vector<64x64xf32>
    %177 = arith.addf %167, %176 : vector<64x64xf32>
    %c16_177 = arith.constant 16 : index
    %c0_178 = arith.constant 0 : index
    %178 = vector.load %arg21[%c16_177, %c0_178] : memref<192x64xbf16, #tpu.memory_space<vmem>>, vector<64x64xbf16>
    %c1_179 = arith.constant 1 : index
    %c0_180 = arith.constant 0 : index
    %c0_181 = arith.constant 0 : index
    %179 = vector.load %arg15[%c1_179, %c0_180, %c0_181] : memref<9x64x64xbf16, #tpu.memory_space<vmem>>, vector<1x64x64xbf16>
    %180 = vector.shape_cast %179 : vector<1x64x64xbf16> to vector<64x64xbf16>
    %cst_182 = arith.constant dense<0.000000e+00> : vector<64x64xf32>
    %181 = tpu.matmul %178, %180, %cst_182 {dimension_numbers = #tpu.dot_dimension_numbers<[1], [0], [0], [1], [0, 0, 1, 1], [], []>} : vector<64x64xbf16>, vector<64x64xbf16>, vector<64x64xf32> -> vector<64x64xf32>
    %182 = arith.addf %177, %181 : vector<64x64xf32>
    %c32_183 = arith.constant 32 : index
    %c0_184 = arith.constant 0 : index
    %183 = vector.load %arg21[%c32_183, %c0_184] : memref<192x64xbf16, #tpu.memory_space<vmem>>, vector<64x64xbf16>
    %c2_185 = arith.constant 2 : index
    %c0_186 = arith.constant 0 : index
    %c0_187 = arith.constant 0 : index
    %184 = vector.load %arg15[%c2_185, %c0_186, %c0_187] : memref<9x64x64xbf16, #tpu.memory_space<vmem>>, vector<1x64x64xbf16>
    %185 = vector.shape_cast %184 : vector<1x64x64xbf16> to vector<64x64xbf16>
    %cst_188 = arith.constant dense<0.000000e+00> : vector<64x64xf32>
    %186 = tpu.matmul %183, %185, %cst_188 {dimension_numbers = #tpu.dot_dimension_numbers<[1], [0], [0], [1], [0, 0, 1, 1], [], []>} : vector<64x64xbf16>, vector<64x64xbf16>, vector<64x64xf32> -> vector<64x64xf32>
    %187 = arith.addf %182, %186 : vector<64x64xf32>
    %c48_189 = arith.constant 48 : index
    %c0_190 = arith.constant 0 : index
    %188 = vector.load %arg21[%c48_189, %c0_190] : memref<192x64xbf16, #tpu.memory_space<vmem>>, vector<64x64xbf16>
    %c3_191 = arith.constant 3 : index
    %c0_192 = arith.constant 0 : index
    %c0_193 = arith.constant 0 : index
    %189 = vector.load %arg15[%c3_191, %c0_192, %c0_193] : memref<9x64x64xbf16, #tpu.memory_space<vmem>>, vector<1x64x64xbf16>
    %190 = vector.shape_cast %189 : vector<1x64x64xbf16> to vector<64x64xbf16>
    %cst_194 = arith.constant dense<0.000000e+00> : vector<64x64xf32>
    %191 = tpu.matmul %188, %190, %cst_194 {dimension_numbers = #tpu.dot_dimension_numbers<[1], [0], [0], [1], [0, 0, 1, 1], [], []>} : vector<64x64xbf16>, vector<64x64xbf16>, vector<64x64xf32> -> vector<64x64xf32>
    %192 = arith.addf %187, %191 : vector<64x64xf32>
    %c64_195 = arith.constant 64 : index
    %c0_196 = arith.constant 0 : index
    %193 = vector.load %arg21[%c64_195, %c0_196] : memref<192x64xbf16, #tpu.memory_space<vmem>>, vector<64x64xbf16>
    %c4_197 = arith.constant 4 : index
    %c0_198 = arith.constant 0 : index
    %c0_199 = arith.constant 0 : index
    %194 = vector.load %arg15[%c4_197, %c0_198, %c0_199] : memref<9x64x64xbf16, #tpu.memory_space<vmem>>, vector<1x64x64xbf16>
    %195 = vector.shape_cast %194 : vector<1x64x64xbf16> to vector<64x64xbf16>
    %cst_200 = arith.constant dense<0.000000e+00> : vector<64x64xf32>
    %196 = tpu.matmul %193, %195, %cst_200 {dimension_numbers = #tpu.dot_dimension_numbers<[1], [0], [0], [1], [0, 0, 1, 1], [], []>} : vector<64x64xbf16>, vector<64x64xbf16>, vector<64x64xf32> -> vector<64x64xf32>
    %197 = arith.addf %192, %196 : vector<64x64xf32>
    %c80_201 = arith.constant 80 : index
    %c0_202 = arith.constant 0 : index
    %198 = vector.load %arg21[%c80_201, %c0_202] : memref<192x64xbf16, #tpu.memory_space<vmem>>, vector<64x64xbf16>
    %c5_203 = arith.constant 5 : index
    %c0_204 = arith.constant 0 : index
    %c0_205 = arith.constant 0 : index
    %199 = vector.load %arg15[%c5_203, %c0_204, %c0_205] : memref<9x64x64xbf16, #tpu.memory_space<vmem>>, vector<1x64x64xbf16>
    %200 = vector.shape_cast %199 : vector<1x64x64xbf16> to vector<64x64xbf16>
    %cst_206 = arith.constant dense<0.000000e+00> : vector<64x64xf32>
    %201 = tpu.matmul %198, %200, %cst_206 {dimension_numbers = #tpu.dot_dimension_numbers<[1], [0], [0], [1], [0, 0, 1, 1], [], []>} : vector<64x64xbf16>, vector<64x64xbf16>, vector<64x64xf32> -> vector<64x64xf32>
    %202 = arith.addf %197, %201 : vector<64x64xf32>
    %c96_207 = arith.constant 96 : index
    %c0_208 = arith.constant 0 : index
    %203 = vector.load %arg21[%c96_207, %c0_208] : memref<192x64xbf16, #tpu.memory_space<vmem>>, vector<64x64xbf16>
    %c6_209 = arith.constant 6 : index
    %c0_210 = arith.constant 0 : index
    %c0_211 = arith.constant 0 : index
    %204 = vector.load %arg15[%c6_209, %c0_210, %c0_211] : memref<9x64x64xbf16, #tpu.memory_space<vmem>>, vector<1x64x64xbf16>
    %205 = vector.shape_cast %204 : vector<1x64x64xbf16> to vector<64x64xbf16>
    %cst_212 = arith.constant dense<0.000000e+00> : vector<64x64xf32>
    %206 = tpu.matmul %203, %205, %cst_212 {dimension_numbers = #tpu.dot_dimension_numbers<[1], [0], [0], [1], [0, 0, 1, 1], [], []>} : vector<64x64xbf16>, vector<64x64xbf16>, vector<64x64xf32> -> vector<64x64xf32>
    %207 = arith.addf %202, %206 : vector<64x64xf32>
    %c112_213 = arith.constant 112 : index
    %c0_214 = arith.constant 0 : index
    %208 = vector.load %arg21[%c112_213, %c0_214] : memref<192x64xbf16, #tpu.memory_space<vmem>>, vector<64x64xbf16>
    %c7_215 = arith.constant 7 : index
    %c0_216 = arith.constant 0 : index
    %c0_217 = arith.constant 0 : index
    %209 = vector.load %arg15[%c7_215, %c0_216, %c0_217] : memref<9x64x64xbf16, #tpu.memory_space<vmem>>, vector<1x64x64xbf16>
    %210 = vector.shape_cast %209 : vector<1x64x64xbf16> to vector<64x64xbf16>
    %cst_218 = arith.constant dense<0.000000e+00> : vector<64x64xf32>
    %211 = tpu.matmul %208, %210, %cst_218 {dimension_numbers = #tpu.dot_dimension_numbers<[1], [0], [0], [1], [0, 0, 1, 1], [], []>} : vector<64x64xbf16>, vector<64x64xbf16>, vector<64x64xf32> -> vector<64x64xf32>
    %212 = arith.addf %207, %211 : vector<64x64xf32>
    %c128_219 = arith.constant 128 : index
    %c0_220 = arith.constant 0 : index
    %213 = vector.load %arg21[%c128_219, %c0_220] : memref<192x64xbf16, #tpu.memory_space<vmem>>, vector<64x64xbf16>
    %c8_221 = arith.constant 8 : index
    %c0_222 = arith.constant 0 : index
    %c0_223 = arith.constant 0 : index
    %214 = vector.load %arg15[%c8_221, %c0_222, %c0_223] : memref<9x64x64xbf16, #tpu.memory_space<vmem>>, vector<1x64x64xbf16>
    %215 = vector.shape_cast %214 : vector<1x64x64xbf16> to vector<64x64xbf16>
    %cst_224 = arith.constant dense<0.000000e+00> : vector<64x64xf32>
    %216 = tpu.matmul %213, %215, %cst_224 {dimension_numbers = #tpu.dot_dimension_numbers<[1], [0], [0], [1], [0, 0, 1, 1], [], []>} : vector<64x64xbf16>, vector<64x64xbf16>, vector<64x64xf32> -> vector<64x64xf32>
    %217 = arith.addf %212, %216 : vector<64x64xf32>
    %218 = vector.broadcast %158 : vector<1x64xf32> to vector<64x64xf32>
    %219 = arith.addf %217, %218 : vector<64x64xf32>
    %cst_225 = arith.constant 0.000000e+00 : f32
    %220 = vector.broadcast %cst_225 : f32 to vector<64x64xf32>
    %221 = arith.maximumf %219, %220 : vector<64x64xf32>
    %222 = vector.extract_strided_slice %221 {offsets = [0, 0], sizes = [16, 64], strides = [1, 1]} : vector<64x64xf32> to vector<16x64xf32>
    %223 = vector.extract_strided_slice %221 {offsets = [16, 0], sizes = [16, 64], strides = [1, 1]} : vector<64x64xf32> to vector<16x64xf32>
    %224 = arith.addf %222, %223 : vector<16x64xf32>
    %225 = vector.extract_strided_slice %221 {offsets = [32, 0], sizes = [16, 64], strides = [1, 1]} : vector<64x64xf32> to vector<16x64xf32>
    %226 = arith.addf %224, %225 : vector<16x64xf32>
    %227 = vector.extract_strided_slice %221 {offsets = [48, 0], sizes = [16, 64], strides = [1, 1]} : vector<64x64xf32> to vector<16x64xf32>
    %228 = arith.addf %226, %227 : vector<16x64xf32>
    %cst_226 = arith.constant 2.500000e-01 : f32
    %229 = vector.broadcast %cst_226 : f32 to vector<16x64xf32>
    %230 = arith.mulf %228, %229 : vector<16x64xf32>
    %c0_227 = arith.constant 0 : index
    %c0_228 = arith.constant 0 : index
    %c0_229 = arith.constant 0 : index
    %231 = vector.load %arg17[%c0_227, %c0_228, %c0_229] : memref<1x16x64xf32, #tpu.memory_space<vmem>>, vector<1x16x64xf32>
    %232 = vector.shape_cast %231 : vector<1x16x64xf32> to vector<16x64xf32>
    %233 = vector.shape_cast %230 : vector<16x64xf32> to vector<1x16x64xf32>
    tpu.vector_store %arg17[%c0_227, %c0_228, %c0_229], %233 {strides = array<i32>} : memref<1x16x64xf32, #tpu.memory_space<vmem>>, vector<1x16x64xf32>,
    return
  }
  func.func @transform_0(%arg0: i32) -> (i32, i32, i32) {
    %c0_i32 = arith.constant 0 : i32
    %c0_i32_0 = arith.constant 0 : i32
    %c0_i32_1 = arith.constant 0 : i32
    return %arg0, %c0_i32, %c0_i32_0 : i32, i32, i32
  }
  func.func @transform_1(%arg0: i32) -> (i32, i32) {
    %c0_i32 = arith.constant 0 : i32
    %c0_i32_0 = arith.constant 0 : i32
    %c0_i32_1 = arith.constant 0 : i32
    return %c0_i32, %c0_i32_0 : i32, i32
  }
  func.func @transform_2(%arg0: i32) -> (i32, i32) {
    %c0_i32 = arith.constant 0 : i32
    %c0_i32_0 = arith.constant 0 : i32
    %c0_i32_1 = arith.constant 0 : i32
    return %c0_i32, %c0_i32_0 : i32, i32
  }
  func.func @transform_3(%arg0: i32) -> (i32, i32) {
    %c0_i32 = arith.constant 0 : i32
    %c0_i32_0 = arith.constant 0 : i32
    %c0_i32_1 = arith.constant 0 : i32
    return %c0_i32, %c0_i32_0 : i32, i32
  }
  func.func @transform_4(%arg0: i32) -> (i32, i32) {
    %c0_i32 = arith.constant 0 : i32
    %c0_i32_0 = arith.constant 0 : i32
    %c0_i32_1 = arith.constant 0 : i32
    return %c0_i32, %c0_i32_0 : i32, i32
  }
  func.func @transform_5(%arg0: i32) -> (i32, i32) {
    %c0_i32 = arith.constant 0 : i32
    %c0_i32_0 = arith.constant 0 : i32
    %c0_i32_1 = arith.constant 0 : i32
    return %c0_i32, %c0_i32_0 : i32, i32
  }
  func.func @transform_6(%arg0: i32) -> (i32, i32, i32) {
    %c0_i32 = arith.constant 0 : i32
    %c0_i32_0 = arith.constant 0 : i32
    %c0_i32_1 = arith.constant 0 : i32
    %c0_i32_2 = arith.constant 0 : i32
    return %c0_i32, %c0_i32_0, %c0_i32_1 : i32, i32, i32
  }
  func.func @transform_7(%arg0: i32) -> (i32, i32) {
    %c0_i32 = arith.constant 0 : i32
    %c0_i32_0 = arith.constant 0 : i32
    %c0_i32_1 = arith.constant 0 : i32
    return %c0_i32, %c0_i32_0 : i32, i32
  }
  func.func @transform_8(%arg0: i32) -> (i32, i32) {
    %c0_i32 = arith.constant 0 : i32
    %c0_i32_0 = arith.constant 0 : i32
    %c0_i32_1 = arith.constant 0 : i32
    return %c0_i32, %c0_i32_0 : i32, i32
  }
  func.func @transform_9(%arg0: i32) -> (i32, i32) {
    %c0_i32 = arith.constant 0 : i32
    %c0_i32_0 = arith.constant 0 : i32
    %c0_i32_1 = arith.constant 0 : i32
    return %c0_i32, %c0_i32_0 : i32, i32
  }
  func.func @transform_10(%arg0: i32) -> (i32, i32, i32) {
    %c0_i32 = arith.constant 0 : i32
    %c0_i32_0 = arith.constant 0 : i32
    %c0_i32_1 = arith.constant 0 : i32
    %c0_i32_2 = arith.constant 0 : i32
    return %c0_i32, %c0_i32_0, %c0_i32_1 : i32, i32, i32
  }
  func.func @transform_11(%arg0: i32) -> (i32, i32) {
    %c0_i32 = arith.constant 0 : i32
    %c0_i32_0 = arith.constant 0 : i32
    %c0_i32_1 = arith.constant 0 : i32
    return %c0_i32, %c0_i32_0 : i32, i32
  }
  func.func @transform_12(%arg0: i32) -> (i32, i32) {
    %c0_i32 = arith.constant 0 : i32
    %c0_i32_0 = arith.constant 0 : i32
    %c0_i32_1 = arith.constant 0 : i32
    return %c0_i32, %c0_i32_0 : i32, i32
  }
  func.func @transform_13(%arg0: i32) -> (i32, i32) {
    %c0_i32 = arith.constant 0 : i32
    %c0_i32_0 = arith.constant 0 : i32
    %c0_i32_1 = arith.constant 0 : i32
    return %c0_i32, %c0_i32_0 : i32, i32
  }
  func.func @transform_14(%arg0: i32) -> (i32, i32, i32) {
    %c0_i32 = arith.constant 0 : i32
    %c0_i32_0 = arith.constant 0 : i32
    %c0_i32_1 = arith.constant 0 : i32
    %c0_i32_2 = arith.constant 0 : i32
    return %c0_i32, %c0_i32_0, %c0_i32_1 : i32, i32, i32
  }
  func.func @transform_15(%arg0: i32) -> (i32, i32) {
    %c0_i32 = arith.constant 0 : i32
    %c0_i32_0 = arith.constant 0 : i32
    %c0_i32_1 = arith.constant 0 : i32
    return %c0_i32, %c0_i32_0 : i32, i32
  }
  func.func @transform_16(%arg0: i32) -> (i32, i32, i32) {
    %c0_i32 = arith.constant 0 : i32
    %c0_i32_0 = arith.constant 0 : i32
    %c0_i32_1 = arith.constant 0 : i32
    return %arg0, %c0_i32, %c0_i32_0 : i32, i32, i32
  }
}

</mosaic_0001>

<llo_original>
// kernel: tpu_custom_call.1
$region0: #{tpu_custom_call.1}
  #allocation0 [shape = 'u32[]', space=smem, size = 0x4, offset = 0x4, fixed_abs, tag = 'smem constant byte address 0x4 - core index']
  #allocation1 [shape = 'u32[72,128]{1,0:T(1,128)}', space=vmem, size = 0x9000, scoped, tag = 'internal scratch']
  #allocation2 [shape = 'bf16[256,128]{1,0:T(8,128)(2,1)}', space=vmem, size = 0x10000, scoped, tag = 'scratch operand']
  #allocation3 [shape = 'bf16[128,256]{1,0:T(8,128)(2,1)}', space=vmem, size = 0x10000, scoped, tag = 'scratch operand']
  #allocation4 [shape = 'bf16[128,256]{1,0:T(8,128)(2,1)}', space=vmem, size = 0x10000, scoped, tag = 'scratch operand']
  #allocation5 [shape = 'bf16[192,64]{1,0:T(8,128)(2,1)}', space=vmem, size = 0xc000, scoped, tag = 'scratch operand']
  %s0 = inlined_call_operand.vmem [shape: f32[2,128,4], index: 0, kind: input, shape index: {}]
  %s1 = inlined_call_operand.hbm [shape: bf16[128,128], index: 1, kind: input, shape index: {}]
  %s2 = inlined_call_operand.hbm [shape: bf16[128,128], index: 2, kind: input, shape index: {}]
  %s3 = inlined_call_operand.hbm [shape: bf16[64,64], index: 3, kind: input, shape index: {}]
  %s4 = inlined_call_operand.hbm [shape: bf16[4,128], index: 4, kind: input, shape index: {}]
  %s5 = inlined_call_operand.hbm [shape: f32[1,128], index: 5, kind: input, shape index: {}]
  %s6 = inlined_call_operand.hbm [shape: bf16[9,128,128], index: 6, kind: input, shape index: {}]
  %s7 = inlined_call_operand.hbm [shape: f32[1,128], index: 7, kind: input, shape index: {}]
  %s8 = inlined_call_operand.hbm [shape: bf16[128,256], index: 8, kind: input, shape index: {}]
  %s9 = inlined_call_operand.hbm [shape: f32[1,256], index: 9, kind: input, shape index: {}]
  %s10 = inlined_call_operand.hbm [shape: bf16[9,256,256], index: 10, kind: input, shape index: {}]
  %s11 = inlined_call_operand.hbm [shape: f32[1,256], index: 11, kind: input, shape index: {}]
  %s12 = inlined_call_operand.vmem [shape: bf16[256,64], index: 12, kind: input, shape index: {}]
  %s13 = inlined_call_operand.hbm [shape: f32[1,64], index: 13, kind: input, shape index: {}]
  %s14 = inlined_call_operand.hbm [shape: bf16[9,64,64], index: 14, kind: input, shape index: {}]
  %s15 = inlined_call_operand.hbm [shape: f32[1,64], index: 15, kind: input, shape index: {}]
  %s16 = inlined_call_operand.hbm [shape: f32[2,16,64], index: 16, kind: output, shape index: {}]
  %s17 = sld [smem:[#allocation0]]
  $region153: #{tpu_custom_call.1} parent=0
    _
  %s19 = ssub.s32 1, %s17
  %s20 = scalar_select 0, %s19, %s17
  $region1: #{tpu_custom_call.1} parent=0
    #allocation6 [shape = 'u8[32768]{0}', space=vmem, size = 0x8000, scoped, tag = 'input window, operand 1, single buffered']
    #allocation7 [shape = 's32[2]{0}', space=sflag, size = 0x8, scoped, tag = 'scoped memory for tpu_custom_call.1']
    #allocation8 [shape = 's32[2]{0}', space=sflag, size = 0x8, scoped, tag = 'scoped memory for tpu_custom_call.1']
    #allocation9 [shape = 'u8[32768]{0}', space=vmem, size = 0x8000, scoped, tag = 'input window, operand 2, single buffered']
    #allocation10 [shape = 's32[1]{0}', space=sflag, size = 0x4, scoped, tag = 'scoped memory for tpu_custom_call.1']
    #allocation11 [shape = 'u8[16384]{0}', space=vmem, size = 0x4000, scoped, tag = 'input window, operand 3, single buffered']
    #allocation12 [shape = 'u8[1024]{0}', space=vmem, size = 0x400, scoped, tag = 'input window, operand 4, single buffered']
    #allocation13 [shape = 's32[1]{0}', space=sflag, size = 0x4, scoped, tag = 'scoped memory for tpu_custom_call.1']
    #allocation14 [shape = 'u8[512]{0}', space=vmem, size = 0x400, scoped, tag = 'input window, operand 5, single buffered']
    #allocation15 [shape = 'u8[294912]{0}', space=vmem, size = 0x48000, scoped, tag = 'input window, operand 6, single buffered']
    #allocation16 [shape = 's32[1]{0}', space=sflag, size = 0x4, scoped, tag = 'scoped memory for tpu_custom_call.1']
    #allocation17 [shape = 'u8[512]{0}', space=vmem, size = 0x400, scoped, tag = 'input window, operand 7, single buffered']
    #allocation18 [shape = 'u8[65536]{0}', space=vmem, size = 0x10000, scoped, tag = 'input window, operand 8, single buffered']
    #allocation19 [shape = 's32[1]{0}', space=sflag, size = 0x4, scoped, tag = 'scoped memory for tpu_custom_call.1']
    #allocation20 [shape = 'u8[1024]{0}', space=vmem, size = 0x400, scoped, tag = 'input window, operand 9, single buffered']
    #allocation21 [shape = 'u8[1179648]{0}', space=vmem, size = 0x120000, scoped, tag = 'input window, operand 10, single buffered']
    #allocation22 [shape = 's32[1]{0}', space=sflag, size = 0x4, scoped, tag = 'scoped memory for tpu_custom_call.1']
    #allocation23 [shape = 'u8[1024]{0}', space=vmem, size = 0x400, scoped, tag = 'input window, operand 11, single buffered']
    #allocation24 [shape = 'u8[512]{0}', space=vmem, size = 0x400, scoped, tag = 'input window, operand 13, single buffered']
    #allocation25 [shape = 's32[1]{0}', space=sflag, size = 0x4, scoped, tag = 'scoped memory for tpu_custom_call.1']
    #allocation26 [shape = 'u8[147456]{0}', space=vmem, size = 0x24000, scoped, tag = 'input window, operand 14, single buffered']
    #allocation27 [shape = 'u8[512]{0}', space=vmem, size = 0x400, scoped, tag = 'input window, operand 15, single buffered']
    #allocation28 [shape = 's32[1]{0}', space=sflag, size = 0x4, scoped, tag = 'scoped memory for tpu_custom_call.1']
    #allocation29 [shape = 'u8[16384]{0}', space=vmem, size = 0x4000, scoped, tag = 'output window, operand 0']
    %21 = vsyncpa [#allocation7], 0
    %22 = vsyncpa [#allocation10], 0
    %23 = vsyncpa [#allocation13], 0
    %24 = vsyncpa [#allocation16], 0
    %25 = vsyncpa [#allocation19], 0
    %26 = vsyncpa [#allocation22], 0
    %27 = vsyncpa [#allocation25], 0
    %28 = vsyncpa [#allocation28], 0
    %29 = vsyncpa [#allocation8], 0
    %s30 = scalar_lea.sflag [#allocation8], 1
    %31 = vsyncpa %s30, 0
    loop: start=0, step=1, limit=4
    $region2: #{tpu_custom_call.1} parent=1 // loop_pre_header
      _
    $region3: #{tpu_custom_call.1} parent=1 // loop_header
      %s33 = sphi 0, %s37
      %p34 = scmp.ge.s32.totalorder %s33, 4
      %s43 = sphi 0, %s45
      %s46 = sphi 0, %s43
      %s47 = sphi 0, %s46
      %s63 = sphi 0, %s47
      %s67 = sphi 0, %s67
      %s69 = sphi 0, %s67
      %s70 = sphi 0, %s69
      %s84 = sphi 0, %s70
      %s88 = sphi 0, %s88
      %s90 = sphi 0, %s88
      %s91 = sphi 0, %s90
      %s105 = sphi 0, %s91
      %s109 = sphi 0, %s109
      %s111 = sphi 0, %s109
      %s112 = sphi 0, %s111
      %s126 = sphi 0, %s112
      %s130 = sphi 0, %s130
      %s132 = sphi 0, %s130
      %s133 = sphi 0, %s132
      %s147 = sphi 0, %s133
      %s151 = sphi 0, %s151
      %s153 = sphi 0, %s151
      %s154 = sphi 0, %s153
      %s168 = sphi 0, %s154
      %s172 = sphi 0, %s172
      %s174 = sphi 0, %s172
      %s175 = sphi 0, %s174
      %s189 = sphi 0, %s175
      %s193 = sphi 0, %s193
      %s195 = sphi 0, %s193
      %s196 = sphi 0, %s195
      %s210 = sphi 0, %s196
      %s214 = sphi 0, %s214
      %s216 = sphi 0, %s214
      %s217 = sphi 0, %s216
      %s231 = sphi 0, %s217
      %s235 = sphi 0, %s235
      %s237 = sphi 0, %s235
      %s238 = sphi 0, %s237
      %s252 = sphi 0, %s238
      %s256 = sphi 0, %s256
      %s258 = sphi 0, %s256
      %s259 = sphi 0, %s258
      %s273 = sphi 0, %s259
      %s277 = sphi 0, %s277
      %s279 = sphi 0, %s277
      %s280 = sphi 0, %s279
      %s294 = sphi 0, %s280
      %s298 = sphi 0, %s298
      %s300 = sphi 0, %s298
      %s301 = sphi 0, %s300
      %s315 = sphi 0, %s301
      %s319 = sphi 0, %s319
      %s321 = sphi 0, %s319
      %s322 = sphi 0, %s321
      %s336 = sphi 0, %s322
      %s340 = sphi 0, %s340
      %s342 = sphi 0, %s340
      %s343 = sphi 0, %s342
      %s357 = sphi 0, %s343
      %s361 = sphi 0, %s361
      %s363 = sphi 0, %s361
      %s364 = sphi 0, %s363
      %s378 = sphi 0, %s364
      %s384 = sphi 0, %s386
      %s387 = sphi 0, %s384
      %s388 = sphi 0, %s387
      %s404 = sphi 0, %s388
    $region4: #{tpu_custom_call.1} parent=1 // loop_header_branch
      %36 = sbr.rel (%p34) target = $region8
    $region5: #{tpu_custom_call.1} parent=1 // loop_body
      %s38 = ssub.s32 %s33, 1
      %s39 = ssub.s32 %s33, 2
      %s40 = sadd.s32 %s33, 1
      %s41 = ssub.s32 %s33, %s40
      %p42 = scmp.eq.s32.totalorder %s41, 0
      %s44 = sadd.s32 %s43, 1
      %s45 = scalar_select %p42, %s43, %s44
      %p48 = pneg %p42
      %p49 = scmp.eq.s32.totalorder %s33, 1
      %p50 = por %p48, %p49
      %p51 = scmp.ne.s32.totalorder %s43, %s46
      %p52 = scmp.eq.s32.totalorder %s33, 0
      %p53 = por %p51, %p52
      %p54 = scmp.ne.s32.totalorder %s43, %s46
      %p55 = scmp.eq.s32.totalorder %s38, 1
      %p56 = por %p54, %p55
      %p57 = scmp.ne.s32.totalorder %s46, %s47
      %p58 = scmp.eq.s32.totalorder %s38, 0
      %p59 = por %p57, %p58
      %p60 = scmp.ne.s32.totalorder %s46, %s47
      %p61 = scmp.eq.s32.totalorder %s39, 1
      %p62 = por %p60, %p61
      %p64 = scmp.ne.s32.totalorder %s47, %s63
      %p65 = scmp.eq.s32.totalorder %s39, 0
      %p66 = por %p64, %p65
      %s68 = sadd.s32 %s67, 1
      %p71 = scmp.eq.s32.totalorder %s33, 1
      %p72 = scmp.ne.s32.totalorder %s67, %s69
      %p73 = scmp.eq.s32.totalorder %s33, 0
      %p74 = por %p72, %p73
      %p75 = scmp.ne.s32.totalorder %s67, %s69
      %p76 = scmp.eq.s32.totalorder %s38, 1
      %p77 = por %p75, %p76
      %p78 = scmp.ne.s32.totalorder %s69, %s70
      %p79 = scmp.eq.s32.totalorder %s38, 0
      %p80 = por %p78, %p79
      %p81 = scmp.ne.s32.totalorder %s69, %s70
      %p82 = scmp.eq.s32.totalorder %s39, 1
      %p83 = por %p81, %p82
      %p85 = scmp.ne.s32.totalorder %s70, %s84
      %p86 = scmp.eq.s32.totalorder %s39, 0
      %p87 = por %p85, %p86
      %s89 = sadd.s32 %s88, 1
      %p92 = scmp.eq.s32.totalorder %s33, 1
      %p93 = scmp.ne.s32.totalorder %s88, %s90
      %p94 = scmp.eq.s32.totalorder %s33, 0
      %p95 = por %p93, %p94
      %p96 = scmp.ne.s32.totalorder %s88, %s90
      %p97 = scmp.eq.s32.totalorder %s38, 1
      %p98 = por %p96, %p97
      %p99 = scmp.ne.s32.totalorder %s90, %s91
      %p100 = scmp.eq.s32.totalorder %s38, 0
      %p101 = por %p99, %p100
      %p102 = scmp.ne.s32.totalorder %s90, %s91
      %p103 = scmp.eq.s32.totalorder %s39, 1
      %p104 = por %p102, %p103
      %p106 = scmp.ne.s32.totalorder %s91, %s105
      %p107 = scmp.eq.s32.totalorder %s39, 0
      %p108 = por %p106, %p107
      %s110 = sadd.s32 %s109, 1
      %p113 = scmp.eq.s32.totalorder %s33, 1
      %p114 = scmp.ne.s32.totalorder %s109, %s111
      %p115 = scmp.eq.s32.totalorder %s33, 0
      %p116 = por %p114, %p115
      %p117 = scmp.ne.s32.totalorder %s109, %s111
      %p118 = scmp.eq.s32.totalorder %s38, 1
      %p119 = por %p117, %p118
      %p120 = scmp.ne.s32.totalorder %s111, %s112
      %p121 = scmp.eq.s32.totalorder %s38, 0
      %p122 = por %p120, %p121
      %p123 = scmp.ne.s32.totalorder %s111, %s112
      %p124 = scmp.eq.s32.totalorder %s39, 1
      %p125 = por %p123, %p124
      %p127 = scmp.ne.s32.totalorder %s112, %s126
      %p128 = scmp.eq.s32.totalorder %s39, 0
      %p129 = por %p127, %p128
      %s131 = sadd.s32 %s130, 1
      %p134 = scmp.eq.s32.totalorder %s33, 1
      %p135 = scmp.ne.s32.totalorder %s130, %s132
      %p136 = scmp.eq.s32.totalorder %s33, 0
      %p137 = por %p135, %p136
      %p138 = scmp.ne.s32.totalorder %s130, %s132
      %p139 = scmp.eq.s32.totalorder %s38, 1
      %p140 = por %p138, %p139
      %p141 = scmp.ne.s32.totalorder %s132, %s133
      %p142 = scmp.eq.s32.totalorder %s38, 0
      %p143 = por %p141, %p142
      %p144 = scmp.ne.s32.totalorder %s132, %s133
      %p145 = scmp.eq.s32.totalorder %s39, 1
      %p146 = por %p144, %p145
      %p148 = scmp.ne.s32.totalorder %s133, %s147
      %p149 = scmp.eq.s32.totalorder %s39, 0
      %p150 = por %p148, %p149
      %s152 = sadd.s32 %s151, 1
      %p155 = scmp.eq.s32.totalorder %s33, 1
      %p156 = scmp.ne.s32.totalorder %s151, %s153
      %p157 = scmp.eq.s32.totalorder %s33, 0
      %p158 = por %p156, %p157
      %p159 = scmp.ne.s32.totalorder %s151, %s153
      %p160 = scmp.eq.s32.totalorder %s38, 1
      %p161 = por %p159, %p160
      %p162 = scmp.ne.s32.totalorder %s153, %s154
      %p163 = scmp.eq.s32.totalorder %s38, 0
      %p164 = por %p162, %p163
      %p165 = scmp.ne.s32.totalorder %s153, %s154
      %p166 = scmp.eq.s32.totalorder %s39, 1
      %p167 = por %p165, %p166
      %p169 = scmp.ne.s32.totalorder %s154, %s168
      %p170 = scmp.eq.s32.totalorder %s39, 0
      %p171 = por %p169, %p170
      %s173 = sadd.s32 %s172, 1
      %p176 = scmp.eq.s32.totalorder %s33, 1
      %p177 = scmp.ne.s32.totalorder %s172, %s174
      %p178 = scmp.eq.s32.totalorder %s33, 0
      %p179 = por %p177, %p178
      %p180 = scmp.ne.s32.totalorder %s172, %s174
      %p181 = scmp.eq.s32.totalorder %s38, 1
      %p182 = por %p180, %p181
      %p183 = scmp.ne.s32.totalorder %s174, %s175
      %p184 = scmp.eq.s32.totalorder %s38, 0
      %p185 = por %p183, %p184
      %p186 = scmp.ne.s32.totalorder %s174, %s175
      %p187 = scmp.eq.s32.totalorder %s39, 1
      %p188 = por %p186, %p187
      %p190 = scmp.ne.s32.totalorder %s175, %s189
      %p191 = scmp.eq.s32.totalorder %s39, 0
      %p192 = por %p190, %p191
      %s194 = sadd.s32 %s193, 1
      %p197 = scmp.eq.s32.totalorder %s33, 1
      %p198 = scmp.ne.s32.totalorder %s193, %s195
      %p199 = scmp.eq.s32.totalorder %s33, 0
      %p200 = por %p198, %p199
      %p201 = scmp.ne.s32.totalorder %s193, %s195
      %p202 = scmp.eq.s32.totalorder %s38, 1
      %p203 = por %p201, %p202
      %p204 = scmp.ne.s32.totalorder %s195, %s196
      %p205 = scmp.eq.s32.totalorder %s38, 0
      %p206 = por %p204, %p205
      %p207 = scmp.ne.s32.totalorder %s195, %s196
      %p208 = scmp.eq.s32.totalorder %s39, 1
      %p209 = por %p207, %p208
      %p211 = scmp.ne.s32.totalorder %s196, %s210
      %p212 = scmp.eq.s32.totalorder %s39, 0
      %p213 = por %p211, %p212
      %s215 = sadd.s32 %s214, 1
      %p218 = scmp.eq.s32.totalorder %s33, 1
      %p219 = scmp.ne.s32.totalorder %s214, %s216
      %p220 = scmp.eq.s32.totalorder %s33, 0
      %p221 = por %p219, %p220
      %p222 = scmp.ne.s32.totalorder %s214, %s216
      %p223 = scmp.eq.s32.totalorder %s38, 1
      %p224 = por %p222, %p223
      %p225 = scmp.ne.s32.totalorder %s216, %s217
      %p226 = scmp.eq.s32.totalorder %s38, 0
      %p227 = por %p225, %p226
      %p228 = scmp.ne.s32.totalorder %s216, %s217
      %p229 = scmp.eq.s32.totalorder %s39, 1
      %p230 = por %p228, %p229
      %p232 = scmp.ne.s32.totalorder %s217, %s231
      %p233 = scmp.eq.s32.totalorder %s39, 0
      %p234 = por %p232, %p233
      %s236 = sadd.s32 %s235, 1
      %p239 = scmp.eq.s32.totalorder %s33, 1
      %p240 = scmp.ne.s32.totalorder %s235, %s237
      %p241 = scmp.eq.s32.totalorder %s33, 0
      %p242 = por %p240, %p241
      %p243 = scmp.ne.s32.totalorder %s235, %s237
      %p244 = scmp.eq.s32.totalorder %s38, 1
      %p245 = por %p243, %p244
      %p246 = scmp.ne.s32.totalorder %s237, %s238
      %p247 = scmp.eq.s32.totalorder %s38, 0
      %p248 = por %p246, %p247
      %p249 = scmp.ne.s32.totalorder %s237, %s238
      %p250 = scmp.eq.s32.totalorder %s39, 1
      %p251 = por %p249, %p250
      %p253 = scmp.ne.s32.totalorder %s238, %s252
      %p254 = scmp.eq.s32.totalorder %s39, 0
      %p255 = por %p253, %p254
      %s257 = sadd.s32 %s256, 1
      %p260 = scmp.eq.s32.totalorder %s33, 1
      %p261 = scmp.ne.s32.totalorder %s256, %s258
      %p262 = scmp.eq.s32.totalorder %s33, 0
      %p263 = por %p261, %p262
      %p264 = scmp.ne.s32.totalorder %s256, %s258
      %p265 = scmp.eq.s32.totalorder %s38, 1
      %p266 = por %p264, %p265
      %p267 = scmp.ne.s32.totalorder %s258, %s259
      %p268 = scmp.eq.s32.totalorder %s38, 0
      %p269 = por %p267, %p268
      %p270 = scmp.ne.s32.totalorder %s258, %s259
      %p271 = scmp.eq.s32.totalorder %s39, 1
      %p272 = por %p270, %p271
      %p274 = scmp.ne.s32.totalorder %s259, %s273
      %p275 = scmp.eq.s32.totalorder %s39, 0
      %p276 = por %p274, %p275
      %s278 = sadd.s32 %s277, 1
      %p281 = scmp.eq.s32.totalorder %s33, 1
      %p282 = scmp.ne.s32.totalorder %s277, %s279
      %p283 = scmp.eq.s32.totalorder %s33, 0
      %p284 = por %p282, %p283
      %p285 = scmp.ne.s32.totalorder %s277, %s279
      %p286 = scmp.eq.s32.totalorder %s38, 1
      %p287 = por %p285, %p286
      %p288 = scmp.ne.s32.totalorder %s279, %s280
      %p289 = scmp.eq.s32.totalorder %s38, 0
      %p290 = por %p288, %p289
      %p291 = scmp.ne.s32.totalorder %s279, %s280
      %p292 = scmp.eq.s32.totalorder %s39, 1
      %p293 = por %p291, %p292
      %p295 = scmp.ne.s32.totalorder %s280, %s294
      %p296 = scmp.eq.s32.totalorder %s39, 0
      %p297 = por %p295, %p296
      %s299 = sadd.s32 %s298, 1
      %p302 = scmp.eq.s32.totalorder %s33, 1
      %p303 = scmp.ne.s32.totalorder %s298, %s300
      %p304 = scmp.eq.s32.totalorder %s33, 0
      %p305 = por %p303, %p304
      %p306 = scmp.ne.s32.totalorder %s298, %s300
      %p307 = scmp.eq.s32.totalorder %s38, 1
      %p308 = por %p306, %p307
      %p309 = scmp.ne.s32.totalorder %s300, %s301
      %p310 = scmp.eq.s32.totalorder %s38, 0
      %p311 = por %p309, %p310
      %p312 = scmp.ne.s32.totalorder %s300, %s301
      %p313 = scmp.eq.s32.totalorder %s39, 1
      %p314 = por %p312, %p313
      %p316 = scmp.ne.s32.totalorder %s301, %s315
      %p317 = scmp.eq.s32.totalorder %s39, 0
      %p318 = por %p316, %p317
      %s320 = sadd.s32 %s319, 1
      %p323 = scmp.eq.s32.totalorder %s33, 1
      %p324 = scmp.ne.s32.totalorder %s319, %s321
      %p325 = scmp.eq.s32.totalorder %s33, 0
      %p326 = por %p324, %p325
      %p327 = scmp.ne.s32.totalorder %s319, %s321
      %p328 = scmp.eq.s32.totalorder %s38, 1
      %p329 = por %p327, %p328
      %p330 = scmp.ne.s32.totalorder %s321, %s322
      %p331 = scmp.eq.s32.totalorder %s38, 0
      %p332 = por %p330, %p331
      %p333 = scmp.ne.s32.totalorder %s321, %s322
      %p334 = scmp.eq.s32.totalorder %s39, 1
      %p335 = por %p333, %p334
      %p337 = scmp.ne.s32.totalorder %s322, %s336
      %p338 = scmp.eq.s32.totalorder %s39, 0
      %p339 = por %p337, %p338
      %s341 = sadd.s32 %s340, 1
      %p344 = scmp.eq.s32.totalorder %s33, 1
      %p345 = scmp.ne.s32.totalorder %s340, %s342
      %p346 = scmp.eq.s32.totalorder %s33, 0
      %p347 = por %p345, %p346
      %p348 = scmp.ne.s32.totalorder %s340, %s342
      %p349 = scmp.eq.s32.totalorder %s38, 1
      %p350 = por %p348, %p349
      %p351 = scmp.ne.s32.totalorder %s342, %s343
      %p352 = scmp.eq.s32.totalorder %s38, 0
      %p353 = por %p351, %p352
      %p354 = scmp.ne.s32.totalorder %s342, %s343
      %p355 = scmp.eq.s32.totalorder %s39, 1
      %p356 = por %p354, %p355
      %p358 = scmp.ne.s32.totalorder %s343, %s357
      %p359 = scmp.eq.s32.totalorder %s39, 0
      %p360 = por %p358, %p359
      %s362 = sadd.s32 %s361, 1
      %p365 = scmp.eq.s32.totalorder %s33, 1
      %p366 = scmp.ne.s32.totalorder %s361, %s363
      %p367 = scmp.eq.s32.totalorder %s33, 0
      %p368 = por %p366, %p367
      %p369 = scmp.ne.s32.totalorder %s361, %s363
      %p370 = scmp.eq.s32.totalorder %s38, 1
      %p371 = por %p369, %p370
      %p372 = scmp.ne.s32.totalorder %s363, %s364
      %p373 = scmp.eq.s32.totalorder %s38, 0
      %p374 = por %p372, %p373
      %p375 = scmp.ne.s32.totalorder %s363, %s364
      %p376 = scmp.eq.s32.totalorder %s39, 1
      %p377 = por %p375, %p376
      %p379 = scmp.ne.s32.totalorder %s364, %s378
      %p380 = scmp.eq.s32.totalorder %s39, 0
      %p381 = por %p379, %p380
      %s382 = ssub.s32 %s33, %s40
      %p383 = scmp.eq.s32.totalorder %s382, 0
      %s385 = sadd.s32 %s384, 1
      %s386 = scalar_select %p383, %s384, %s385
      %p389 = pneg %p383
      %p390 = scmp.eq.s32.totalorder %s33, 1
      %p391 = por %p389, %p390
      %p392 = scmp.ne.s32.totalorder %s384, %s387
      %p393 = scmp.eq.s32.totalorder %s33, 0
      %p394 = por %p392, %p393
      %p395 = scmp.ne.s32.totalorder %s384, %s387
      %p396 = scmp.eq.s32.totalorder %s38, 1
      %p397 = por %p395, %p396
      %p398 = scmp.ne.s32.totalorder %s387, %s388
      %p399 = scmp.eq.s32.totalorder %s38, 0
      %p400 = por %p398, %p399
      %p401 = scmp.ne.s32.totalorder %s387, %s388
      %p402 = scmp.eq.s32.totalorder %s39, 1
      %p403 = por %p401, %p402
      %p405 = scmp.ne.s32.totalorder %s388, %s404
      %p406 = scmp.eq.s32.totalorder %s39, 0
      %p407 = por %p405, %p406
      %p408 = scmp.le.s32.totalorder 1, %s33
      %p409 = scmp.lt.s32.totalorder %s33, 3
      %p410 = pnand %p408, %p409
      %p411 = pneg %p410
      // Predicated region
      $region9: #{tpu_custom_call.1} parent=5 // pred_check
        _
      $region10: #{tpu_custom_call.1} parent=5 // pred_check_branch
        %413 = sbr.rel (%p410) target = $region12
      $region11: #{tpu_custom_call.1} parent=5 // pred_region
        %s414 = ssub.s32 %s33, 1
        // Predicated region
        $region13: #{tpu_custom_call.1} parent=11 // pred_check
          %p415 = pneg %p80
        $region14: #{tpu_custom_call.1} parent=11 // pred_check_branch
          %417 = sbr.rel (%p415) target = $region16
        $region15: #{tpu_custom_call.1} parent=11 // pred_region
          %419 = vsyncadd [#allocation7], 0
          %s420 = sshll.u32 %s1, 4
          %s421 = int_to_ptr.hbm [resolvable:$true] %s420
          %s422 = sshll.u32 [#allocation6], 4
          %s423 = int_to_ptr.vmem [resolvable:$true] %s422
          %428 = dma.hbm_to_vmem [thread:$0]  %s421, 1024, %s423, [#allocation7], 64, 64, 4
        $region16: #{tpu_custom_call.1} parent=11 // pred_fallthru
          _
        // Predicated region
        $region17: #{tpu_custom_call.1} parent=11 // pred_check
          %p429 = pneg %p101
        $region18: #{tpu_custom_call.1} parent=11 // pred_check_branch
          %431 = sbr.rel (%p429) target = $region20
        $region19: #{tpu_custom_call.1} parent=11 // pred_region
          %433 = vsyncadd [#allocation10], 0
          %s434 = sshll.u32 %s2, 4
          %s435 = int_to_ptr.hbm [resolvable:$true] %s434
          %s436 = sshll.u32 [#allocation9], 4
          %s437 = int_to_ptr.vmem [resolvable:$true] %s436
          %442 = dma.hbm_to_vmem [thread:$0]  %s435, 1024, %s437, [#allocation10], 64, 64, 4
        $region20: #{tpu_custom_call.1} parent=11 // pred_fallthru
          _
        // Predicated region
        $region21: #{tpu_custom_call.1} parent=11 // pred_check
          %p443 = pneg %p122
        $region22: #{tpu_custom_call.1} parent=11 // pred_check_branch
          %445 = sbr.rel (%p443) target = $region24
        $region23: #{tpu_custom_call.1} parent=11 // pred_region
          %447 = vsyncadd [#allocation10], 0
          %s448 = sshll.u32 %s3, 4
          %s449 = int_to_ptr.hbm [resolvable:$true] %s448
          %s450 = sshll.u32 [#allocation11], 4
          %s451 = int_to_ptr.vmem [resolvable:$true] %s450
          %456 = dma.hbm_to_vmem [thread:$0]  %s449, 512, %s451, [#allocation10], 64, 64, 4
        $region24: #{tpu_custom_call.1} parent=11 // pred_fallthru
          _
        // Predicated region
        $region25: #{tpu_custom_call.1} parent=11 // pred_check
          %p457 = pneg %p143
        $region26: #{tpu_custom_call.1} parent=11 // pred_check_branch
          %459 = sbr.rel (%p457) target = $region28
        $region27: #{tpu_custom_call.1} parent=11 // pred_region
          %461 = vsyncadd [#allocation13], 0
          %s463 = sshll.u32 %s4, 4
          %s464 = int_to_ptr.hbm [resolvable:$true] %s463
          %s465 = sshll.u32 [#allocation12], 4
          %s466 = int_to_ptr.vmem [resolvable:$true] %s465
          %468 = dma.hbm_to_vmem [thread:$0]  %s464, 32, %s466, [#allocation13]
        $region28: #{tpu_custom_call.1} parent=11 // pred_fallthru
          _
        // Predicated region
        $region29: #{tpu_custom_call.1} parent=11 // pred_check
          %p469 = pneg %p164
        $region30: #{tpu_custom_call.1} parent=11 // pred_check_branch
          %471 = sbr.rel (%p469) target = $region32
        $region31: #{tpu_custom_call.1} parent=11 // pred_region
          %473 = vsyncadd [#allocation13], 0
          %s475 = sshll.u32 %s5, 4
          %s476 = int_to_ptr.hbm [resolvable:$true] %s475
          %s477 = sshll.u32 [#allocation14], 4
          %s478 = int_to_ptr.vmem [resolvable:$true] %s477
          %480 = dma.hbm_to_vmem [thread:$0]  %s476, 16, %s478, [#allocation13]
        $region32: #{tpu_custom_call.1} parent=11 // pred_fallthru
          _
        // Predicated region
        $region33: #{tpu_custom_call.1} parent=11 // pred_check
          %p481 = pneg %p185
        $region34: #{tpu_custom_call.1} parent=11 // pred_check_branch
          %483 = sbr.rel (%p481) target = $region36
        $region35: #{tpu_custom_call.1} parent=11 // pred_region
          %485 = vsyncadd [#allocation16], 0
          %s486 = sshll.u32 %s6, 4
          %s487 = int_to_ptr.hbm [resolvable:$true] %s486
          %s488 = sshll.u32 [#allocation15], 4
          %s489 = int_to_ptr.vmem [resolvable:$true] %s488
          %494 = dma.hbm_to_vmem [thread:$0]  %s487, 9216, %s489, [#allocation16], 64, 64, 4
        $region36: #{tpu_custom_call.1} parent=11 // pred_fallthru
          _
        // Predicated region
        $region37: #{tpu_custom_call.1} parent=11 // pred_check
          %p495 = pneg %p206
        $region38: #{tpu_custom_call.1} parent=11 // pred_check_branch
          %497 = sbr.rel (%p495) target = $region40
        $region39: #{tpu_custom_call.1} parent=11 // pred_region
          %499 = vsyncadd [#allocation16], 0
          %s501 = sshll.u32 %s7, 4
          %s502 = int_to_ptr.hbm [resolvable:$true] %s501
          %s503 = sshll.u32 [#allocation17], 4
          %s504 = int_to_ptr.vmem [resolvable:$true] %s503
          %506 = dma.hbm_to_vmem [thread:$0]  %s502, 16, %s504, [#allocation16]
        $region40: #{tpu_custom_call.1} parent=11 // pred_fallthru
          _
        // Predicated region
        $region41: #{tpu_custom_call.1} parent=11 // pred_check
          %p507 = pneg %p227
        $region42: #{tpu_custom_call.1} parent=11 // pred_check_branch
          %509 = sbr.rel (%p507) target = $region44
        $region43: #{tpu_custom_call.1} parent=11 // pred_region
          %511 = vsyncadd [#allocation19], 0
          %s512 = sshll.u32 %s8, 4
          %s513 = int_to_ptr.hbm [resolvable:$true] %s512
          %s514 = sshll.u32 [#allocation18], 4
          %s515 = int_to_ptr.vmem [resolvable:$true] %s514
          %520 = dma.hbm_to_vmem [thread:$0]  %s513, 2048, %s515, [#allocation19], 128, 128, 8
        $region44: #{tpu_custom_call.1} parent=11 // pred_fallthru
          _
        // Predicated region
        $region45: #{tpu_custom_call.1} parent=11 // pred_check
          %p521 = pneg %p248
        $region46: #{tpu_custom_call.1} parent=11 // pred_check_branch
          %523 = sbr.rel (%p521) target = $region48
        $region47: #{tpu_custom_call.1} parent=11 // pred_region
          %525 = vsyncadd [#allocation19], 0
          %s527 = sshll.u32 %s9, 4
          %s528 = int_to_ptr.hbm [resolvable:$true] %s527
          %s529 = sshll.u32 [#allocation20], 4
          %s530 = int_to_ptr.vmem [resolvable:$true] %s529
          %532 = dma.hbm_to_vmem [thread:$0]  %s528, 32, %s530, [#allocation19]
        $region48: #{tpu_custom_call.1} parent=11 // pred_fallthru
          _
        // Predicated region
        $region49: #{tpu_custom_call.1} parent=11 // pred_check
          %p533 = pneg %p269
        $region50: #{tpu_custom_call.1} parent=11 // pred_check_branch
          %535 = sbr.rel (%p533) target = $region52
        $region51: #{tpu_custom_call.1} parent=11 // pred_region
          %537 = vsyncadd [#allocation22], 0
          %s538 = sshll.u32 %s10, 4
          %s539 = int_to_ptr.hbm [resolvable:$true] %s538
          %s540 = sshll.u32 [#allocation21], 4
          %s541 = int_to_ptr.vmem [resolvable:$true] %s540
          %546 = dma.hbm_to_vmem [thread:$0]  %s539, 36864, %s541, [#allocation22], 128, 128, 8
        $region52: #{tpu_custom_call.1} parent=11 // pred_fallthru
          _
        // Predicated region
        $region53: #{tpu_custom_call.1} parent=11 // pred_check
          %p547 = pneg %p290
        $region54: #{tpu_custom_call.1} parent=11 // pred_check_branch
          %549 = sbr.rel (%p547) target = $region56
        $region55: #{tpu_custom_call.1} parent=11 // pred_region
          %551 = vsyncadd [#allocation22], 0
          %s553 = sshll.u32 %s11, 4
          %s554 = int_to_ptr.hbm [resolvable:$true] %s553
          %s555 = sshll.u32 [#allocation23], 4
          %s556 = int_to_ptr.vmem [resolvable:$true] %s555
          %558 = dma.hbm_to_vmem [thread:$0]  %s554, 32, %s556, [#allocation22]
        $region56: #{tpu_custom_call.1} parent=11 // pred_fallthru
          _
        // Predicated region
        $region57: #{tpu_custom_call.1} parent=11 // pred_check
          %p559 = pneg %p311
        $region58: #{tpu_custom_call.1} parent=11 // pred_check_branch
          %561 = sbr.rel (%p559) target = $region60
        $region59: #{tpu_custom_call.1} parent=11 // pred_region
          _
        $region60: #{tpu_custom_call.1} parent=11 // pred_fallthru
          _
        // Predicated region
        $region61: #{tpu_custom_call.1} parent=11 // pred_check
          %p562 = pneg %p332
        $region62: #{tpu_custom_call.1} parent=11 // pred_check_branch
          %564 = sbr.rel (%p562) target = $region64
        $region63: #{tpu_custom_call.1} parent=11 // pred_region
          %566 = vsyncadd [#allocation25], 0
          %s568 = sshll.u32 %s13, 4
          %s569 = int_to_ptr.hbm [resolvable:$true] %s568
          %s570 = sshll.u32 [#allocation24], 4
          %s571 = int_to_ptr.vmem [resolvable:$true] %s570
          %573 = dma.hbm_to_vmem [thread:$0]  %s569, 16, %s571, [#allocation25]
        $region64: #{tpu_custom_call.1} parent=11 // pred_fallthru
          _
        // Predicated region
        $region65: #{tpu_custom_call.1} parent=11 // pred_check
          %p574 = pneg %p353
        $region66: #{tpu_custom_call.1} parent=11 // pred_check_branch
          %576 = sbr.rel (%p574) target = $region68
        $region67: #{tpu_custom_call.1} parent=11 // pred_region
          %578 = vsyncadd [#allocation25], 0
          %s579 = sshll.u32 %s14, 4
          %s580 = int_to_ptr.hbm [resolvable:$true] %s579
          %s581 = sshll.u32 [#allocation26], 4
          %s582 = int_to_ptr.vmem [resolvable:$true] %s581
          %587 = dma.hbm_to_vmem [thread:$0]  %s580, 4608, %s582, [#allocation25], 64, 64, 4
        $region68: #{tpu_custom_call.1} parent=11 // pred_fallthru
          _
        // Predicated region
        $region69: #{tpu_custom_call.1} parent=11 // pred_check
          %p588 = pneg %p374
        $region70: #{tpu_custom_call.1} parent=11 // pred_check_branch
          %590 = sbr.rel (%p588) target = $region72
        $region71: #{tpu_custom_call.1} parent=11 // pred_region
          %592 = vsyncadd [#allocation28], 0
          %s594 = sshll.u32 %s15, 4
          %s595 = int_to_ptr.hbm [resolvable:$true] %s594
          %s596 = sshll.u32 [#allocation27], 4
          %s597 = int_to_ptr.vmem [resolvable:$true] %s596
          %599 = dma.hbm_to_vmem [thread:$0]  %s595, 16, %s597, [#allocation28]
        $region72: #{tpu_custom_call.1} parent=11 // pred_fallthru
          _
      $region12: #{tpu_custom_call.1} parent=5 // pred_fallthru
        _
      %p600 = scmp.lt.s32.totalorder %s33, 2
      // Predicated region
      $region73: #{tpu_custom_call.1} parent=5 // pred_check
        %p601 = pneg %p600
      $region74: #{tpu_custom_call.1} parent=5 // pred_check_branch
        %603 = sbr.rel (%p601) target = $region76
      $region75: #{tpu_custom_call.1} parent=5 // pred_region
        // Predicated region
        $region77: #{tpu_custom_call.1} parent=75 // pred_check
          %p604 = pneg %p53
        $region78: #{tpu_custom_call.1} parent=75 // pred_check_branch
          %606 = sbr.rel (%p604) target = $region80
        $region79: #{tpu_custom_call.1} parent=75 // pred_region
          %p607 = scmp.lt.s32.totalorder %s33, 1
          %s608 = scalar_select %p607, %s33, 1
          %s609 = smul.addr %s608, 16
          %s610 = smul.addr %s609, 8
          %s611 = scalar_lea.vmem %s0, %s610
        $region80: #{tpu_custom_call.1} parent=75 // pred_fallthru
          _
      $region76: #{tpu_custom_call.1} parent=5 // pred_fallthru
        _
      %p612 = scmp.le.s32.totalorder 1, %s33
      %p613 = scmp.lt.s32.totalorder %s33, 3
      %p614 = pnand %p612, %p613
      %p615 = pneg %p614
      // Predicated region
      $region81: #{tpu_custom_call.1} parent=5 // pred_check
        _
      $region82: #{tpu_custom_call.1} parent=5 // pred_check_branch
        %617 = sbr.rel (%p614) target = $region84
      $region83: #{tpu_custom_call.1} parent=5 // pred_region
        %s618 = ssub.s32 %s33, 1
        // Predicated region
        $region85: #{tpu_custom_call.1} parent=83 // pred_check
          %p619 = pneg %p80
        $region86: #{tpu_custom_call.1} parent=83 // pred_check_branch
          %621 = sbr.rel (%p619) target = $region88
        $region87: #{tpu_custom_call.1} parent=83 // pred_region
          %623 = dma.done [#allocation7], 1024
        $region88: #{tpu_custom_call.1} parent=83 // pred_fallthru
          _
        // Predicated region
        $region89: #{tpu_custom_call.1} parent=83 // pred_check
          %p624 = pneg %p101
        $region90: #{tpu_custom_call.1} parent=83 // pred_check_branch
          %626 = sbr.rel (%p624) target = $region92
        $region91: #{tpu_custom_call.1} parent=83 // pred_region
          %628 = dma.done [#allocation10], 1024
        $region92: #{tpu_custom_call.1} parent=83 // pred_fallthru
          _
        // Predicated region
        $region93: #{tpu_custom_call.1} parent=83 // pred_check
          %p629 = pneg %p122
        $region94: #{tpu_custom_call.1} parent=83 // pred_check_branch
          %631 = sbr.rel (%p629) target = $region96
        $region95: #{tpu_custom_call.1} parent=83 // pred_region
          %633 = dma.done [#allocation10], 512
        $region96: #{tpu_custom_call.1} parent=83 // pred_fallthru
          _
        // Predicated region
        $region97: #{tpu_custom_call.1} parent=83 // pred_check
          %p634 = pneg %p143
        $region98: #{tpu_custom_call.1} parent=83 // pred_check_branch
          %636 = sbr.rel (%p634) target = $region100
        $region99: #{tpu_custom_call.1} parent=83 // pred_region
          %638 = dma.done [#allocation13], 32
        $region100: #{tpu_custom_call.1} parent=83 // pred_fallthru
          _
        // Predicated region
        $region101: #{tpu_custom_call.1} parent=83 // pred_check
          %p639 = pneg %p164
        $region102: #{tpu_custom_call.1} parent=83 // pred_check_branch
          %641 = sbr.rel (%p639) target = $region104
        $region103: #{tpu_custom_call.1} parent=83 // pred_region
          %643 = dma.done [#allocation13], 16
        $region104: #{tpu_custom_call.1} parent=83 // pred_fallthru
          _
        // Predicated region
        $region105: #{tpu_custom_call.1} parent=83 // pred_check
          %p644 = pneg %p185
        $region106: #{tpu_custom_call.1} parent=83 // pred_check_branch
          %646 = sbr.rel (%p644) target = $region108
        $region107: #{tpu_custom_call.1} parent=83 // pred_region
          %648 = dma.done [#allocation16], 9216
        $region108: #{tpu_custom_call.1} parent=83 // pred_fallthru
          _
        // Predicated region
        $region109: #{tpu_custom_call.1} parent=83 // pred_check
          %p649 = pneg %p206
        $region110: #{tpu_custom_call.1} parent=83 // pred_check_branch
          %651 = sbr.rel (%p649) target = $region112
        $region111: #{tpu_custom_call.1} parent=83 // pred_region
          %653 = dma.done [#allocation16], 16
        $region112: #{tpu_custom_call.1} parent=83 // pred_fallthru
          _
        // Predicated region
        $region113: #{tpu_custom_call.1} parent=83 // pred_check
          %p654 = pneg %p227
        $region114: #{tpu_custom_call.1} parent=83 // pred_check_branch
          %656 = sbr.rel (%p654) target = $region116
        $region115: #{tpu_custom_call.1} parent=83 // pred_region
          %658 = dma.done [#allocation19], 2048
        $region116: #{tpu_custom_call.1} parent=83 // pred_fallthru
          _
        // Predicated region
        $region117: #{tpu_custom_call.1} parent=83 // pred_check
          %p659 = pneg %p248
        $region118: #{tpu_custom_call.1} parent=83 // pred_check_branch
          %661 = sbr.rel (%p659) target = $region120
        $region119: #{tpu_custom_call.1} parent=83 // pred_region
          %663 = dma.done [#allocation19], 32
        $region120: #{tpu_custom_call.1} parent=83 // pred_fallthru
          _
        // Predicated region
        $region121: #{tpu_custom_call.1} parent=83 // pred_check
          %p664 = pneg %p269
        $region122: #{tpu_custom_call.1} parent=83 // pred_check_branch
          %666 = sbr.rel (%p664) target = $region124
        $region123: #{tpu_custom_call.1} parent=83 // pred_region
          %668 = dma.done [#allocation22], 36864
        $region124: #{tpu_custom_call.1} parent=83 // pred_fallthru
          _
        // Predicated region
        $region125: #{tpu_custom_call.1} parent=83 // pred_check
          %p669 = pneg %p290
        $region126: #{tpu_custom_call.1} parent=83 // pred_check_branch
          %671 = sbr.rel (%p669) target = $region128
        $region127: #{tpu_custom_call.1} parent=83 // pred_region
          %673 = dma.done [#allocation22], 32
        $region128: #{tpu_custom_call.1} parent=83 // pred_fallthru
          _
        // Predicated region
        $region129: #{tpu_custom_call.1} parent=83 // pred_check
          %p674 = pneg %p332
        $region130: #{tpu_custom_call.1} parent=83 // pred_check_branch
          %676 = sbr.rel (%p674) target = $region132
        $region131: #{tpu_custom_call.1} parent=83 // pred_region
          %678 = dma.done [#allocation25], 16
        $region132: #{tpu_custom_call.1} parent=83 // pred_fallthru
          _
        // Predicated region
        $region133: #{tpu_custom_call.1} parent=83 // pred_check
          %p679 = pneg %p353
        $region134: #{tpu_custom_call.1} parent=83 // pred_check_branch
          %681 = sbr.rel (%p679) target = $region136
        $region135: #{tpu_custom_call.1} parent=83 // pred_region
          %683 = dma.done [#allocation25], 4608
        $region136: #{tpu_custom_call.1} parent=83 // pred_fallthru
          _
        // Predicated region
        $region137: #{tpu_custom_call.1} parent=83 // pred_check
          %p684 = pneg %p374
        $region138: #{tpu_custom_call.1} parent=83 // pred_check_branch
          %686 = sbr.rel (%p684) target = $region140
        $region139: #{tpu_custom_call.1} parent=83 // pred_region
          %688 = dma.done [#allocation28], 16
        $region140: #{tpu_custom_call.1} parent=83 // pred_fallthru
          _
        %p689 = scmp.lt.s32.totalorder %s38, 1
        %s690 = scalar_select %p689, %s38, 1
        %s691 = smul.addr %s690, 16
        %s692 = smul.addr %s691, 8
        %s693 = scalar_lea.vmem %s0, %s692
        %p694 = pneg %p59
        %p695 = pneg %p56
        %p696 = pneg %p80
        %p697 = pneg %p77
        %p698 = pneg %p101
        %p699 = pneg %p98
        %p700 = pneg %p122
        %p701 = pneg %p119
        %p702 = pneg %p143
        %p703 = pneg %p140
        %p704 = pneg %p164
        %p705 = pneg %p161
        %p706 = pneg %p185
        %p707 = pneg %p182
        %p708 = pneg %p206
        %p709 = pneg %p203
        %p710 = pneg %p227
        %p711 = pneg %p224
        %p712 = pneg %p248
        %p713 = pneg %p245
        %p714 = pneg %p269
        %p715 = pneg %p266
        %p716 = pneg %p290
        %p717 = pneg %p287
        %p718 = pneg %p311
        %p719 = pneg %p308
        %p720 = pneg %p332
        %p721 = pneg %p329
        %p722 = pneg %p353
        %p723 = pneg %p350
        %p724 = pneg %p374
        %p725 = pneg %p371
        %p726 = pneg %p400
        %p727 = pneg %p397
        %s728 = sand.u32 %s387, 1
        %s729 = scalar_lea.sflag [#allocation8], %s728
        %s730 = sand.u32 %s387, 1
        %s731 = smul.addr %s730, 16
        %s732 = scalar_lea.vmem [#allocation29], %s731
        %p733 = scmp.lt.s32.totalorder %s38, 1
        %s734 = scalar_select %p733, %s38, 1
        %s735 = smul.addr %s734, 16
        %s736 = smul.addr %s735, 8
        %s737 = scalar_lea.vmem %s0, %s736
        %v739 = vld [vmem:[%s737] sm:$0xff]
        %v740 = vld [vmem:[%s737 + $0x8] sm:$0xff]
        %v741 = vld [vmem:[%s737 + $0x10] sm:$0xff]
        %v742 = vld [vmem:[%s737 + $0x18] sm:$0xff]
        %v743 = vld [vmem:[%s737 + $0x20] sm:$0xff]
        %v744 = vld [vmem:[%s737 + $0x28] sm:$0xff]
        %v745 = vld [vmem:[%s737 + $0x30] sm:$0xff]
        %v746 = vld [vmem:[%s737 + $0x38] sm:$0xff]
        %v747 = vld [vmem:[%s737 + $0x40] sm:$0xff]
        %v748 = vld [vmem:[%s737 + $0x48] sm:$0xff]
        %v749 = vld [vmem:[%s737 + $0x50] sm:$0xff]
        %v750 = vld [vmem:[%s737 + $0x58] sm:$0xff]
        %v751 = vld [vmem:[%s737 + $0x60] sm:$0xff]
        %v752 = vld [vmem:[%s737 + $0x68] sm:$0xff]
        %v753 = vld [vmem:[%s737 + $0x70] sm:$0xff]
        %v754 = vld [vmem:[%s737 + $0x78] sm:$0xff]
        %v755 = vpack.c.bf16 %v740, %v739
        %v756 = vpack.c.bf16 %v742, %v741
        %v757 = vpack.c.bf16 %v744, %v743
        %v758 = vpack.c.bf16 %v746, %v745
        %v759 = vpack.c.bf16 %v748, %v747
        %v760 = vpack.c.bf16 %v750, %v749
        %v761 = vpack.c.bf16 %v752, %v751
        %v762 = vpack.c.bf16 %v754, %v753
        %v763 = vld [vmem:[#allocation6] sm:$0xf]
        %v764 = vld [vmem:[#allocation6 + $0x4] sm:$0xf]
        %v765 = vld [vmem:[#allocation6 + $0x8] sm:$0xf]
        %v766 = vld [vmem:[#allocation6 + $0xc] sm:$0xf]
        %v767 = vld [vmem:[#allocation6 + $0x10] sm:$0xf]
        %v768 = vld [vmem:[#allocation6 + $0x14] sm:$0xf]
        %v769 = vld [vmem:[#allocation6 + $0x18] sm:$0xf]
        %v770 = vld [vmem:[#allocation6 + $0x1c] sm:$0xf]
        %v771 = vld [vmem:[#allocation6 + $0x20] sm:$0xf]
        %v772 = vld [vmem:[#allocation6 + $0x24] sm:$0xf]
        %v773 = vld [vmem:[#allocation6 + $0x28] sm:$0xf]
        %v774 = vld [vmem:[#allocation6 + $0x2c] sm:$0xf]
        %v775 = vld [vmem:[#allocation6 + $0x30] sm:$0xf]
        %v776 = vld [vmem:[#allocation6 + $0x34] sm:$0xf]
        %v777 = vld [vmem:[#allocation6 + $0x38] sm:$0xf]
        %v778 = vld [vmem:[#allocation6 + $0x3c] sm:$0xf]
        %v779 = vld [vmem:[#allocation12] sm:$0x3]
        %v780 = vld [vmem:[#allocation14] sm:$0x1]
        %v781 = vld [vmem:[#allocation17] sm:$0x1]
        %v798 = vunpack.c.l.b16 %v763
        %v799 = vunpack.c.l.b16 %v764
        %v800 = vunpack.c.l.b16 %v765
        %v801 = vunpack.c.l.b16 %v766
        %v802 = vunpack.c.l.b16 %v767
        %v803 = vunpack.c.l.b16 %v768
        %v804 = vunpack.c.l.b16 %v769
        %v805 = vunpack.c.l.b16 %v770
        %v806 = vunpack.c.l.b16 %v771
        %v807 = vunpack.c.l.b16 %v772
        %v808 = vunpack.c.l.b16 %v773
        %v809 = vunpack.c.l.b16 %v774
        %v810 = vunpack.c.l.b16 %v775
        %v811 = vunpack.c.l.b16 %v776
        %v812 = vunpack.c.l.b16 %v777
        %v813 = vunpack.c.l.b16 %v778
        %v814 = vpack.c.b16 %v799, %v798
        %v815 = vpack.c.b16 %v801, %v800
        %v816 = vpack.c.b16 %v803, %v802
        %v817 = vpack.c.b16 %v805, %v804
        %v818 = vpack.c.b16 %v807, %v806
        %v819 = vpack.c.b16 %v809, %v808
        %v820 = vpack.c.b16 %v811, %v810
        %v821 = vpack.c.b16 %v813, %v812
        %830 = vmatpush.bf16.msra.mxu0 %v762
        %831 = vmatpush.bf16.msra.mxu0 %v761
        %832 = vmatpush.bf16.msra.mxu0 %v760
        %833 = vmatpush.bf16.msra.mxu0 %v759
        %834 = vmatpush.bf16.msra.mxu0 %v758
        %835 = vmatpush.bf16.msra.mxu0 %v757
        %836 = vmatpush.bf16.msra.mxu0 %v756
        %837 = vmatpush.bf16.msra.mxu0 %v755
        %838 = vmatmul.bf16.gmra.mxu0 %v814
        %v839 = vpop.f32.mrf.mxu0
        %v840 = vadd.f32 0.0, %v839
        %v841 = vpop.f32.mrf.mxu0
        %v842 = vadd.f32 0.0, %v841
        %843 = vmatmul.bf16.gmra.mxu0 %v815
        %v844 = vpop.f32.mrf.mxu0
        %v845 = vadd.f32 0.0, %v844
        %v846 = vpop.f32.mrf.mxu0
        %v847 = vadd.f32 0.0, %v846
        %848 = vmatmul.bf16.gmra.mxu0 %v816
        %v849 = vpop.f32.mrf.mxu0
        %v850 = vadd.f32 0.0, %v849
        %v851 = vpop.f32.mrf.mxu0
        %v852 = vadd.f32 0.0, %v851
        %853 = vmatmul.bf16.gmra.mxu0 %v817
        %v854 = vpop.f32.mrf.mxu0
        %v855 = vadd.f32 0.0, %v854
        %v856 = vpop.f32.mrf.mxu0
        %v857 = vadd.f32 0.0, %v856
        %858 = vmatmul.bf16.gmra.mxu0 %v818
        %v859 = vpop.f32.mrf.mxu0
        %v860 = vadd.f32 0.0, %v859
        %v861 = vpop.f32.mrf.mxu0
        %v862 = vadd.f32 0.0, %v861
        %863 = vmatmul.bf16.gmra.mxu0 %v819
        %v864 = vpop.f32.mrf.mxu0
        %v865 = vadd.f32 0.0, %v864
        %v866 = vpop.f32.mrf.mxu0
        %v867 = vadd.f32 0.0, %v866
        %868 = vmatmul.bf16.gmra.mxu0 %v820
        %v869 = vpop.f32.mrf.mxu0
        %v870 = vadd.f32 0.0, %v869
        %v871 = vpop.f32.mrf.mxu0
        %v872 = vadd.f32 0.0, %v871
        %873 = vmatmul.bf16.gmra.mxu0 %v821
        %v874 = vpop.f32.mrf.mxu0
        %v875 = vadd.f32 0.0, %v874
        %v876 = vpop.f32.mrf.mxu0
        %v877 = vadd.f32 0.0, %v876
        %878 = vdwg.mxu0
        %v879 = vpack.c.bf16 %v842, %v840
        %v880 = vpack.c.bf16 %v847, %v845
        %v881 = vpack.c.bf16 %v852, %v850
        %v882 = vpack.c.bf16 %v857, %v855
        %v883 = vpack.c.bf16 %v862, %v860
        %v884 = vpack.c.bf16 %v867, %v865
        %v885 = vpack.c.bf16 %v872, %v870
        %v886 = vpack.c.bf16 %v877, %v875
        %v888 = vperm.slane %v780, 0
        %vm890 = vcmask 31744
        %v892 = vsel %vm890, %v879, 0
        %v895 = vsel %vm890, %v880, 0
        %v898 = vsel %vm890, %v881, 0
        %v901 = vsel %vm890, %v882, 0
        %v904 = vsel %vm890, %v883, 0
        %v907 = vsel %vm890, %v884, 0
        %v910 = vsel %vm890, %v885, 0
        %v913 = vsel %vm890, %v886, 0
        %vm915 = vcmask 1041408
        %v917 = vsel %vm915, %v779, 0
        %919 = vmatpush.bf16.msra.mxu0 0
        %920 = vmatpush.bf16.msra.mxu0 0
        %921 = vmatpush.bf16.msra.mxu0 0
        %922 = vmatpush.bf16.msra.mxu0 0
        %923 = vmatpush.bf16.msra.mxu0 0
        %924 = vmatpush.bf16.msra.mxu0 0
        %925 = vmatpush.bf16.msra.mxu0 0
        %926 = vmatpush.bf16.msra.mxu0 %v917
        %927 = vmatmul.bf16.gmra.mxu0 %v892
        %v928 = vpop.f32.mrf.mxu0
        %v929 = vadd.f32 %v888, %v928
        %v930 = vpop.f32.mrf.mxu0
        %v931 = vadd.f32 %v888, %v930
        %932 = vmatmul.bf16.gmra.mxu0 %v895
        %v933 = vpop.f32.mrf.mxu0
        %v934 = vadd.f32 %v888, %v933
        %v935 = vpop.f32.mrf.mxu0
        %v936 = vadd.f32 %v888, %v935
        %937 = vmatmul.bf16.gmra.mxu0 %v898
        %v938 = vpop.f32.mrf.mxu0
        %v939 = vadd.f32 %v888, %v938
        %v940 = vpop.f32.mrf.mxu0
        %v941 = vadd.f32 %v888, %v940
        %942 = vmatmul.bf16.gmra.mxu0 %v901
        %v943 = vpop.f32.mrf.mxu0
        %v944 = vadd.f32 %v888, %v943
        %v945 = vpop.f32.mrf.mxu0
        %v946 = vadd.f32 %v888, %v945
        %947 = vmatmul.bf16.gmra.mxu0 %v904
        %v948 = vpop.f32.mrf.mxu0
        %v949 = vadd.f32 %v888, %v948
        %v950 = vpop.f32.mrf.mxu0
        %v951 = vadd.f32 %v888, %v950
        %952 = vmatmul.bf16.gmra.mxu0 %v907
        %v953 = vpop.f32.mrf.mxu0
        %v954 = vadd.f32 %v888, %v953
        %v955 = vpop.f32.mrf.mxu0
        %v956 = vadd.f32 %v888, %v955
        %957 = vmatmul.bf16.gmra.mxu0 %v910
        %v958 = vpop.f32.mrf.mxu0
        %v959 = vadd.f32 %v888, %v958
        %v960 = vpop.f32.mrf.mxu0
        %v961 = vadd.f32 %v888, %v960
        %962 = vmatmul.bf16.gmra.mxu0 %v913
        %v963 = vpop.f32.mrf.mxu0
        %v964 = vadd.f32 %v888, %v963
        %v965 = vpop.f32.mrf.mxu0
        %v966 = vadd.f32 %v888, %v965
        %967 = vdwg.mxu0
        %v968 = vmax.f32 %v929, 0.0
        %v969 = vmax.f32 %v931, 0.0
        %v970 = vmax.f32 %v934, 0.0
        %v971 = vmax.f32 %v936, 0.0
        %v972 = vmax.f32 %v939, 0.0
        %v973 = vmax.f32 %v941, 0.0
        %v974 = vmax.f32 %v944, 0.0
        %v975 = vmax.f32 %v946, 0.0
        %v976 = vmax.f32 %v949, 0.0
        %v977 = vmax.f32 %v951, 0.0
        %v978 = vmax.f32 %v954, 0.0
        %v979 = vmax.f32 %v956, 0.0
        %v980 = vmax.f32 %v959, 0.0
        %v981 = vmax.f32 %v961, 0.0
        %v982 = vmax.f32 %v964, 0.0
        %v983 = vmax.f32 %v966, 0.0
        %v984 = vpack.c.bf16 %v968, %v968
        %v985 = vpack.c.bf16 %v969, %v969
        %v986 = vpack.c.bf16 %v970, %v970
        %v987 = vpack.c.bf16 %v971, %v971
        %v988 = vpack.c.bf16 %v972, %v972
        %v989 = vpack.c.bf16 %v973, %v973
        %v990 = vpack.c.bf16 %v974, %v974
        %v991 = vpack.c.bf16 %v975, %v975
        %v992 = vpack.c.bf16 %v976, %v976
        %v993 = vpack.c.bf16 %v977, %v977
        %v994 = vpack.c.bf16 %v978, %v978
        %v995 = vpack.c.bf16 %v979, %v979
        %v996 = vpack.c.bf16 %v980, %v980
        %v997 = vpack.c.bf16 %v981, %v981
        %v998 = vpack.c.bf16 %v982, %v982
        %v999 = vpack.c.bf16 %v983, %v983
        %1000 = vst [vmem:[#allocation2] sm:$0xf] 0
        %1001 = vst [vmem:[#allocation2 + $0x4] sm:$0xf] 0
        %1002 = vst [vmem:[#allocation2 + $0x8] sm:$0xf] 0
        %1003 = vst [vmem:[#allocation2 + $0xc] sm:$0xf] 0
        %1004 = vst [vmem:[#allocation2 + $0x10] sm:$0xf] 0
        %1005 = vst [vmem:[#allocation2 + $0x14] sm:$0xf] 0
        %1006 = vst [vmem:[#allocation2 + $0x18] sm:$0xf] 0
        %1007 = vst [vmem:[#allocation2 + $0x1c] sm:$0xf] 0
        %1008 = vst [vmem:[#allocation2 + $0x20] sm:$0xf] %v984
        %1009 = vst [vmem:[#allocation2 + $0x24] sm:$0xf] %v985
        %1010 = vst [vmem:[#allocation2 + $0x28] sm:$0xf] %v986
        %1011 = vst [vmem:[#allocation2 + $0x2c] sm:$0xf] %v987
        %1012 = vst [vmem:[#allocation2 + $0x30] sm:$0xf] %v988
        %1013 = vst [vmem:[#allocation2 + $0x34] sm:$0xf] %v989
        %1014 = vst [vmem:[#allocation2 + $0x38] sm:$0xf] %v990
        %1015 = vst [vmem:[#allocation2 + $0x3c] sm:$0xf] %v991
        %1016 = vst [vmem:[#allocation2 + $0x40] sm:$0xf] %v992
        %1017 = vst [vmem:[#allocation2 + $0x44] sm:$0xf] %v993
        %1018 = vst [vmem:[#allocation2 + $0x48] sm:$0xf] %v994
        %1019 = vst [vmem:[#allocation2 + $0x4c] sm:$0xf] %v995
        %1020 = vst [vmem:[#allocation2 + $0x50] sm:$0xf] %v996
        %1021 = vst [vmem:[#allocation2 + $0x54] sm:$0xf] %v997
        %1022 = vst [vmem:[#allocation2 + $0x58] sm:$0xf] %v998
        %1023 = vst [vmem:[#allocation2 + $0x5c] sm:$0xf] %v999
        %1024 = vst [vmem:[#allocation2 + $0x60] sm:$0xf] 0
        %1025 = vst [vmem:[#allocation2 + $0x64] sm:$0xf] 0
        %1026 = vst [vmem:[#allocation2 + $0x68] sm:$0xf] 0
        %1027 = vst [vmem:[#allocation2 + $0x6c] sm:$0xf] 0
        %1028 = vst [vmem:[#allocation2 + $0x70] sm:$0xf] 0
        %1029 = vst [vmem:[#allocation2 + $0x74] sm:$0xf] 0
        %1030 = vst [vmem:[#allocation2 + $0x78] sm:$0xf] 0
        %1031 = vst [vmem:[#allocation2 + $0x7c] sm:$0xf] 0
        %v1032 = vld [vmem:[#allocation2] sm:$0xf]
        %v1033 = vld [vmem:[#allocation2 + $0x4] sm:$0xf]
        %v1034 = vld [vmem:[#allocation2 + $0x8] sm:$0xf]
        %v1035 = vld [vmem:[#allocation2 + $0xc] sm:$0xf]
        %v1036 = vld [vmem:[#allocation2 + $0x10] sm:$0xf]
        %v1037 = vld [vmem:[#allocation2 + $0x14] sm:$0xf]
        %v1038 = vld [vmem:[#allocation2 + $0x18] sm:$0xf]
        %v1039 = vld [vmem:[#allocation2 + $0x1c] sm:$0xf]
        %v1040 = vld [vmem:[#allocation2 + $0x20] sm:$0xf]
        %v1041 = vld [vmem:[#allocation2 + $0x24] sm:$0xf]
        %v1042 = vld [vmem:[#allocation2 + $0x28] sm:$0xf]
        %v1043 = vld [vmem:[#allocation2 + $0x2c] sm:$0xf]
        %v1044 = vld [vmem:[#allocation2 + $0x30] sm:$0xf]
        %v1045 = vld [vmem:[#allocation2 + $0x34] sm:$0xf]
        %v1046 = vld [vmem:[#allocation2 + $0x38] sm:$0xf]
        %v1047 = vld [vmem:[#allocation2 + $0x3c] sm:$0xf]
        %v1048 = vld [vmem:[#allocation15] sm:$0xf]
        %v1049 = vld [vmem:[#allocation15 + $0x4] sm:$0xf]
        %v1050 = vld [vmem:[#allocation15 + $0x8] sm:$0xf]
        %v1051 = vld [vmem:[#allocation15 + $0xc] sm:$0xf]
        %v1052 = vld [vmem:[#allocation15 + $0x10] sm:$0xf]
        %v1053 = vld [vmem:[#allocation15 + $0x14] sm:$0xf]
        %v1054 = vld [vmem:[#allocation15 + $0x18] sm:$0xf]
        %v1055 = vld [vmem:[#allocation15 + $0x1c] sm:$0xf]
        %v1056 = vld [vmem:[#allocation15 + $0x20] sm:$0xf]
        %v1057 = vld [vmem:[#allocation15 + $0x24] sm:$0xf]
        %v1058 = vld [vmem:[#allocation15 + $0x28] sm:$0xf]
        %v1059 = vld [vmem:[#allocation15 + $0x2c] sm:$0xf]
        %v1060 = vld [vmem:[#allocation15 + $0x30] sm:$0xf]
        %v1061 = vld [vmem:[#allocation15 + $0x34] sm:$0xf]
        %v1062 = vld [vmem:[#allocation15 + $0x38] sm:$0xf]
        %v1063 = vld [vmem:[#allocation15 + $0x3c] sm:$0xf]
        %v1064 = vld [vmem:[#allocation2 + $0x40] sm:$0xf]
        %v1065 = vld [vmem:[#allocation2 + $0x44] sm:$0xf]
        %s1066 = scalar_lea.vmem [#allocation15], 64
        %v1067 = vld [vmem:[%s1066] sm:$0xf]
        %v1068 = vld [vmem:[%s1066 + $0x4] sm:$0xf]
        %v1069 = vld [vmem:[%s1066 + $0x8] sm:$0xf]
        %v1070 = vld [vmem:[%s1066 + $0xc] sm:$0xf]
        %v1071 = vld [vmem:[%s1066 + $0x10] sm:$0xf]
        %v1072 = vld [vmem:[%s1066 + $0x14] sm:$0xf]
        %v1073 = vld [vmem:[%s1066 + $0x18] sm:$0xf]
        %v1074 = vld [vmem:[%s1066 + $0x1c] sm:$0xf]
        %v1075 = vld [vmem:[%s1066 + $0x20] sm:$0xf]
        %v1076 = vld [vmem:[%s1066 + $0x24] sm:$0xf]
        %v1077 = vld [vmem:[%s1066 + $0x28] sm:$0xf]
        %v1078 = vld [vmem:[%s1066 + $0x2c] sm:$0xf]
        %v1079 = vld [vmem:[%s1066 + $0x30] sm:$0xf]
        %v1080 = vld [vmem:[%s1066 + $0x34] sm:$0xf]
        %v1081 = vld [vmem:[%s1066 + $0x38] sm:$0xf]
        %v1082 = vld [vmem:[%s1066 + $0x3c] sm:$0xf]
        %v1099 = vunpack.c.l.b16 %v1034
        %v1100 = vunpack.c.l.b16 %v1035
        %v1101 = vunpack.c.l.b16 %v1036
        %v1102 = vunpack.c.l.b16 %v1037
        %v1103 = vunpack.c.l.b16 %v1038
        %v1104 = vunpack.c.l.b16 %v1039
        %v1105 = vunpack.c.l.b16 %v1040
        %v1106 = vunpack.c.l.b16 %v1041
        %v1107 = vunpack.c.l.b16 %v1042
        %v1108 = vunpack.c.l.b16 %v1043
        %v1109 = vunpack.c.l.b16 %v1044
        %v1110 = vunpack.c.l.b16 %v1045
        %v1111 = vunpack.c.l.b16 %v1046
        %v1112 = vunpack.c.l.b16 %v1047
        %v1113 = vunpack.c.l.b16 %v1064
        %v1114 = vunpack.c.l.b16 %v1065
        %v1115 = vpack.c.b16 %v1100, %v1099
        %v1116 = vpack.c.b16 %v1102, %v1101
        %v1117 = vpack.c.b16 %v1104, %v1103
        %v1118 = vpack.c.b16 %v1106, %v1105
        %v1119 = vpack.c.b16 %v1108, %v1107
        %v1120 = vpack.c.b16 %v1110, %v1109
        %v1121 = vpack.c.b16 %v1112, %v1111
        %v1122 = vpack.c.b16 %v1114, %v1113
        %v1147 = vunpack.c.l.b16 %v1067
        %v1148 = vunpack.c.l.b16 %v1068
        %v1149 = vunpack.c.l.b16 %v1069
        %v1150 = vunpack.c.l.b16 %v1070
        %v1151 = vunpack.c.l.b16 %v1071
        %v1152 = vunpack.c.l.b16 %v1072
        %v1153 = vunpack.c.l.b16 %v1073
        %v1154 = vunpack.c.l.b16 %v1074
        %v1155 = vunpack.c.l.b16 %v1075
        %v1156 = vunpack.c.l.b16 %v1076
        %v1157 = vunpack.c.l.b16 %v1077
        %v1158 = vunpack.c.l.b16 %v1078
        %v1159 = vunpack.c.l.b16 %v1079
        %v1160 = vunpack.c.l.b16 %v1080
        %v1161 = vunpack.c.l.b16 %v1081
        %v1162 = vunpack.c.l.b16 %v1082
        %v1163 = vpack.c.b16 %v1148, %v1147
        %v1164 = vpack.c.b16 %v1150, %v1149
        %v1165 = vpack.c.b16 %v1152, %v1151
        %v1166 = vpack.c.b16 %v1154, %v1153
        %v1167 = vpack.c.b16 %v1156, %v1155
        %v1168 = vpack.c.b16 %v1158, %v1157
        %v1169 = vpack.c.b16 %v1160, %v1159
        %v1170 = vpack.c.b16 %v1162, %v1161
        %1179 = vmatpush.bf16.msra.mxu0 %v1170
        %1180 = vmatpush.bf16.msra.mxu0 %v1169
        %1181 = vmatpush.bf16.msra.mxu0 %v1168
        %1182 = vmatpush.bf16.msra.mxu0 %v1167
        %1183 = vmatpush.bf16.msra.mxu0 %v1166
        %1184 = vmatpush.bf16.msra.mxu0 %v1165
        %1185 = vmatpush.bf16.msra.mxu0 %v1164
        %1186 = vmatpush.bf16.msra.mxu0 %v1163
        %1187 = vmatmul.bf16.gmra.mxu0 %v1115
        %v1188 = vpop.f32.mrf.mxu0
        %v1189 = vadd.f32 0.0, %v1188
        %v1190 = vpop.f32.mrf.mxu0
        %v1191 = vadd.f32 0.0, %v1190
        %1192 = vmatmul.bf16.gmra.mxu0 %v1116
        %v1193 = vpop.f32.mrf.mxu0
        %v1194 = vadd.f32 0.0, %v1193
        %v1195 = vpop.f32.mrf.mxu0
        %v1196 = vadd.f32 0.0, %v1195
        %1197 = vmatmul.bf16.gmra.mxu0 %v1117
        %v1198 = vpop.f32.mrf.mxu0
        %v1199 = vadd.f32 0.0, %v1198
        %v1200 = vpop.f32.mrf.mxu0
        %v1201 = vadd.f32 0.0, %v1200
        %1202 = vmatmul.bf16.gmra.mxu0 %v1118
        %v1203 = vpop.f32.mrf.mxu0
        %v1204 = vadd.f32 0.0, %v1203
        %v1205 = vpop.f32.mrf.mxu0
        %v1206 = vadd.f32 0.0, %v1205
        %1207 = vmatmul.bf16.gmra.mxu0 %v1119
        %v1208 = vpop.f32.mrf.mxu0
        %v1209 = vadd.f32 0.0, %v1208
        %v1210 = vpop.f32.mrf.mxu0
        %v1211 = vadd.f32 0.0, %v1210
        %1212 = vmatmul.bf16.gmra.mxu0 %v1120
        %v1213 = vpop.f32.mrf.mxu0
        %v1214 = vadd.f32 0.0, %v1213
        %v1215 = vpop.f32.mrf.mxu0
        %v1216 = vadd.f32 0.0, %v1215
        %1217 = vmatmul.bf16.gmra.mxu0 %v1121
        %v1218 = vpop.f32.mrf.mxu0
        %v1219 = vadd.f32 0.0, %v1218
        %v1220 = vpop.f32.mrf.mxu0
        %v1221 = vadd.f32 0.0, %v1220
        %1222 = vmatmul.bf16.gmra.mxu0 %v1122
        %v1223 = vpop.f32.mrf.mxu0
        %v1224 = vadd.f32 0.0, %v1223
        %v1225 = vpop.f32.mrf.mxu0
        %v1226 = vadd.f32 0.0, %v1225
        %1227 = vdwg.mxu0
        %v1230 = vunpack.c.l.b16 %v1032
        %v1231 = vunpack.c.l.b16 %v1033
        %v1232 = vpack.c.b16 %v1231, %v1230
        %v1250 = vunpack.c.l.b16 %v1048
        %v1251 = vunpack.c.l.b16 %v1049
        %v1252 = vunpack.c.l.b16 %v1050
        %v1253 = vunpack.c.l.b16 %v1051
        %v1254 = vunpack.c.l.b16 %v1052
        %v1255 = vunpack.c.l.b16 %v1053
        %v1256 = vunpack.c.l.b16 %v1054
        %v1257 = vunpack.c.l.b16 %v1055
        %v1258 = vunpack.c.l.b16 %v1056
        %v1259 = vunpack.c.l.b16 %v1057
        %v1260 = vunpack.c.l.b16 %v1058
        %v1261 = vunpack.c.l.b16 %v1059
        %v1262 = vunpack.c.l.b16 %v1060
        %v1263 = vunpack.c.l.b16 %v1061
        %v1264 = vunpack.c.l.b16 %v1062
        %v1265 = vunpack.c.l.b16 %v1063
        %v1266 = vpack.c.b16 %v1251, %v1250
        %v1267 = vpack.c.b16 %v1253, %v1252
        %v1268 = vpack.c.b16 %v1255, %v1254
        %v1269 = vpack.c.b16 %v1257, %v1256
        %v1270 = vpack.c.b16 %v1259, %v1258
        %v1271 = vpack.c.b16 %v1261, %v1260
        %v1272 = vpack.c.b16 %v1263, %v1262
        %v1273 = vpack.c.b16 %v1265, %v1264
        %1282 = vmatpush.bf16.msra.mxu0 %v1273
        %1283 = vmatpush.bf16.msra.mxu0 %v1272
        %1284 = vmatpush.bf16.msra.mxu0 %v1271
        %1285 = vmatpush.bf16.msra.mxu0 %v1270
        %1286 = vmatpush.bf16.msra.mxu0 %v1269
        %1287 = vmatpush.bf16.msra.mxu0 %v1268
        %1288 = vmatpush.bf16.msra.mxu0 %v1267
        %1289 = vmatpush.bf16.msra.mxu0 %v1266
        %1290 = vmatmul.bf16.gmra.mxu0 %v1232
        %v1291 = vpop.f32.mrf.mxu0
        %v1292 = vadd.f32 %v1189, %v1291
        %v1293 = vpop.f32.mrf.mxu0
        %v1294 = vadd.f32 %v1191, %v1293
        %1295 = vmatmul.bf16.gmra.mxu0 %v1115
        %v1296 = vpop.f32.mrf.mxu0
        %v1297 = vadd.f32 %v1194, %v1296
        %v1298 = vpop.f32.mrf.mxu0
        %v1299 = vadd.f32 %v1196, %v1298
        %1300 = vmatmul.bf16.gmra.mxu0 %v1116
        %v1301 = vpop.f32.mrf.mxu0
        %v1302 = vadd.f32 %v1199, %v1301
        %v1303 = vpop.f32.mrf.mxu0
        %v1304 = vadd.f32 %v1201, %v1303
        %1305 = vmatmul.bf16.gmra.mxu0 %v1117
        %v1306 = vpop.f32.mrf.mxu0
        %v1307 = vadd.f32 %v1204, %v1306
        %v1308 = vpop.f32.mrf.mxu0
        %v1309 = vadd.f32 %v1206, %v1308
        %1310 = vmatmul.bf16.gmra.mxu0 %v1118
        %v1311 = vpop.f32.mrf.mxu0
        %v1312 = vadd.f32 %v1209, %v1311
        %v1313 = vpop.f32.mrf.mxu0
        %v1314 = vadd.f32 %v1211, %v1313
        %1315 = vmatmul.bf16.gmra.mxu0 %v1119
        %v1316 = vpop.f32.mrf.mxu0
        %v1317 = vadd.f32 %v1214, %v1316
        %v1318 = vpop.f32.mrf.mxu0
        %v1319 = vadd.f32 %v1216, %v1318
        %1320 = vmatmul.bf16.gmra.mxu0 %v1120
        %v1321 = vpop.f32.mrf.mxu0
        %v1322 = vadd.f32 %v1219, %v1321
        %v1323 = vpop.f32.mrf.mxu0
        %v1324 = vadd.f32 %v1221, %v1323
        %1325 = vmatmul.bf16.gmra.mxu0 %v1121
        %v1326 = vpop.f32.mrf.mxu0
        %v1327 = vadd.f32 %v1224, %v1326
        %v1328 = vpop.f32.mrf.mxu0
        %v1329 = vadd.f32 %v1226, %v1328
        %1330 = vdwg.mxu0
        %v1331 = vld [vmem:[#allocation2 + $0x10] sm:$0xf]
        %v1332 = vld [vmem:[#allocation2 + $0x14] sm:$0xf]
        %v1333 = vld [vmem:[#allocation2 + $0x18] sm:$0xf]
        %v1334 = vld [vmem:[#allocation2 + $0x1c] sm:$0xf]
        %v1335 = vld [vmem:[#allocation2 + $0x20] sm:$0xf]
        %v1336 = vld [vmem:[#allocation2 + $0x24] sm:$0xf]
        %v1337 = vld [vmem:[#allocation2 + $0x28] sm:$0xf]
        %v1338 = vld [vmem:[#allocation2 + $0x2c] sm:$0xf]
        %v1339 = vld [vmem:[#allocation2 + $0x30] sm:$0xf]
        %v1340 = vld [vmem:[#allocation2 + $0x34] sm:$0xf]
        %v1341 = vld [vmem:[#allocation2 + $0x38] sm:$0xf]
        %v1342 = vld [vmem:[#allocation2 + $0x3c] sm:$0xf]
        %v1343 = vld [vmem:[#allocation2 + $0x40] sm:$0xf]
        %v1344 = vld [vmem:[#allocation2 + $0x44] sm:$0xf]
        %v1345 = vld [vmem:[#allocation2 + $0x48] sm:$0xf]
        %v1346 = vld [vmem:[#allocation2 + $0x4c] sm:$0xf]
        %s1347 = scalar_lea.vmem [#allocation15], 128
        %v1348 = vld [vmem:[%s1347] sm:$0xf]
        %v1349 = vld [vmem:[%s1347 + $0x4] sm:$0xf]
        %v1350 = vld [vmem:[%s1347 + $0x8] sm:$0xf]
        %v1351 = vld [vmem:[%s1347 + $0xc] sm:$0xf]
        %v1352 = vld [vmem:[%s1347 + $0x10] sm:$0xf]
        %v1353 = vld [vmem:[%s1347 + $0x14] sm:$0xf]
        %v1354 = vld [vmem:[%s1347 + $0x18] sm:$0xf]
        %v1355 = vld [vmem:[%s1347 + $0x1c] sm:$0xf]
        %v1356 = vld [vmem:[%s1347 + $0x20] sm:$0xf]
        %v1357 = vld [vmem:[%s1347 + $0x24] sm:$0xf]
        %v1358 = vld [vmem:[%s1347 + $0x28] sm:$0xf]
        %v1359 = vld [vmem:[%s1347 + $0x2c] sm:$0xf]
        %v1360 = vld [vmem:[%s1347 + $0x30] sm:$0xf]
        %v1361 = vld [vmem:[%s1347 + $0x34] sm:$0xf]
        %v1362 = vld [vmem:[%s1347 + $0x38] sm:$0xf]
        %v1363 = vld [vmem:[%s1347 + $0x3c] sm:$0xf]
        %v1380 = vunpack.c.l.b16 %v1331
        %v1381 = vunpack.c.l.b16 %v1332
        %v1382 = vunpack.c.l.b16 %v1333
        %v1383 = vunpack.c.l.b16 %v1334
        %v1384 = vunpack.c.l.b16 %v1335
        %v1385 = vunpack.c.l.b16 %v1336
        %v1386 = vunpack.c.l.b16 %v1337
        %v1387 = vunpack.c.l.b16 %v1338
        %v1388 = vunpack.c.l.b16 %v1339
        %v1389 = vunpack.c.l.b16 %v1340
        %v1390 = vunpack.c.l.b16 %v1341
        %v1391 = vunpack.c.l.b16 %v1342
        %v1392 = vunpack.c.l.b16 %v1343
        %v1393 = vunpack.c.l.b16 %v1344
        %v1394 = vunpack.c.l.b16 %v1345
        %v1395 = vunpack.c.l.b16 %v1346
        %v1396 = vpack.c.b16 %v1381, %v1380
        %v1397 = vpack.c.b16 %v1383, %v1382
        %v1398 = vpack.c.b16 %v1385, %v1384
        %v1399 = vpack.c.b16 %v1387, %v1386
        %v1400 = vpack.c.b16 %v1389, %v1388
        %v1401 = vpack.c.b16 %v1391, %v1390
        %v1402 = vpack.c.b16 %v1393, %v1392
        %v1403 = vpack.c.b16 %v1395, %v1394
        %v1428 = vunpack.c.l.b16 %v1348
        %v1429 = vunpack.c.l.b16 %v1349
        %v1430 = vunpack.c.l.b16 %v1350
        %v1431 = vunpack.c.l.b16 %v1351
        %v1432 = vunpack.c.l.b16 %v1352
        %v1433 = vunpack.c.l.b16 %v1353
        %v1434 = vunpack.c.l.b16 %v1354
        %v1435 = vunpack.c.l.b16 %v1355
        %v1436 = vunpack.c.l.b16 %v1356
        %v1437 = vunpack.c.l.b16 %v1357
        %v1438 = vunpack.c.l.b16 %v1358
        %v1439 = vunpack.c.l.b16 %v1359
        %v1440 = vunpack.c.l.b16 %v1360
        %v1441 = vunpack.c.l.b16 %v1361
        %v1442 = vunpack.c.l.b16 %v1362
        %v1443 = vunpack.c.l.b16 %v1363
        %v1444 = vpack.c.b16 %v1429, %v1428
        %v1445 = vpack.c.b16 %v1431, %v1430
        %v1446 = vpack.c.b16 %v1433, %v1432
        %v1447 = vpack.c.b16 %v1435, %v1434
        %v1448 = vpack.c.b16 %v1437, %v1436
        %v1449 = vpack.c.b16 %v1439, %v1438
        %v1450 = vpack.c.b16 %v1441, %v1440
        %v1451 = vpack.c.b16 %v1443, %v1442
        %1460 = vmatpush.bf16.msra.mxu0 %v1451
        %1461 = vmatpush.bf16.msra.mxu0 %v1450
        %1462 = vmatpush.bf16.msra.mxu0 %v1449
        %1463 = vmatpush.bf16.msra.mxu0 %v1448
        %1464 = vmatpush.bf16.msra.mxu0 %v1447
        %1465 = vmatpush.bf16.msra.mxu0 %v1446
        %1466 = vmatpush.bf16.msra.mxu0 %v1445
        %1467 = vmatpush.bf16.msra.mxu0 %v1444
        %1468 = vmatmul.bf16.gmra.mxu0 %v1396
        %v1469 = vpop.f32.mrf.mxu0
        %v1470 = vadd.f32 0.0, %v1469
        %v1471 = vpop.f32.mrf.mxu0
        %v1472 = vadd.f32 0.0, %v1471
        %1473 = vmatmul.bf16.gmra.mxu0 %v1397
        %v1474 = vpop.f32.mrf.mxu0
        %v1475 = vadd.f32 0.0, %v1474
        %v1476 = vpop.f32.mrf.mxu0
        %v1477 = vadd.f32 0.0, %v1476
        %1478 = vmatmul.bf16.gmra.mxu0 %v1398
        %v1479 = vpop.f32.mrf.mxu0
        %v1480 = vadd.f32 0.0, %v1479
        %v1481 = vpop.f32.mrf.mxu0
        %v1482 = vadd.f32 0.0, %v1481
        %1483 = vmatmul.bf16.gmra.mxu0 %v1399
        %v1484 = vpop.f32.mrf.mxu0
        %v1485 = vadd.f32 0.0, %v1484
        %v1486 = vpop.f32.mrf.mxu0
        %v1487 = vadd.f32 0.0, %v1486
        %1488 = vmatmul.bf16.gmra.mxu0 %v1400
        %v1489 = vpop.f32.mrf.mxu0
        %v1490 = vadd.f32 0.0, %v1489
        %v1491 = vpop.f32.mrf.mxu0
        %v1492 = vadd.f32 0.0, %v1491
        %1493 = vmatmul.bf16.gmra.mxu0 %v1401
        %v1494 = vpop.f32.mrf.mxu0
        %v1495 = vadd.f32 0.0, %v1494
        %v1496 = vpop.f32.mrf.mxu0
        %v1497 = vadd.f32 0.0, %v1496
        %1498 = vmatmul.bf16.gmra.mxu0 %v1402
        %v1499 = vpop.f32.mrf.mxu0
        %v1500 = vadd.f32 0.0, %v1499
        %v1501 = vpop.f32.mrf.mxu0
        %v1502 = vadd.f32 0.0, %v1501
        %1503 = vmatmul.bf16.gmra.mxu0 %v1403
        %v1504 = vpop.f32.mrf.mxu0
        %v1505 = vadd.f32 0.0, %v1504
        %v1506 = vpop.f32.mrf.mxu0
        %v1507 = vadd.f32 0.0, %v1506
        %1508 = vdwg.mxu0
        %v1509 = vadd.f32 %v1292, %v1470
        %v1510 = vadd.f32 %v1294, %v1472
        %v1511 = vadd.f32 %v1297, %v1475
        %v1512 = vadd.f32 %v1299, %v1477
        %v1513 = vadd.f32 %v1302, %v1480
        %v1514 = vadd.f32 %v1304, %v1482
        %v1515 = vadd.f32 %v1307, %v1485
        %v1516 = vadd.f32 %v1309, %v1487
        %v1517 = vadd.f32 %v1312, %v1490
        %v1518 = vadd.f32 %v1314, %v1492
        %v1519 = vadd.f32 %v1317, %v1495
        %v1520 = vadd.f32 %v1319, %v1497
        %v1521 = vadd.f32 %v1322, %v1500
        %v1522 = vadd.f32 %v1324, %v1502
        %v1523 = vadd.f32 %v1327, %v1505
        %v1524 = vadd.f32 %v1329, %v1507
        %v1525 = vld [vmem:[#allocation2 + $0x18] sm:$0xf]
        %v1526 = vld [vmem:[#allocation2 + $0x1c] sm:$0xf]
        %v1527 = vld [vmem:[#allocation2 + $0x20] sm:$0xf]
        %v1528 = vld [vmem:[#allocation2 + $0x24] sm:$0xf]
        %v1529 = vld [vmem:[#allocation2 + $0x28] sm:$0xf]
        %v1530 = vld [vmem:[#allocation2 + $0x2c] sm:$0xf]
        %v1531 = vld [vmem:[#allocation2 + $0x30] sm:$0xf]
        %v1532 = vld [vmem:[#allocation2 + $0x34] sm:$0xf]
        %v1533 = vld [vmem:[#allocation2 + $0x38] sm:$0xf]
        %v1534 = vld [vmem:[#allocation2 + $0x3c] sm:$0xf]
        %v1535 = vld [vmem:[#allocation2 + $0x40] sm:$0xf]
        %v1536 = vld [vmem:[#allocation2 + $0x44] sm:$0xf]
        %v1537 = vld [vmem:[#allocation2 + $0x48] sm:$0xf]
        %v1538 = vld [vmem:[#allocation2 + $0x4c] sm:$0xf]
        %v1539 = vld [vmem:[#allocation2 + $0x50] sm:$0xf]
        %v1540 = vld [vmem:[#allocation2 + $0x54] sm:$0xf]
        %s1541 = scalar_lea.vmem [#allocation15], 192
        %v1542 = vld [vmem:[%s1541] sm:$0xf]
        %v1543 = vld [vmem:[%s1541 + $0x4] sm:$0xf]
        %v1544 = vld [vmem:[%s1541 + $0x8] sm:$0xf]
        %v1545 = vld [vmem:[%s1541 + $0xc] sm:$0xf]
        %v1546 = vld [vmem:[%s1541 + $0x10] sm:$0xf]
        %v1547 = vld [vmem:[%s1541 + $0x14] sm:$0xf]
        %v1548 = vld [vmem:[%s1541 + $0x18] sm:$0xf]
        %v1549 = vld [vmem:[%s1541 + $0x1c] sm:$0xf]
        %v1550 = vld [vmem:[%s1541 + $0x20] sm:$0xf]
        %v1551 = vld [vmem:[%s1541 + $0x24] sm:$0xf]
        %v1552 = vld [vmem:[%s1541 + $0x28] sm:$0xf]
        %v1553 = vld [vmem:[%s1541 + $0x2c] sm:$0xf]
        %v1554 = vld [vmem:[%s1541 + $0x30] sm:$0xf]
        %v1555 = vld [vmem:[%s1541 + $0x34] sm:$0xf]
        %v1556 = vld [vmem:[%s1541 + $0x38] sm:$0xf]
        %v1557 = vld [vmem:[%s1541 + $0x3c] sm:$0xf]
        %v1574 = vunpack.c.l.b16 %v1525
        %v1575 = vunpack.c.l.b16 %v1526
        %v1576 = vunpack.c.l.b16 %v1527
        %v1577 = vunpack.c.l.b16 %v1528
        %v1578 = vunpack.c.l.b16 %v1529
        %v1579 = vunpack.c.l.b16 %v1530
        %v1580 = vunpack.c.l.b16 %v1531
        %v1581 = vunpack.c.l.b16 %v1532
        %v1582 = vunpack.c.l.b16 %v1533
        %v1583 = vunpack.c.l.b16 %v1534
        %v1584 = vunpack.c.l.b16 %v1535
        %v1585 = vunpack.c.l.b16 %v1536
        %v1586 = vunpack.c.l.b16 %v1537
        %v1587 = vunpack.c.l.b16 %v1538
        %v1588 = vunpack.c.l.b16 %v1539
        %v1589 = vunpack.c.l.b16 %v1540
        %v1590 = vpack.c.b16 %v1575, %v1574
        %v1591 = vpack.c.b16 %v1577, %v1576
        %v1592 = vpack.c.b16 %v1579, %v1578
        %v1593 = vpack.c.b16 %v1581, %v1580
        %v1594 = vpack.c.b16 %v1583, %v1582
        %v1595 = vpack.c.b16 %v1585, %v1584
        %v1596 = vpack.c.b16 %v1587, %v1586
        %v1597 = vpack.c.b16 %v1589, %v1588
        %v1622 = vunpack.c.l.b16 %v1542
        %v1623 = vunpack.c.l.b16 %v1543
        %v1624 = vunpack.c.l.b16 %v1544
        %v1625 = vunpack.c.l.b16 %v1545
        %v1626 = vunpack.c.l.b16 %v1546
        %v1627 = vunpack.c.l.b16 %v1547
        %v1628 = vunpack.c.l.b16 %v1548
        %v1629 = vunpack.c.l.b16 %v1549
        %v1630 = vunpack.c.l.b16 %v1550
        %v1631 = vunpack.c.l.b16 %v1551
        %v1632 = vunpack.c.l.b16 %v1552
        %v1633 = vunpack.c.l.b16 %v1553
        %v1634 = vunpack.c.l.b16 %v1554
        %v1635 = vunpack.c.l.b16 %v1555
        %v1636 = vunpack.c.l.b16 %v1556
        %v1637 = vunpack.c.l.b16 %v1557
        %v1638 = vpack.c.b16 %v1623, %v1622
        %v1639 = vpack.c.b16 %v1625, %v1624
        %v1640 = vpack.c.b16 %v1627, %v1626
        %v1641 = vpack.c.b16 %v1629, %v1628
        %v1642 = vpack.c.b16 %v1631, %v1630
        %v1643 = vpack.c.b16 %v1633, %v1632
        %v1644 = vpack.c.b16 %v1635, %v1634
        %v1645 = vpack.c.b16 %v1637, %v1636
        %1654 = vmatpush.bf16.msra.mxu0 %v1645
        %1655 = vmatpush.bf16.msra.mxu0 %v1644
        %1656 = vmatpush.bf16.msra.mxu0 %v1643
        %1657 = vmatpush.bf16.msra.mxu0 %v1642
        %1658 = vmatpush.bf16.msra.mxu0 %v1641
        %1659 = vmatpush.bf16.msra.mxu0 %v1640
        %1660 = vmatpush.bf16.msra.mxu0 %v1639
        %1661 = vmatpush.bf16.msra.mxu0 %v1638
        %1662 = vmatmul.bf16.gmra.mxu0 %v1590
        %v1663 = vpop.f32.mrf.mxu0
        %v1664 = vadd.f32 0.0, %v1663
        %v1665 = vpop.f32.mrf.mxu0
        %v1666 = vadd.f32 0.0, %v1665
        %1667 = vmatmul.bf16.gmra.mxu0 %v1591
        %v1668 = vpop.f32.mrf.mxu0
        %v1669 = vadd.f32 0.0, %v1668
        %v1670 = vpop.f32.mrf.mxu0
        %v1671 = vadd.f32 0.0, %v1670
        %1672 = vmatmul.bf16.gmra.mxu0 %v1592
        %v1673 = vpop.f32.mrf.mxu0
        %v1674 = vadd.f32 0.0, %v1673
        %v1675 = vpop.f32.mrf.mxu0
        %v1676 = vadd.f32 0.0, %v1675
        %1677 = vmatmul.bf16.gmra.mxu0 %v1593
        %v1678 = vpop.f32.mrf.mxu0
        %v1679 = vadd.f32 0.0, %v1678
        %v1680 = vpop.f32.mrf.mxu0
        %v1681 = vadd.f32 0.0, %v1680
        %1682 = vmatmul.bf16.gmra.mxu0 %v1594
        %v1683 = vpop.f32.mrf.mxu0
        %v1684 = vadd.f32 0.0, %v1683
        %v1685 = vpop.f32.mrf.mxu0
        %v1686 = vadd.f32 0.0, %v1685
        %1687 = vmatmul.bf16.gmra.mxu0 %v1595
        %v1688 = vpop.f32.mrf.mxu0
        %v1689 = vadd.f32 0.0, %v1688
        %v1690 = vpop.f32.mrf.mxu0
        %v1691 = vadd.f32 0.0, %v1690
        %1692 = vmatmul.bf16.gmra.mxu0 %v1596
        %v1693 = vpop.f32.mrf.mxu0
        %v1694 = vadd.f32 0.0, %v1693
        %v1695 = vpop.f32.mrf.mxu0
        %v1696 = vadd.f32 0.0, %v1695
        %1697 = vmatmul.bf16.gmra.mxu0 %v1597
        %v1698 = vpop.f32.mrf.mxu0
        %v1699 = vadd.f32 0.0, %v1698
        %v1700 = vpop.f32.mrf.mxu0
        %v1701 = vadd.f32 0.0, %v1700
        %1702 = vdwg.mxu0
        %v1703 = vadd.f32 %v1509, %v1664
        %v1704 = vadd.f32 %v1510, %v1666
        %v1705 = vadd.f32 %v1511, %v1669
        %v1706 = vadd.f32 %v1512, %v1671
        %v1707 = vadd.f32 %v1513, %v1674
        %v1708 = vadd.f32 %v1514, %v1676
        %v1709 = vadd.f32 %v1515, %v1679
        %v1710 = vadd.f32 %v1516, %v1681
        %v1711 = vadd.f32 %v1517, %v1684
        %v1712 = vadd.f32 %v1518, %v1686
        %v1713 = vadd.f32 %v1519, %v1689
        %v1714 = vadd.f32 %v1520, %v1691
        %v1715 = vadd.f32 %v1521, %v1694
        %v1716 = vadd.f32 %v1522, %v1696
        %v1717 = vadd.f32 %v1523, %v1699
        %v1718 = vadd.f32 %v1524, %v1701
        %v1719 = vld [vmem:[#allocation2 + $0x20] sm:$0xf]
        %v1720 = vld [vmem:[#allocation2 + $0x24] sm:$0xf]
        %v1721 = vld [vmem:[#allocation2 + $0x28] sm:$0xf]
        %v1722 = vld [vmem:[#allocation2 + $0x2c] sm:$0xf]
        %v1723 = vld [vmem:[#allocation2 + $0x30] sm:$0xf]
        %v1724 = vld [vmem:[#allocation2 + $0x34] sm:$0xf]
        %v1725 = vld [vmem:[#allocation2 + $0x38] sm:$0xf]
        %v1726 = vld [vmem:[#allocation2 + $0x3c] sm:$0xf]
        %v1727 = vld [vmem:[#allocation2 + $0x40] sm:$0xf]
        %v1728 = vld [vmem:[#allocation2 + $0x44] sm:$0xf]
        %v1729 = vld [vmem:[#allocation2 + $0x48] sm:$0xf]
        %v1730 = vld [vmem:[#allocation2 + $0x4c] sm:$0xf]
        %v1731 = vld [vmem:[#allocation2 + $0x50] sm:$0xf]
        %v1732 = vld [vmem:[#allocation2 + $0x54] sm:$0xf]
        %v1733 = vld [vmem:[#allocation2 + $0x58] sm:$0xf]
        %v1734 = vld [vmem:[#allocation2 + $0x5c] sm:$0xf]
        %s1735 = scalar_lea.vmem [#allocation15], 256
        %v1736 = vld [vmem:[%s1735] sm:$0xf]
        %v1737 = vld [vmem:[%s1735 + $0x4] sm:$0xf]
        %v1738 = vld [vmem:[%s1735 + $0x8] sm:$0xf]
        %v1739 = vld [vmem:[%s1735 + $0xc] sm:$0xf]
        %v1740 = vld [vmem:[%s1735 + $0x10] sm:$0xf]
        %v1741 = vld [vmem:[%s1735 + $0x14] sm:$0xf]
        %v1742 = vld [vmem:[%s1735 + $0x18] sm:$0xf]
        %v1743 = vld [vmem:[%s1735 + $0x1c] sm:$0xf]
        %v1744 = vld [vmem:[%s1735 + $0x20] sm:$0xf]
        %v1745 = vld [vmem:[%s1735 + $0x24] sm:$0xf]
        %v1746 = vld [vmem:[%s1735 + $0x28] sm:$0xf]
        %v1747 = vld [vmem:[%s1735 + $0x2c] sm:$0xf]
        %v1748 = vld [vmem:[%s1735 + $0x30] sm:$0xf]
        %v1749 = vld [vmem:[%s1735 + $0x34] sm:$0xf]
        %v1750 = vld [vmem:[%s1735 + $0x38] sm:$0xf]
        %v1751 = vld [vmem:[%s1735 + $0x3c] sm:$0xf]
        %v1768 = vunpack.c.l.b16 %v1719
        %v1769 = vunpack.c.l.b16 %v1720
        %v1770 = vunpack.c.l.b16 %v1721
        %v1771 = vunpack.c.l.b16 %v1722
        %v1772 = vunpack.c.l.b16 %v1723
        %v1773 = vunpack.c.l.b16 %v1724
        %v1774 = vunpack.c.l.b16 %v1725
        %v1775 = vunpack.c.l.b16 %v1726
        %v1776 = vunpack.c.l.b16 %v1727
        %v1777 = vunpack.c.l.b16 %v1728
        %v1778 = vunpack.c.l.b16 %v1729
        %v1779 = vunpack.c.l.b16 %v1730
        %v1780 = vunpack.c.l.b16 %v1731
        %v1781 = vunpack.c.l.b16 %v1732
        %v1782 = vunpack.c.l.b16 %v1733
        %v1783 = vunpack.c.l.b16 %v1734
        %v1784 = vpack.c.b16 %v1769, %v1768
        %v1785 = vpack.c.b16 %v1771, %v1770
        %v1786 = vpack.c.b16 %v1773, %v1772
        %v1787 = vpack.c.b16 %v1775, %v1774
        %v1788 = vpack.c.b16 %v1777, %v1776
        %v1789 = vpack.c.b16 %v1779, %v1778
        %v1790 = vpack.c.b16 %v1781, %v1780
        %v1791 = vpack.c.b16 %v1783, %v1782
        %v1816 = vunpack.c.l.b16 %v1736
        %v1817 = vunpack.c.l.b16 %v1737
        %v1818 = vunpack.c.l.b16 %v1738
        %v1819 = vunpack.c.l.b16 %v1739
        %v1820 = vunpack.c.l.b16 %v1740
        %v1821 = vunpack.c.l.b16 %v1741
        %v1822 = vunpack.c.l.b16 %v1742
        %v1823 = vunpack.c.l.b16 %v1743
        %v1824 = vunpack.c.l.b16 %v1744
        %v1825 = vunpack.c.l.b16 %v1745
        %v1826 = vunpack.c.l.b16 %v1746
        %v1827 = vunpack.c.l.b16 %v1747
        %v1828 = vunpack.c.l.b16 %v1748
        %v1829 = vunpack.c.l.b16 %v1749
        %v1830 = vunpack.c.l.b16 %v1750
        %v1831 = vunpack.c.l.b16 %v1751
        %v1832 = vpack.c.b16 %v1817, %v1816
        %v1833 = vpack.c.b16 %v1819, %v1818
        %v1834 = vpack.c.b16 %v1821, %v1820
        %v1835 = vpack.c.b16 %v1823, %v1822
        %v1836 = vpack.c.b16 %v1825, %v1824
        %v1837 = vpack.c.b16 %v1827, %v1826
        %v1838 = vpack.c.b16 %v1829, %v1828
        %v1839 = vpack.c.b16 %v1831, %v1830
        %1848 = vmatpush.bf16.msra.mxu0 %v1839
        %1849 = vmatpush.bf16.msra.mxu0 %v1838
        %1850 = vmatpush.bf16.msra.mxu0 %v1837
        %1851 = vmatpush.bf16.msra.mxu0 %v1836
        %1852 = vmatpush.bf16.msra.mxu0 %v1835
        %1853 = vmatpush.bf16.msra.mxu0 %v1834
        %1854 = vmatpush.bf16.msra.mxu0 %v1833
        %1855 = vmatpush.bf16.msra.mxu0 %v1832
        %1856 = vmatmul.bf16.gmra.mxu0 %v1784
        %v1857 = vpop.f32.mrf.mxu0
        %v1858 = vadd.f32 0.0, %v1857
        %v1859 = vpop.f32.mrf.mxu0
        %v1860 = vadd.f32 0.0, %v1859
        %1861 = vmatmul.bf16.gmra.mxu0 %v1785
        %v1862 = vpop.f32.mrf.mxu0
        %v1863 = vadd.f32 0.0, %v1862
        %v1864 = vpop.f32.mrf.mxu0
        %v1865 = vadd.f32 0.0, %v1864
        %1866 = vmatmul.bf16.gmra.mxu0 %v1786
        %v1867 = vpop.f32.mrf.mxu0
        %v1868 = vadd.f32 0.0, %v1867
        %v1869 = vpop.f32.mrf.mxu0
        %v1870 = vadd.f32 0.0, %v1869
        %1871 = vmatmul.bf16.gmra.mxu0 %v1787
        %v1872 = vpop.f32.mrf.mxu0
        %v1873 = vadd.f32 0.0, %v1872
        %v1874 = vpop.f32.mrf.mxu0
        %v1875 = vadd.f32 0.0, %v1874
        %1876 = vmatmul.bf16.gmra.mxu0 %v1788
        %v1877 = vpop.f32.mrf.mxu0
        %v1878 = vadd.f32 0.0, %v1877
        %v1879 = vpop.f32.mrf.mxu0
        %v1880 = vadd.f32 0.0, %v1879
        %1881 = vmatmul.bf16.gmra.mxu0 %v1789
        %v1882 = vpop.f32.mrf.mxu0
        %v1883 = vadd.f32 0.0, %v1882
        %v1884 = vpop.f32.mrf.mxu0
        %v1885 = vadd.f32 0.0, %v1884
        %1886 = vmatmul.bf16.gmra.mxu0 %v1790
        %v1887 = vpop.f32.mrf.mxu0
        %v1888 = vadd.f32 0.0, %v1887
        %v1889 = vpop.f32.mrf.mxu0
        %v1890 = vadd.f32 0.0, %v1889
        %1891 = vmatmul.bf16.gmra.mxu0 %v1791
        %v1892 = vpop.f32.mrf.mxu0
        %v1893 = vadd.f32 0.0, %v1892
        %v1894 = vpop.f32.mrf.mxu0
        %v1895 = vadd.f32 0.0, %v1894
        %1896 = vdwg.mxu0
        %v1897 = vadd.f32 %v1703, %v1858
        %v1898 = vadd.f32 %v1704, %v1860
        %v1899 = vadd.f32 %v1705, %v1863
        %v1900 = vadd.f32 %v1706, %v1865
        %v1901 = vadd.f32 %v1707, %v1868
        %v1902 = vadd.f32 %v1708, %v1870
        %v1903 = vadd.f32 %v1709, %v1873
        %v1904 = vadd.f32 %v1710, %v1875
        %v1905 = vadd.f32 %v1711, %v1878
        %v1906 = vadd.f32 %v1712, %v1880
        %v1907 = vadd.f32 %v1713, %v1883
        %v1908 = vadd.f32 %v1714, %v1885
        %v1909 = vadd.f32 %v1715, %v1888
        %v1910 = vadd.f32 %v1716, %v1890
        %v1911 = vadd.f32 %v1717, %v1893
        %v1912 = vadd.f32 %v1718, %v1895
        %v1913 = vld [vmem:[#allocation2 + $0x28] sm:$0xf]
        %v1914 = vld [vmem:[#allocation2 + $0x2c] sm:$0xf]
        %v1915 = vld [vmem:[#allocation2 + $0x30] sm:$0xf]
        %v1916 = vld [vmem:[#allocation2 + $0x34] sm:$0xf]
        %v1917 = vld [vmem:[#allocation2 + $0x38] sm:$0xf]
        %v1918 = vld [vmem:[#allocation2 + $0x3c] sm:$0xf]
        %v1919 = vld [vmem:[#allocation2 + $0x40] sm:$0xf]
        %v1920 = vld [vmem:[#allocation2 + $0x44] sm:$0xf]
        %v1921 = vld [vmem:[#allocation2 + $0x48] sm:$0xf]
        %v1922 = vld [vmem:[#allocation2 + $0x4c] sm:$0xf]
        %v1923 = vld [vmem:[#allocation2 + $0x50] sm:$0xf]
        %v1924 = vld [vmem:[#allocation2 + $0x54] sm:$0xf]
        %v1925 = vld [vmem:[#allocation2 + $0x58] sm:$0xf]
        %v1926 = vld [vmem:[#allocation2 + $0x5c] sm:$0xf]
        %v1927 = vld [vmem:[#allocation2 + $0x60] sm:$0xf]
        %v1928 = vld [vmem:[#allocation2 + $0x64] sm:$0xf]
        %s1929 = scalar_lea.vmem [#allocation15], 320
        %v1930 = vld [vmem:[%s1929] sm:$0xf]
        %v1931 = vld [vmem:[%s1929 + $0x4] sm:$0xf]
        %v1932 = vld [vmem:[%s1929 + $0x8] sm:$0xf]
        %v1933 = vld [vmem:[%s1929 + $0xc] sm:$0xf]
        %v1934 = vld [vmem:[%s1929 + $0x10] sm:$0xf]
        %v1935 = vld [vmem:[%s1929 + $0x14] sm:$0xf]
        %v1936 = vld [vmem:[%s1929 + $0x18] sm:$0xf]
        %v1937 = vld [vmem:[%s1929 + $0x1c] sm:$0xf]
        %v1938 = vld [vmem:[%s1929 + $0x20] sm:$0xf]
        %v1939 = vld [vmem:[%s1929 + $0x24] sm:$0xf]
        %v1940 = vld [vmem:[%s1929 + $0x28] sm:$0xf]
        %v1941 = vld [vmem:[%s1929 + $0x2c] sm:$0xf]
        %v1942 = vld [vmem:[%s1929 + $0x30] sm:$0xf]
        %v1943 = vld [vmem:[%s1929 + $0x34] sm:$0xf]
        %v1944 = vld [vmem:[%s1929 + $0x38] sm:$0xf]
        %v1945 = vld [vmem:[%s1929 + $0x3c] sm:$0xf]
        %v1962 = vunpack.c.l.b16 %v1913
        %v1963 = vunpack.c.l.b16 %v1914
        %v1964 = vunpack.c.l.b16 %v1915
        %v1965 = vunpack.c.l.b16 %v1916
        %v1966 = vunpack.c.l.b16 %v1917
        %v1967 = vunpack.c.l.b16 %v1918
        %v1968 = vunpack.c.l.b16 %v1919
        %v1969 = vunpack.c.l.b16 %v1920
        %v1970 = vunpack.c.l.b16 %v1921
        %v1971 = vunpack.c.l.b16 %v1922
        %v1972 = vunpack.c.l.b16 %v1923
        %v1973 = vunpack.c.l.b16 %v1924
        %v1974 = vunpack.c.l.b16 %v1925
        %v1975 = vunpack.c.l.b16 %v1926
        %v1976 = vunpack.c.l.b16 %v1927
        %v1977 = vunpack.c.l.b16 %v1928
        %v1978 = vpack.c.b16 %v1963, %v1962
        %v1979 = vpack.c.b16 %v1965, %v1964
        %v1980 = vpack.c.b16 %v1967, %v1966
        %v1981 = vpack.c.b16 %v1969, %v1968
        %v1982 = vpack.c.b16 %v1971, %v1970
        %v1983 = vpack.c.b16 %v1973, %v1972
        %v1984 = vpack.c.b16 %v1975, %v1974
        %v1985 = vpack.c.b16 %v1977, %v1976
        %v2010 = vunpack.c.l.b16 %v1930
        %v2011 = vunpack.c.l.b16 %v1931
        %v2012 = vunpack.c.l.b16 %v1932
        %v2013 = vunpack.c.l.b16 %v1933
        %v2014 = vunpack.c.l.b16 %v1934
        %v2015 = vunpack.c.l.b16 %v1935
        %v2016 = vunpack.c.l.b16 %v1936
        %v2017 = vunpack.c.l.b16 %v1937
        %v2018 = vunpack.c.l.b16 %v1938
        %v2019 = vunpack.c.l.b16 %v1939
        %v2020 = vunpack.c.l.b16 %v1940
        %v2021 = vunpack.c.l.b16 %v1941
        %v2022 = vunpack.c.l.b16 %v1942
        %v2023 = vunpack.c.l.b16 %v1943
        %v2024 = vunpack.c.l.b16 %v1944
        %v2025 = vunpack.c.l.b16 %v1945
        %v2026 = vpack.c.b16 %v2011, %v2010
        %v2027 = vpack.c.b16 %v2013, %v2012
        %v2028 = vpack.c.b16 %v2015, %v2014
        %v2029 = vpack.c.b16 %v2017, %v2016
        %v2030 = vpack.c.b16 %v2019, %v2018
        %v2031 = vpack.c.b16 %v2021, %v2020
        %v2032 = vpack.c.b16 %v2023, %v2022
        %v2033 = vpack.c.b16 %v2025, %v2024
        %2042 = vmatpush.bf16.msra.mxu0 %v2033
        %2043 = vmatpush.bf16.msra.mxu0 %v2032
        %2044 = vmatpush.bf16.msra.mxu0 %v2031
        %2045 = vmatpush.bf16.msra.mxu0 %v2030
        %2046 = vmatpush.bf16.msra.mxu0 %v2029
        %2047 = vmatpush.bf16.msra.mxu0 %v2028
        %2048 = vmatpush.bf16.msra.mxu0 %v2027
        %2049 = vmatpush.bf16.msra.mxu0 %v2026
        %2050 = vmatmul.bf16.gmra.mxu0 %v1978
        %v2051 = vpop.f32.mrf.mxu0
        %v2052 = vadd.f32 0.0, %v2051
        %v2053 = vpop.f32.mrf.mxu0
        %v2054 = vadd.f32 0.0, %v2053
        %2055 = vmatmul.bf16.gmra.mxu0 %v1979
        %v2056 = vpop.f32.mrf.mxu0
        %v2057 = vadd.f32 0.0, %v2056
        %v2058 = vpop.f32.mrf.mxu0
        %v2059 = vadd.f32 0.0, %v2058
        %2060 = vmatmul.bf16.gmra.mxu0 %v1980
        %v2061 = vpop.f32.mrf.mxu0
        %v2062 = vadd.f32 0.0, %v2061
        %v2063 = vpop.f32.mrf.mxu0
        %v2064 = vadd.f32 0.0, %v2063
        %2065 = vmatmul.bf16.gmra.mxu0 %v1981
        %v2066 = vpop.f32.mrf.mxu0
        %v2067 = vadd.f32 0.0, %v2066
        %v2068 = vpop.f32.mrf.mxu0
        %v2069 = vadd.f32 0.0, %v2068
        %2070 = vmatmul.bf16.gmra.mxu0 %v1982
        %v2071 = vpop.f32.mrf.mxu0
        %v2072 = vadd.f32 0.0, %v2071
        %v2073 = vpop.f32.mrf.mxu0
        %v2074 = vadd.f32 0.0, %v2073
        %2075 = vmatmul.bf16.gmra.mxu0 %v1983
        %v2076 = vpop.f32.mrf.mxu0
        %v2077 = vadd.f32 0.0, %v2076
        %v2078 = vpop.f32.mrf.mxu0
        %v2079 = vadd.f32 0.0, %v2078
        %2080 = vmatmul.bf16.gmra.mxu0 %v1984
        %v2081 = vpop.f32.mrf.mxu0
        %v2082 = vadd.f32 0.0, %v2081
        %v2083 = vpop.f32.mrf.mxu0
        %v2084 = vadd.f32 0.0, %v2083
        %2085 = vmatmul.bf16.gmra.mxu0 %v1985
        %v2086 = vpop.f32.mrf.mxu0
        %v2087 = vadd.f32 0.0, %v2086
        %v2088 = vpop.f32.mrf.mxu0
        %v2089 = vadd.f32 0.0, %v2088
        %2090 = vdwg.mxu0
        %v2091 = vadd.f32 %v1897, %v2052
        %v2092 = vadd.f32 %v1898, %v2054
        %v2093 = vadd.f32 %v1899, %v2057
        %v2094 = vadd.f32 %v1900, %v2059
        %v2095 = vadd.f32 %v1901, %v2062
        %v2096 = vadd.f32 %v1902, %v2064
        %v2097 = vadd.f32 %v1903, %v2067
        %v2098 = vadd.f32 %v1904, %v2069
        %v2099 = vadd.f32 %v1905, %v2072
        %v2100 = vadd.f32 %v1906, %v2074
        %v2101 = vadd.f32 %v1907, %v2077
        %v2102 = vadd.f32 %v1908, %v2079
        %v2103 = vadd.f32 %v1909, %v2082
        %v2104 = vadd.f32 %v1910, %v2084
        %v2105 = vadd.f32 %v1911, %v2087
        %v2106 = vadd.f32 %v1912, %v2089
        %v2107 = vld [vmem:[#allocation2 + $0x30] sm:$0xf]
        %v2108 = vld [vmem:[#allocation2 + $0x34] sm:$0xf]
        %v2109 = vld [vmem:[#allocation2 + $0x38] sm:$0xf]
        %v2110 = vld [vmem:[#allocation2 + $0x3c] sm:$0xf]
        %v2111 = vld [vmem:[#allocation2 + $0x40] sm:$0xf]
        %v2112 = vld [vmem:[#allocation2 + $0x44] sm:$0xf]
        %v2113 = vld [vmem:[#allocation2 + $0x48] sm:$0xf]
        %v2114 = vld [vmem:[#allocation2 + $0x4c] sm:$0xf]
        %v2115 = vld [vmem:[#allocation2 + $0x50] sm:$0xf]
        %v2116 = vld [vmem:[#allocation2 + $0x54] sm:$0xf]
        %v2117 = vld [vmem:[#allocation2 + $0x58] sm:$0xf]
        %v2118 = vld [vmem:[#allocation2 + $0x5c] sm:$0xf]
        %v2119 = vld [vmem:[#allocation2 + $0x60] sm:$0xf]
        %v2120 = vld [vmem:[#allocation2 + $0x64] sm:$0xf]
        %v2121 = vld [vmem:[#allocation2 + $0x68] sm:$0xf]
        %v2122 = vld [vmem:[#allocation2 + $0x6c] sm:$0xf]
        %s2123 = scalar_lea.vmem [#allocation15], 384
        %v2124 = vld [vmem:[%s2123] sm:$0xf]
        %v2125 = vld [vmem:[%s2123 + $0x4] sm:$0xf]
        %v2126 = vld [vmem:[%s2123 + $0x8] sm:$0xf]
        %v2127 = vld [vmem:[%s2123 + $0xc] sm:$0xf]
        %v2128 = vld [vmem:[%s2123 + $0x10] sm:$0xf]
        %v2129 = vld [vmem:[%s2123 + $0x14] sm:$0xf]
        %v2130 = vld [vmem:[%s2123 + $0x18] sm:$0xf]
        %v2131 = vld [vmem:[%s2123 + $0x1c] sm:$0xf]
        %v2132 = vld [vmem:[%s2123 + $0x20] sm:$0xf]
        %v2133 = vld [vmem:[%s2123 + $0x24] sm:$0xf]
        %v2134 = vld [vmem:[%s2123 + $0x28] sm:$0xf]
        %v2135 = vld [vmem:[%s2123 + $0x2c] sm:$0xf]
        %v2136 = vld [vmem:[%s2123 + $0x30] sm:$0xf]
        %v2137 = vld [vmem:[%s2123 + $0x34] sm:$0xf]
        %v2138 = vld [vmem:[%s2123 + $0x38] sm:$0xf]
        %v2139 = vld [vmem:[%s2123 + $0x3c] sm:$0xf]
        %v2156 = vunpack.c.l.b16 %v2107
        %v2157 = vunpack.c.l.b16 %v2108
        %v2158 = vunpack.c.l.b16 %v2109
        %v2159 = vunpack.c.l.b16 %v2110
        %v2160 = vunpack.c.l.b16 %v2111
        %v2161 = vunpack.c.l.b16 %v2112
        %v2162 = vunpack.c.l.b16 %v2113
        %v2163 = vunpack.c.l.b16 %v2114
        %v2164 = vunpack.c.l.b16 %v2115
        %v2165 = vunpack.c.l.b16 %v2116
        %v2166 = vunpack.c.l.b16 %v2117
        %v2167 = vunpack.c.l.b16 %v2118
        %v2168 = vunpack.c.l.b16 %v2119
        %v2169 = vunpack.c.l.b16 %v2120
        %v2170 = vunpack.c.l.b16 %v2121
        %v2171 = vunpack.c.l.b16 %v2122
        %v2172 = vpack.c.b16 %v2157, %v2156
        %v2173 = vpack.c.b16 %v2159, %v2158
        %v2174 = vpack.c.b16 %v2161, %v2160
        %v2175 = vpack.c.b16 %v2163, %v2162
        %v2176 = vpack.c.b16 %v2165, %v2164
        %v2177 = vpack.c.b16 %v2167, %v2166
        %v2178 = vpack.c.b16 %v2169, %v2168
        %v2179 = vpack.c.b16 %v2171, %v2170
        %v2204 = vunpack.c.l.b16 %v2124
        %v2205 = vunpack.c.l.b16 %v2125
        %v2206 = vunpack.c.l.b16 %v2126
        %v2207 = vunpack.c.l.b16 %v2127
        %v2208 = vunpack.c.l.b16 %v2128
        %v2209 = vunpack.c.l.b16 %v2129
        %v2210 = vunpack.c.l.b16 %v2130
        %v2211 = vunpack.c.l.b16 %v2131
        %v2212 = vunpack.c.l.b16 %v2132
        %v2213 = vunpack.c.l.b16 %v2133
        %v2214 = vunpack.c.l.b16 %v2134
        %v2215 = vunpack.c.l.b16 %v2135
        %v2216 = vunpack.c.l.b16 %v2136
        %v2217 = vunpack.c.l.b16 %v2137
        %v2218 = vunpack.c.l.b16 %v2138
        %v2219 = vunpack.c.l.b16 %v2139
        %v2220 = vpack.c.b16 %v2205, %v2204
        %v2221 = vpack.c.b16 %v2207, %v2206
        %v2222 = vpack.c.b16 %v2209, %v2208
        %v2223 = vpack.c.b16 %v2211, %v2210
        %v2224 = vpack.c.b16 %v2213, %v2212
        %v2225 = vpack.c.b16 %v2215, %v2214
        %v2226 = vpack.c.b16 %v2217, %v2216
        %v2227 = vpack.c.b16 %v2219, %v2218
        %2236 = vmatpush.bf16.msra.mxu0 %v2227
        %2237 = vmatpush.bf16.msra.mxu0 %v2226
        %2238 = vmatpush.bf16.msra.mxu0 %v2225
        %2239 = vmatpush.bf16.msra.mxu0 %v2224
        %2240 = vmatpush.bf16.msra.mxu0 %v2223
        %2241 = vmatpush.bf16.msra.mxu0 %v2222
        %2242 = vmatpush.bf16.msra.mxu0 %v2221
        %2243 = vmatpush.bf16.msra.mxu0 %v2220
        %2244 = vmatmul.bf16.gmra.mxu0 %v2172
        %v2245 = vpop.f32.mrf.mxu0
        %v2246 = vadd.f32 0.0, %v2245
        %v2247 = vpop.f32.mrf.mxu0
        %v2248 = vadd.f32 0.0, %v2247
        %2249 = vmatmul.bf16.gmra.mxu0 %v2173
        %v2250 = vpop.f32.mrf.mxu0
        %v2251 = vadd.f32 0.0, %v2250
        %v2252 = vpop.f32.mrf.mxu0
        %v2253 = vadd.f32 0.0, %v2252
        %2254 = vmatmul.bf16.gmra.mxu0 %v2174
        %v2255 = vpop.f32.mrf.mxu0
        %v2256 = vadd.f32 0.0, %v2255
        %v2257 = vpop.f32.mrf.mxu0
        %v2258 = vadd.f32 0.0, %v2257
        %2259 = vmatmul.bf16.gmra.mxu0 %v2175
        %v2260 = vpop.f32.mrf.mxu0
        %v2261 = vadd.f32 0.0, %v2260
        %v2262 = vpop.f32.mrf.mxu0
        %v2263 = vadd.f32 0.0, %v2262
        %2264 = vmatmul.bf16.gmra.mxu0 %v2176
        %v2265 = vpop.f32.mrf.mxu0
        %v2266 = vadd.f32 0.0, %v2265
        %v2267 = vpop.f32.mrf.mxu0
        %v2268 = vadd.f32 0.0, %v2267
        %2269 = vmatmul.bf16.gmra.mxu0 %v2177
        %v2270 = vpop.f32.mrf.mxu0
        %v2271 = vadd.f32 0.0, %v2270
        %v2272 = vpop.f32.mrf.mxu0
        %v2273 = vadd.f32 0.0, %v2272
        %2274 = vmatmul.bf16.gmra.mxu0 %v2178
        %v2275 = vpop.f32.mrf.mxu0
        %v2276 = vadd.f32 0.0, %v2275
        %v2277 = vpop.f32.mrf.mxu0
        %v2278 = vadd.f32 0.0, %v2277
        %2279 = vmatmul.bf16.gmra.mxu0 %v2179
        %v2280 = vpop.f32.mrf.mxu0
        %v2281 = vadd.f32 0.0, %v2280
        %v2282 = vpop.f32.mrf.mxu0
        %v2283 = vadd.f32 0.0, %v2282
        %2284 = vdwg.mxu0
        %v2285 = vadd.f32 %v2091, %v2246
        %v2286 = vadd.f32 %v2092, %v2248
        %v2287 = vadd.f32 %v2093, %v2251
        %v2288 = vadd.f32 %v2094, %v2253
        %v2289 = vadd.f32 %v2095, %v2256
        %v2290 = vadd.f32 %v2096, %v2258
        %v2291 = vadd.f32 %v2097, %v2261
        %v2292 = vadd.f32 %v2098, %v2263
        %v2293 = vadd.f32 %v2099, %v2266
        %v2294 = vadd.f32 %v2100, %v2268
        %v2295 = vadd.f32 %v2101, %v2271
        %v2296 = vadd.f32 %v2102, %v2273
        %v2297 = vadd.f32 %v2103, %v2276
        %v2298 = vadd.f32 %v2104, %v2278
        %v2299 = vadd.f32 %v2105, %v2281
        %v2300 = vadd.f32 %v2106, %v2283
        %v2301 = vld [vmem:[#allocation2 + $0x38] sm:$0xf]
        %v2302 = vld [vmem:[#allocation2 + $0x3c] sm:$0xf]
        %v2303 = vld [vmem:[#allocation2 + $0x40] sm:$0xf]
        %v2304 = vld [vmem:[#allocation2 + $0x44] sm:$0xf]
        %v2305 = vld [vmem:[#allocation2 + $0x48] sm:$0xf]
        %v2306 = vld [vmem:[#allocation2 + $0x4c] sm:$0xf]
        %v2307 = vld [vmem:[#allocation2 + $0x50] sm:$0xf]
        %v2308 = vld [vmem:[#allocation2 + $0x54] sm:$0xf]
        %v2309 = vld [vmem:[#allocation2 + $0x58] sm:$0xf]
        %v2310 = vld [vmem:[#allocation2 + $0x5c] sm:$0xf]
        %v2311 = vld [vmem:[#allocation2 + $0x60] sm:$0xf]
        %v2312 = vld [vmem:[#allocation2 + $0x64] sm:$0xf]
        %v2313 = vld [vmem:[#allocation2 + $0x68] sm:$0xf]
        %v2314 = vld [vmem:[#allocation2 + $0x6c] sm:$0xf]
        %v2315 = vld [vmem:[#allocation2 + $0x70] sm:$0xf]
        %v2316 = vld [vmem:[#allocation2 + $0x74] sm:$0xf]
        %s2317 = scalar_lea.vmem [#allocation15], 448
        %v2318 = vld [vmem:[%s2317] sm:$0xf]
        %v2319 = vld [vmem:[%s2317 + $0x4] sm:$0xf]
        %v2320 = vld [vmem:[%s2317 + $0x8] sm:$0xf]
        %v2321 = vld [vmem:[%s2317 + $0xc] sm:$0xf]
        %v2322 = vld [vmem:[%s2317 + $0x10] sm:$0xf]
        %v2323 = vld [vmem:[%s2317 + $0x14] sm:$0xf]
        %v2324 = vld [vmem:[%s2317 + $0x18] sm:$0xf]
        %v2325 = vld [vmem:[%s2317 + $0x1c] sm:$0xf]
        %v2326 = vld [vmem:[%s2317 + $0x20] sm:$0xf]
        %v2327 = vld [vmem:[%s2317 + $0x24] sm:$0xf]
        %v2328 = vld [vmem:[%s2317 + $0x28] sm:$0xf]
        %v2329 = vld [vmem:[%s2317 + $0x2c] sm:$0xf]
        %v2330 = vld [vmem:[%s2317 + $0x30] sm:$0xf]
        %v2331 = vld [vmem:[%s2317 + $0x34] sm:$0xf]
        %v2332 = vld [vmem:[%s2317 + $0x38] sm:$0xf]
        %v2333 = vld [vmem:[%s2317 + $0x3c] sm:$0xf]
        %v2350 = vunpack.c.l.b16 %v2301
        %v2351 = vunpack.c.l.b16 %v2302
        %v2352 = vunpack.c.l.b16 %v2303
        %v2353 = vunpack.c.l.b16 %v2304
        %v2354 = vunpack.c.l.b16 %v2305
        %v2355 = vunpack.c.l.b16 %v2306
        %v2356 = vunpack.c.l.b16 %v2307
        %v2357 = vunpack.c.l.b16 %v2308
        %v2358 = vunpack.c.l.b16 %v2309
        %v2359 = vunpack.c.l.b16 %v2310
        %v2360 = vunpack.c.l.b16 %v2311
        %v2361 = vunpack.c.l.b16 %v2312
        %v2362 = vunpack.c.l.b16 %v2313
        %v2363 = vunpack.c.l.b16 %v2314
        %v2364 = vunpack.c.l.b16 %v2315
        %v2365 = vunpack.c.l.b16 %v2316
        %v2366 = vpack.c.b16 %v2351, %v2350
        %v2367 = vpack.c.b16 %v2353, %v2352
        %v2368 = vpack.c.b16 %v2355, %v2354
        %v2369 = vpack.c.b16 %v2357, %v2356
        %v2370 = vpack.c.b16 %v2359, %v2358
        %v2371 = vpack.c.b16 %v2361, %v2360
        %v2372 = vpack.c.b16 %v2363, %v2362
        %v2373 = vpack.c.b16 %v2365, %v2364
        %v2398 = vunpack.c.l.b16 %v2318
        %v2399 = vunpack.c.l.b16 %v2319
        %v2400 = vunpack.c.l.b16 %v2320
        %v2401 = vunpack.c.l.b16 %v2321
        %v2402 = vunpack.c.l.b16 %v2322
        %v2403 = vunpack.c.l.b16 %v2323
        %v2404 = vunpack.c.l.b16 %v2324
        %v2405 = vunpack.c.l.b16 %v2325
        %v2406 = vunpack.c.l.b16 %v2326
        %v2407 = vunpack.c.l.b16 %v2327
        %v2408 = vunpack.c.l.b16 %v2328
        %v2409 = vunpack.c.l.b16 %v2329
        %v2410 = vunpack.c.l.b16 %v2330
        %v2411 = vunpack.c.l.b16 %v2331
        %v2412 = vunpack.c.l.b16 %v2332
        %v2413 = vunpack.c.l.b16 %v2333
        %v2414 = vpack.c.b16 %v2399, %v2398
        %v2415 = vpack.c.b16 %v2401, %v2400
        %v2416 = vpack.c.b16 %v2403, %v2402
        %v2417 = vpack.c.b16 %v2405, %v2404
        %v2418 = vpack.c.b16 %v2407, %v2406
        %v2419 = vpack.c.b16 %v2409, %v2408
        %v2420 = vpack.c.b16 %v2411, %v2410
        %v2421 = vpack.c.b16 %v2413, %v2412
        %2430 = vmatpush.bf16.msra.mxu0 %v2421
        %2431 = vmatpush.bf16.msra.mxu0 %v2420
        %2432 = vmatpush.bf16.msra.mxu0 %v2419
        %2433 = vmatpush.bf16.msra.mxu0 %v2418
        %2434 = vmatpush.bf16.msra.mxu0 %v2417
        %2435 = vmatpush.bf16.msra.mxu0 %v2416
        %2436 = vmatpush.bf16.msra.mxu0 %v2415
        %2437 = vmatpush.bf16.msra.mxu0 %v2414
        %2438 = vmatmul.bf16.gmra.mxu0 %v2366
        %v2439 = vpop.f32.mrf.mxu0
        %v2440 = vadd.f32 0.0, %v2439
        %v2441 = vpop.f32.mrf.mxu0
        %v2442 = vadd.f32 0.0, %v2441
        %2443 = vmatmul.bf16.gmra.mxu0 %v2367
        %v2444 = vpop.f32.mrf.mxu0
        %v2445 = vadd.f32 0.0, %v2444
        %v2446 = vpop.f32.mrf.mxu0
        %v2447 = vadd.f32 0.0, %v2446
        %2448 = vmatmul.bf16.gmra.mxu0 %v2368
        %v2449 = vpop.f32.mrf.mxu0
        %v2450 = vadd.f32 0.0, %v2449
        %v2451 = vpop.f32.mrf.mxu0
        %v2452 = vadd.f32 0.0, %v2451
        %2453 = vmatmul.bf16.gmra.mxu0 %v2369
        %v2454 = vpop.f32.mrf.mxu0
        %v2455 = vadd.f32 0.0, %v2454
        %v2456 = vpop.f32.mrf.mxu0
        %v2457 = vadd.f32 0.0, %v2456
        %2458 = vmatmul.bf16.gmra.mxu0 %v2370
        %v2459 = vpop.f32.mrf.mxu0
        %v2460 = vadd.f32 0.0, %v2459
        %v2461 = vpop.f32.mrf.mxu0
        %v2462 = vadd.f32 0.0, %v2461
        %2463 = vmatmul.bf16.gmra.mxu0 %v2371
        %v2464 = vpop.f32.mrf.mxu0
        %v2465 = vadd.f32 0.0, %v2464
        %v2466 = vpop.f32.mrf.mxu0
        %v2467 = vadd.f32 0.0, %v2466
        %2468 = vmatmul.bf16.gmra.mxu0 %v2372
        %v2469 = vpop.f32.mrf.mxu0
        %v2470 = vadd.f32 0.0, %v2469
        %v2471 = vpop.f32.mrf.mxu0
        %v2472 = vadd.f32 0.0, %v2471
        %2473 = vmatmul.bf16.gmra.mxu0 %v2373
        %v2474 = vpop.f32.mrf.mxu0
        %v2475 = vadd.f32 0.0, %v2474
        %v2476 = vpop.f32.mrf.mxu0
        %v2477 = vadd.f32 0.0, %v2476
        %2478 = vdwg.mxu0
        %v2479 = vadd.f32 %v2285, %v2440
        %v2480 = vadd.f32 %v2286, %v2442
        %v2481 = vadd.f32 %v2287, %v2445
        %v2482 = vadd.f32 %v2288, %v2447
        %v2483 = vadd.f32 %v2289, %v2450
        %v2484 = vadd.f32 %v2290, %v2452
        %v2485 = vadd.f32 %v2291, %v2455
        %v2486 = vadd.f32 %v2292, %v2457
        %v2487 = vadd.f32 %v2293, %v2460
        %v2488 = vadd.f32 %v2294, %v2462
        %v2489 = vadd.f32 %v2295, %v2465
        %v2490 = vadd.f32 %v2296, %v2467
        %v2491 = vadd.f32 %v2297, %v2470
        %v2492 = vadd.f32 %v2298, %v2472
        %v2493 = vadd.f32 %v2299, %v2475
        %v2494 = vadd.f32 %v2300, %v2477
        %v2495 = vld [vmem:[#allocation2 + $0x40] sm:$0xf]
        %v2496 = vld [vmem:[#allocation2 + $0x44] sm:$0xf]
        %v2497 = vld [vmem:[#allocation2 + $0x48] sm:$0xf]
        %v2498 = vld [vmem:[#allocation2 + $0x4c] sm:$0xf]
        %v2499 = vld [vmem:[#allocation2 + $0x50] sm:$0xf]
        %v2500 = vld [vmem:[#allocation2 + $0x54] sm:$0xf]
        %v2501 = vld [vmem:[#allocation2 + $0x58] sm:$0xf]
        %v2502 = vld [vmem:[#allocation2 + $0x5c] sm:$0xf]
        %v2503 = vld [vmem:[#allocation2 + $0x60] sm:$0xf]
        %v2504 = vld [vmem:[#allocation2 + $0x64] sm:$0xf]
        %v2505 = vld [vmem:[#allocation2 + $0x68] sm:$0xf]
        %v2506 = vld [vmem:[#allocation2 + $0x6c] sm:$0xf]
        %v2507 = vld [vmem:[#allocation2 + $0x70] sm:$0xf]
        %v2508 = vld [vmem:[#allocation2 + $0x74] sm:$0xf]
        %v2509 = vld [vmem:[#allocation2 + $0x78] sm:$0xf]
        %v2510 = vld [vmem:[#allocation2 + $0x7c] sm:$0xf]
        %s2511 = scalar_lea.vmem [#allocation15], 512
        %v2512 = vld [vmem:[%s2511] sm:$0xf]
        %v2513 = vld [vmem:[%s2511 + $0x4] sm:$0xf]
        %v2514 = vld [vmem:[%s2511 + $0x8] sm:$0xf]
        %v2515 = vld [vmem:[%s2511 + $0xc] sm:$0xf]
        %v2516 = vld [vmem:[%s2511 + $0x10] sm:$0xf]
        %v2517 = vld [vmem:[%s2511 + $0x14] sm:$0xf]
        %v2518 = vld [vmem:[%s2511 + $0x18] sm:$0xf]
        %v2519 = vld [vmem:[%s2511 + $0x1c] sm:$0xf]
        %v2520 = vld [vmem:[%s2511 + $0x20] sm:$0xf]
        %v2521 = vld [vmem:[%s2511 + $0x24] sm:$0xf]
        %v2522 = vld [vmem:[%s2511 + $0x28] sm:$0xf]
        %v2523 = vld [vmem:[%s2511 + $0x2c] sm:$0xf]
        %v2524 = vld [vmem:[%s2511 + $0x30] sm:$0xf]
        %v2525 = vld [vmem:[%s2511 + $0x34] sm:$0xf]
        %v2526 = vld [vmem:[%s2511 + $0x38] sm:$0xf]
        %v2527 = vld [vmem:[%s2511 + $0x3c] sm:$0xf]
        %v2544 = vunpack.c.l.b16 %v2495
        %v2545 = vunpack.c.l.b16 %v2496
        %v2546 = vunpack.c.l.b16 %v2497
        %v2547 = vunpack.c.l.b16 %v2498
        %v2548 = vunpack.c.l.b16 %v2499
        %v2549 = vunpack.c.l.b16 %v2500
        %v2550 = vunpack.c.l.b16 %v2501
        %v2551 = vunpack.c.l.b16 %v2502
        %v2552 = vunpack.c.l.b16 %v2503
        %v2553 = vunpack.c.l.b16 %v2504
        %v2554 = vunpack.c.l.b16 %v2505
        %v2555 = vunpack.c.l.b16 %v2506
        %v2556 = vunpack.c.l.b16 %v2507
        %v2557 = vunpack.c.l.b16 %v2508
        %v2558 = vunpack.c.l.b16 %v2509
        %v2559 = vunpack.c.l.b16 %v2510
        %v2560 = vpack.c.b16 %v2545, %v2544
        %v2561 = vpack.c.b16 %v2547, %v2546
        %v2562 = vpack.c.b16 %v2549, %v2548
        %v2563 = vpack.c.b16 %v2551, %v2550
        %v2564 = vpack.c.b16 %v2553, %v2552
        %v2565 = vpack.c.b16 %v2555, %v2554
        %v2566 = vpack.c.b16 %v2557, %v2556
        %v2567 = vpack.c.b16 %v2559, %v2558
        %v2592 = vunpack.c.l.b16 %v2512
        %v2593 = vunpack.c.l.b16 %v2513
        %v2594 = vunpack.c.l.b16 %v2514
        %v2595 = vunpack.c.l.b16 %v2515
        %v2596 = vunpack.c.l.b16 %v2516
        %v2597 = vunpack.c.l.b16 %v2517
        %v2598 = vunpack.c.l.b16 %v2518
        %v2599 = vunpack.c.l.b16 %v2519
        %v2600 = vunpack.c.l.b16 %v2520
        %v2601 = vunpack.c.l.b16 %v2521
        %v2602 = vunpack.c.l.b16 %v2522
        %v2603 = vunpack.c.l.b16 %v2523
        %v2604 = vunpack.c.l.b16 %v2524
        %v2605 = vunpack.c.l.b16 %v2525
        %v2606 = vunpack.c.l.b16 %v2526
        %v2607 = vunpack.c.l.b16 %v2527
        %v2608 = vpack.c.b16 %v2593, %v2592
        %v2609 = vpack.c.b16 %v2595, %v2594
        %v2610 = vpack.c.b16 %v2597, %v2596
        %v2611 = vpack.c.b16 %v2599, %v2598
        %v2612 = vpack.c.b16 %v2601, %v2600
        %v2613 = vpack.c.b16 %v2603, %v2602
        %v2614 = vpack.c.b16 %v2605, %v2604
        %v2615 = vpack.c.b16 %v2607, %v2606
        %2624 = vmatpush.bf16.msra.mxu0 %v2615
        %2625 = vmatpush.bf16.msra.mxu0 %v2614
        %2626 = vmatpush.bf16.msra.mxu0 %v2613
        %2627 = vmatpush.bf16.msra.mxu0 %v2612
        %2628 = vmatpush.bf16.msra.mxu0 %v2611
        %2629 = vmatpush.bf16.msra.mxu0 %v2610
        %2630 = vmatpush.bf16.msra.mxu0 %v2609
        %2631 = vmatpush.bf16.msra.mxu0 %v2608
        %2632 = vmatmul.bf16.gmra.mxu0 %v2560
        %v2633 = vpop.f32.mrf.mxu0
        %v2634 = vadd.f32 0.0, %v2633
        %v2635 = vpop.f32.mrf.mxu0
        %v2636 = vadd.f32 0.0, %v2635
        %2637 = vmatmul.bf16.gmra.mxu0 %v2561
        %v2638 = vpop.f32.mrf.mxu0
        %v2639 = vadd.f32 0.0, %v2638
        %v2640 = vpop.f32.mrf.mxu0
        %v2641 = vadd.f32 0.0, %v2640
        %2642 = vmatmul.bf16.gmra.mxu0 %v2562
        %v2643 = vpop.f32.mrf.mxu0
        %v2644 = vadd.f32 0.0, %v2643
        %v2645 = vpop.f32.mrf.mxu0
        %v2646 = vadd.f32 0.0, %v2645
        %2647 = vmatmul.bf16.gmra.mxu0 %v2563
        %v2648 = vpop.f32.mrf.mxu0
        %v2649 = vadd.f32 0.0, %v2648
        %v2650 = vpop.f32.mrf.mxu0
        %v2651 = vadd.f32 0.0, %v2650
        %2652 = vmatmul.bf16.gmra.mxu0 %v2564
        %v2653 = vpop.f32.mrf.mxu0
        %v2654 = vadd.f32 0.0, %v2653
        %v2655 = vpop.f32.mrf.mxu0
        %v2656 = vadd.f32 0.0, %v2655
        %2657 = vmatmul.bf16.gmra.mxu0 %v2565
        %v2658 = vpop.f32.mrf.mxu0
        %v2659 = vadd.f32 0.0, %v2658
        %v2660 = vpop.f32.mrf.mxu0
        %v2661 = vadd.f32 0.0, %v2660
        %2662 = vmatmul.bf16.gmra.mxu0 %v2566
        %v2663 = vpop.f32.mrf.mxu0
        %v2664 = vadd.f32 0.0, %v2663
        %v2665 = vpop.f32.mrf.mxu0
        %v2666 = vadd.f32 0.0, %v2665
        %2667 = vmatmul.bf16.gmra.mxu0 %v2567
        %v2668 = vpop.f32.mrf.mxu0
        %v2669 = vadd.f32 0.0, %v2668
        %v2670 = vpop.f32.mrf.mxu0
        %v2671 = vadd.f32 0.0, %v2670
        %2672 = vdwg.mxu0
        %v2673 = vadd.f32 %v2479, %v2634
        %v2674 = vadd.f32 %v2480, %v2636
        %v2675 = vadd.f32 %v2481, %v2639
        %v2676 = vadd.f32 %v2482, %v2641
        %v2677 = vadd.f32 %v2483, %v2644
        %v2678 = vadd.f32 %v2484, %v2646
        %v2679 = vadd.f32 %v2485, %v2649
        %v2680 = vadd.f32 %v2486, %v2651
        %v2681 = vadd.f32 %v2487, %v2654
        %v2682 = vadd.f32 %v2488, %v2656
        %v2683 = vadd.f32 %v2489, %v2659
        %v2684 = vadd.f32 %v2490, %v2661
        %v2685 = vadd.f32 %v2491, %v2664
        %v2686 = vadd.f32 %v2492, %v2666
        %v2687 = vadd.f32 %v2493, %v2669
        %v2688 = vadd.f32 %v2494, %v2671
        %v2690 = vperm.slane %v781, 0
        %v2692 = vadd.f32 %v2673, %v2690
        %v2693 = vadd.f32 %v2674, %v2690
        %v2694 = vadd.f32 %v2675, %v2690
        %v2695 = vadd.f32 %v2676, %v2690
        %v2696 = vadd.f32 %v2677, %v2690
        %v2697 = vadd.f32 %v2678, %v2690
        %v2698 = vadd.f32 %v2679, %v2690
        %v2699 = vadd.f32 %v2680, %v2690
        %v2700 = vadd.f32 %v2681, %v2690
        %v2701 = vadd.f32 %v2682, %v2690
        %v2702 = vadd.f32 %v2683, %v2690
        %v2703 = vadd.f32 %v2684, %v2690
        %v2704 = vadd.f32 %v2685, %v2690
        %v2705 = vadd.f32 %v2686, %v2690
        %v2706 = vadd.f32 %v2687, %v2690
        %v2707 = vadd.f32 %v2688, %v2690
        %v2708 = vmax.f32 %v2692, 0.0
        %v2709 = vmax.f32 %v2693, 0.0
        %v2710 = vmax.f32 %v2694, 0.0
        %v2711 = vmax.f32 %v2695, 0.0
        %v2712 = vmax.f32 %v2696, 0.0
        %v2713 = vmax.f32 %v2697, 0.0
        %v2714 = vmax.f32 %v2698, 0.0
        %v2715 = vmax.f32 %v2699, 0.0
        %v2716 = vmax.f32 %v2700, 0.0
        %v2717 = vmax.f32 %v2701, 0.0
        %v2718 = vmax.f32 %v2702, 0.0
        %v2719 = vmax.f32 %v2703, 0.0
        %v2720 = vmax.f32 %v2704, 0.0
        %v2721 = vmax.f32 %v2705, 0.0
        %v2722 = vmax.f32 %v2706, 0.0
        %v2723 = vmax.f32 %v2707, 0.0
        %v2724 = vpack.c.bf16 %v2709, %v2708
        %v2725 = vpack.c.bf16 %v2711, %v2710
        %v2726 = vpack.c.bf16 %v2713, %v2712
        %v2727 = vpack.c.bf16 %v2715, %v2714
        %v2728 = vpack.c.bf16 %v2717, %v2716
        %v2729 = vpack.c.bf16 %v2719, %v2718
        %v2730 = vpack.c.bf16 %v2721, %v2720
        %v2731 = vpack.c.bf16 %v2723, %v2722
        %v2732 = vld [vmem:[#allocation9] sm:$0xf]
        %v2733 = vld [vmem:[#allocation9 + $0x4] sm:$0xf]
        %v2734 = vld [vmem:[#allocation9 + $0x8] sm:$0xf]
        %v2735 = vld [vmem:[#allocation9 + $0xc] sm:$0xf]
        %v2736 = vld [vmem:[#allocation9 + $0x10] sm:$0xf]
        %v2737 = vld [vmem:[#allocation9 + $0x14] sm:$0xf]
        %v2738 = vld [vmem:[#allocation9 + $0x18] sm:$0xf]
        %v2739 = vld [vmem:[#allocation9 + $0x1c] sm:$0xf]
        %v2740 = vld [vmem:[#allocation9 + $0x20] sm:$0xf]
        %v2741 = vld [vmem:[#allocation9 + $0x24] sm:$0xf]
        %v2742 = vld [vmem:[#allocation9 + $0x28] sm:$0xf]
        %v2743 = vld [vmem:[#allocation9 + $0x2c] sm:$0xf]
        %v2744 = vld [vmem:[#allocation9 + $0x30] sm:$0xf]
        %v2745 = vld [vmem:[#allocation9 + $0x34] sm:$0xf]
        %v2746 = vld [vmem:[#allocation9 + $0x38] sm:$0xf]
        %v2747 = vld [vmem:[#allocation9 + $0x3c] sm:$0xf]
        %v2748 = vld [vmem:[#allocation18] sm:$0xff]
        %v2749 = vld [vmem:[#allocation18 + $0x8] sm:$0xff]
        %v2750 = vld [vmem:[#allocation18 + $0x10] sm:$0xff]
        %v2751 = vld [vmem:[#allocation18 + $0x18] sm:$0xff]
        %v2752 = vld [vmem:[#allocation18 + $0x20] sm:$0xff]
        %v2753 = vld [vmem:[#allocation18 + $0x28] sm:$0xff]
        %v2754 = vld [vmem:[#allocation18 + $0x30] sm:$0xff]
        %v2755 = vld [vmem:[#allocation18 + $0x38] sm:$0xff]
        %v2756 = vld [vmem:[#allocation18 + $0x40] sm:$0xff]
        %v2757 = vld [vmem:[#allocation18 + $0x48] sm:$0xff]
        %v2758 = vld [vmem:[#allocation18 + $0x50] sm:$0xff]
        %v2759 = vld [vmem:[#allocation18 + $0x58] sm:$0xff]
        %v2760 = vld [vmem:[#allocation18 + $0x60] sm:$0xff]
        %v2761 = vld [vmem:[#allocation18 + $0x68] sm:$0xff]
        %v2762 = vld [vmem:[#allocation18 + $0x70] sm:$0xff]
        %v2763 = vld [vmem:[#allocation18 + $0x78] sm:$0xff]
        %v2764 = vld [vmem:[#allocation20] sm:$0x3]
        %v2765 = vld [vmem:[#allocation23] sm:$0x3]
        %v2782 = vunpack.c.l.b16 %v2732
        %v2783 = vunpack.c.l.b16 %v2733
        %v2784 = vunpack.c.l.b16 %v2734
        %v2785 = vunpack.c.l.b16 %v2735
        %v2786 = vunpack.c.l.b16 %v2736
        %v2787 = vunpack.c.l.b16 %v2737
        %v2788 = vunpack.c.l.b16 %v2738
        %v2789 = vunpack.c.l.b16 %v2739
        %v2790 = vunpack.c.l.b16 %v2740
        %v2791 = vunpack.c.l.b16 %v2741
        %v2792 = vunpack.c.l.b16 %v2742
        %v2793 = vunpack.c.l.b16 %v2743
        %v2794 = vunpack.c.l.b16 %v2744
        %v2795 = vunpack.c.l.b16 %v2745
        %v2796 = vunpack.c.l.b16 %v2746
        %v2797 = vunpack.c.l.b16 %v2747
        %v2798 = vpack.c.b16 %v2783, %v2782
        %v2799 = vpack.c.b16 %v2785, %v2784
        %v2800 = vpack.c.b16 %v2787, %v2786
        %v2801 = vpack.c.b16 %v2789, %v2788
        %v2802 = vpack.c.b16 %v2791, %v2790
        %v2803 = vpack.c.b16 %v2793, %v2792
        %v2804 = vpack.c.b16 %v2795, %v2794
        %v2805 = vpack.c.b16 %v2797, %v2796
        %2814 = vmatpush.bf16.msra.mxu0 %v2731
        %2815 = vmatpush.bf16.msra.mxu0 %v2730
        %2816 = vmatpush.bf16.msra.mxu0 %v2729
        %2817 = vmatpush.bf16.msra.mxu0 %v2728
        %2818 = vmatpush.bf16.msra.mxu0 %v2727
        %2819 = vmatpush.bf16.msra.mxu0 %v2726
        %2820 = vmatpush.bf16.msra.mxu0 %v2725
        %2821 = vmatpush.bf16.msra.mxu0 %v2724
        %2822 = vmatmul.bf16.gmra.mxu0 %v2798
        %v2823 = vpop.f32.mrf.mxu0
        %v2824 = vadd.f32 0.0, %v2823
        %v2825 = vpop.f32.mrf.mxu0
        %v2826 = vadd.f32 0.0, %v2825
        %2827 = vmatmul.bf16.gmra.mxu0 %v2799
        %v2828 = vpop.f32.mrf.mxu0
        %v2829 = vadd.f32 0.0, %v2828
        %v2830 = vpop.f32.mrf.mxu0
        %v2831 = vadd.f32 0.0, %v2830
        %2832 = vmatmul.bf16.gmra.mxu0 %v2800
        %v2833 = vpop.f32.mrf.mxu0
        %v2834 = vadd.f32 0.0, %v2833
        %v2835 = vpop.f32.mrf.mxu0
        %v2836 = vadd.f32 0.0, %v2835
        %2837 = vmatmul.bf16.gmra.mxu0 %v2801
        %v2838 = vpop.f32.mrf.mxu0
        %v2839 = vadd.f32 0.0, %v2838
        %v2840 = vpop.f32.mrf.mxu0
        %v2841 = vadd.f32 0.0, %v2840
        %2842 = vmatmul.bf16.gmra.mxu0 %v2802
        %v2843 = vpop.f32.mrf.mxu0
        %v2844 = vadd.f32 0.0, %v2843
        %v2845 = vpop.f32.mrf.mxu0
        %v2846 = vadd.f32 0.0, %v2845
        %2847 = vmatmul.bf16.gmra.mxu0 %v2803
        %v2848 = vpop.f32.mrf.mxu0
        %v2849 = vadd.f32 0.0, %v2848
        %v2850 = vpop.f32.mrf.mxu0
        %v2851 = vadd.f32 0.0, %v2850
        %2852 = vmatmul.bf16.gmra.mxu0 %v2804
        %v2853 = vpop.f32.mrf.mxu0
        %v2854 = vadd.f32 0.0, %v2853
        %v2855 = vpop.f32.mrf.mxu0
        %v2856 = vadd.f32 0.0, %v2855
        %2857 = vmatmul.bf16.gmra.mxu0 %v2805
        %v2858 = vpop.f32.mrf.mxu0
        %v2859 = vadd.f32 0.0, %v2858
        %v2860 = vpop.f32.mrf.mxu0
        %v2861 = vadd.f32 0.0, %v2860
        %2862 = vdwg.mxu0
        %v2863 = vpack.c.bf16 %v2826, %v2824
        %v2864 = vpack.c.bf16 %v2831, %v2829
        %v2865 = vpack.c.bf16 %v2836, %v2834
        %v2866 = vpack.c.bf16 %v2841, %v2839
        %v2867 = vpack.c.bf16 %v2846, %v2844
        %v2868 = vpack.c.bf16 %v2851, %v2849
        %v2869 = vpack.c.bf16 %v2856, %v2854
        %v2870 = vpack.c.bf16 %v2861, %v2859
        %v2872 = vperm.slane %v2764, 0
        %v2873 = vperm.slane %v2764, 1
        %v2892 = vunpack.c.l.b16 %v2748
        %v2893 = vunpack.c.h.b16 %v2748
        %v2894 = vunpack.c.l.b16 %v2749
        %v2895 = vunpack.c.h.b16 %v2749
        %v2896 = vunpack.c.l.b16 %v2750
        %v2897 = vunpack.c.h.b16 %v2750
        %v2898 = vunpack.c.l.b16 %v2751
        %v2899 = vunpack.c.h.b16 %v2751
        %v2900 = vunpack.c.l.b16 %v2752
        %v2901 = vunpack.c.h.b16 %v2752
        %v2902 = vunpack.c.l.b16 %v2753
        %v2903 = vunpack.c.h.b16 %v2753
        %v2904 = vunpack.c.l.b16 %v2754
        %v2905 = vunpack.c.h.b16 %v2754
        %v2906 = vunpack.c.l.b16 %v2755
        %v2907 = vunpack.c.h.b16 %v2755
        %v2908 = vunpack.c.l.b16 %v2756
        %v2909 = vunpack.c.h.b16 %v2756
        %v2910 = vunpack.c.l.b16 %v2757
        %v2911 = vunpack.c.h.b16 %v2757
        %v2912 = vunpack.c.l.b16 %v2758
        %v2913 = vunpack.c.h.b16 %v2758
        %v2914 = vunpack.c.l.b16 %v2759
        %v2915 = vunpack.c.h.b16 %v2759
        %v2916 = vunpack.c.l.b16 %v2760
        %v2917 = vunpack.c.h.b16 %v2760
        %v2918 = vunpack.c.l.b16 %v2761
        %v2919 = vunpack.c.h.b16 %v2761
        %v2920 = vunpack.c.l.b16 %v2762
        %v2921 = vunpack.c.h.b16 %v2762
        %v2922 = vunpack.c.l.b16 %v2763
        %v2923 = vunpack.c.h.b16 %v2763
        %v2924 = vpack.c.b16 %v2894, %v2892
        %v2925 = vpack.c.b16 %v2895, %v2893
        %v2926 = vpack.c.b16 %v2898, %v2896
        %v2927 = vpack.c.b16 %v2899, %v2897
        %v2928 = vpack.c.b16 %v2902, %v2900
        %v2929 = vpack.c.b16 %v2903, %v2901
        %v2930 = vpack.c.b16 %v2906, %v2904
        %v2931 = vpack.c.b16 %v2907, %v2905
        %v2932 = vpack.c.b16 %v2910, %v2908
        %v2933 = vpack.c.b16 %v2911, %v2909
        %v2934 = vpack.c.b16 %v2914, %v2912
        %v2935 = vpack.c.b16 %v2915, %v2913
        %v2936 = vpack.c.b16 %v2918, %v2916
        %v2937 = vpack.c.b16 %v2919, %v2917
        %v2938 = vpack.c.b16 %v2922, %v2920
        %v2939 = vpack.c.b16 %v2923, %v2921
        %2956 = vmatpush.bf16.msra.mxu0 %v2938
        %2957 = vmatpush.bf16.msra.mxu0 %v2936
        %2958 = vmatpush.bf16.msra.mxu0 %v2934
        %2959 = vmatpush.bf16.msra.mxu0 %v2932
        %2960 = vmatpush.bf16.msra.mxu0 %v2930
        %2961 = vmatpush.bf16.msra.mxu0 %v2928
        %2962 = vmatpush.bf16.msra.mxu0 %v2926
        %2963 = vmatpush.bf16.msra.mxu0 %v2924
        %2964 = vmatmul.bf16.gmra.mxu0 %v2863
        %v2965 = vpop.f32.mrf.mxu0
        %v2966 = vadd.f32 %v2872, %v2965
        %v2967 = vpop.f32.mrf.mxu0
        %v2968 = vadd.f32 %v2872, %v2967
        %2969 = vmatmul.bf16.gmra.mxu0 %v2864
        %v2970 = vpop.f32.mrf.mxu0
        %v2971 = vadd.f32 %v2872, %v2970
        %v2972 = vpop.f32.mrf.mxu0
        %v2973 = vadd.f32 %v2872, %v2972
        %2974 = vmatmul.bf16.gmra.mxu0 %v2865
        %v2975 = vpop.f32.mrf.mxu0
        %v2976 = vadd.f32 %v2872, %v2975
        %v2977 = vpop.f32.mrf.mxu0
        %v2978 = vadd.f32 %v2872, %v2977
        %2979 = vmatmul.bf16.gmra.mxu0 %v2866
        %v2980 = vpop.f32.mrf.mxu0
        %v2981 = vadd.f32 %v2872, %v2980
        %v2982 = vpop.f32.mrf.mxu0
        %v2983 = vadd.f32 %v2872, %v2982
        %2984 = vmatmul.bf16.gmra.mxu0 %v2867
        %v2985 = vpop.f32.mrf.mxu0
        %v2986 = vadd.f32 %v2872, %v2985
        %v2987 = vpop.f32.mrf.mxu0
        %v2988 = vadd.f32 %v2872, %v2987
        %2989 = vmatmul.bf16.gmra.mxu0 %v2868
        %v2990 = vpop.f32.mrf.mxu0
        %v2991 = vadd.f32 %v2872, %v2990
        %v2992 = vpop.f32.mrf.mxu0
        %v2993 = vadd.f32 %v2872, %v2992
        %2994 = vmatmul.bf16.gmra.mxu0 %v2869
        %v2995 = vpop.f32.mrf.mxu0
        %v2996 = vadd.f32 %v2872, %v2995
        %v2997 = vpop.f32.mrf.mxu0
        %v2998 = vadd.f32 %v2872, %v2997
        %2999 = vmatmul.bf16.gmra.mxu0 %v2870
        %v3000 = vpop.f32.mrf.mxu0
        %v3001 = vadd.f32 %v2872, %v3000
        %v3002 = vpop.f32.mrf.mxu0
        %v3003 = vadd.f32 %v2872, %v3002
        %3004 = vdwg.mxu0
        %3005 = vmatpush.bf16.msra.mxu0 %v2939
        %3006 = vmatpush.bf16.msra.mxu0 %v2937
        %3007 = vmatpush.bf16.msra.mxu0 %v2935
        %3008 = vmatpush.bf16.msra.mxu0 %v2933
        %3009 = vmatpush.bf16.msra.mxu0 %v2931
        %3010 = vmatpush.bf16.msra.mxu0 %v2929
        %3011 = vmatpush.bf16.msra.mxu0 %v2927
        %3012 = vmatpush.bf16.msra.mxu0 %v2925
        %3013 = vmatmul.bf16.gmra.mxu0 %v2863
        %v3014 = vpop.f32.mrf.mxu0
        %v3015 = vadd.f32 %v2873, %v3014
        %v3016 = vpop.f32.mrf.mxu0
        %v3017 = vadd.f32 %v2873, %v3016
        %3018 = vmatmul.bf16.gmra.mxu0 %v2864
        %v3019 = vpop.f32.mrf.mxu0
        %v3020 = vadd.f32 %v2873, %v3019
        %v3021 = vpop.f32.mrf.mxu0
        %v3022 = vadd.f32 %v2873, %v3021
        %3023 = vmatmul.bf16.gmra.mxu0 %v2865
        %v3024 = vpop.f32.mrf.mxu0
        %v3025 = vadd.f32 %v2873, %v3024
        %v3026 = vpop.f32.mrf.mxu0
        %v3027 = vadd.f32 %v2873, %v3026
        %3028 = vmatmul.bf16.gmra.mxu0 %v2866
        %v3029 = vpop.f32.mrf.mxu0
        %v3030 = vadd.f32 %v2873, %v3029
        %v3031 = vpop.f32.mrf.mxu0
        %v3032 = vadd.f32 %v2873, %v3031
        %3033 = vmatmul.bf16.gmra.mxu0 %v2867
        %v3034 = vpop.f32.mrf.mxu0
        %v3035 = vadd.f32 %v2873, %v3034
        %v3036 = vpop.f32.mrf.mxu0
        %v3037 = vadd.f32 %v2873, %v3036
        %3038 = vmatmul.bf16.gmra.mxu0 %v2868
        %v3039 = vpop.f32.mrf.mxu0
        %v3040 = vadd.f32 %v2873, %v3039
        %v3041 = vpop.f32.mrf.mxu0
        %v3042 = vadd.f32 %v2873, %v3041
        %3043 = vmatmul.bf16.gmra.mxu0 %v2869
        %v3044 = vpop.f32.mrf.mxu0
        %v3045 = vadd.f32 %v2873, %v3044
        %v3046 = vpop.f32.mrf.mxu0
        %v3047 = vadd.f32 %v2873, %v3046
        %3048 = vmatmul.bf16.gmra.mxu0 %v2870
        %v3049 = vpop.f32.mrf.mxu0
        %v3050 = vadd.f32 %v2873, %v3049
        %v3051 = vpop.f32.mrf.mxu0
        %v3052 = vadd.f32 %v2873, %v3051
        %3053 = vdwg.mxu0
        %v3054 = vmax.f32 %v2966, 0.0
        %v3055 = vmax.f32 %v3015, 0.0
        %v3056 = vmax.f32 %v2968, 0.0
        %v3057 = vmax.f32 %v3017, 0.0
        %v3058 = vmax.f32 %v2971, 0.0
        %v3059 = vmax.f32 %v3020, 0.0
        %v3060 = vmax.f32 %v2973, 0.0
        %v3061 = vmax.f32 %v3022, 0.0
        %v3062 = vmax.f32 %v2976, 0.0
        %v3063 = vmax.f32 %v3025, 0.0
        %v3064 = vmax.f32 %v2978, 0.0
        %v3065 = vmax.f32 %v3027, 0.0
        %v3066 = vmax.f32 %v2981, 0.0
        %v3067 = vmax.f32 %v3030, 0.0
        %v3068 = vmax.f32 %v2983, 0.0
        %v3069 = vmax.f32 %v3032, 0.0
        %v3070 = vmax.f32 %v2986, 0.0
        %v3071 = vmax.f32 %v3035, 0.0
        %v3072 = vmax.f32 %v2988, 0.0
        %v3073 = vmax.f32 %v3037, 0.0
        %v3074 = vmax.f32 %v2991, 0.0
        %v3075 = vmax.f32 %v3040, 0.0
        %v3076 = vmax.f32 %v2993, 0.0
        %v3077 = vmax.f32 %v3042, 0.0
        %v3078 = vmax.f32 %v2996, 0.0
        %v3079 = vmax.f32 %v3045, 0.0
        %v3080 = vmax.f32 %v2998, 0.0
        %v3081 = vmax.f32 %v3047, 0.0
        %v3082 = vmax.f32 %v3001, 0.0
        %v3083 = vmax.f32 %v3050, 0.0
        %v3084 = vmax.f32 %v3003, 0.0
        %v3085 = vmax.f32 %v3052, 0.0
        %v3086 = vpack.c.bf16 %v3055, %v3054
        %v3087 = vpack.c.bf16 %v3057, %v3056
        %v3088 = vpack.c.bf16 %v3059, %v3058
        %v3089 = vpack.c.bf16 %v3061, %v3060
        %v3090 = vpack.c.bf16 %v3063, %v3062
        %v3091 = vpack.c.bf16 %v3065, %v3064
        %v3092 = vpack.c.bf16 %v3067, %v3066
        %v3093 = vpack.c.bf16 %v3069, %v3068
        %v3094 = vpack.c.bf16 %v3071, %v3070
        %v3095 = vpack.c.bf16 %v3073, %v3072
        %v3096 = vpack.c.bf16 %v3075, %v3074
        %v3097 = vpack.c.bf16 %v3077, %v3076
        %v3098 = vpack.c.bf16 %v3079, %v3078
        %v3099 = vpack.c.bf16 %v3081, %v3080
        %v3100 = vpack.c.bf16 %v3083, %v3082
        %v3101 = vpack.c.bf16 %v3085, %v3084
        %3102 = vst [vmem:[#allocation3] sm:$0xff] 0
        %3103 = vst [vmem:[#allocation3 + $0x8] sm:$0xff] 0
        %3104 = vst [vmem:[#allocation3 + $0x10] sm:$0xff] 0
        %3105 = vst [vmem:[#allocation3 + $0x18] sm:$0xff] 0
        %3106 = vst [vmem:[#allocation3 + $0x60] sm:$0xff] 0
        %3107 = vst [vmem:[#allocation3 + $0x68] sm:$0xff] 0
        %3108 = vst [vmem:[#allocation3 + $0x70] sm:$0xff] 0
        %3109 = vst [vmem:[#allocation3 + $0x78] sm:$0xff] 0
        %3110 = vst [vmem:[#allocation4] sm:$0xff] 0
        %3111 = vst [vmem:[#allocation4 + $0x8] sm:$0xff] 0
        %3112 = vst [vmem:[#allocation4 + $0x10] sm:$0xff] 0
        %3113 = vst [vmem:[#allocation4 + $0x18] sm:$0xff] 0
        %3114 = vst [vmem:[#allocation4 + $0x60] sm:$0xff] 0
        %3115 = vst [vmem:[#allocation4 + $0x68] sm:$0xff] 0
        %3116 = vst [vmem:[#allocation4 + $0x70] sm:$0xff] 0
        %3117 = vst [vmem:[#allocation4 + $0x78] sm:$0xff] 0
        %3118 = vst [vmem:[#allocation3 + $0x20] sm:$0xff] %v3086
        %3119 = vst [vmem:[#allocation3 + $0x28] sm:$0xff] %v3087
        %3120 = vst [vmem:[#allocation4 + $0x20] sm:$0xff] %v3088
        %3121 = vst [vmem:[#allocation4 + $0x28] sm:$0xff] %v3089
        %3122 = vst [vmem:[#allocation3 + $0x30] sm:$0xff] %v3090
        %3123 = vst [vmem:[#allocation3 + $0x38] sm:$0xff] %v3091
        %3124 = vst [vmem:[#allocation4 + $0x30] sm:$0xff] %v3092
        %3125 = vst [vmem:[#allocation4 + $0x38] sm:$0xff] %v3093
        %3126 = vst [vmem:[#allocation3 + $0x40] sm:$0xff] %v3094
        %3127 = vst [vmem:[#allocation3 + $0x48] sm:$0xff] %v3095
        %3128 = vst [vmem:[#allocation4 + $0x40] sm:$0xff] %v3096
        %3129 = vst [vmem:[#allocation4 + $0x48] sm:$0xff] %v3097
        %3130 = vst [vmem:[#allocation3 + $0x50] sm:$0xff] %v3098
        %3131 = vst [vmem:[#allocation3 + $0x58] sm:$0xff] %v3099
        %3132 = vst [vmem:[#allocation4 + $0x50] sm:$0xff] %v3100
        %3133 = vst [vmem:[#allocation4 + $0x58] sm:$0xff] %v3101
        %v3134 = vld [vmem:[#allocation3] sm:$0xff]
        %v3135 = vld [vmem:[#allocation3 + $0x8] sm:$0xff]
        %v3136 = vld [vmem:[#allocation3 + $0x10] sm:$0xff]
        %v3137 = vld [vmem:[#allocation3 + $0x18] sm:$0xff]
        %v3138 = vld [vmem:[#allocation3 + $0x20] sm:$0xff]
        %v3139 = vld [vmem:[#allocation3 + $0x28] sm:$0xff]
        %v3140 = vld [vmem:[#allocation3 + $0x30] sm:$0xff]
        %v3141 = vld [vmem:[#allocation3 + $0x38] sm:$0xff]
        %v3142 = vld [vmem:[#allocation21] sm:$0xff]
        %v3143 = vld [vmem:[#allocation21 + $0x8] sm:$0xff]
        %v3144 = vld [vmem:[#allocation21 + $0x10] sm:$0xff]
        %v3145 = vld [vmem:[#allocation21 + $0x18] sm:$0xff]
        %v3146 = vld [vmem:[#allocation21 + $0x20] sm:$0xff]
        %v3147 = vld [vmem:[#allocation21 + $0x28] sm:$0xff]
        %v3148 = vld [vmem:[#allocation21 + $0x30] sm:$0xff]
        %v3149 = vld [vmem:[#allocation21 + $0x38] sm:$0xff]
        %v3150 = vld [vmem:[#allocation21 + $0x40] sm:$0xff]
        %v3151 = vld [vmem:[#allocation21 + $0x48] sm:$0xff]
        %v3152 = vld [vmem:[#allocation21 + $0x50] sm:$0xff]
        %v3153 = vld [vmem:[#allocation21 + $0x58] sm:$0xff]
        %v3154 = vld [vmem:[#allocation21 + $0x60] sm:$0xff]
        %v3155 = vld [vmem:[#allocation21 + $0x68] sm:$0xff]
        %v3156 = vld [vmem:[#allocation21 + $0x70] sm:$0xff]
        %v3157 = vld [vmem:[#allocation21 + $0x78] sm:$0xff]
        %v3158 = vld [vmem:[#allocation21 + $0x80] sm:$0xff]
        %v3159 = vld [vmem:[#allocation21 + $0x88] sm:$0xff]
        %v3160 = vld [vmem:[#allocation21 + $0x90] sm:$0xff]
        %v3161 = vld [vmem:[#allocation21 + $0x98] sm:$0xff]
        %v3162 = vld [vmem:[#allocation21 + $0xa0] sm:$0xff]
        %v3163 = vld [vmem:[#allocation21 + $0xa8] sm:$0xff]
        %v3164 = vld [vmem:[#allocation21 + $0xb0] sm:$0xff]
        %v3165 = vld [vmem:[#allocation21 + $0xb8] sm:$0xff]
        %v3166 = vld [vmem:[#allocation21 + $0xc0] sm:$0xff]
        %v3167 = vld [vmem:[#allocation21 + $0xc8] sm:$0xff]
        %v3168 = vld [vmem:[#allocation21 + $0xd0] sm:$0xff]
        %v3169 = vld [vmem:[#allocation21 + $0xd8] sm:$0xff]
        %v3170 = vld [vmem:[#allocation21 + $0xe0] sm:$0xff]
        %v3171 = vld [vmem:[#allocation21 + $0xe8] sm:$0xff]
        %v3172 = vld [vmem:[#allocation21 + $0xf0] sm:$0xff]
        %v3173 = vld [vmem:[#allocation21 + $0xf8] sm:$0xff]
        %v3174 = vld [vmem:[#allocation4] sm:$0xff]
        %v3175 = vld [vmem:[#allocation4 + $0x8] sm:$0xff]
        %v3176 = vld [vmem:[#allocation4 + $0x10] sm:$0xff]
        %v3177 = vld [vmem:[#allocation4 + $0x18] sm:$0xff]
        %v3178 = vld [vmem:[#allocation4 + $0x20] sm:$0xff]
        %v3179 = vld [vmem:[#allocation4 + $0x28] sm:$0xff]
        %v3180 = vld [vmem:[#allocation4 + $0x30] sm:$0xff]
        %v3181 = vld [vmem:[#allocation4 + $0x38] sm:$0xff]
        %s3182 = scalar_lea.vmem [#allocation21], 256
        %v3183 = vld [vmem:[%s3182] sm:$0xff]
        %v3184 = vld [vmem:[%s3182 + $0x8] sm:$0xff]
        %v3185 = vld [vmem:[%s3182 + $0x10] sm:$0xff]
        %v3186 = vld [vmem:[%s3182 + $0x18] sm:$0xff]
        %v3187 = vld [vmem:[%s3182 + $0x20] sm:$0xff]
        %v3188 = vld [vmem:[%s3182 + $0x28] sm:$0xff]
        %v3189 = vld [vmem:[%s3182 + $0x30] sm:$0xff]
        %v3190 = vld [vmem:[%s3182 + $0x38] sm:$0xff]
        %v3191 = vld [vmem:[%s3182 + $0x40] sm:$0xff]
        %v3192 = vld [vmem:[%s3182 + $0x48] sm:$0xff]
        %v3193 = vld [vmem:[%s3182 + $0x50] sm:$0xff]
        %v3194 = vld [vmem:[%s3182 + $0x58] sm:$0xff]
        %v3195 = vld [vmem:[%s3182 + $0x60] sm:$0xff]
        %v3196 = vld [vmem:[%s3182 + $0x68] sm:$0xff]
        %v3197 = vld [vmem:[%s3182 + $0x70] sm:$0xff]
        %v3198 = vld [vmem:[%s3182 + $0x78] sm:$0xff]
        %v3199 = vld [vmem:[%s3182 + $0x80] sm:$0xff]
        %v3200 = vld [vmem:[%s3182 + $0x88] sm:$0xff]
        %v3201 = vld [vmem:[%s3182 + $0x90] sm:$0xff]
        %v3202 = vld [vmem:[%s3182 + $0x98] sm:$0xff]
        %v3203 = vld [vmem:[%s3182 + $0xa0] sm:$0xff]
        %v3204 = vld [vmem:[%s3182 + $0xa8] sm:$0xff]
        %v3205 = vld [vmem:[%s3182 + $0xb0] sm:$0xff]
        %v3206 = vld [vmem:[%s3182 + $0xb8] sm:$0xff]
        %v3207 = vld [vmem:[%s3182 + $0xc0] sm:$0xff]
        %v3208 = vld [vmem:[%s3182 + $0xc8] sm:$0xff]
        %v3209 = vld [vmem:[%s3182 + $0xd0] sm:$0xff]
        %v3210 = vld [vmem:[%s3182 + $0xd8] sm:$0xff]
        %v3211 = vld [vmem:[%s3182 + $0xe0] sm:$0xff]
        %v3212 = vld [vmem:[%s3182 + $0xe8] sm:$0xff]
        %v3213 = vld [vmem:[%s3182 + $0xf0] sm:$0xff]
        %v3214 = vld [vmem:[%s3182 + $0xf8] sm:$0xff]
        %v3223 = vunpack.c.l.b16 %v3174
        %v3224 = vunpack.c.h.b16 %v3174
        %v3225 = vunpack.c.l.b16 %v3175
        %v3226 = vunpack.c.h.b16 %v3175
        %v3227 = vunpack.c.l.b16 %v3176
        %v3228 = vunpack.c.h.b16 %v3176
        %v3229 = vunpack.c.l.b16 %v3177
        %v3230 = vunpack.c.h.b16 %v3177
        %v3231 = vunpack.c.l.b16 %v3178
        %v3232 = vunpack.c.h.b16 %v3178
        %v3233 = vunpack.c.l.b16 %v3179
        %v3234 = vunpack.c.h.b16 %v3179
        %v3235 = vunpack.c.l.b16 %v3180
        %v3236 = vunpack.c.h.b16 %v3180
        %v3237 = vunpack.c.l.b16 %v3181
        %v3238 = vunpack.c.h.b16 %v3181
        %v3239 = vpack.c.b16 %v3225, %v3223
        %v3240 = vpack.c.b16 %v3226, %v3224
        %v3241 = vpack.c.b16 %v3229, %v3227
        %v3242 = vpack.c.b16 %v3230, %v3228
        %v3243 = vpack.c.b16 %v3233, %v3231
        %v3244 = vpack.c.b16 %v3234, %v3232
        %v3245 = vpack.c.b16 %v3237, %v3235
        %v3246 = vpack.c.b16 %v3238, %v3236
        %v3287 = vunpack.c.l.b16 %v3183
        %v3288 = vunpack.c.h.b16 %v3183
        %v3289 = vunpack.c.l.b16 %v3184
        %v3290 = vunpack.c.h.b16 %v3184
        %v3291 = vunpack.c.l.b16 %v3185
        %v3292 = vunpack.c.h.b16 %v3185
        %v3293 = vunpack.c.l.b16 %v3186
        %v3294 = vunpack.c.h.b16 %v3186
        %v3295 = vunpack.c.l.b16 %v3187
        %v3296 = vunpack.c.h.b16 %v3187
        %v3297 = vunpack.c.l.b16 %v3188
        %v3298 = vunpack.c.h.b16 %v3188
        %v3299 = vunpack.c.l.b16 %v3189
        %v3300 = vunpack.c.h.b16 %v3189
        %v3301 = vunpack.c.l.b16 %v3190
        %v3302 = vunpack.c.h.b16 %v3190
        %v3303 = vunpack.c.l.b16 %v3191
        %v3304 = vunpack.c.h.b16 %v3191
        %v3305 = vunpack.c.l.b16 %v3192
        %v3306 = vunpack.c.h.b16 %v3192
        %v3307 = vunpack.c.l.b16 %v3193
        %v3308 = vunpack.c.h.b16 %v3193
        %v3309 = vunpack.c.l.b16 %v3194
        %v3310 = vunpack.c.h.b16 %v3194
        %v3311 = vunpack.c.l.b16 %v3195
        %v3312 = vunpack.c.h.b16 %v3195
        %v3313 = vunpack.c.l.b16 %v3196
        %v3314 = vunpack.c.h.b16 %v3196
        %v3315 = vunpack.c.l.b16 %v3197
        %v3316 = vunpack.c.h.b16 %v3197
        %v3317 = vunpack.c.l.b16 %v3198
        %v3318 = vunpack.c.h.b16 %v3198
        %v3319 = vunpack.c.l.b16 %v3199
        %v3320 = vunpack.c.h.b16 %v3199
        %v3321 = vunpack.c.l.b16 %v3200
        %v3322 = vunpack.c.h.b16 %v3200
        %v3323 = vunpack.c.l.b16 %v3201
        %v3324 = vunpack.c.h.b16 %v3201
        %v3325 = vunpack.c.l.b16 %v3202
        %v3326 = vunpack.c.h.b16 %v3202
        %v3327 = vunpack.c.l.b16 %v3203
        %v3328 = vunpack.c.h.b16 %v3203
        %v3329 = vunpack.c.l.b16 %v3204
        %v3330 = vunpack.c.h.b16 %v3204
        %v3331 = vunpack.c.l.b16 %v3205
        %v3332 = vunpack.c.h.b16 %v3205
        %v3333 = vunpack.c.l.b16 %v3206
        %v3334 = vunpack.c.h.b16 %v3206
        %v3335 = vunpack.c.l.b16 %v3207
        %v3336 = vunpack.c.h.b16 %v3207
        %v3337 = vunpack.c.l.b16 %v3208
        %v3338 = vunpack.c.h.b16 %v3208
        %v3339 = vunpack.c.l.b16 %v3209
        %v3340 = vunpack.c.h.b16 %v3209
        %v3341 = vunpack.c.l.b16 %v3210
        %v3342 = vunpack.c.h.b16 %v3210
        %v3343 = vunpack.c.l.b16 %v3211
        %v3344 = vunpack.c.h.b16 %v3211
        %v3345 = vunpack.c.l.b16 %v3212
        %v3346 = vunpack.c.h.b16 %v3212
        %v3347 = vunpack.c.l.b16 %v3213
        %v3348 = vunpack.c.h.b16 %v3213
        %v3349 = vunpack.c.l.b16 %v3214
        %v3350 = vunpack.c.h.b16 %v3214
        %v3351 = vpack.c.b16 %v3289, %v3287
        %v3352 = vpack.c.b16 %v3290, %v3288
        %v3353 = vpack.c.b16 %v3293, %v3291
        %v3354 = vpack.c.b16 %v3294, %v3292
        %v3355 = vpack.c.b16 %v3297, %v3295
        %v3356 = vpack.c.b16 %v3298, %v3296
        %v3357 = vpack.c.b16 %v3301, %v3299
        %v3358 = vpack.c.b16 %v3302, %v3300
        %v3359 = vpack.c.b16 %v3305, %v3303
        %v3360 = vpack.c.b16 %v3306, %v3304
        %v3361 = vpack.c.b16 %v3309, %v3307
        %v3362 = vpack.c.b16 %v3310, %v3308
        %v3363 = vpack.c.b16 %v3313, %v3311
        %v3364 = vpack.c.b16 %v3314, %v3312
        %v3365 = vpack.c.b16 %v3317, %v3315
        %v3366 = vpack.c.b16 %v3318, %v3316
        %v3367 = vpack.c.b16 %v3321, %v3319
        %v3368 = vpack.c.b16 %v3322, %v3320
        %v3369 = vpack.c.b16 %v3325, %v3323
        %v3370 = vpack.c.b16 %v3326, %v3324
        %v3371 = vpack.c.b16 %v3329, %v3327
        %v3372 = vpack.c.b16 %v3330, %v3328
        %v3373 = vpack.c.b16 %v3333, %v3331
        %v3374 = vpack.c.b16 %v3334, %v3332
        %v3375 = vpack.c.b16 %v3337, %v3335
        %v3376 = vpack.c.b16 %v3338, %v3336
        %v3377 = vpack.c.b16 %v3341, %v3339
        %v3378 = vpack.c.b16 %v3342, %v3340
        %v3379 = vpack.c.b16 %v3345, %v3343
        %v3380 = vpack.c.b16 %v3346, %v3344
        %v3381 = vpack.c.b16 %v3349, %v3347
        %v3382 = vpack.c.b16 %v3350, %v3348
        %3415 = vmatpush.bf16.msra.mxu0 %v3365
        %3416 = vmatpush.bf16.msra.mxu0 %v3363
        %3417 = vmatpush.bf16.msra.mxu0 %v3361
        %3418 = vmatpush.bf16.msra.mxu0 %v3359
        %3419 = vmatpush.bf16.msra.mxu0 %v3357
        %3420 = vmatpush.bf16.msra.mxu0 %v3355
        %3421 = vmatpush.bf16.msra.mxu0 %v3353
        %3422 = vmatpush.bf16.msra.mxu0 %v3351
        %3423 = vmatmul.bf16.gmra.mxu0 %v3239
        %v3424 = vpop.f32.mrf.mxu0
        %v3425 = vadd.f32 0.0, %v3424
        %v3426 = vpop.f32.mrf.mxu0
        %v3427 = vadd.f32 0.0, %v3426
        %3428 = vmatmul.bf16.gmra.mxu0 %v3241
        %v3429 = vpop.f32.mrf.mxu0
        %v3430 = vadd.f32 0.0, %v3429
        %v3431 = vpop.f32.mrf.mxu0
        %v3432 = vadd.f32 0.0, %v3431
        %3433 = vmatmul.bf16.gmra.mxu0 %v3243
        %v3434 = vpop.f32.mrf.mxu0
        %v3435 = vadd.f32 0.0, %v3434
        %v3436 = vpop.f32.mrf.mxu0
        %v3437 = vadd.f32 0.0, %v3436
        %3438 = vmatmul.bf16.gmra.mxu0 %v3245
        %v3439 = vpop.f32.mrf.mxu0
        %v3440 = vadd.f32 0.0, %v3439
        %v3441 = vpop.f32.mrf.mxu0
        %v3442 = vadd.f32 0.0, %v3441
        %3443 = vdwg.mxu0
        %3444 = vmatpush.bf16.msra.mxu0 %v3381
        %3445 = vmatpush.bf16.msra.mxu0 %v3379
        %3446 = vmatpush.bf16.msra.mxu0 %v3377
        %3447 = vmatpush.bf16.msra.mxu0 %v3375
        %3448 = vmatpush.bf16.msra.mxu0 %v3373
        %3449 = vmatpush.bf16.msra.mxu0 %v3371
        %3450 = vmatpush.bf16.msra.mxu0 %v3369
        %3451 = vmatpush.bf16.msra.mxu0 %v3367
        %3452 = vmatmul.bf16.gmra.mxu0 %v3240
        %v3453 = vpop.f32.mrf.mxu0
        %v3454 = vadd.f32 %v3425, %v3453
        %v3455 = vpop.f32.mrf.mxu0
        %v3456 = vadd.f32 %v3427, %v3455
        %3457 = vmatmul.bf16.gmra.mxu0 %v3242
        %v3458 = vpop.f32.mrf.mxu0
        %v3459 = vadd.f32 %v3430, %v3458
        %v3460 = vpop.f32.mrf.mxu0
        %v3461 = vadd.f32 %v3432, %v3460
        %3462 = vmatmul.bf16.gmra.mxu0 %v3244
        %v3463 = vpop.f32.mrf.mxu0
        %v3464 = vadd.f32 %v3435, %v3463
        %v3465 = vpop.f32.mrf.mxu0
        %v3466 = vadd.f32 %v3437, %v3465
        %3467 = vmatmul.bf16.gmra.mxu0 %v3246
        %v3468 = vpop.f32.mrf.mxu0
        %v3469 = vadd.f32 %v3440, %v3468
        %v3470 = vpop.f32.mrf.mxu0
        %v3471 = vadd.f32 %v3442, %v3470
        %3472 = vdwg.mxu0
        %3473 = vmatpush.bf16.msra.mxu0 %v3366
        %3474 = vmatpush.bf16.msra.mxu0 %v3364
        %3475 = vmatpush.bf16.msra.mxu0 %v3362
        %3476 = vmatpush.bf16.msra.mxu0 %v3360
        %3477 = vmatpush.bf16.msra.mxu0 %v3358
        %3478 = vmatpush.bf16.msra.mxu0 %v3356
        %3479 = vmatpush.bf16.msra.mxu0 %v3354
        %3480 = vmatpush.bf16.msra.mxu0 %v3352
        %3481 = vmatmul.bf16.gmra.mxu0 %v3239
        %v3482 = vpop.f32.mrf.mxu0
        %v3483 = vadd.f32 0.0, %v3482
        %v3484 = vpop.f32.mrf.mxu0
        %v3485 = vadd.f32 0.0, %v3484
        %3486 = vmatmul.bf16.gmra.mxu0 %v3241
        %v3487 = vpop.f32.mrf.mxu0
        %v3488 = vadd.f32 0.0, %v3487
        %v3489 = vpop.f32.mrf.mxu0
        %v3490 = vadd.f32 0.0, %v3489
        %3491 = vmatmul.bf16.gmra.mxu0 %v3243
        %v3492 = vpop.f32.mrf.mxu0
        %v3493 = vadd.f32 0.0, %v3492
        %v3494 = vpop.f32.mrf.mxu0
        %v3495 = vadd.f32 0.0, %v3494
        %3496 = vmatmul.bf16.gmra.mxu0 %v3245
        %v3497 = vpop.f32.mrf.mxu0
        %v3498 = vadd.f32 0.0, %v3497
        %v3499 = vpop.f32.mrf.mxu0
        %v3500 = vadd.f32 0.0, %v3499
        %3501 = vdwg.mxu0
        %3502 = vmatpush.bf16.msra.mxu0 %v3382
        %3503 = vmatpush.bf16.msra.mxu0 %v3380
        %3504 = vmatpush.bf16.msra.mxu0 %v3378
        %3505 = vmatpush.bf16.msra.mxu0 %v3376
        %3506 = vmatpush.bf16.msra.mxu0 %v3374
        %3507 = vmatpush.bf16.msra.mxu0 %v3372
        %3508 = vmatpush.bf16.msra.mxu0 %v3370
        %3509 = vmatpush.bf16.msra.mxu0 %v3368
        %3510 = vmatmul.bf16.gmra.mxu0 %v3240
        %v3511 = vpop.f32.mrf.mxu0
        %v3512 = vadd.f32 %v3483, %v3511
        %v3513 = vpop.f32.mrf.mxu0
        %v3514 = vadd.f32 %v3485, %v3513
        %3515 = vmatmul.bf16.gmra.mxu0 %v3242
        %v3516 = vpop.f32.mrf.mxu0
        %v3517 = vadd.f32 %v3488, %v3516
        %v3518 = vpop.f32.mrf.mxu0
        %v3519 = vadd.f32 %v3490, %v3518
        %3520 = vmatmul.bf16.gmra.mxu0 %v3244
        %v3521 = vpop.f32.mrf.mxu0
        %v3522 = vadd.f32 %v3493, %v3521
        %v3523 = vpop.f32.mrf.mxu0
        %v3524 = vadd.f32 %v3495, %v3523
        %3525 = vmatmul.bf16.gmra.mxu0 %v3246
        %v3526 = vpop.f32.mrf.mxu0
        %v3527 = vadd.f32 %v3498, %v3526
        %v3528 = vpop.f32.mrf.mxu0
        %v3529 = vadd.f32 %v3500, %v3528
        %3530 = vdwg.mxu0
        %v3539 = vunpack.c.l.b16 %v3134
        %v3540 = vunpack.c.h.b16 %v3134
        %v3541 = vunpack.c.l.b16 %v3135
        %v3542 = vunpack.c.h.b16 %v3135
        %v3543 = vunpack.c.l.b16 %v3136
        %v3544 = vunpack.c.h.b16 %v3136
        %v3545 = vunpack.c.l.b16 %v3137
        %v3546 = vunpack.c.h.b16 %v3137
        %v3547 = vunpack.c.l.b16 %v3138
        %v3548 = vunpack.c.h.b16 %v3138
        %v3549 = vunpack.c.l.b16 %v3139
        %v3550 = vunpack.c.h.b16 %v3139
        %v3551 = vunpack.c.l.b16 %v3140
        %v3552 = vunpack.c.h.b16 %v3140
        %v3553 = vunpack.c.l.b16 %v3141
        %v3554 = vunpack.c.h.b16 %v3141
        %v3555 = vpack.c.b16 %v3541, %v3539
        %v3556 = vpack.c.b16 %v3542, %v3540
        %v3557 = vpack.c.b16 %v3545, %v3543
        %v3558 = vpack.c.b16 %v3546, %v3544
        %v3559 = vpack.c.b16 %v3549, %v3547
        %v3560 = vpack.c.b16 %v3550, %v3548
        %v3561 = vpack.c.b16 %v3553, %v3551
        %v3562 = vpack.c.b16 %v3554, %v3552
        %v3603 = vunpack.c.l.b16 %v3142
        %v3604 = vunpack.c.h.b16 %v3142
        %v3605 = vunpack.c.l.b16 %v3143
        %v3606 = vunpack.c.h.b16 %v3143
        %v3607 = vunpack.c.l.b16 %v3144
        %v3608 = vunpack.c.h.b16 %v3144
        %v3609 = vunpack.c.l.b16 %v3145
        %v3610 = vunpack.c.h.b16 %v3145
        %v3611 = vunpack.c.l.b16 %v3146
        %v3612 = vunpack.c.h.b16 %v3146
        %v3613 = vunpack.c.l.b16 %v3147
        %v3614 = vunpack.c.h.b16 %v3147
        %v3615 = vunpack.c.l.b16 %v3148
        %v3616 = vunpack.c.h.b16 %v3148
        %v3617 = vunpack.c.l.b16 %v3149
        %v3618 = vunpack.c.h.b16 %v3149
        %v3619 = vunpack.c.l.b16 %v3150
        %v3620 = vunpack.c.h.b16 %v3150
        %v3621 = vunpack.c.l.b16 %v3151
        %v3622 = vunpack.c.h.b16 %v3151
        %v3623 = vunpack.c.l.b16 %v3152
        %v3624 = vunpack.c.h.b16 %v3152
        %v3625 = vunpack.c.l.b16 %v3153
        %v3626 = vunpack.c.h.b16 %v3153
        %v3627 = vunpack.c.l.b16 %v3154
        %v3628 = vunpack.c.h.b16 %v3154
        %v3629 = vunpack.c.l.b16 %v3155
        %v3630 = vunpack.c.h.b16 %v3155
        %v3631 = vunpack.c.l.b16 %v3156
        %v3632 = vunpack.c.h.b16 %v3156
        %v3633 = vunpack.c.l.b16 %v3157
        %v3634 = vunpack.c.h.b16 %v3157
        %v3635 = vunpack.c.l.b16 %v3158
        %v3636 = vunpack.c.h.b16 %v3158
        %v3637 = vunpack.c.l.b16 %v3159
        %v3638 = vunpack.c.h.b16 %v3159
        %v3639 = vunpack.c.l.b16 %v3160
        %v3640 = vunpack.c.h.b16 %v3160
        %v3641 = vunpack.c.l.b16 %v3161
        %v3642 = vunpack.c.h.b16 %v3161
        %v3643 = vunpack.c.l.b16 %v3162
        %v3644 = vunpack.c.h.b16 %v3162
        %v3645 = vunpack.c.l.b16 %v3163
        %v3646 = vunpack.c.h.b16 %v3163
        %v3647 = vunpack.c.l.b16 %v3164
        %v3648 = vunpack.c.h.b16 %v3164
        %v3649 = vunpack.c.l.b16 %v3165
        %v3650 = vunpack.c.h.b16 %v3165
        %v3651 = vunpack.c.l.b16 %v3166
        %v3652 = vunpack.c.h.b16 %v3166
        %v3653 = vunpack.c.l.b16 %v3167
        %v3654 = vunpack.c.h.b16 %v3167
        %v3655 = vunpack.c.l.b16 %v3168
        %v3656 = vunpack.c.h.b16 %v3168
        %v3657 = vunpack.c.l.b16 %v3169
        %v3658 = vunpack.c.h.b16 %v3169
        %v3659 = vunpack.c.l.b16 %v3170
        %v3660 = vunpack.c.h.b16 %v3170
        %v3661 = vunpack.c.l.b16 %v3171
        %v3662 = vunpack.c.h.b16 %v3171
        %v3663 = vunpack.c.l.b16 %v3172
        %v3664 = vunpack.c.h.b16 %v3172
        %v3665 = vunpack.c.l.b16 %v3173
        %v3666 = vunpack.c.h.b16 %v3173
        %v3667 = vpack.c.b16 %v3605, %v3603
        %v3668 = vpack.c.b16 %v3606, %v3604
        %v3669 = vpack.c.b16 %v3609, %v3607
        %v3670 = vpack.c.b16 %v3610, %v3608
        %v3671 = vpack.c.b16 %v3613, %v3611
        %v3672 = vpack.c.b16 %v3614, %v3612
        %v3673 = vpack.c.b16 %v3617, %v3615
        %v3674 = vpack.c.b16 %v3618, %v3616
        %v3675 = vpack.c.b16 %v3621, %v3619
        %v3676 = vpack.c.b16 %v3622, %v3620
        %v3677 = vpack.c.b16 %v3625, %v3623
        %v3678 = vpack.c.b16 %v3626, %v3624
        %v3679 = vpack.c.b16 %v3629, %v3627
        %v3680 = vpack.c.b16 %v3630, %v3628
        %v3681 = vpack.c.b16 %v3633, %v3631
        %v3682 = vpack.c.b16 %v3634, %v3632
        %v3683 = vpack.c.b16 %v3637, %v3635
        %v3684 = vpack.c.b16 %v3638, %v3636
        %v3685 = vpack.c.b16 %v3641, %v3639
        %v3686 = vpack.c.b16 %v3642, %v3640
        %v3687 = vpack.c.b16 %v3645, %v3643
        %v3688 = vpack.c.b16 %v3646, %v3644
        %v3689 = vpack.c.b16 %v3649, %v3647
        %v3690 = vpack.c.b16 %v3650, %v3648
        %v3691 = vpack.c.b16 %v3653, %v3651
        %v3692 = vpack.c.b16 %v3654, %v3652
        %v3693 = vpack.c.b16 %v3657, %v3655
        %v3694 = vpack.c.b16 %v3658, %v3656
        %v3695 = vpack.c.b16 %v3661, %v3659
        %v3696 = vpack.c.b16 %v3662, %v3660
        %v3697 = vpack.c.b16 %v3665, %v3663
        %v3698 = vpack.c.b16 %v3666, %v3664
        %3731 = vmatpush.bf16.msra.mxu0 %v3681
        %3732 = vmatpush.bf16.msra.mxu0 %v3679
        %3733 = vmatpush.bf16.msra.mxu0 %v3677
        %3734 = vmatpush.bf16.msra.mxu0 %v3675
        %3735 = vmatpush.bf16.msra.mxu0 %v3673
        %3736 = vmatpush.bf16.msra.mxu0 %v3671
        %3737 = vmatpush.bf16.msra.mxu0 %v3669
        %3738 = vmatpush.bf16.msra.mxu0 %v3667
        %3739 = vmatmul.bf16.gmra.mxu0 %v3555
        %v3740 = vpop.f32.mrf.mxu0
        %v3741 = vadd.f32 %v3454, %v3740
        %v3742 = vpop.f32.mrf.mxu0
        %v3743 = vadd.f32 %v3456, %v3742
        %3744 = vmatmul.bf16.gmra.mxu0 %v3557
        %v3745 = vpop.f32.mrf.mxu0
        %v3746 = vadd.f32 %v3459, %v3745
        %v3747 = vpop.f32.mrf.mxu0
        %v3748 = vadd.f32 %v3461, %v3747
        %3749 = vmatmul.bf16.gmra.mxu0 %v3559
        %v3750 = vpop.f32.mrf.mxu0
        %v3751 = vadd.f32 %v3464, %v3750
        %v3752 = vpop.f32.mrf.mxu0
        %v3753 = vadd.f32 %v3466, %v3752
        %3754 = vmatmul.bf16.gmra.mxu0 %v3561
        %v3755 = vpop.f32.mrf.mxu0
        %v3756 = vadd.f32 %v3469, %v3755
        %v3757 = vpop.f32.mrf.mxu0
        %v3758 = vadd.f32 %v3471, %v3757
        %3759 = vdwg.mxu0
        %3760 = vmatpush.bf16.msra.mxu0 %v3697
        %3761 = vmatpush.bf16.msra.mxu0 %v3695
        %3762 = vmatpush.bf16.msra.mxu0 %v3693
        %3763 = vmatpush.bf16.msra.mxu0 %v3691
        %3764 = vmatpush.bf16.msra.mxu0 %v3689
        %3765 = vmatpush.bf16.msra.mxu0 %v3687
        %3766 = vmatpush.bf16.msra.mxu0 %v3685
        %3767 = vmatpush.bf16.msra.mxu0 %v3683
        %3768 = vmatmul.bf16.gmra.mxu0 %v3556
        %v3769 = vpop.f32.mrf.mxu0
        %v3770 = vadd.f32 %v3741, %v3769
        %v3771 = vpop.f32.mrf.mxu0
        %v3772 = vadd.f32 %v3743, %v3771
        %3773 = vmatmul.bf16.gmra.mxu0 %v3558
        %v3774 = vpop.f32.mrf.mxu0
        %v3775 = vadd.f32 %v3746, %v3774
        %v3776 = vpop.f32.mrf.mxu0
        %v3777 = vadd.f32 %v3748, %v3776
        %3778 = vmatmul.bf16.gmra.mxu0 %v3560
        %v3779 = vpop.f32.mrf.mxu0
        %v3780 = vadd.f32 %v3751, %v3779
        %v3781 = vpop.f32.mrf.mxu0
        %v3782 = vadd.f32 %v3753, %v3781
        %3783 = vmatmul.bf16.gmra.mxu0 %v3562
        %v3784 = vpop.f32.mrf.mxu0
        %v3785 = vadd.f32 %v3756, %v3784
        %v3786 = vpop.f32.mrf.mxu0
        %v3787 = vadd.f32 %v3758, %v3786
        %3788 = vdwg.mxu0
        %3789 = vmatpush.bf16.msra.mxu0 %v3682
        %3790 = vmatpush.bf16.msra.mxu0 %v3680
        %3791 = vmatpush.bf16.msra.mxu0 %v3678
        %3792 = vmatpush.bf16.msra.mxu0 %v3676
        %3793 = vmatpush.bf16.msra.mxu0 %v3674
        %3794 = vmatpush.bf16.msra.mxu0 %v3672
        %3795 = vmatpush.bf16.msra.mxu0 %v3670
        %3796 = vmatpush.bf16.msra.mxu0 %v3668
        %3797 = vmatmul.bf16.gmra.mxu0 %v3555
        %v3798 = vpop.f32.mrf.mxu0
        %v3799 = vadd.f32 %v3512, %v3798
        %v3800 = vpop.f32.mrf.mxu0
        %v3801 = vadd.f32 %v3514, %v3800
        %3802 = vmatmul.bf16.gmra.mxu0 %v3557
        %v3803 = vpop.f32.mrf.mxu0
        %v3804 = vadd.f32 %v3517, %v3803
        %v3805 = vpop.f32.mrf.mxu0
        %v3806 = vadd.f32 %v3519, %v3805
        %3807 = vmatmul.bf16.gmra.mxu0 %v3559
        %v3808 = vpop.f32.mrf.mxu0
        %v3809 = vadd.f32 %v3522, %v3808
        %v3810 = vpop.f32.mrf.mxu0
        %v3811 = vadd.f32 %v3524, %v3810
        %3812 = vmatmul.bf16.gmra.mxu0 %v3561
        %v3813 = vpop.f32.mrf.mxu0
        %v3814 = vadd.f32 %v3527, %v3813
        %v3815 = vpop.f32.mrf.mxu0
        %v3816 = vadd.f32 %v3529, %v3815
        %3817 = vdwg.mxu0
        %3818 = vmatpush.bf16.msra.mxu0 %v3698
        %3819 = vmatpush.bf16.msra.mxu0 %v3696
        %3820 = vmatpush.bf16.msra.mxu0 %v3694
        %3821 = vmatpush.bf16.msra.mxu0 %v3692
        %3822 = vmatpush.bf16.msra.mxu0 %v3690
        %3823 = vmatpush.bf16.msra.mxu0 %v3688
        %3824 = vmatpush.bf16.msra.mxu0 %v3686
        %3825 = vmatpush.bf16.msra.mxu0 %v3684
        %3826 = vmatmul.bf16.gmra.mxu0 %v3556
        %v3827 = vpop.f32.mrf.mxu0
        %v3828 = vadd.f32 %v3799, %v3827
        %v3829 = vpop.f32.mrf.mxu0
        %v3830 = vadd.f32 %v3801, %v3829
        %3831 = vmatmul.bf16.gmra.mxu0 %v3558
        %v3832 = vpop.f32.mrf.mxu0
        %v3833 = vadd.f32 %v3804, %v3832
        %v3834 = vpop.f32.mrf.mxu0
        %v3835 = vadd.f32 %v3806, %v3834
        %3836 = vmatmul.bf16.gmra.mxu0 %v3560
        %v3837 = vpop.f32.mrf.mxu0
        %v3838 = vadd.f32 %v3809, %v3837
        %v3839 = vpop.f32.mrf.mxu0
        %v3840 = vadd.f32 %v3811, %v3839
        %3841 = vmatmul.bf16.gmra.mxu0 %v3562
        %v3842 = vpop.f32.mrf.mxu0
        %v3843 = vadd.f32 %v3814, %v3842
        %v3844 = vpop.f32.mrf.mxu0
        %v3845 = vadd.f32 %v3816, %v3844
        %3846 = vdwg.mxu0
        %v3847 = vld [vmem:[#allocation3 + $0x10] sm:$0xff]
        %v3848 = vld [vmem:[#allocation3 + $0x18] sm:$0xff]
        %v3849 = vld [vmem:[#allocation3 + $0x20] sm:$0xff]
        %v3850 = vld [vmem:[#allocation3 + $0x28] sm:$0xff]
        %v3851 = vld [vmem:[#allocation3 + $0x30] sm:$0xff]
        %v3852 = vld [vmem:[#allocation3 + $0x38] sm:$0xff]
        %v3853 = vld [vmem:[#allocation3 + $0x40] sm:$0xff]
        %v3854 = vld [vmem:[#allocation3 + $0x48] sm:$0xff]
        %s3855 = scalar_lea.vmem [#allocation21], 512
        %v3856 = vld [vmem:[%s3855] sm:$0xff]
        %v3857 = vld [vmem:[%s3855 + $0x8] sm:$0xff]
        %v3858 = vld [vmem:[%s3855 + $0x10] sm:$0xff]
        %v3859 = vld [vmem:[%s3855 + $0x18] sm:$0xff]
        %v3860 = vld [vmem:[%s3855 + $0x20] sm:$0xff]
        %v3861 = vld [vmem:[%s3855 + $0x28] sm:$0xff]
        %v3862 = vld [vmem:[%s3855 + $0x30] sm:$0xff]
        %v3863 = vld [vmem:[%s3855 + $0x38] sm:$0xff]
        %v3864 = vld [vmem:[%s3855 + $0x40] sm:$0xff]
        %v3865 = vld [vmem:[%s3855 + $0x48] sm:$0xff]
        %v3866 = vld [vmem:[%s3855 + $0x50] sm:$0xff]
        %v3867 = vld [vmem:[%s3855 + $0x58] sm:$0xff]
        %v3868 = vld [vmem:[%s3855 + $0x60] sm:$0xff]
        %v3869 = vld [vmem:[%s3855 + $0x68] sm:$0xff]
        %v3870 = vld [vmem:[%s3855 + $0x70] sm:$0xff]
        %v3871 = vld [vmem:[%s3855 + $0x78] sm:$0xff]
        %v3872 = vld [vmem:[%s3855 + $0x80] sm:$0xff]
        %v3873 = vld [vmem:[%s3855 + $0x88] sm:$0xff]
        %v3874 = vld [vmem:[%s3855 + $0x90] sm:$0xff]
        %v3875 = vld [vmem:[%s3855 + $0x98] sm:$0xff]
        %v3876 = vld [vmem:[%s3855 + $0xa0] sm:$0xff]
        %v3877 = vld [vmem:[%s3855 + $0xa8] sm:$0xff]
        %v3878 = vld [vmem:[%s3855 + $0xb0] sm:$0xff]
        %v3879 = vld [vmem:[%s3855 + $0xb8] sm:$0xff]
        %v3880 = vld [vmem:[%s3855 + $0xc0] sm:$0xff]
        %v3881 = vld [vmem:[%s3855 + $0xc8] sm:$0xff]
        %v3882 = vld [vmem:[%s3855 + $0xd0] sm:$0xff]
        %v3883 = vld [vmem:[%s3855 + $0xd8] sm:$0xff]
        %v3884 = vld [vmem:[%s3855 + $0xe0] sm:$0xff]
        %v3885 = vld [vmem:[%s3855 + $0xe8] sm:$0xff]
        %v3886 = vld [vmem:[%s3855 + $0xf0] sm:$0xff]
        %v3887 = vld [vmem:[%s3855 + $0xf8] sm:$0xff]
        %v3896 = vunpack.c.l.b16 %v3847
        %v3897 = vunpack.c.h.b16 %v3847
        %v3898 = vunpack.c.l.b16 %v3848
        %v3899 = vunpack.c.h.b16 %v3848
        %v3900 = vunpack.c.l.b16 %v3849
        %v3901 = vunpack.c.h.b16 %v3849
        %v3902 = vunpack.c.l.b16 %v3850
        %v3903 = vunpack.c.h.b16 %v3850
        %v3904 = vunpack.c.l.b16 %v3851
        %v3905 = vunpack.c.h.b16 %v3851
        %v3906 = vunpack.c.l.b16 %v3852
        %v3907 = vunpack.c.h.b16 %v3852
        %v3908 = vunpack.c.l.b16 %v3853
        %v3909 = vunpack.c.h.b16 %v3853
        %v3910 = vunpack.c.l.b16 %v3854
        %v3911 = vunpack.c.h.b16 %v3854
        %v3912 = vpack.c.b16 %v3898, %v3896
        %v3913 = vpack.c.b16 %v3899, %v3897
        %v3914 = vpack.c.b16 %v3902, %v3900
        %v3915 = vpack.c.b16 %v3903, %v3901
        %v3916 = vpack.c.b16 %v3906, %v3904
        %v3917 = vpack.c.b16 %v3907, %v3905
        %v3918 = vpack.c.b16 %v3910, %v3908
        %v3919 = vpack.c.b16 %v3911, %v3909
        %v3960 = vunpack.c.l.b16 %v3856
        %v3961 = vunpack.c.h.b16 %v3856
        %v3962 = vunpack.c.l.b16 %v3857
        %v3963 = vunpack.c.h.b16 %v3857
        %v3964 = vunpack.c.l.b16 %v3858
        %v3965 = vunpack.c.h.b16 %v3858
        %v3966 = vunpack.c.l.b16 %v3859
        %v3967 = vunpack.c.h.b16 %v3859
        %v3968 = vunpack.c.l.b16 %v3860
        %v3969 = vunpack.c.h.b16 %v3860
        %v3970 = vunpack.c.l.b16 %v3861
        %v3971 = vunpack.c.h.b16 %v3861
        %v3972 = vunpack.c.l.b16 %v3862
        %v3973 = vunpack.c.h.b16 %v3862
        %v3974 = vunpack.c.l.b16 %v3863
        %v3975 = vunpack.c.h.b16 %v3863
        %v3976 = vunpack.c.l.b16 %v3864
        %v3977 = vunpack.c.h.b16 %v3864
        %v3978 = vunpack.c.l.b16 %v3865
        %v3979 = vunpack.c.h.b16 %v3865
        %v3980 = vunpack.c.l.b16 %v3866
        %v3981 = vunpack.c.h.b16 %v3866
        %v3982 = vunpack.c.l.b16 %v3867
        %v3983 = vunpack.c.h.b16 %v3867
        %v3984 = vunpack.c.l.b16 %v3868
        %v3985 = vunpack.c.h.b16 %v3868
        %v3986 = vunpack.c.l.b16 %v3869
        %v3987 = vunpack.c.h.b16 %v3869
        %v3988 = vunpack.c.l.b16 %v3870
        %v3989 = vunpack.c.h.b16 %v3870
        %v3990 = vunpack.c.l.b16 %v3871
        %v3991 = vunpack.c.h.b16 %v3871
        %v3992 = vunpack.c.l.b16 %v3872
        %v3993 = vunpack.c.h.b16 %v3872
        %v3994 = vunpack.c.l.b16 %v3873
        %v3995 = vunpack.c.h.b16 %v3873
        %v3996 = vunpack.c.l.b16 %v3874
        %v3997 = vunpack.c.h.b16 %v3874
        %v3998 = vunpack.c.l.b16 %v3875
        %v3999 = vunpack.c.h.b16 %v3875
        %v4000 = vunpack.c.l.b16 %v3876
        %v4001 = vunpack.c.h.b16 %v3876
        %v4002 = vunpack.c.l.b16 %v3877
        %v4003 = vunpack.c.h.b16 %v3877
        %v4004 = vunpack.c.l.b16 %v3878
        %v4005 = vunpack.c.h.b16 %v3878
        %v4006 = vunpack.c.l.b16 %v3879
        %v4007 = vunpack.c.h.b16 %v3879
        %v4008 = vunpack.c.l.b16 %v3880
        %v4009 = vunpack.c.h.b16 %v3880
        %v4010 = vunpack.c.l.b16 %v3881
        %v4011 = vunpack.c.h.b16 %v3881
        %v4012 = vunpack.c.l.b16 %v3882
        %v4013 = vunpack.c.h.b16 %v3882
        %v4014 = vunpack.c.l.b16 %v3883
        %v4015 = vunpack.c.h.b16 %v3883
        %v4016 = vunpack.c.l.b16 %v3884
        %v4017 = vunpack.c.h.b16 %v3884
        %v4018 = vunpack.c.l.b16 %v3885
        %v4019 = vunpack.c.h.b16 %v3885
        %v4020 = vunpack.c.l.b16 %v3886
        %v4021 = vunpack.c.h.b16 %v3886
        %v4022 = vunpack.c.l.b16 %v3887
        %v4023 = vunpack.c.h.b16 %v3887
        %v4024 = vpack.c.b16 %v3962, %v3960
        %v4025 = vpack.c.b16 %v3963, %v3961
        %v4026 = vpack.c.b16 %v3966, %v3964
        %v4027 = vpack.c.b16 %v3967, %v3965
        %v4028 = vpack.c.b16 %v3970, %v3968
        %v4029 = vpack.c.b16 %v3971, %v3969
        %v4030 = vpack.c.b16 %v3974, %v3972
        %v4031 = vpack.c.b16 %v3975, %v3973
        %v4032 = vpack.c.b16 %v3978, %v3976
        %v4033 = vpack.c.b16 %v3979, %v3977
        %v4034 = vpack.c.b16 %v3982, %v3980
        %v4035 = vpack.c.b16 %v3983, %v3981
        %v4036 = vpack.c.b16 %v3986, %v3984
        %v4037 = vpack.c.b16 %v3987, %v3985
        %v4038 = vpack.c.b16 %v3990, %v3988
        %v4039 = vpack.c.b16 %v3991, %v3989
        %v4040 = vpack.c.b16 %v3994, %v3992
        %v4041 = vpack.c.b16 %v3995, %v3993
        %v4042 = vpack.c.b16 %v3998, %v3996
        %v4043 = vpack.c.b16 %v3999, %v3997
        %v4044 = vpack.c.b16 %v4002, %v4000
        %v4045 = vpack.c.b16 %v4003, %v4001
        %v4046 = vpack.c.b16 %v4006, %v4004
        %v4047 = vpack.c.b16 %v4007, %v4005
        %v4048 = vpack.c.b16 %v4010, %v4008
        %v4049 = vpack.c.b16 %v4011, %v4009
        %v4050 = vpack.c.b16 %v4014, %v4012
        %v4051 = vpack.c.b16 %v4015, %v4013
        %v4052 = vpack.c.b16 %v4018, %v4016
        %v4053 = vpack.c.b16 %v4019, %v4017
        %v4054 = vpack.c.b16 %v4022, %v4020
        %v4055 = vpack.c.b16 %v4023, %v4021
        %4088 = vmatpush.bf16.msra.mxu0 %v4038
        %4089 = vmatpush.bf16.msra.mxu0 %v4036
        %4090 = vmatpush.bf16.msra.mxu0 %v4034
        %4091 = vmatpush.bf16.msra.mxu0 %v4032
        %4092 = vmatpush.bf16.msra.mxu0 %v4030
        %4093 = vmatpush.bf16.msra.mxu0 %v4028
        %4094 = vmatpush.bf16.msra.mxu0 %v4026
        %4095 = vmatpush.bf16.msra.mxu0 %v4024
        %4096 = vmatmul.bf16.gmra.mxu0 %v3912
        %v4097 = vpop.f32.mrf.mxu0
        %v4098 = vadd.f32 0.0, %v4097
        %v4099 = vpop.f32.mrf.mxu0
        %v4100 = vadd.f32 0.0, %v4099
        %4101 = vmatmul.bf16.gmra.mxu0 %v3914
        %v4102 = vpop.f32.mrf.mxu0
        %v4103 = vadd.f32 0.0, %v4102
        %v4104 = vpop.f32.mrf.mxu0
        %v4105 = vadd.f32 0.0, %v4104
        %4106 = vmatmul.bf16.gmra.mxu0 %v3916
        %v4107 = vpop.f32.mrf.mxu0
        %v4108 = vadd.f32 0.0, %v4107
        %v4109 = vpop.f32.mrf.mxu0
        %v4110 = vadd.f32 0.0, %v4109
        %4111 = vmatmul.bf16.gmra.mxu0 %v3918
        %v4112 = vpop.f32.mrf.mxu0
        %v4113 = vadd.f32 0.0, %v4112
        %v4114 = vpop.f32.mrf.mxu0
        %v4115 = vadd.f32 0.0, %v4114
        %4116 = vdwg.mxu0
        %4117 = vmatpush.bf16.msra.mxu0 %v4054
        %4118 = vmatpush.bf16.msra.mxu0 %v4052
        %4119 = vmatpush.bf16.msra.mxu0 %v4050
        %4120 = vmatpush.bf16.msra.mxu0 %v4048
        %4121 = vmatpush.bf16.msra.mxu0 %v4046
        %4122 = vmatpush.bf16.msra.mxu0 %v4044
        %4123 = vmatpush.bf16.msra.mxu0 %v4042
        %4124 = vmatpush.bf16.msra.mxu0 %v4040
        %4125 = vmatmul.bf16.gmra.mxu0 %v3913
        %v4126 = vpop.f32.mrf.mxu0
        %v4127 = vadd.f32 %v4098, %v4126
        %v4128 = vpop.f32.mrf.mxu0
        %v4129 = vadd.f32 %v4100, %v4128
        %4130 = vmatmul.bf16.gmra.mxu0 %v3915
        %v4131 = vpop.f32.mrf.mxu0
        %v4132 = vadd.f32 %v4103, %v4131
        %v4133 = vpop.f32.mrf.mxu0
        %v4134 = vadd.f32 %v4105, %v4133
        %4135 = vmatmul.bf16.gmra.mxu0 %v3917
        %v4136 = vpop.f32.mrf.mxu0
        %v4137 = vadd.f32 %v4108, %v4136
        %v4138 = vpop.f32.mrf.mxu0
        %v4139 = vadd.f32 %v4110, %v4138
        %4140 = vmatmul.bf16.gmra.mxu0 %v3919
        %v4141 = vpop.f32.mrf.mxu0
        %v4142 = vadd.f32 %v4113, %v4141
        %v4143 = vpop.f32.mrf.mxu0
        %v4144 = vadd.f32 %v4115, %v4143
        %4145 = vdwg.mxu0
        %4146 = vmatpush.bf16.msra.mxu0 %v4039
        %4147 = vmatpush.bf16.msra.mxu0 %v4037
        %4148 = vmatpush.bf16.msra.mxu0 %v4035
        %4149 = vmatpush.bf16.msra.mxu0 %v4033
        %4150 = vmatpush.bf16.msra.mxu0 %v4031
        %4151 = vmatpush.bf16.msra.mxu0 %v4029
        %4152 = vmatpush.bf16.msra.mxu0 %v4027
        %4153 = vmatpush.bf16.msra.mxu0 %v4025
        %4154 = vmatmul.bf16.gmra.mxu0 %v3912
        %v4155 = vpop.f32.mrf.mxu0
        %v4156 = vadd.f32 0.0, %v4155
        %v4157 = vpop.f32.mrf.mxu0
        %v4158 = vadd.f32 0.0, %v4157
        %4159 = vmatmul.bf16.gmra.mxu0 %v3914
        %v4160 = vpop.f32.mrf.mxu0
        %v4161 = vadd.f32 0.0, %v4160
        %v4162 = vpop.f32.mrf.mxu0
        %v4163 = vadd.f32 0.0, %v4162
        %4164 = vmatmul.bf16.gmra.mxu0 %v3916
        %v4165 = vpop.f32.mrf.mxu0
        %v4166 = vadd.f32 0.0, %v4165
        %v4167 = vpop.f32.mrf.mxu0
        %v4168 = vadd.f32 0.0, %v4167
        %4169 = vmatmul.bf16.gmra.mxu0 %v3918
        %v4170 = vpop.f32.mrf.mxu0
        %v4171 = vadd.f32 0.0, %v4170
        %v4172 = vpop.f32.mrf.mxu0
        %v4173 = vadd.f32 0.0, %v4172
        %4174 = vdwg.mxu0
        %4175 = vmatpush.bf16.msra.mxu0 %v4055
        %4176 = vmatpush.bf16.msra.mxu0 %v4053
        %4177 = vmatpush.bf16.msra.mxu0 %v4051
        %4178 = vmatpush.bf16.msra.mxu0 %v4049
        %4179 = vmatpush.bf16.msra.mxu0 %v4047
        %4180 = vmatpush.bf16.msra.mxu0 %v4045
        %4181 = vmatpush.bf16.msra.mxu0 %v4043
        %4182 = vmatpush.bf16.msra.mxu0 %v4041
        %4183 = vmatmul.bf16.gmra.mxu0 %v3913
        %v4184 = vpop.f32.mrf.mxu0
        %v4185 = vadd.f32 %v4156, %v4184
        %v4186 = vpop.f32.mrf.mxu0
        %v4187 = vadd.f32 %v4158, %v4186
        %4188 = vmatmul.bf16.gmra.mxu0 %v3915
        %v4189 = vpop.f32.mrf.mxu0
        %v4190 = vadd.f32 %v4161, %v4189
        %v4191 = vpop.f32.mrf.mxu0
        %v4192 = vadd.f32 %v4163, %v4191
        %4193 = vmatmul.bf16.gmra.mxu0 %v3917
        %v4194 = vpop.f32.mrf.mxu0
        %v4195 = vadd.f32 %v4166, %v4194
        %v4196 = vpop.f32.mrf.mxu0
        %v4197 = vadd.f32 %v4168, %v4196
        %4198 = vmatmul.bf16.gmra.mxu0 %v3919
        %v4199 = vpop.f32.mrf.mxu0
        %v4200 = vadd.f32 %v4171, %v4199
        %v4201 = vpop.f32.mrf.mxu0
        %v4202 = vadd.f32 %v4173, %v4201
        %4203 = vdwg.mxu0
        %v4204 = vadd.f32 %v3770, %v4127
        %v4205 = vadd.f32 %v3828, %v4185
        %v4206 = vadd.f32 %v3772, %v4129
        %v4207 = vadd.f32 %v3830, %v4187
        %v4208 = vadd.f32 %v3775, %v4132
        %v4209 = vadd.f32 %v3833, %v4190
        %v4210 = vadd.f32 %v3777, %v4134
        %v4211 = vadd.f32 %v3835, %v4192
        %v4212 = vadd.f32 %v3780, %v4137
        %v4213 = vadd.f32 %v3838, %v4195
        %v4214 = vadd.f32 %v3782, %v4139
        %v4215 = vadd.f32 %v3840, %v4197
        %v4216 = vadd.f32 %v3785, %v4142
        %v4217 = vadd.f32 %v3843, %v4200
        %v4218 = vadd.f32 %v3787, %v4144
        %v4219 = vadd.f32 %v3845, %v4202
        %v4220 = vld [vmem:[#allocation4 + $0x10] sm:$0xff]
        %v4221 = vld [vmem:[#allocation4 + $0x18] sm:$0xff]
        %v4222 = vld [vmem:[#allocation4 + $0x20] sm:$0xff]
        %v4223 = vld [vmem:[#allocation4 + $0x28] sm:$0xff]
        %v4224 = vld [vmem:[#allocation4 + $0x30] sm:$0xff]
        %v4225 = vld [vmem:[#allocation4 + $0x38] sm:$0xff]
        %v4226 = vld [vmem:[#allocation4 + $0x40] sm:$0xff]
        %v4227 = vld [vmem:[#allocation4 + $0x48] sm:$0xff]
        %s4228 = scalar_lea.vmem [#allocation21], 768
        %v4229 = vld [vmem:[%s4228] sm:$0xff]
        %v4230 = vld [vmem:[%s4228 + $0x8] sm:$0xff]
        %v4231 = vld [vmem:[%s4228 + $0x10] sm:$0xff]
        %v4232 = vld [vmem:[%s4228 + $0x18] sm:$0xff]
        %v4233 = vld [vmem:[%s4228 + $0x20] sm:$0xff]
        %v4234 = vld [vmem:[%s4228 + $0x28] sm:$0xff]
        %v4235 = vld [vmem:[%s4228 + $0x30] sm:$0xff]
        %v4236 = vld [vmem:[%s4228 + $0x38] sm:$0xff]
        %v4237 = vld [vmem:[%s4228 + $0x40] sm:$0xff]
        %v4238 = vld [vmem:[%s4228 + $0x48] sm:$0xff]
        %v4239 = vld [vmem:[%s4228 + $0x50] sm:$0xff]
        %v4240 = vld [vmem:[%s4228 + $0x58] sm:$0xff]
        %v4241 = vld [vmem:[%s4228 + $0x60] sm:$0xff]
        %v4242 = vld [vmem:[%s4228 + $0x68] sm:$0xff]
        %v4243 = vld [vmem:[%s4228 + $0x70] sm:$0xff]
        %v4244 = vld [vmem:[%s4228 + $0x78] sm:$0xff]
        %v4245 = vld [vmem:[%s4228 + $0x80] sm:$0xff]
        %v4246 = vld [vmem:[%s4228 + $0x88] sm:$0xff]
        %v4247 = vld [vmem:[%s4228 + $0x90] sm:$0xff]
        %v4248 = vld [vmem:[%s4228 + $0x98] sm:$0xff]
        %v4249 = vld [vmem:[%s4228 + $0xa0] sm:$0xff]
        %v4250 = vld [vmem:[%s4228 + $0xa8] sm:$0xff]
        %v4251 = vld [vmem:[%s4228 + $0xb0] sm:$0xff]
        %v4252 = vld [vmem:[%s4228 + $0xb8] sm:$0xff]
        %v4253 = vld [vmem:[%s4228 + $0xc0] sm:$0xff]
        %v4254 = vld [vmem:[%s4228 + $0xc8] sm:$0xff]
        %v4255 = vld [vmem:[%s4228 + $0xd0] sm:$0xff]
        %v4256 = vld [vmem:[%s4228 + $0xd8] sm:$0xff]
        %v4257 = vld [vmem:[%s4228 + $0xe0] sm:$0xff]
        %v4258 = vld [vmem:[%s4228 + $0xe8] sm:$0xff]
        %v4259 = vld [vmem:[%s4228 + $0xf0] sm:$0xff]
        %v4260 = vld [vmem:[%s4228 + $0xf8] sm:$0xff]
        %v4269 = vunpack.c.l.b16 %v4220
        %v4270 = vunpack.c.h.b16 %v4220
        %v4271 = vunpack.c.l.b16 %v4221
        %v4272 = vunpack.c.h.b16 %v4221
        %v4273 = vunpack.c.l.b16 %v4222
        %v4274 = vunpack.c.h.b16 %v4222
        %v4275 = vunpack.c.l.b16 %v4223
        %v4276 = vunpack.c.h.b16 %v4223
        %v4277 = vunpack.c.l.b16 %v4224
        %v4278 = vunpack.c.h.b16 %v4224
        %v4279 = vunpack.c.l.b16 %v4225
        %v4280 = vunpack.c.h.b16 %v4225
        %v4281 = vunpack.c.l.b16 %v4226
        %v4282 = vunpack.c.h.b16 %v4226
        %v4283 = vunpack.c.l.b16 %v4227
        %v4284 = vunpack.c.h.b16 %v4227
        %v4285 = vpack.c.b16 %v4271, %v4269
        %v4286 = vpack.c.b16 %v4272, %v4270
        %v4287 = vpack.c.b16 %v4275, %v4273
        %v4288 = vpack.c.b16 %v4276, %v4274
        %v4289 = vpack.c.b16 %v4279, %v4277
        %v4290 = vpack.c.b16 %v4280, %v4278
        %v4291 = vpack.c.b16 %v4283, %v4281
        %v4292 = vpack.c.b16 %v4284, %v4282
        %v4333 = vunpack.c.l.b16 %v4229
        %v4334 = vunpack.c.h.b16 %v4229
        %v4335 = vunpack.c.l.b16 %v4230
        %v4336 = vunpack.c.h.b16 %v4230
        %v4337 = vunpack.c.l.b16 %v4231
        %v4338 = vunpack.c.h.b16 %v4231
        %v4339 = vunpack.c.l.b16 %v4232
        %v4340 = vunpack.c.h.b16 %v4232
        %v4341 = vunpack.c.l.b16 %v4233
        %v4342 = vunpack.c.h.b16 %v4233
        %v4343 = vunpack.c.l.b16 %v4234
        %v4344 = vunpack.c.h.b16 %v4234
        %v4345 = vunpack.c.l.b16 %v4235
        %v4346 = vunpack.c.h.b16 %v4235
        %v4347 = vunpack.c.l.b16 %v4236
        %v4348 = vunpack.c.h.b16 %v4236
        %v4349 = vunpack.c.l.b16 %v4237
        %v4350 = vunpack.c.h.b16 %v4237
        %v4351 = vunpack.c.l.b16 %v4238
        %v4352 = vunpack.c.h.b16 %v4238
        %v4353 = vunpack.c.l.b16 %v4239
        %v4354 = vunpack.c.h.b16 %v4239
        %v4355 = vunpack.c.l.b16 %v4240
        %v4356 = vunpack.c.h.b16 %v4240
        %v4357 = vunpack.c.l.b16 %v4241
        %v4358 = vunpack.c.h.b16 %v4241
        %v4359 = vunpack.c.l.b16 %v4242
        %v4360 = vunpack.c.h.b16 %v4242
        %v4361 = vunpack.c.l.b16 %v4243
        %v4362 = vunpack.c.h.b16 %v4243
        %v4363 = vunpack.c.l.b16 %v4244
        %v4364 = vunpack.c.h.b16 %v4244
        %v4365 = vunpack.c.l.b16 %v4245
        %v4366 = vunpack.c.h.b16 %v4245
        %v4367 = vunpack.c.l.b16 %v4246
        %v4368 = vunpack.c.h.b16 %v4246
        %v4369 = vunpack.c.l.b16 %v4247
        %v4370 = vunpack.c.h.b16 %v4247
        %v4371 = vunpack.c.l.b16 %v4248
        %v4372 = vunpack.c.h.b16 %v4248
        %v4373 = vunpack.c.l.b16 %v4249
        %v4374 = vunpack.c.h.b16 %v4249
        %v4375 = vunpack.c.l.b16 %v4250
        %v4376 = vunpack.c.h.b16 %v4250
        %v4377 = vunpack.c.l.b16 %v4251
        %v4378 = vunpack.c.h.b16 %v4251
        %v4379 = vunpack.c.l.b16 %v4252
        %v4380 = vunpack.c.h.b16 %v4252
        %v4381 = vunpack.c.l.b16 %v4253
        %v4382 = vunpack.c.h.b16 %v4253
        %v4383 = vunpack.c.l.b16 %v4254
        %v4384 = vunpack.c.h.b16 %v4254
        %v4385 = vunpack.c.l.b16 %v4255
        %v4386 = vunpack.c.h.b16 %v4255
        %v4387 = vunpack.c.l.b16 %v4256
        %v4388 = vunpack.c.h.b16 %v4256
        %v4389 = vunpack.c.l.b16 %v4257
        %v4390 = vunpack.c.h.b16 %v4257
        %v4391 = vunpack.c.l.b16 %v4258
        %v4392 = vunpack.c.h.b16 %v4258
        %v4393 = vunpack.c.l.b16 %v4259
        %v4394 = vunpack.c.h.b16 %v4259
        %v4395 = vunpack.c.l.b16 %v4260
        %v4396 = vunpack.c.h.b16 %v4260
        %v4397 = vpack.c.b16 %v4335, %v4333
        %v4398 = vpack.c.b16 %v4336, %v4334
        %v4399 = vpack.c.b16 %v4339, %v4337
        %v4400 = vpack.c.b16 %v4340, %v4338
        %v4401 = vpack.c.b16 %v4343, %v4341
        %v4402 = vpack.c.b16 %v4344, %v4342
        %v4403 = vpack.c.b16 %v4347, %v4345
        %v4404 = vpack.c.b16 %v4348, %v4346
        %v4405 = vpack.c.b16 %v4351, %v4349
        %v4406 = vpack.c.b16 %v4352, %v4350
        %v4407 = vpack.c.b16 %v4355, %v4353
        %v4408 = vpack.c.b16 %v4356, %v4354
        %v4409 = vpack.c.b16 %v4359, %v4357
        %v4410 = vpack.c.b16 %v4360, %v4358
        %v4411 = vpack.c.b16 %v4363, %v4361
        %v4412 = vpack.c.b16 %v4364, %v4362
        %v4413 = vpack.c.b16 %v4367, %v4365
        %v4414 = vpack.c.b16 %v4368, %v4366
        %v4415 = vpack.c.b16 %v4371, %v4369
        %v4416 = vpack.c.b16 %v4372, %v4370
        %v4417 = vpack.c.b16 %v4375, %v4373
        %v4418 = vpack.c.b16 %v4376, %v4374
        %v4419 = vpack.c.b16 %v4379, %v4377
        %v4420 = vpack.c.b16 %v4380, %v4378
        %v4421 = vpack.c.b16 %v4383, %v4381
        %v4422 = vpack.c.b16 %v4384, %v4382
        %v4423 = vpack.c.b16 %v4387, %v4385
        %v4424 = vpack.c.b16 %v4388, %v4386
        %v4425 = vpack.c.b16 %v4391, %v4389
        %v4426 = vpack.c.b16 %v4392, %v4390
        %v4427 = vpack.c.b16 %v4395, %v4393
        %v4428 = vpack.c.b16 %v4396, %v4394
        %4461 = vmatpush.bf16.msra.mxu0 %v4411
        %4462 = vmatpush.bf16.msra.mxu0 %v4409
        %4463 = vmatpush.bf16.msra.mxu0 %v4407
        %4464 = vmatpush.bf16.msra.mxu0 %v4405
        %4465 = vmatpush.bf16.msra.mxu0 %v4403
        %4466 = vmatpush.bf16.msra.mxu0 %v4401
        %4467 = vmatpush.bf16.msra.mxu0 %v4399
        %4468 = vmatpush.bf16.msra.mxu0 %v4397
        %4469 = vmatmul.bf16.gmra.mxu0 %v4285
        %v4470 = vpop.f32.mrf.mxu0
        %v4471 = vadd.f32 0.0, %v4470
        %v4472 = vpop.f32.mrf.mxu0
        %v4473 = vadd.f32 0.0, %v4472
        %4474 = vmatmul.bf16.gmra.mxu0 %v4287
        %v4475 = vpop.f32.mrf.mxu0
        %v4476 = vadd.f32 0.0, %v4475
        %v4477 = vpop.f32.mrf.mxu0
        %v4478 = vadd.f32 0.0, %v4477
        %4479 = vmatmul.bf16.gmra.mxu0 %v4289
        %v4480 = vpop.f32.mrf.mxu0
        %v4481 = vadd.f32 0.0, %v4480
        %v4482 = vpop.f32.mrf.mxu0
        %v4483 = vadd.f32 0.0, %v4482
        %4484 = vmatmul.bf16.gmra.mxu0 %v4291
        %v4485 = vpop.f32.mrf.mxu0
        %v4486 = vadd.f32 0.0, %v4485
        %v4487 = vpop.f32.mrf.mxu0
        %v4488 = vadd.f32 0.0, %v4487
        %4489 = vdwg.mxu0
        %4490 = vmatpush.bf16.msra.mxu0 %v4427
        %4491 = vmatpush.bf16.msra.mxu0 %v4425
        %4492 = vmatpush.bf16.msra.mxu0 %v4423
        %4493 = vmatpush.bf16.msra.mxu0 %v4421
        %4494 = vmatpush.bf16.msra.mxu0 %v4419
        %4495 = vmatpush.bf16.msra.mxu0 %v4417
        %4496 = vmatpush.bf16.msra.mxu0 %v4415
        %4497 = vmatpush.bf16.msra.mxu0 %v4413
        %4498 = vmatmul.bf16.gmra.mxu0 %v4286
        %v4499 = vpop.f32.mrf.mxu0
        %v4500 = vadd.f32 %v4471, %v4499
        %v4501 = vpop.f32.mrf.mxu0
        %v4502 = vadd.f32 %v4473, %v4501
        %4503 = vmatmul.bf16.gmra.mxu0 %v4288
        %v4504 = vpop.f32.mrf.mxu0
        %v4505 = vadd.f32 %v4476, %v4504
        %v4506 = vpop.f32.mrf.mxu0
        %v4507 = vadd.f32 %v4478, %v4506
        %4508 = vmatmul.bf16.gmra.mxu0 %v4290
        %v4509 = vpop.f32.mrf.mxu0
        %v4510 = vadd.f32 %v4481, %v4509
        %v4511 = vpop.f32.mrf.mxu0
        %v4512 = vadd.f32 %v4483, %v4511
        %4513 = vmatmul.bf16.gmra.mxu0 %v4292
        %v4514 = vpop.f32.mrf.mxu0
        %v4515 = vadd.f32 %v4486, %v4514
        %v4516 = vpop.f32.mrf.mxu0
        %v4517 = vadd.f32 %v4488, %v4516
        %4518 = vdwg.mxu0
        %4519 = vmatpush.bf16.msra.mxu0 %v4412
        %4520 = vmatpush.bf16.msra.mxu0 %v4410
        %4521 = vmatpush.bf16.msra.mxu0 %v4408
        %4522 = vmatpush.bf16.msra.mxu0 %v4406
        %4523 = vmatpush.bf16.msra.mxu0 %v4404
        %4524 = vmatpush.bf16.msra.mxu0 %v4402
        %4525 = vmatpush.bf16.msra.mxu0 %v4400
        %4526 = vmatpush.bf16.msra.mxu0 %v4398
        %4527 = vmatmul.bf16.gmra.mxu0 %v4285
        %v4528 = vpop.f32.mrf.mxu0
        %v4529 = vadd.f32 0.0, %v4528
        %v4530 = vpop.f32.mrf.mxu0
        %v4531 = vadd.f32 0.0, %v4530
        %4532 = vmatmul.bf16.gmra.mxu0 %v4287
        %v4533 = vpop.f32.mrf.mxu0
        %v4534 = vadd.f32 0.0, %v4533
        %v4535 = vpop.f32.mrf.mxu0
        %v4536 = vadd.f32 0.0, %v4535
        %4537 = vmatmul.bf16.gmra.mxu0 %v4289
        %v4538 = vpop.f32.mrf.mxu0
        %v4539 = vadd.f32 0.0, %v4538
        %v4540 = vpop.f32.mrf.mxu0
        %v4541 = vadd.f32 0.0, %v4540
        %4542 = vmatmul.bf16.gmra.mxu0 %v4291
        %v4543 = vpop.f32.mrf.mxu0
        %v4544 = vadd.f32 0.0, %v4543
        %v4545 = vpop.f32.mrf.mxu0
        %v4546 = vadd.f32 0.0, %v4545
        %4547 = vdwg.mxu0
        %4548 = vmatpush.bf16.msra.mxu0 %v4428
        %4549 = vmatpush.bf16.msra.mxu0 %v4426
        %4550 = vmatpush.bf16.msra.mxu0 %v4424
        %4551 = vmatpush.bf16.msra.mxu0 %v4422
        %4552 = vmatpush.bf16.msra.mxu0 %v4420
        %4553 = vmatpush.bf16.msra.mxu0 %v4418
        %4554 = vmatpush.bf16.msra.mxu0 %v4416
        %4555 = vmatpush.bf16.msra.mxu0 %v4414
        %4556 = vmatmul.bf16.gmra.mxu0 %v4286
        %v4557 = vpop.f32.mrf.mxu0
        %v4558 = vadd.f32 %v4529, %v4557
        %v4559 = vpop.f32.mrf.mxu0
        %v4560 = vadd.f32 %v4531, %v4559
        %4561 = vmatmul.bf16.gmra.mxu0 %v4288
        %v4562 = vpop.f32.mrf.mxu0
        %v4563 = vadd.f32 %v4534, %v4562
        %v4564 = vpop.f32.mrf.mxu0
        %v4565 = vadd.f32 %v4536, %v4564
        %4566 = vmatmul.bf16.gmra.mxu0 %v4290
        %v4567 = vpop.f32.mrf.mxu0
        %v4568 = vadd.f32 %v4539, %v4567
        %v4569 = vpop.f32.mrf.mxu0
        %v4570 = vadd.f32 %v4541, %v4569
        %4571 = vmatmul.bf16.gmra.mxu0 %v4292
        %v4572 = vpop.f32.mrf.mxu0
        %v4573 = vadd.f32 %v4544, %v4572
        %v4574 = vpop.f32.mrf.mxu0
        %v4575 = vadd.f32 %v4546, %v4574
        %4576 = vdwg.mxu0
        %v4577 = vadd.f32 %v4204, %v4500
        %v4578 = vadd.f32 %v4205, %v4558
        %v4579 = vadd.f32 %v4206, %v4502
        %v4580 = vadd.f32 %v4207, %v4560
        %v4581 = vadd.f32 %v4208, %v4505
        %v4582 = vadd.f32 %v4209, %v4563
        %v4583 = vadd.f32 %v4210, %v4507
        %v4584 = vadd.f32 %v4211, %v4565
        %v4585 = vadd.f32 %v4212, %v4510
        %v4586 = vadd.f32 %v4213, %v4568
        %v4587 = vadd.f32 %v4214, %v4512
        %v4588 = vadd.f32 %v4215, %v4570
        %v4589 = vadd.f32 %v4216, %v4515
        %v4590 = vadd.f32 %v4217, %v4573
        %v4591 = vadd.f32 %v4218, %v4517
        %v4592 = vadd.f32 %v4219, %v4575
        %v4593 = vld [vmem:[#allocation3 + $0x20] sm:$0xff]
        %v4594 = vld [vmem:[#allocation3 + $0x28] sm:$0xff]
        %v4595 = vld [vmem:[#allocation3 + $0x30] sm:$0xff]
        %v4596 = vld [vmem:[#allocation3 + $0x38] sm:$0xff]
        %v4597 = vld [vmem:[#allocation3 + $0x40] sm:$0xff]
        %v4598 = vld [vmem:[#allocation3 + $0x48] sm:$0xff]
        %v4599 = vld [vmem:[#allocation3 + $0x50] sm:$0xff]
        %v4600 = vld [vmem:[#allocation3 + $0x58] sm:$0xff]
        %s4601 = scalar_lea.vmem [#allocation21], 1024
        %v4602 = vld [vmem:[%s4601] sm:$0xff]
        %v4603 = vld [vmem:[%s4601 + $0x8] sm:$0xff]
        %v4604 = vld [vmem:[%s4601 + $0x10] sm:$0xff]
        %v4605 = vld [vmem:[%s4601 + $0x18] sm:$0xff]
        %v4606 = vld [vmem:[%s4601 + $0x20] sm:$0xff]
        %v4607 = vld [vmem:[%s4601 + $0x28] sm:$0xff]
        %v4608 = vld [vmem:[%s4601 + $0x30] sm:$0xff]
        %v4609 = vld [vmem:[%s4601 + $0x38] sm:$0xff]
        %v4610 = vld [vmem:[%s4601 + $0x40] sm:$0xff]
        %v4611 = vld [vmem:[%s4601 + $0x48] sm:$0xff]
        %v4612 = vld [vmem:[%s4601 + $0x50] sm:$0xff]
        %v4613 = vld [vmem:[%s4601 + $0x58] sm:$0xff]
        %v4614 = vld [vmem:[%s4601 + $0x60] sm:$0xff]
        %v4615 = vld [vmem:[%s4601 + $0x68] sm:$0xff]
        %v4616 = vld [vmem:[%s4601 + $0x70] sm:$0xff]
        %v4617 = vld [vmem:[%s4601 + $0x78] sm:$0xff]
        %v4618 = vld [vmem:[%s4601 + $0x80] sm:$0xff]
        %v4619 = vld [vmem:[%s4601 + $0x88] sm:$0xff]
        %v4620 = vld [vmem:[%s4601 + $0x90] sm:$0xff]
        %v4621 = vld [vmem:[%s4601 + $0x98] sm:$0xff]
        %v4622 = vld [vmem:[%s4601 + $0xa0] sm:$0xff]
        %v4623 = vld [vmem:[%s4601 + $0xa8] sm:$0xff]
        %v4624 = vld [vmem:[%s4601 + $0xb0] sm:$0xff]
        %v4625 = vld [vmem:[%s4601 + $0xb8] sm:$0xff]
        %v4626 = vld [vmem:[%s4601 + $0xc0] sm:$0xff]
        %v4627 = vld [vmem:[%s4601 + $0xc8] sm:$0xff]
        %v4628 = vld [vmem:[%s4601 + $0xd0] sm:$0xff]
        %v4629 = vld [vmem:[%s4601 + $0xd8] sm:$0xff]
        %v4630 = vld [vmem:[%s4601 + $0xe0] sm:$0xff]
        %v4631 = vld [vmem:[%s4601 + $0xe8] sm:$0xff]
        %v4632 = vld [vmem:[%s4601 + $0xf0] sm:$0xff]
        %v4633 = vld [vmem:[%s4601 + $0xf8] sm:$0xff]
        %v4642 = vunpack.c.l.b16 %v4593
        %v4643 = vunpack.c.h.b16 %v4593
        %v4644 = vunpack.c.l.b16 %v4594
        %v4645 = vunpack.c.h.b16 %v4594
        %v4646 = vunpack.c.l.b16 %v4595
        %v4647 = vunpack.c.h.b16 %v4595
        %v4648 = vunpack.c.l.b16 %v4596
        %v4649 = vunpack.c.h.b16 %v4596
        %v4650 = vunpack.c.l.b16 %v4597
        %v4651 = vunpack.c.h.b16 %v4597
        %v4652 = vunpack.c.l.b16 %v4598
        %v4653 = vunpack.c.h.b16 %v4598
        %v4654 = vunpack.c.l.b16 %v4599
        %v4655 = vunpack.c.h.b16 %v4599
        %v4656 = vunpack.c.l.b16 %v4600
        %v4657 = vunpack.c.h.b16 %v4600
        %v4658 = vpack.c.b16 %v4644, %v4642
        %v4659 = vpack.c.b16 %v4645, %v4643
        %v4660 = vpack.c.b16 %v4648, %v4646
        %v4661 = vpack.c.b16 %v4649, %v4647
        %v4662 = vpack.c.b16 %v4652, %v4650
        %v4663 = vpack.c.b16 %v4653, %v4651
        %v4664 = vpack.c.b16 %v4656, %v4654
        %v4665 = vpack.c.b16 %v4657, %v4655
        %v4706 = vunpack.c.l.b16 %v4602
        %v4707 = vunpack.c.h.b16 %v4602
        %v4708 = vunpack.c.l.b16 %v4603
        %v4709 = vunpack.c.h.b16 %v4603
        %v4710 = vunpack.c.l.b16 %v4604
        %v4711 = vunpack.c.h.b16 %v4604
        %v4712 = vunpack.c.l.b16 %v4605
        %v4713 = vunpack.c.h.b16 %v4605
        %v4714 = vunpack.c.l.b16 %v4606
        %v4715 = vunpack.c.h.b16 %v4606
        %v4716 = vunpack.c.l.b16 %v4607
        %v4717 = vunpack.c.h.b16 %v4607
        %v4718 = vunpack.c.l.b16 %v4608
        %v4719 = vunpack.c.h.b16 %v4608
        %v4720 = vunpack.c.l.b16 %v4609
        %v4721 = vunpack.c.h.b16 %v4609
        %v4722 = vunpack.c.l.b16 %v4610
        %v4723 = vunpack.c.h.b16 %v4610
        %v4724 = vunpack.c.l.b16 %v4611
        %v4725 = vunpack.c.h.b16 %v4611
        %v4726 = vunpack.c.l.b16 %v4612
        %v4727 = vunpack.c.h.b16 %v4612
        %v4728 = vunpack.c.l.b16 %v4613
        %v4729 = vunpack.c.h.b16 %v4613
        %v4730 = vunpack.c.l.b16 %v4614
        %v4731 = vunpack.c.h.b16 %v4614
        %v4732 = vunpack.c.l.b16 %v4615
        %v4733 = vunpack.c.h.b16 %v4615
        %v4734 = vunpack.c.l.b16 %v4616
        %v4735 = vunpack.c.h.b16 %v4616
        %v4736 = vunpack.c.l.b16 %v4617
        %v4737 = vunpack.c.h.b16 %v4617
        %v4738 = vunpack.c.l.b16 %v4618
        %v4739 = vunpack.c.h.b16 %v4618
        %v4740 = vunpack.c.l.b16 %v4619
        %v4741 = vunpack.c.h.b16 %v4619
        %v4742 = vunpack.c.l.b16 %v4620
        %v4743 = vunpack.c.h.b16 %v4620
        %v4744 = vunpack.c.l.b16 %v4621
        %v4745 = vunpack.c.h.b16 %v4621
        %v4746 = vunpack.c.l.b16 %v4622
        %v4747 = vunpack.c.h.b16 %v4622
        %v4748 = vunpack.c.l.b16 %v4623
        %v4749 = vunpack.c.h.b16 %v4623
        %v4750 = vunpack.c.l.b16 %v4624
        %v4751 = vunpack.c.h.b16 %v4624
        %v4752 = vunpack.c.l.b16 %v4625
        %v4753 = vunpack.c.h.b16 %v4625
        %v4754 = vunpack.c.l.b16 %v4626
        %v4755 = vunpack.c.h.b16 %v4626
        %v4756 = vunpack.c.l.b16 %v4627
        %v4757 = vunpack.c.h.b16 %v4627
        %v4758 = vunpack.c.l.b16 %v4628
        %v4759 = vunpack.c.h.b16 %v4628
        %v4760 = vunpack.c.l.b16 %v4629
        %v4761 = vunpack.c.h.b16 %v4629
        %v4762 = vunpack.c.l.b16 %v4630
        %v4763 = vunpack.c.h.b16 %v4630
        %v4764 = vunpack.c.l.b16 %v4631
        %v4765 = vunpack.c.h.b16 %v4631
        %v4766 = vunpack.c.l.b16 %v4632
        %v4767 = vunpack.c.h.b16 %v4632
        %v4768 = vunpack.c.l.b16 %v4633
        %v4769 = vunpack.c.h.b16 %v4633
        %v4770 = vpack.c.b16 %v4708, %v4706
        %v4771 = vpack.c.b16 %v4709, %v4707
        %v4772 = vpack.c.b16 %v4712, %v4710
        %v4773 = vpack.c.b16 %v4713, %v4711
        %v4774 = vpack.c.b16 %v4716, %v4714
        %v4775 = vpack.c.b16 %v4717, %v4715
        %v4776 = vpack.c.b16 %v4720, %v4718
        %v4777 = vpack.c.b16 %v4721, %v4719
        %v4778 = vpack.c.b16 %v4724, %v4722
        %v4779 = vpack.c.b16 %v4725, %v4723
        %v4780 = vpack.c.b16 %v4728, %v4726
        %v4781 = vpack.c.b16 %v4729, %v4727
        %v4782 = vpack.c.b16 %v4732, %v4730
        %v4783 = vpack.c.b16 %v4733, %v4731
        %v4784 = vpack.c.b16 %v4736, %v4734
        %v4785 = vpack.c.b16 %v4737, %v4735
        %v4786 = vpack.c.b16 %v4740, %v4738
        %v4787 = vpack.c.b16 %v4741, %v4739
        %v4788 = vpack.c.b16 %v4744, %v4742
        %v4789 = vpack.c.b16 %v4745, %v4743
        %v4790 = vpack.c.b16 %v4748, %v4746
        %v4791 = vpack.c.b16 %v4749, %v4747
        %v4792 = vpack.c.b16 %v4752, %v4750
        %v4793 = vpack.c.b16 %v4753, %v4751
        %v4794 = vpack.c.b16 %v4756, %v4754
        %v4795 = vpack.c.b16 %v4757, %v4755
        %v4796 = vpack.c.b16 %v4760, %v4758
        %v4797 = vpack.c.b16 %v4761, %v4759
        %v4798 = vpack.c.b16 %v4764, %v4762
        %v4799 = vpack.c.b16 %v4765, %v4763
        %v4800 = vpack.c.b16 %v4768, %v4766
        %v4801 = vpack.c.b16 %v4769, %v4767
        %4834 = vmatpush.bf16.msra.mxu0 %v4784
        %4835 = vmatpush.bf16.msra.mxu0 %v4782
        %4836 = vmatpush.bf16.msra.mxu0 %v4780
        %4837 = vmatpush.bf16.msra.mxu0 %v4778
        %4838 = vmatpush.bf16.msra.mxu0 %v4776
        %4839 = vmatpush.bf16.msra.mxu0 %v4774
        %4840 = vmatpush.bf16.msra.mxu0 %v4772
        %4841 = vmatpush.bf16.msra.mxu0 %v4770
        %4842 = vmatmul.bf16.gmra.mxu0 %v4658
        %v4843 = vpop.f32.mrf.mxu0
        %v4844 = vadd.f32 0.0, %v4843
        %v4845 = vpop.f32.mrf.mxu0
        %v4846 = vadd.f32 0.0, %v4845
        %4847 = vmatmul.bf16.gmra.mxu0 %v4660
        %v4848 = vpop.f32.mrf.mxu0
        %v4849 = vadd.f32 0.0, %v4848
        %v4850 = vpop.f32.mrf.mxu0
        %v4851 = vadd.f32 0.0, %v4850
        %4852 = vmatmul.bf16.gmra.mxu0 %v4662
        %v4853 = vpop.f32.mrf.mxu0
        %v4854 = vadd.f32 0.0, %v4853
        %v4855 = vpop.f32.mrf.mxu0
        %v4856 = vadd.f32 0.0, %v4855
        %4857 = vmatmul.bf16.gmra.mxu0 %v4664
        %v4858 = vpop.f32.mrf.mxu0
        %v4859 = vadd.f32 0.0, %v4858
        %v4860 = vpop.f32.mrf.mxu0
        %v4861 = vadd.f32 0.0, %v4860
        %4862 = vdwg.mxu0
        %4863 = vmatpush.bf16.msra.mxu0 %v4800
        %4864 = vmatpush.bf16.msra.mxu0 %v4798
        %4865 = vmatpush.bf16.msra.mxu0 %v4796
        %4866 = vmatpush.bf16.msra.mxu0 %v4794
        %4867 = vmatpush.bf16.msra.mxu0 %v4792
        %4868 = vmatpush.bf16.msra.mxu0 %v4790
        %4869 = vmatpush.bf16.msra.mxu0 %v4788
        %4870 = vmatpush.bf16.msra.mxu0 %v4786
        %4871 = vmatmul.bf16.gmra.mxu0 %v4659
        %v4872 = vpop.f32.mrf.mxu0
        %v4873 = vadd.f32 %v4844, %v4872
        %v4874 = vpop.f32.mrf.mxu0
        %v4875 = vadd.f32 %v4846, %v4874
        %4876 = vmatmul.bf16.gmra.mxu0 %v4661
        %v4877 = vpop.f32.mrf.mxu0
        %v4878 = vadd.f32 %v4849, %v4877
        %v4879 = vpop.f32.mrf.mxu0
        %v4880 = vadd.f32 %v4851, %v4879
        %4881 = vmatmul.bf16.gmra.mxu0 %v4663
        %v4882 = vpop.f32.mrf.mxu0
        %v4883 = vadd.f32 %v4854, %v4882
        %v4884 = vpop.f32.mrf.mxu0
        %v4885 = vadd.f32 %v4856, %v4884
        %4886 = vmatmul.bf16.gmra.mxu0 %v4665
        %v4887 = vpop.f32.mrf.mxu0
        %v4888 = vadd.f32 %v4859, %v4887
        %v4889 = vpop.f32.mrf.mxu0
        %v4890 = vadd.f32 %v4861, %v4889
        %4891 = vdwg.mxu0
        %4892 = vmatpush.bf16.msra.mxu0 %v4785
        %4893 = vmatpush.bf16.msra.mxu0 %v4783
        %4894 = vmatpush.bf16.msra.mxu0 %v4781
        %4895 = vmatpush.bf16.msra.mxu0 %v4779
        %4896 = vmatpush.bf16.msra.mxu0 %v4777
        %4897 = vmatpush.bf16.msra.mxu0 %v4775
        %4898 = vmatpush.bf16.msra.mxu0 %v4773
        %4899 = vmatpush.bf16.msra.mxu0 %v4771
        %4900 = vmatmul.bf16.gmra.mxu0 %v4658
        %v4901 = vpop.f32.mrf.mxu0
        %v4902 = vadd.f32 0.0, %v4901
        %v4903 = vpop.f32.mrf.mxu0
        %v4904 = vadd.f32 0.0, %v4903
        %4905 = vmatmul.bf16.gmra.mxu0 %v4660
        %v4906 = vpop.f32.mrf.mxu0
        %v4907 = vadd.f32 0.0, %v4906
        %v4908 = vpop.f32.mrf.mxu0
        %v4909 = vadd.f32 0.0, %v4908
        %4910 = vmatmul.bf16.gmra.mxu0 %v4662
        %v4911 = vpop.f32.mrf.mxu0
        %v4912 = vadd.f32 0.0, %v4911
        %v4913 = vpop.f32.mrf.mxu0
        %v4914 = vadd.f32 0.0, %v4913
        %4915 = vmatmul.bf16.gmra.mxu0 %v4664
        %v4916 = vpop.f32.mrf.mxu0
        %v4917 = vadd.f32 0.0, %v4916
        %v4918 = vpop.f32.mrf.mxu0
        %v4919 = vadd.f32 0.0, %v4918
        %4920 = vdwg.mxu0
        %4921 = vmatpush.bf16.msra.mxu0 %v4801
        %4922 = vmatpush.bf16.msra.mxu0 %v4799
        %4923 = vmatpush.bf16.msra.mxu0 %v4797
        %4924 = vmatpush.bf16.msra.mxu0 %v4795
        %4925 = vmatpush.bf16.msra.mxu0 %v4793
        %4926 = vmatpush.bf16.msra.mxu0 %v4791
        %4927 = vmatpush.bf16.msra.mxu0 %v4789
        %4928 = vmatpush.bf16.msra.mxu0 %v4787
        %4929 = vmatmul.bf16.gmra.mxu0 %v4659
        %v4930 = vpop.f32.mrf.mxu0
        %v4931 = vadd.f32 %v4902, %v4930
        %v4932 = vpop.f32.mrf.mxu0
        %v4933 = vadd.f32 %v4904, %v4932
        %4934 = vmatmul.bf16.gmra.mxu0 %v4661
        %v4935 = vpop.f32.mrf.mxu0
        %v4936 = vadd.f32 %v4907, %v4935
        %v4937 = vpop.f32.mrf.mxu0
        %v4938 = vadd.f32 %v4909, %v4937
        %4939 = vmatmul.bf16.gmra.mxu0 %v4663
        %v4940 = vpop.f32.mrf.mxu0
        %v4941 = vadd.f32 %v4912, %v4940
        %v4942 = vpop.f32.mrf.mxu0
        %v4943 = vadd.f32 %v4914, %v4942
        %4944 = vmatmul.bf16.gmra.mxu0 %v4665
        %v4945 = vpop.f32.mrf.mxu0
        %v4946 = vadd.f32 %v4917, %v4945
        %v4947 = vpop.f32.mrf.mxu0
        %v4948 = vadd.f32 %v4919, %v4947
        %4949 = vdwg.mxu0
        %v4950 = vadd.f32 %v4577, %v4873
        %v4951 = vadd.f32 %v4578, %v4931
        %v4952 = vadd.f32 %v4579, %v4875
        %v4953 = vadd.f32 %v4580, %v4933
        %v4954 = vadd.f32 %v4581, %v4878
        %v4955 = vadd.f32 %v4582, %v4936
        %v4956 = vadd.f32 %v4583, %v4880
        %v4957 = vadd.f32 %v4584, %v4938
        %v4958 = vadd.f32 %v4585, %v4883
        %v4959 = vadd.f32 %v4586, %v4941
        %v4960 = vadd.f32 %v4587, %v4885
        %v4961 = vadd.f32 %v4588, %v4943
        %v4962 = vadd.f32 %v4589, %v4888
        %v4963 = vadd.f32 %v4590, %v4946
        %v4964 = vadd.f32 %v4591, %v4890
        %v4965 = vadd.f32 %v4592, %v4948
        %v4966 = vld [vmem:[#allocation4 + $0x20] sm:$0xff]
        %v4967 = vld [vmem:[#allocation4 + $0x28] sm:$0xff]
        %v4968 = vld [vmem:[#allocation4 + $0x30] sm:$0xff]
        %v4969 = vld [vmem:[#allocation4 + $0x38] sm:$0xff]
        %v4970 = vld [vmem:[#allocation4 + $0x40] sm:$0xff]
        %v4971 = vld [vmem:[#allocation4 + $0x48] sm:$0xff]
        %v4972 = vld [vmem:[#allocation4 + $0x50] sm:$0xff]
        %v4973 = vld [vmem:[#allocation4 + $0x58] sm:$0xff]
        %s4974 = scalar_lea.vmem [#allocation21], 1280
        %v4975 = vld [vmem:[%s4974] sm:$0xff]
        %v4976 = vld [vmem:[%s4974 + $0x8] sm:$0xff]
        %v4977 = vld [vmem:[%s4974 + $0x10] sm:$0xff]
        %v4978 = vld [vmem:[%s4974 + $0x18] sm:$0xff]
        %v4979 = vld [vmem:[%s4974 + $0x20] sm:$0xff]
        %v4980 = vld [vmem:[%s4974 + $0x28] sm:$0xff]
        %v4981 = vld [vmem:[%s4974 + $0x30] sm:$0xff]
        %v4982 = vld [vmem:[%s4974 + $0x38] sm:$0xff]
        %v4983 = vld [vmem:[%s4974 + $0x40] sm:$0xff]
        %v4984 = vld [vmem:[%s4974 + $0x48] sm:$0xff]
        %v4985 = vld [vmem:[%s4974 + $0x50] sm:$0xff]
        %v4986 = vld [vmem:[%s4974 + $0x58] sm:$0xff]
        %v4987 = vld [vmem:[%s4974 + $0x60] sm:$0xff]
        %v4988 = vld [vmem:[%s4974 + $0x68] sm:$0xff]
        %v4989 = vld [vmem:[%s4974 + $0x70] sm:$0xff]
        %v4990 = vld [vmem:[%s4974 + $0x78] sm:$0xff]
        %v4991 = vld [vmem:[%s4974 + $0x80] sm:$0xff]
        %v4992 = vld [vmem:[%s4974 + $0x88] sm:$0xff]
        %v4993 = vld [vmem:[%s4974 + $0x90] sm:$0xff]
        %v4994 = vld [vmem:[%s4974 + $0x98] sm:$0xff]
        %v4995 = vld [vmem:[%s4974 + $0xa0] sm:$0xff]
        %v4996 = vld [vmem:[%s4974 + $0xa8] sm:$0xff]
        %v4997 = vld [vmem:[%s4974 + $0xb0] sm:$0xff]
        %v4998 = vld [vmem:[%s4974 + $0xb8] sm:$0xff]
        %v4999 = vld [vmem:[%s4974 + $0xc0] sm:$0xff]
        %v5000 = vld [vmem:[%s4974 + $0xc8] sm:$0xff]
        %v5001 = vld [vmem:[%s4974 + $0xd0] sm:$0xff]
        %v5002 = vld [vmem:[%s4974 + $0xd8] sm:$0xff]
        %v5003 = vld [vmem:[%s4974 + $0xe0] sm:$0xff]
        %v5004 = vld [vmem:[%s4974 + $0xe8] sm:$0xff]
        %v5005 = vld [vmem:[%s4974 + $0xf0] sm:$0xff]
        %v5006 = vld [vmem:[%s4974 + $0xf8] sm:$0xff]
        %v5015 = vunpack.c.l.b16 %v4966
        %v5016 = vunpack.c.h.b16 %v4966
        %v5017 = vunpack.c.l.b16 %v4967
        %v5018 = vunpack.c.h.b16 %v4967
        %v5019 = vunpack.c.l.b16 %v4968
        %v5020 = vunpack.c.h.b16 %v4968
        %v5021 = vunpack.c.l.b16 %v4969
        %v5022 = vunpack.c.h.b16 %v4969
        %v5023 = vunpack.c.l.b16 %v4970
        %v5024 = vunpack.c.h.b16 %v4970
        %v5025 = vunpack.c.l.b16 %v4971
        %v5026 = vunpack.c.h.b16 %v4971
        %v5027 = vunpack.c.l.b16 %v4972
        %v5028 = vunpack.c.h.b16 %v4972
        %v5029 = vunpack.c.l.b16 %v4973
        %v5030 = vunpack.c.h.b16 %v4973
        %v5031 = vpack.c.b16 %v5017, %v5015
        %v5032 = vpack.c.b16 %v5018, %v5016
        %v5033 = vpack.c.b16 %v5021, %v5019
        %v5034 = vpack.c.b16 %v5022, %v5020
        %v5035 = vpack.c.b16 %v5025, %v5023
        %v5036 = vpack.c.b16 %v5026, %v5024
        %v5037 = vpack.c.b16 %v5029, %v5027
        %v5038 = vpack.c.b16 %v5030, %v5028
        %v5079 = vunpack.c.l.b16 %v4975
        %v5080 = vunpack.c.h.b16 %v4975
        %v5081 = vunpack.c.l.b16 %v4976
        %v5082 = vunpack.c.h.b16 %v4976
        %v5083 = vunpack.c.l.b16 %v4977
        %v5084 = vunpack.c.h.b16 %v4977
        %v5085 = vunpack.c.l.b16 %v4978
        %v5086 = vunpack.c.h.b16 %v4978
        %v5087 = vunpack.c.l.b16 %v4979
        %v5088 = vunpack.c.h.b16 %v4979
        %v5089 = vunpack.c.l.b16 %v4980
        %v5090 = vunpack.c.h.b16 %v4980
        %v5091 = vunpack.c.l.b16 %v4981
        %v5092 = vunpack.c.h.b16 %v4981
        %v5093 = vunpack.c.l.b16 %v4982
        %v5094 = vunpack.c.h.b16 %v4982
        %v5095 = vunpack.c.l.b16 %v4983
        %v5096 = vunpack.c.h.b16 %v4983
        %v5097 = vunpack.c.l.b16 %v4984
        %v5098 = vunpack.c.h.b16 %v4984
        %v5099 = vunpack.c.l.b16 %v4985
        %v5100 = vunpack.c.h.b16 %v4985
        %v5101 = vunpack.c.l.b16 %v4986
        %v5102 = vunpack.c.h.b16 %v4986
        %v5103 = vunpack.c.l.b16 %v4987
        %v5104 = vunpack.c.h.b16 %v4987
        %v5105 = vunpack.c.l.b16 %v4988
        %v5106 = vunpack.c.h.b16 %v4988
        %v5107 = vunpack.c.l.b16 %v4989
        %v5108 = vunpack.c.h.b16 %v4989
        %v5109 = vunpack.c.l.b16 %v4990
        %v5110 = vunpack.c.h.b16 %v4990
        %v5111 = vunpack.c.l.b16 %v4991
        %v5112 = vunpack.c.h.b16 %v4991
        %v5113 = vunpack.c.l.b16 %v4992
        %v5114 = vunpack.c.h.b16 %v4992
        %v5115 = vunpack.c.l.b16 %v4993
        %v5116 = vunpack.c.h.b16 %v4993
        %v5117 = vunpack.c.l.b16 %v4994
        %v5118 = vunpack.c.h.b16 %v4994
        %v5119 = vunpack.c.l.b16 %v4995
        %v5120 = vunpack.c.h.b16 %v4995
        %v5121 = vunpack.c.l.b16 %v4996
        %v5122 = vunpack.c.h.b16 %v4996
        %v5123 = vunpack.c.l.b16 %v4997
        %v5124 = vunpack.c.h.b16 %v4997
        %v5125 = vunpack.c.l.b16 %v4998
        %v5126 = vunpack.c.h.b16 %v4998
        %v5127 = vunpack.c.l.b16 %v4999
        %v5128 = vunpack.c.h.b16 %v4999
        %v5129 = vunpack.c.l.b16 %v5000
        %v5130 = vunpack.c.h.b16 %v5000
        %v5131 = vunpack.c.l.b16 %v5001
        %v5132 = vunpack.c.h.b16 %v5001
        %v5133 = vunpack.c.l.b16 %v5002
        %v5134 = vunpack.c.h.b16 %v5002
        %v5135 = vunpack.c.l.b16 %v5003
        %v5136 = vunpack.c.h.b16 %v5003
        %v5137 = vunpack.c.l.b16 %v5004
        %v5138 = vunpack.c.h.b16 %v5004
        %v5139 = vunpack.c.l.b16 %v5005
        %v5140 = vunpack.c.h.b16 %v5005
        %v5141 = vunpack.c.l.b16 %v5006
        %v5142 = vunpack.c.h.b16 %v5006
        %v5143 = vpack.c.b16 %v5081, %v5079
        %v5144 = vpack.c.b16 %v5082, %v5080
        %v5145 = vpack.c.b16 %v5085, %v5083
        %v5146 = vpack.c.b16 %v5086, %v5084
        %v5147 = vpack.c.b16 %v5089, %v5087
        %v5148 = vpack.c.b16 %v5090, %v5088
        %v5149 = vpack.c.b16 %v5093, %v5091
        %v5150 = vpack.c.b16 %v5094, %v5092
        %v5151 = vpack.c.b16 %v5097, %v5095
        %v5152 = vpack.c.b16 %v5098, %v5096
        %v5153 = vpack.c.b16 %v5101, %v5099
        %v5154 = vpack.c.b16 %v5102, %v5100
        %v5155 = vpack.c.b16 %v5105, %v5103
        %v5156 = vpack.c.b16 %v5106, %v5104
        %v5157 = vpack.c.b16 %v5109, %v5107
        %v5158 = vpack.c.b16 %v5110, %v5108
        %v5159 = vpack.c.b16 %v5113, %v5111
        %v5160 = vpack.c.b16 %v5114, %v5112
        %v5161 = vpack.c.b16 %v5117, %v5115
        %v5162 = vpack.c.b16 %v5118, %v5116
        %v5163 = vpack.c.b16 %v5121, %v5119
        %v5164 = vpack.c.b16 %v5122, %v5120
        %v5165 = vpack.c.b16 %v5125, %v5123
        %v5166 = vpack.c.b16 %v5126, %v5124
        %v5167 = vpack.c.b16 %v5129, %v5127
        %v5168 = vpack.c.b16 %v5130, %v5128
        %v5169 = vpack.c.b16 %v5133, %v5131
        %v5170 = vpack.c.b16 %v5134, %v5132
        %v5171 = vpack.c.b16 %v5137, %v5135
        %v5172 = vpack.c.b16 %v5138, %v5136
        %v5173 = vpack.c.b16 %v5141, %v5139
        %v5174 = vpack.c.b16 %v5142, %v5140
        %5207 = vmatpush.bf16.msra.mxu0 %v5157
        %5208 = vmatpush.bf16.msra.mxu0 %v5155
        %5209 = vmatpush.bf16.msra.mxu0 %v5153
        %5210 = vmatpush.bf16.msra.mxu0 %v5151
        %5211 = vmatpush.bf16.msra.mxu0 %v5149
        %5212 = vmatpush.bf16.msra.mxu0 %v5147
        %5213 = vmatpush.bf16.msra.mxu0 %v5145
        %5214 = vmatpush.bf16.msra.mxu0 %v5143
        %5215 = vmatmul.bf16.gmra.mxu0 %v5031
        %v5216 = vpop.f32.mrf.mxu0
        %v5217 = vadd.f32 0.0, %v5216
        %v5218 = vpop.f32.mrf.mxu0
        %v5219 = vadd.f32 0.0, %v5218
        %5220 = vmatmul.bf16.gmra.mxu0 %v5033
        %v5221 = vpop.f32.mrf.mxu0
        %v5222 = vadd.f32 0.0, %v5221
        %v5223 = vpop.f32.mrf.mxu0
        %v5224 = vadd.f32 0.0, %v5223
        %5225 = vmatmul.bf16.gmra.mxu0 %v5035
        %v5226 = vpop.f32.mrf.mxu0
        %v5227 = vadd.f32 0.0, %v5226
        %v5228 = vpop.f32.mrf.mxu0
        %v5229 = vadd.f32 0.0, %v5228
        %5230 = vmatmul.bf16.gmra.mxu0 %v5037
        %v5231 = vpop.f32.mrf.mxu0
        %v5232 = vadd.f32 0.0, %v5231
        %v5233 = vpop.f32.mrf.mxu0
        %v5234 = vadd.f32 0.0, %v5233
        %5235 = vdwg.mxu0
        %5236 = vmatpush.bf16.msra.mxu0 %v5173
        %5237 = vmatpush.bf16.msra.mxu0 %v5171
        %5238 = vmatpush.bf16.msra.mxu0 %v5169
        %5239 = vmatpush.bf16.msra.mxu0 %v5167
        %5240 = vmatpush.bf16.msra.mxu0 %v5165
        %5241 = vmatpush.bf16.msra.mxu0 %v5163
        %5242 = vmatpush.bf16.msra.mxu0 %v5161
        %5243 = vmatpush.bf16.msra.mxu0 %v5159
        %5244 = vmatmul.bf16.gmra.mxu0 %v5032
        %v5245 = vpop.f32.mrf.mxu0
        %v5246 = vadd.f32 %v5217, %v5245
        %v5247 = vpop.f32.mrf.mxu0
        %v5248 = vadd.f32 %v5219, %v5247
        %5249 = vmatmul.bf16.gmra.mxu0 %v5034
        %v5250 = vpop.f32.mrf.mxu0
        %v5251 = vadd.f32 %v5222, %v5250
        %v5252 = vpop.f32.mrf.mxu0
        %v5253 = vadd.f32 %v5224, %v5252
        %5254 = vmatmul.bf16.gmra.mxu0 %v5036
        %v5255 = vpop.f32.mrf.mxu0
        %v5256 = vadd.f32 %v5227, %v5255
        %v5257 = vpop.f32.mrf.mxu0
        %v5258 = vadd.f32 %v5229, %v5257
        %5259 = vmatmul.bf16.gmra.mxu0 %v5038
        %v5260 = vpop.f32.mrf.mxu0
        %v5261 = vadd.f32 %v5232, %v5260
        %v5262 = vpop.f32.mrf.mxu0
        %v5263 = vadd.f32 %v5234, %v5262
        %5264 = vdwg.mxu0
        %5265 = vmatpush.bf16.msra.mxu0 %v5158
        %5266 = vmatpush.bf16.msra.mxu0 %v5156
        %5267 = vmatpush.bf16.msra.mxu0 %v5154
        %5268 = vmatpush.bf16.msra.mxu0 %v5152
        %5269 = vmatpush.bf16.msra.mxu0 %v5150
        %5270 = vmatpush.bf16.msra.mxu0 %v5148
        %5271 = vmatpush.bf16.msra.mxu0 %v5146
        %5272 = vmatpush.bf16.msra.mxu0 %v5144
        %5273 = vmatmul.bf16.gmra.mxu0 %v5031
        %v5274 = vpop.f32.mrf.mxu0
        %v5275 = vadd.f32 0.0, %v5274
        %v5276 = vpop.f32.mrf.mxu0
        %v5277 = vadd.f32 0.0, %v5276
        %5278 = vmatmul.bf16.gmra.mxu0 %v5033
        %v5279 = vpop.f32.mrf.mxu0
        %v5280 = vadd.f32 0.0, %v5279
        %v5281 = vpop.f32.mrf.mxu0
        %v5282 = vadd.f32 0.0, %v5281
        %5283 = vmatmul.bf16.gmra.mxu0 %v5035
        %v5284 = vpop.f32.mrf.mxu0
        %v5285 = vadd.f32 0.0, %v5284
        %v5286 = vpop.f32.mrf.mxu0
        %v5287 = vadd.f32 0.0, %v5286
        %5288 = vmatmul.bf16.gmra.mxu0 %v5037
        %v5289 = vpop.f32.mrf.mxu0
        %v5290 = vadd.f32 0.0, %v5289
        %v5291 = vpop.f32.mrf.mxu0
        %v5292 = vadd.f32 0.0, %v5291
        %5293 = vdwg.mxu0
        %5294 = vmatpush.bf16.msra.mxu0 %v5174
        %5295 = vmatpush.bf16.msra.mxu0 %v5172
        %5296 = vmatpush.bf16.msra.mxu0 %v5170
        %5297 = vmatpush.bf16.msra.mxu0 %v5168
        %5298 = vmatpush.bf16.msra.mxu0 %v5166
        %5299 = vmatpush.bf16.msra.mxu0 %v5164
        %5300 = vmatpush.bf16.msra.mxu0 %v5162
        %5301 = vmatpush.bf16.msra.mxu0 %v5160
        %5302 = vmatmul.bf16.gmra.mxu0 %v5032
        %v5303 = vpop.f32.mrf.mxu0
        %v5304 = vadd.f32 %v5275, %v5303
        %v5305 = vpop.f32.mrf.mxu0
        %v5306 = vadd.f32 %v5277, %v5305
        %5307 = vmatmul.bf16.gmra.mxu0 %v5034
        %v5308 = vpop.f32.mrf.mxu0
        %v5309 = vadd.f32 %v5280, %v5308
        %v5310 = vpop.f32.mrf.mxu0
        %v5311 = vadd.f32 %v5282, %v5310
        %5312 = vmatmul.bf16.gmra.mxu0 %v5036
        %v5313 = vpop.f32.mrf.mxu0
        %v5314 = vadd.f32 %v5285, %v5313
        %v5315 = vpop.f32.mrf.mxu0
        %v5316 = vadd.f32 %v5287, %v5315
        %5317 = vmatmul.bf16.gmra.mxu0 %v5038
        %v5318 = vpop.f32.mrf.mxu0
        %v5319 = vadd.f32 %v5290, %v5318
        %v5320 = vpop.f32.mrf.mxu0
        %v5321 = vadd.f32 %v5292, %v5320
        %5322 = vdwg.mxu0
        %v5323 = vadd.f32 %v4950, %v5246
        %v5324 = vadd.f32 %v4951, %v5304
        %v5325 = vadd.f32 %v4952, %v5248
        %v5326 = vadd.f32 %v4953, %v5306
        %v5327 = vadd.f32 %v4954, %v5251
        %v5328 = vadd.f32 %v4955, %v5309
        %v5329 = vadd.f32 %v4956, %v5253
        %v5330 = vadd.f32 %v4957, %v5311
        %v5331 = vadd.f32 %v4958, %v5256
        %v5332 = vadd.f32 %v4959, %v5314
        %v5333 = vadd.f32 %v4960, %v5258
        %v5334 = vadd.f32 %v4961, %v5316
        %v5335 = vadd.f32 %v4962, %v5261
        %v5336 = vadd.f32 %v4963, %v5319
        %v5337 = vadd.f32 %v4964, %v5263
        %v5338 = vadd.f32 %v4965, %v5321
        %v5339 = vld [vmem:[#allocation3 + $0x30] sm:$0xff]
        %v5340 = vld [vmem:[#allocation3 + $0x38] sm:$0xff]
        %v5341 = vld [vmem:[#allocation3 + $0x40] sm:$0xff]
        %v5342 = vld [vmem:[#allocation3 + $0x48] sm:$0xff]
        %v5343 = vld [vmem:[#allocation3 + $0x50] sm:$0xff]
        %v5344 = vld [vmem:[#allocation3 + $0x58] sm:$0xff]
        %v5345 = vld [vmem:[#allocation3 + $0x60] sm:$0xff]
        %v5346 = vld [vmem:[#allocation3 + $0x68] sm:$0xff]
        %s5347 = scalar_lea.vmem [#allocation21], 1536
        %v5348 = vld [vmem:[%s5347] sm:$0xff]
        %v5349 = vld [vmem:[%s5347 + $0x8] sm:$0xff]
        %v5350 = vld [vmem:[%s5347 + $0x10] sm:$0xff]
        %v5351 = vld [vmem:[%s5347 + $0x18] sm:$0xff]
        %v5352 = vld [vmem:[%s5347 + $0x20] sm:$0xff]
        %v5353 = vld [vmem:[%s5347 + $0x28] sm:$0xff]
        %v5354 = vld [vmem:[%s5347 + $0x30] sm:$0xff]
        %v5355 = vld [vmem:[%s5347 + $0x38] sm:$0xff]
        %v5356 = vld [vmem:[%s5347 + $0x40] sm:$0xff]
        %v5357 = vld [vmem:[%s5347 + $0x48] sm:$0xff]
        %v5358 = vld [vmem:[%s5347 + $0x50] sm:$0xff]
        %v5359 = vld [vmem:[%s5347 + $0x58] sm:$0xff]
        %v5360 = vld [vmem:[%s5347 + $0x60] sm:$0xff]
        %v5361 = vld [vmem:[%s5347 + $0x68] sm:$0xff]
        %v5362 = vld [vmem:[%s5347 + $0x70] sm:$0xff]
        %v5363 = vld [vmem:[%s5347 + $0x78] sm:$0xff]
        %v5364 = vld [vmem:[%s5347 + $0x80] sm:$0xff]
        %v5365 = vld [vmem:[%s5347 + $0x88] sm:$0xff]
        %v5366 = vld [vmem:[%s5347 + $0x90] sm:$0xff]
        %v5367 = vld [vmem:[%s5347 + $0x98] sm:$0xff]
        %v5368 = vld [vmem:[%s5347 + $0xa0] sm:$0xff]
        %v5369 = vld [vmem:[%s5347 + $0xa8] sm:$0xff]
        %v5370 = vld [vmem:[%s5347 + $0xb0] sm:$0xff]
        %v5371 = vld [vmem:[%s5347 + $0xb8] sm:$0xff]
        %v5372 = vld [vmem:[%s5347 + $0xc0] sm:$0xff]
        %v5373 = vld [vmem:[%s5347 + $0xc8] sm:$0xff]
        %v5374 = vld [vmem:[%s5347 + $0xd0] sm:$0xff]
        %v5375 = vld [vmem:[%s5347 + $0xd8] sm:$0xff]
        %v5376 = vld [vmem:[%s5347 + $0xe0] sm:$0xff]
        %v5377 = vld [vmem:[%s5347 + $0xe8] sm:$0xff]
        %v5378 = vld [vmem:[%s5347 + $0xf0] sm:$0xff]
        %v5379 = vld [vmem:[%s5347 + $0xf8] sm:$0xff]
        %v5388 = vunpack.c.l.b16 %v5339
        %v5389 = vunpack.c.h.b16 %v5339
        %v5390 = vunpack.c.l.b16 %v5340
        %v5391 = vunpack.c.h.b16 %v5340
        %v5392 = vunpack.c.l.b16 %v5341
        %v5393 = vunpack.c.h.b16 %v5341
        %v5394 = vunpack.c.l.b16 %v5342
        %v5395 = vunpack.c.h.b16 %v5342
        %v5396 = vunpack.c.l.b16 %v5343
        %v5397 = vunpack.c.h.b16 %v5343
        %v5398 = vunpack.c.l.b16 %v5344
        %v5399 = vunpack.c.h.b16 %v5344
        %v5400 = vunpack.c.l.b16 %v5345
        %v5401 = vunpack.c.h.b16 %v5345
        %v5402 = vunpack.c.l.b16 %v5346
        %v5403 = vunpack.c.h.b16 %v5346
        %v5404 = vpack.c.b16 %v5390, %v5388
        %v5405 = vpack.c.b16 %v5391, %v5389
        %v5406 = vpack.c.b16 %v5394, %v5392
        %v5407 = vpack.c.b16 %v5395, %v5393
        %v5408 = vpack.c.b16 %v5398, %v5396
        %v5409 = vpack.c.b16 %v5399, %v5397
        %v5410 = vpack.c.b16 %v5402, %v5400
        %v5411 = vpack.c.b16 %v5403, %v5401
        %v5452 = vunpack.c.l.b16 %v5348
        %v5453 = vunpack.c.h.b16 %v5348
        %v5454 = vunpack.c.l.b16 %v5349
        %v5455 = vunpack.c.h.b16 %v5349
        %v5456 = vunpack.c.l.b16 %v5350
        %v5457 = vunpack.c.h.b16 %v5350
        %v5458 = vunpack.c.l.b16 %v5351
        %v5459 = vunpack.c.h.b16 %v5351
        %v5460 = vunpack.c.l.b16 %v5352
        %v5461 = vunpack.c.h.b16 %v5352
        %v5462 = vunpack.c.l.b16 %v5353
        %v5463 = vunpack.c.h.b16 %v5353
        %v5464 = vunpack.c.l.b16 %v5354
        %v5465 = vunpack.c.h.b16 %v5354
        %v5466 = vunpack.c.l.b16 %v5355
        %v5467 = vunpack.c.h.b16 %v5355
        %v5468 = vunpack.c.l.b16 %v5356
        %v5469 = vunpack.c.h.b16 %v5356
        %v5470 = vunpack.c.l.b16 %v5357
        %v5471 = vunpack.c.h.b16 %v5357
        %v5472 = vunpack.c.l.b16 %v5358
        %v5473 = vunpack.c.h.b16 %v5358
        %v5474 = vunpack.c.l.b16 %v5359
        %v5475 = vunpack.c.h.b16 %v5359
        %v5476 = vunpack.c.l.b16 %v5360
        %v5477 = vunpack.c.h.b16 %v5360
        %v5478 = vunpack.c.l.b16 %v5361
        %v5479 = vunpack.c.h.b16 %v5361
        %v5480 = vunpack.c.l.b16 %v5362
        %v5481 = vunpack.c.h.b16 %v5362
        %v5482 = vunpack.c.l.b16 %v5363
        %v5483 = vunpack.c.h.b16 %v5363
        %v5484 = vunpack.c.l.b16 %v5364
        %v5485 = vunpack.c.h.b16 %v5364
        %v5486 = vunpack.c.l.b16 %v5365
        %v5487 = vunpack.c.h.b16 %v5365
        %v5488 = vunpack.c.l.b16 %v5366
        %v5489 = vunpack.c.h.b16 %v5366
        %v5490 = vunpack.c.l.b16 %v5367
        %v5491 = vunpack.c.h.b16 %v5367
        %v5492 = vunpack.c.l.b16 %v5368
        %v5493 = vunpack.c.h.b16 %v5368
        %v5494 = vunpack.c.l.b16 %v5369
        %v5495 = vunpack.c.h.b16 %v5369
        %v5496 = vunpack.c.l.b16 %v5370
        %v5497 = vunpack.c.h.b16 %v5370
        %v5498 = vunpack.c.l.b16 %v5371
        %v5499 = vunpack.c.h.b16 %v5371
        %v5500 = vunpack.c.l.b16 %v5372
        %v5501 = vunpack.c.h.b16 %v5372
        %v5502 = vunpack.c.l.b16 %v5373
        %v5503 = vunpack.c.h.b16 %v5373
        %v5504 = vunpack.c.l.b16 %v5374
        %v5505 = vunpack.c.h.b16 %v5374
        %v5506 = vunpack.c.l.b16 %v5375
        %v5507 = vunpack.c.h.b16 %v5375
        %v5508 = vunpack.c.l.b16 %v5376
        %v5509 = vunpack.c.h.b16 %v5376
        %v5510 = vunpack.c.l.b16 %v5377
        %v5511 = vunpack.c.h.b16 %v5377
        %v5512 = vunpack.c.l.b16 %v5378
        %v5513 = vunpack.c.h.b16 %v5378
        %v5514 = vunpack.c.l.b16 %v5379
        %v5515 = vunpack.c.h.b16 %v5379
        %v5516 = vpack.c.b16 %v5454, %v5452
        %v5517 = vpack.c.b16 %v5455, %v5453
        %v5518 = vpack.c.b16 %v5458, %v5456
        %v5519 = vpack.c.b16 %v5459, %v5457
        %v5520 = vpack.c.b16 %v5462, %v5460
        %v5521 = vpack.c.b16 %v5463, %v5461
        %v5522 = vpack.c.b16 %v5466, %v5464
        %v5523 = vpack.c.b16 %v5467, %v5465
        %v5524 = vpack.c.b16 %v5470, %v5468
        %v5525 = vpack.c.b16 %v5471, %v5469
        %v5526 = vpack.c.b16 %v5474, %v5472
        %v5527 = vpack.c.b16 %v5475, %v5473
        %v5528 = vpack.c.b16 %v5478, %v5476
        %v5529 = vpack.c.b16 %v5479, %v5477
        %v5530 = vpack.c.b16 %v5482, %v5480
        %v5531 = vpack.c.b16 %v5483, %v5481
        %v5532 = vpack.c.b16 %v5486, %v5484
        %v5533 = vpack.c.b16 %v5487, %v5485
        %v5534 = vpack.c.b16 %v5490, %v5488
        %v5535 = vpack.c.b16 %v5491, %v5489
        %v5536 = vpack.c.b16 %v5494, %v5492
        %v5537 = vpack.c.b16 %v5495, %v5493
        %v5538 = vpack.c.b16 %v5498, %v5496
        %v5539 = vpack.c.b16 %v5499, %v5497
        %v5540 = vpack.c.b16 %v5502, %v5500
        %v5541 = vpack.c.b16 %v5503, %v5501
        %v5542 = vpack.c.b16 %v5506, %v5504
        %v5543 = vpack.c.b16 %v5507, %v5505
        %v5544 = vpack.c.b16 %v5510, %v5508
        %v5545 = vpack.c.b16 %v5511, %v5509
        %v5546 = vpack.c.b16 %v5514, %v5512
        %v5547 = vpack.c.b16 %v5515, %v5513
        %5580 = vmatpush.bf16.msra.mxu0 %v5530
        %5581 = vmatpush.bf16.msra.mxu0 %v5528
        %5582 = vmatpush.bf16.msra.mxu0 %v5526
        %5583 = vmatpush.bf16.msra.mxu0 %v5524
        %5584 = vmatpush.bf16.msra.mxu0 %v5522
        %5585 = vmatpush.bf16.msra.mxu0 %v5520
        %5586 = vmatpush.bf16.msra.mxu0 %v5518
        %5587 = vmatpush.bf16.msra.mxu0 %v5516
        %5588 = vmatmul.bf16.gmra.mxu0 %v5404
        %v5589 = vpop.f32.mrf.mxu0
        %v5590 = vadd.f32 0.0, %v5589
        %v5591 = vpop.f32.mrf.mxu0
        %v5592 = vadd.f32 0.0, %v5591
        %5593 = vmatmul.bf16.gmra.mxu0 %v5406
        %v5594 = vpop.f32.mrf.mxu0
        %v5595 = vadd.f32 0.0, %v5594
        %v5596 = vpop.f32.mrf.mxu0
        %v5597 = vadd.f32 0.0, %v5596
        %5598 = vmatmul.bf16.gmra.mxu0 %v5408
        %v5599 = vpop.f32.mrf.mxu0
        %v5600 = vadd.f32 0.0, %v5599
        %v5601 = vpop.f32.mrf.mxu0
        %v5602 = vadd.f32 0.0, %v5601
        %5603 = vmatmul.bf16.gmra.mxu0 %v5410
        %v5604 = vpop.f32.mrf.mxu0
        %v5605 = vadd.f32 0.0, %v5604
        %v5606 = vpop.f32.mrf.mxu0
        %v5607 = vadd.f32 0.0, %v5606
        %5608 = vdwg.mxu0
        %5609 = vmatpush.bf16.msra.mxu0 %v5546
        %5610 = vmatpush.bf16.msra.mxu0 %v5544
        %5611 = vmatpush.bf16.msra.mxu0 %v5542
        %5612 = vmatpush.bf16.msra.mxu0 %v5540
        %5613 = vmatpush.bf16.msra.mxu0 %v5538
        %5614 = vmatpush.bf16.msra.mxu0 %v5536
        %5615 = vmatpush.bf16.msra.mxu0 %v5534
        %5616 = vmatpush.bf16.msra.mxu0 %v5532
        %5617 = vmatmul.bf16.gmra.mxu0 %v5405
        %v5618 = vpop.f32.mrf.mxu0
        %v5619 = vadd.f32 %v5590, %v5618
        %v5620 = vpop.f32.mrf.mxu0
        %v5621 = vadd.f32 %v5592, %v5620
        %5622 = vmatmul.bf16.gmra.mxu0 %v5407
        %v5623 = vpop.f32.mrf.mxu0
        %v5624 = vadd.f32 %v5595, %v5623
        %v5625 = vpop.f32.mrf.mxu0
        %v5626 = vadd.f32 %v5597, %v5625
        %5627 = vmatmul.bf16.gmra.mxu0 %v5409
        %v5628 = vpop.f32.mrf.mxu0
        %v5629 = vadd.f32 %v5600, %v5628
        %v5630 = vpop.f32.mrf.mxu0
        %v5631 = vadd.f32 %v5602, %v5630
        %5632 = vmatmul.bf16.gmra.mxu0 %v5411
        %v5633 = vpop.f32.mrf.mxu0
        %v5634 = vadd.f32 %v5605, %v5633
        %v5635 = vpop.f32.mrf.mxu0
        %v5636 = vadd.f32 %v5607, %v5635
        %5637 = vdwg.mxu0
        %5638 = vmatpush.bf16.msra.mxu0 %v5531
        %5639 = vmatpush.bf16.msra.mxu0 %v5529
        %5640 = vmatpush.bf16.msra.mxu0 %v5527
        %5641 = vmatpush.bf16.msra.mxu0 %v5525
        %5642 = vmatpush.bf16.msra.mxu0 %v5523
        %5643 = vmatpush.bf16.msra.mxu0 %v5521
        %5644 = vmatpush.bf16.msra.mxu0 %v5519
        %5645 = vmatpush.bf16.msra.mxu0 %v5517
        %5646 = vmatmul.bf16.gmra.mxu0 %v5404
        %v5647 = vpop.f32.mrf.mxu0
        %v5648 = vadd.f32 0.0, %v5647
        %v5649 = vpop.f32.mrf.mxu0
        %v5650 = vadd.f32 0.0, %v5649
        %5651 = vmatmul.bf16.gmra.mxu0 %v5406
        %v5652 = vpop.f32.mrf.mxu0
        %v5653 = vadd.f32 0.0, %v5652
        %v5654 = vpop.f32.mrf.mxu0
        %v5655 = vadd.f32 0.0, %v5654
        %5656 = vmatmul.bf16.gmra.mxu0 %v5408
        %v5657 = vpop.f32.mrf.mxu0
        %v5658 = vadd.f32 0.0, %v5657
        %v5659 = vpop.f32.mrf.mxu0
        %v5660 = vadd.f32 0.0, %v5659
        %5661 = vmatmul.bf16.gmra.mxu0 %v5410
        %v5662 = vpop.f32.mrf.mxu0
        %v5663 = vadd.f32 0.0, %v5662
        %v5664 = vpop.f32.mrf.mxu0
        %v5665 = vadd.f32 0.0, %v5664
        %5666 = vdwg.mxu0
        %5667 = vmatpush.bf16.msra.mxu0 %v5547
        %5668 = vmatpush.bf16.msra.mxu0 %v5545
        %5669 = vmatpush.bf16.msra.mxu0 %v5543
        %5670 = vmatpush.bf16.msra.mxu0 %v5541
        %5671 = vmatpush.bf16.msra.mxu0 %v5539
        %5672 = vmatpush.bf16.msra.mxu0 %v5537
        %5673 = vmatpush.bf16.msra.mxu0 %v5535
        %5674 = vmatpush.bf16.msra.mxu0 %v5533
        %5675 = vmatmul.bf16.gmra.mxu0 %v5405
        %v5676 = vpop.f32.mrf.mxu0
        %v5677 = vadd.f32 %v5648, %v5676
        %v5678 = vpop.f32.mrf.mxu0
        %v5679 = vadd.f32 %v5650, %v5678
        %5680 = vmatmul.bf16.gmra.mxu0 %v5407
        %v5681 = vpop.f32.mrf.mxu0
        %v5682 = vadd.f32 %v5653, %v5681
        %v5683 = vpop.f32.mrf.mxu0
        %v5684 = vadd.f32 %v5655, %v5683
        %5685 = vmatmul.bf16.gmra.mxu0 %v5409
        %v5686 = vpop.f32.mrf.mxu0
        %v5687 = vadd.f32 %v5658, %v5686
        %v5688 = vpop.f32.mrf.mxu0
        %v5689 = vadd.f32 %v5660, %v5688
        %5690 = vmatmul.bf16.gmra.mxu0 %v5411
        %v5691 = vpop.f32.mrf.mxu0
        %v5692 = vadd.f32 %v5663, %v5691
        %v5693 = vpop.f32.mrf.mxu0
        %v5694 = vadd.f32 %v5665, %v5693
        %5695 = vdwg.mxu0
        %v5696 = vadd.f32 %v5323, %v5619
        %v5697 = vadd.f32 %v5324, %v5677
        %v5698 = vadd.f32 %v5325, %v5621
        %v5699 = vadd.f32 %v5326, %v5679
        %v5700 = vadd.f32 %v5327, %v5624
        %v5701 = vadd.f32 %v5328, %v5682
        %v5702 = vadd.f32 %v5329, %v5626
        %v5703 = vadd.f32 %v5330, %v5684
        %v5704 = vadd.f32 %v5331, %v5629
        %v5705 = vadd.f32 %v5332, %v5687
        %v5706 = vadd.f32 %v5333, %v5631
        %v5707 = vadd.f32 %v5334, %v5689
        %v5708 = vadd.f32 %v5335, %v5634
        %v5709 = vadd.f32 %v5336, %v5692
        %v5710 = vadd.f32 %v5337, %v5636
        %v5711 = vadd.f32 %v5338, %v5694
        %v5712 = vld [vmem:[#allocation4 + $0x30] sm:$0xff]
        %v5713 = vld [vmem:[#allocation4 + $0x38] sm:$0xff]
        %v5714 = vld [vmem:[#allocation4 + $0x40] sm:$0xff]
        %v5715 = vld [vmem:[#allocation4 + $0x48] sm:$0xff]
        %v5716 = vld [vmem:[#allocation4 + $0x50] sm:$0xff]
        %v5717 = vld [vmem:[#allocation4 + $0x58] sm:$0xff]
        %v5718 = vld [vmem:[#allocation4 + $0x60] sm:$0xff]
        %v5719 = vld [vmem:[#allocation4 + $0x68] sm:$0xff]
        %s5720 = scalar_lea.vmem [#allocation21], 1792
        %v5721 = vld [vmem:[%s5720] sm:$0xff]
        %v5722 = vld [vmem:[%s5720 + $0x8] sm:$0xff]
        %v5723 = vld [vmem:[%s5720 + $0x10] sm:$0xff]
        %v5724 = vld [vmem:[%s5720 + $0x18] sm:$0xff]
        %v5725 = vld [vmem:[%s5720 + $0x20] sm:$0xff]
        %v5726 = vld [vmem:[%s5720 + $0x28] sm:$0xff]
        %v5727 = vld [vmem:[%s5720 + $0x30] sm:$0xff]
        %v5728 = vld [vmem:[%s5720 + $0x38] sm:$0xff]
        %v5729 = vld [vmem:[%s5720 + $0x40] sm:$0xff]
        %v5730 = vld [vmem:[%s5720 + $0x48] sm:$0xff]
        %v5731 = vld [vmem:[%s5720 + $0x50] sm:$0xff]
        %v5732 = vld [vmem:[%s5720 + $0x58] sm:$0xff]
        %v5733 = vld [vmem:[%s5720 + $0x60] sm:$0xff]
        %v5734 = vld [vmem:[%s5720 + $0x68] sm:$0xff]
        %v5735 = vld [vmem:[%s5720 + $0x70] sm:$0xff]
        %v5736 = vld [vmem:[%s5720 + $0x78] sm:$0xff]
        %v5737 = vld [vmem:[%s5720 + $0x80] sm:$0xff]
        %v5738 = vld [vmem:[%s5720 + $0x88] sm:$0xff]
        %v5739 = vld [vmem:[%s5720 + $0x90] sm:$0xff]
        %v5740 = vld [vmem:[%s5720 + $0x98] sm:$0xff]
        %v5741 = vld [vmem:[%s5720 + $0xa0] sm:$0xff]
        %v5742 = vld [vmem:[%s5720 + $0xa8] sm:$0xff]
        %v5743 = vld [vmem:[%s5720 + $0xb0] sm:$0xff]
        %v5744 = vld [vmem:[%s5720 + $0xb8] sm:$0xff]
        %v5745 = vld [vmem:[%s5720 + $0xc0] sm:$0xff]
        %v5746 = vld [vmem:[%s5720 + $0xc8] sm:$0xff]
        %v5747 = vld [vmem:[%s5720 + $0xd0] sm:$0xff]
        %v5748 = vld [vmem:[%s5720 + $0xd8] sm:$0xff]
        %v5749 = vld [vmem:[%s5720 + $0xe0] sm:$0xff]
        %v5750 = vld [vmem:[%s5720 + $0xe8] sm:$0xff]
        %v5751 = vld [vmem:[%s5720 + $0xf0] sm:$0xff]
        %v5752 = vld [vmem:[%s5720 + $0xf8] sm:$0xff]
        %v5761 = vunpack.c.l.b16 %v5712
        %v5762 = vunpack.c.h.b16 %v5712
        %v5763 = vunpack.c.l.b16 %v5713
        %v5764 = vunpack.c.h.b16 %v5713
        %v5765 = vunpack.c.l.b16 %v5714
        %v5766 = vunpack.c.h.b16 %v5714
        %v5767 = vunpack.c.l.b16 %v5715
        %v5768 = vunpack.c.h.b16 %v5715
        %v5769 = vunpack.c.l.b16 %v5716
        %v5770 = vunpack.c.h.b16 %v5716
        %v5771 = vunpack.c.l.b16 %v5717
        %v5772 = vunpack.c.h.b16 %v5717
        %v5773 = vunpack.c.l.b16 %v5718
        %v5774 = vunpack.c.h.b16 %v5718
        %v5775 = vunpack.c.l.b16 %v5719
        %v5776 = vunpack.c.h.b16 %v5719
        %v5777 = vpack.c.b16 %v5763, %v5761
        %v5778 = vpack.c.b16 %v5764, %v5762
        %v5779 = vpack.c.b16 %v5767, %v5765
        %v5780 = vpack.c.b16 %v5768, %v5766
        %v5781 = vpack.c.b16 %v5771, %v5769
        %v5782 = vpack.c.b16 %v5772, %v5770
        %v5783 = vpack.c.b16 %v5775, %v5773
        %v5784 = vpack.c.b16 %v5776, %v5774
        %v5825 = vunpack.c.l.b16 %v5721
        %v5826 = vunpack.c.h.b16 %v5721
        %v5827 = vunpack.c.l.b16 %v5722
        %v5828 = vunpack.c.h.b16 %v5722
        %v5829 = vunpack.c.l.b16 %v5723
        %v5830 = vunpack.c.h.b16 %v5723
        %v5831 = vunpack.c.l.b16 %v5724
        %v5832 = vunpack.c.h.b16 %v5724
        %v5833 = vunpack.c.l.b16 %v5725
        %v5834 = vunpack.c.h.b16 %v5725
        %v5835 = vunpack.c.l.b16 %v5726
        %v5836 = vunpack.c.h.b16 %v5726
        %v5837 = vunpack.c.l.b16 %v5727
        %v5838 = vunpack.c.h.b16 %v5727
        %v5839 = vunpack.c.l.b16 %v5728
        %v5840 = vunpack.c.h.b16 %v5728
        %v5841 = vunpack.c.l.b16 %v5729
        %v5842 = vunpack.c.h.b16 %v5729
        %v5843 = vunpack.c.l.b16 %v5730
        %v5844 = vunpack.c.h.b16 %v5730
        %v5845 = vunpack.c.l.b16 %v5731
        %v5846 = vunpack.c.h.b16 %v5731
        %v5847 = vunpack.c.l.b16 %v5732
        %v5848 = vunpack.c.h.b16 %v5732
        %v5849 = vunpack.c.l.b16 %v5733
        %v5850 = vunpack.c.h.b16 %v5733
        %v5851 = vunpack.c.l.b16 %v5734
        %v5852 = vunpack.c.h.b16 %v5734
        %v5853 = vunpack.c.l.b16 %v5735
        %v5854 = vunpack.c.h.b16 %v5735
        %v5855 = vunpack.c.l.b16 %v5736
        %v5856 = vunpack.c.h.b16 %v5736
        %v5857 = vunpack.c.l.b16 %v5737
        %v5858 = vunpack.c.h.b16 %v5737
        %v5859 = vunpack.c.l.b16 %v5738
        %v5860 = vunpack.c.h.b16 %v5738
        %v5861 = vunpack.c.l.b16 %v5739
        %v5862 = vunpack.c.h.b16 %v5739
        %v5863 = vunpack.c.l.b16 %v5740
        %v5864 = vunpack.c.h.b16 %v5740
        %v5865 = vunpack.c.l.b16 %v5741
        %v5866 = vunpack.c.h.b16 %v5741
        %v5867 = vunpack.c.l.b16 %v5742
        %v5868 = vunpack.c.h.b16 %v5742
        %v5869 = vunpack.c.l.b16 %v5743
        %v5870 = vunpack.c.h.b16 %v5743
        %v5871 = vunpack.c.l.b16 %v5744
        %v5872 = vunpack.c.h.b16 %v5744
        %v5873 = vunpack.c.l.b16 %v5745
        %v5874 = vunpack.c.h.b16 %v5745
        %v5875 = vunpack.c.l.b16 %v5746
        %v5876 = vunpack.c.h.b16 %v5746
        %v5877 = vunpack.c.l.b16 %v5747
        %v5878 = vunpack.c.h.b16 %v5747
        %v5879 = vunpack.c.l.b16 %v5748
        %v5880 = vunpack.c.h.b16 %v5748
        %v5881 = vunpack.c.l.b16 %v5749
        %v5882 = vunpack.c.h.b16 %v5749
        %v5883 = vunpack.c.l.b16 %v5750
        %v5884 = vunpack.c.h.b16 %v5750
        %v5885 = vunpack.c.l.b16 %v5751
        %v5886 = vunpack.c.h.b16 %v5751
        %v5887 = vunpack.c.l.b16 %v5752
        %v5888 = vunpack.c.h.b16 %v5752
        %v5889 = vpack.c.b16 %v5827, %v5825
        %v5890 = vpack.c.b16 %v5828, %v5826
        %v5891 = vpack.c.b16 %v5831, %v5829
        %v5892 = vpack.c.b16 %v5832, %v5830
        %v5893 = vpack.c.b16 %v5835, %v5833
        %v5894 = vpack.c.b16 %v5836, %v5834
        %v5895 = vpack.c.b16 %v5839, %v5837
        %v5896 = vpack.c.b16 %v5840, %v5838
        %v5897 = vpack.c.b16 %v5843, %v5841
        %v5898 = vpack.c.b16 %v5844, %v5842
        %v5899 = vpack.c.b16 %v5847, %v5845
        %v5900 = vpack.c.b16 %v5848, %v5846
        %v5901 = vpack.c.b16 %v5851, %v5849
        %v5902 = vpack.c.b16 %v5852, %v5850
        %v5903 = vpack.c.b16 %v5855, %v5853
        %v5904 = vpack.c.b16 %v5856, %v5854
        %v5905 = vpack.c.b16 %v5859, %v5857
        %v5906 = vpack.c.b16 %v5860, %v5858
        %v5907 = vpack.c.b16 %v5863, %v5861
        %v5908 = vpack.c.b16 %v5864, %v5862
        %v5909 = vpack.c.b16 %v5867, %v5865
        %v5910 = vpack.c.b16 %v5868, %v5866
        %v5911 = vpack.c.b16 %v5871, %v5869
        %v5912 = vpack.c.b16 %v5872, %v5870
        %v5913 = vpack.c.b16 %v5875, %v5873
        %v5914 = vpack.c.b16 %v5876, %v5874
        %v5915 = vpack.c.b16 %v5879, %v5877
        %v5916 = vpack.c.b16 %v5880, %v5878
        %v5917 = vpack.c.b16 %v5883, %v5881
        %v5918 = vpack.c.b16 %v5884, %v5882
        %v5919 = vpack.c.b16 %v5887, %v5885
        %v5920 = vpack.c.b16 %v5888, %v5886
        %5953 = vmatpush.bf16.msra.mxu0 %v5903
        %5954 = vmatpush.bf16.msra.mxu0 %v5901
        %5955 = vmatpush.bf16.msra.mxu0 %v5899
        %5956 = vmatpush.bf16.msra.mxu0 %v5897
        %5957 = vmatpush.bf16.msra.mxu0 %v5895
        %5958 = vmatpush.bf16.msra.mxu0 %v5893
        %5959 = vmatpush.bf16.msra.mxu0 %v5891
        %5960 = vmatpush.bf16.msra.mxu0 %v5889
        %5961 = vmatmul.bf16.gmra.mxu0 %v5777
        %v5962 = vpop.f32.mrf.mxu0
        %v5963 = vadd.f32 0.0, %v5962
        %v5964 = vpop.f32.mrf.mxu0
        %v5965 = vadd.f32 0.0, %v5964
        %5966 = vmatmul.bf16.gmra.mxu0 %v5779
        %v5967 = vpop.f32.mrf.mxu0
        %v5968 = vadd.f32 0.0, %v5967
        %v5969 = vpop.f32.mrf.mxu0
        %v5970 = vadd.f32 0.0, %v5969
        %5971 = vmatmul.bf16.gmra.mxu0 %v5781
        %v5972 = vpop.f32.mrf.mxu0
        %v5973 = vadd.f32 0.0, %v5972
        %v5974 = vpop.f32.mrf.mxu0
        %v5975 = vadd.f32 0.0, %v5974
        %5976 = vmatmul.bf16.gmra.mxu0 %v5783
        %v5977 = vpop.f32.mrf.mxu0
        %v5978 = vadd.f32 0.0, %v5977
        %v5979 = vpop.f32.mrf.mxu0
        %v5980 = vadd.f32 0.0, %v5979
        %5981 = vdwg.mxu0
        %5982 = vmatpush.bf16.msra.mxu0 %v5919
        %5983 = vmatpush.bf16.msra.mxu0 %v5917
        %5984 = vmatpush.bf16.msra.mxu0 %v5915
        %5985 = vmatpush.bf16.msra.mxu0 %v5913
        %5986 = vmatpush.bf16.msra.mxu0 %v5911
        %5987 = vmatpush.bf16.msra.mxu0 %v5909
        %5988 = vmatpush.bf16.msra.mxu0 %v5907
        %5989 = vmatpush.bf16.msra.mxu0 %v5905
        %5990 = vmatmul.bf16.gmra.mxu0 %v5778
        %v5991 = vpop.f32.mrf.mxu0
        %v5992 = vadd.f32 %v5963, %v5991
        %v5993 = vpop.f32.mrf.mxu0
        %v5994 = vadd.f32 %v5965, %v5993
        %5995 = vmatmul.bf16.gmra.mxu0 %v5780
        %v5996 = vpop.f32.mrf.mxu0
        %v5997 = vadd.f32 %v5968, %v5996
        %v5998 = vpop.f32.mrf.mxu0
        %v5999 = vadd.f32 %v5970, %v5998
        %6000 = vmatmul.bf16.gmra.mxu0 %v5782
        %v6001 = vpop.f32.mrf.mxu0
        %v6002 = vadd.f32 %v5973, %v6001
        %v6003 = vpop.f32.mrf.mxu0
        %v6004 = vadd.f32 %v5975, %v6003
        %6005 = vmatmul.bf16.gmra.mxu0 %v5784
        %v6006 = vpop.f32.mrf.mxu0
        %v6007 = vadd.f32 %v5978, %v6006
        %v6008 = vpop.f32.mrf.mxu0
        %v6009 = vadd.f32 %v5980, %v6008
        %6010 = vdwg.mxu0
        %6011 = vmatpush.bf16.msra.mxu0 %v5904
        %6012 = vmatpush.bf16.msra.mxu0 %v5902
        %6013 = vmatpush.bf16.msra.mxu0 %v5900
        %6014 = vmatpush.bf16.msra.mxu0 %v5898
        %6015 = vmatpush.bf16.msra.mxu0 %v5896
        %6016 = vmatpush.bf16.msra.mxu0 %v5894
        %6017 = vmatpush.bf16.msra.mxu0 %v5892
        %6018 = vmatpush.bf16.msra.mxu0 %v5890
        %6019 = vmatmul.bf16.gmra.mxu0 %v5777
        %v6020 = vpop.f32.mrf.mxu0
        %v6021 = vadd.f32 0.0, %v6020
        %v6022 = vpop.f32.mrf.mxu0
        %v6023 = vadd.f32 0.0, %v6022
        %6024 = vmatmul.bf16.gmra.mxu0 %v5779
        %v6025 = vpop.f32.mrf.mxu0
        %v6026 = vadd.f32 0.0, %v6025
        %v6027 = vpop.f32.mrf.mxu0
        %v6028 = vadd.f32 0.0, %v6027
        %6029 = vmatmul.bf16.gmra.mxu0 %v5781
        %v6030 = vpop.f32.mrf.mxu0
        %v6031 = vadd.f32 0.0, %v6030
        %v6032 = vpop.f32.mrf.mxu0
        %v6033 = vadd.f32 0.0, %v6032
        %6034 = vmatmul.bf16.gmra.mxu0 %v5783
        %v6035 = vpop.f32.mrf.mxu0
        %v6036 = vadd.f32 0.0, %v6035
        %v6037 = vpop.f32.mrf.mxu0
        %v6038 = vadd.f32 0.0, %v6037
        %6039 = vdwg.mxu0
        %6040 = vmatpush.bf16.msra.mxu0 %v5920
        %6041 = vmatpush.bf16.msra.mxu0 %v5918
        %6042 = vmatpush.bf16.msra.mxu0 %v5916
        %6043 = vmatpush.bf16.msra.mxu0 %v5914
        %6044 = vmatpush.bf16.msra.mxu0 %v5912
        %6045 = vmatpush.bf16.msra.mxu0 %v5910
        %6046 = vmatpush.bf16.msra.mxu0 %v5908
        %6047 = vmatpush.bf16.msra.mxu0 %v5906
        %6048 = vmatmul.bf16.gmra.mxu0 %v5778
        %v6049 = vpop.f32.mrf.mxu0
        %v6050 = vadd.f32 %v6021, %v6049
        %v6051 = vpop.f32.mrf.mxu0
        %v6052 = vadd.f32 %v6023, %v6051
        %6053 = vmatmul.bf16.gmra.mxu0 %v5780
        %v6054 = vpop.f32.mrf.mxu0
        %v6055 = vadd.f32 %v6026, %v6054
        %v6056 = vpop.f32.mrf.mxu0
        %v6057 = vadd.f32 %v6028, %v6056
        %6058 = vmatmul.bf16.gmra.mxu0 %v5782
        %v6059 = vpop.f32.mrf.mxu0
        %v6060 = vadd.f32 %v6031, %v6059
        %v6061 = vpop.f32.mrf.mxu0
        %v6062 = vadd.f32 %v6033, %v6061
        %6063 = vmatmul.bf16.gmra.mxu0 %v5784
        %v6064 = vpop.f32.mrf.mxu0
        %v6065 = vadd.f32 %v6036, %v6064
        %v6066 = vpop.f32.mrf.mxu0
        %v6067 = vadd.f32 %v6038, %v6066
        %6068 = vdwg.mxu0
        %v6069 = vadd.f32 %v5696, %v5992
        %v6070 = vadd.f32 %v5697, %v6050
        %v6071 = vadd.f32 %v5698, %v5994
        %v6072 = vadd.f32 %v5699, %v6052
        %v6073 = vadd.f32 %v5700, %v5997
        %v6074 = vadd.f32 %v5701, %v6055
        %v6075 = vadd.f32 %v5702, %v5999
        %v6076 = vadd.f32 %v5703, %v6057
        %v6077 = vadd.f32 %v5704, %v6002
        %v6078 = vadd.f32 %v5705, %v6060
        %v6079 = vadd.f32 %v5706, %v6004
        %v6080 = vadd.f32 %v5707, %v6062
        %v6081 = vadd.f32 %v5708, %v6007
        %v6082 = vadd.f32 %v5709, %v6065
        %v6083 = vadd.f32 %v5710, %v6009
        %v6084 = vadd.f32 %v5711, %v6067
        %v6085 = vld [vmem:[#allocation3 + $0x40] sm:$0xff]
        %v6086 = vld [vmem:[#allocation3 + $0x48] sm:$0xff]
        %v6087 = vld [vmem:[#allocation3 + $0x50] sm:$0xff]
        %v6088 = vld [vmem:[#allocation3 + $0x58] sm:$0xff]
        %v6089 = vld [vmem:[#allocation3 + $0x60] sm:$0xff]
        %v6090 = vld [vmem:[#allocation3 + $0x68] sm:$0xff]
        %v6091 = vld [vmem:[#allocation3 + $0x70] sm:$0xff]
        %v6092 = vld [vmem:[#allocation3 + $0x78] sm:$0xff]
        %s6093 = scalar_lea.vmem [#allocation21], 2048
        %v6094 = vld [vmem:[%s6093] sm:$0xff]
        %v6095 = vld [vmem:[%s6093 + $0x8] sm:$0xff]
        %v6096 = vld [vmem:[%s6093 + $0x10] sm:$0xff]
        %v6097 = vld [vmem:[%s6093 + $0x18] sm:$0xff]
        %v6098 = vld [vmem:[%s6093 + $0x20] sm:$0xff]
        %v6099 = vld [vmem:[%s6093 + $0x28] sm:$0xff]
        %v6100 = vld [vmem:[%s6093 + $0x30] sm:$0xff]
        %v6101 = vld [vmem:[%s6093 + $0x38] sm:$0xff]
        %v6102 = vld [vmem:[%s6093 + $0x40] sm:$0xff]
        %v6103 = vld [vmem:[%s6093 + $0x48] sm:$0xff]
        %v6104 = vld [vmem:[%s6093 + $0x50] sm:$0xff]
        %v6105 = vld [vmem:[%s6093 + $0x58] sm:$0xff]
        %v6106 = vld [vmem:[%s6093 + $0x60] sm:$0xff]
        %v6107 = vld [vmem:[%s6093 + $0x68] sm:$0xff]
        %v6108 = vld [vmem:[%s6093 + $0x70] sm:$0xff]
        %v6109 = vld [vmem:[%s6093 + $0x78] sm:$0xff]
        %v6110 = vld [vmem:[%s6093 + $0x80] sm:$0xff]
        %v6111 = vld [vmem:[%s6093 + $0x88] sm:$0xff]
        %v6112 = vld [vmem:[%s6093 + $0x90] sm:$0xff]
        %v6113 = vld [vmem:[%s6093 + $0x98] sm:$0xff]
        %v6114 = vld [vmem:[%s6093 + $0xa0] sm:$0xff]
        %v6115 = vld [vmem:[%s6093 + $0xa8] sm:$0xff]
        %v6116 = vld [vmem:[%s6093 + $0xb0] sm:$0xff]
        %v6117 = vld [vmem:[%s6093 + $0xb8] sm:$0xff]
        %v6118 = vld [vmem:[%s6093 + $0xc0] sm:$0xff]
        %v6119 = vld [vmem:[%s6093 + $0xc8] sm:$0xff]
        %v6120 = vld [vmem:[%s6093 + $0xd0] sm:$0xff]
        %v6121 = vld [vmem:[%s6093 + $0xd8] sm:$0xff]
        %v6122 = vld [vmem:[%s6093 + $0xe0] sm:$0xff]
        %v6123 = vld [vmem:[%s6093 + $0xe8] sm:$0xff]
        %v6124 = vld [vmem:[%s6093 + $0xf0] sm:$0xff]
        %v6125 = vld [vmem:[%s6093 + $0xf8] sm:$0xff]
        %v6134 = vunpack.c.l.b16 %v6085
        %v6135 = vunpack.c.h.b16 %v6085
        %v6136 = vunpack.c.l.b16 %v6086
        %v6137 = vunpack.c.h.b16 %v6086
        %v6138 = vunpack.c.l.b16 %v6087
        %v6139 = vunpack.c.h.b16 %v6087
        %v6140 = vunpack.c.l.b16 %v6088
        %v6141 = vunpack.c.h.b16 %v6088
        %v6142 = vunpack.c.l.b16 %v6089
        %v6143 = vunpack.c.h.b16 %v6089
        %v6144 = vunpack.c.l.b16 %v6090
        %v6145 = vunpack.c.h.b16 %v6090
        %v6146 = vunpack.c.l.b16 %v6091
        %v6147 = vunpack.c.h.b16 %v6091
        %v6148 = vunpack.c.l.b16 %v6092
        %v6149 = vunpack.c.h.b16 %v6092
        %v6150 = vpack.c.b16 %v6136, %v6134
        %v6151 = vpack.c.b16 %v6137, %v6135
        %v6152 = vpack.c.b16 %v6140, %v6138
        %v6153 = vpack.c.b16 %v6141, %v6139
        %v6154 = vpack.c.b16 %v6144, %v6142
        %v6155 = vpack.c.b16 %v6145, %v6143
        %v6156 = vpack.c.b16 %v6148, %v6146
        %v6157 = vpack.c.b16 %v6149, %v6147
        %v6198 = vunpack.c.l.b16 %v6094
        %v6199 = vunpack.c.h.b16 %v6094
        %v6200 = vunpack.c.l.b16 %v6095
        %v6201 = vunpack.c.h.b16 %v6095
        %v6202 = vunpack.c.l.b16 %v6096
        %v6203 = vunpack.c.h.b16 %v6096
        %v6204 = vunpack.c.l.b16 %v6097
        %v6205 = vunpack.c.h.b16 %v6097
        %v6206 = vunpack.c.l.b16 %v6098
        %v6207 = vunpack.c.h.b16 %v6098
        %v6208 = vunpack.c.l.b16 %v6099
        %v6209 = vunpack.c.h.b16 %v6099
        %v6210 = vunpack.c.l.b16 %v6100
        %v6211 = vunpack.c.h.b16 %v6100
        %v6212 = vunpack.c.l.b16 %v6101
        %v6213 = vunpack.c.h.b16 %v6101
        %v6214 = vunpack.c.l.b16 %v6102
        %v6215 = vunpack.c.h.b16 %v6102
        %v6216 = vunpack.c.l.b16 %v6103
        %v6217 = vunpack.c.h.b16 %v6103
        %v6218 = vunpack.c.l.b16 %v6104
        %v6219 = vunpack.c.h.b16 %v6104
        %v6220 = vunpack.c.l.b16 %v6105
        %v6221 = vunpack.c.h.b16 %v6105
        %v6222 = vunpack.c.l.b16 %v6106
        %v6223 = vunpack.c.h.b16 %v6106
        %v6224 = vunpack.c.l.b16 %v6107
        %v6225 = vunpack.c.h.b16 %v6107
        %v6226 = vunpack.c.l.b16 %v6108
        %v6227 = vunpack.c.h.b16 %v6108
        %v6228 = vunpack.c.l.b16 %v6109
        %v6229 = vunpack.c.h.b16 %v6109
        %v6230 = vunpack.c.l.b16 %v6110
        %v6231 = vunpack.c.h.b16 %v6110
        %v6232 = vunpack.c.l.b16 %v6111
        %v6233 = vunpack.c.h.b16 %v6111
        %v6234 = vunpack.c.l.b16 %v6112
        %v6235 = vunpack.c.h.b16 %v6112
        %v6236 = vunpack.c.l.b16 %v6113
        %v6237 = vunpack.c.h.b16 %v6113
        %v6238 = vunpack.c.l.b16 %v6114
        %v6239 = vunpack.c.h.b16 %v6114
        %v6240 = vunpack.c.l.b16 %v6115
        %v6241 = vunpack.c.h.b16 %v6115
        %v6242 = vunpack.c.l.b16 %v6116
        %v6243 = vunpack.c.h.b16 %v6116
        %v6244 = vunpack.c.l.b16 %v6117
        %v6245 = vunpack.c.h.b16 %v6117
        %v6246 = vunpack.c.l.b16 %v6118
        %v6247 = vunpack.c.h.b16 %v6118
        %v6248 = vunpack.c.l.b16 %v6119
        %v6249 = vunpack.c.h.b16 %v6119
        %v6250 = vunpack.c.l.b16 %v6120
        %v6251 = vunpack.c.h.b16 %v6120
        %v6252 = vunpack.c.l.b16 %v6121
        %v6253 = vunpack.c.h.b16 %v6121
        %v6254 = vunpack.c.l.b16 %v6122
        %v6255 = vunpack.c.h.b16 %v6122
        %v6256 = vunpack.c.l.b16 %v6123
        %v6257 = vunpack.c.h.b16 %v6123
        %v6258 = vunpack.c.l.b16 %v6124
        %v6259 = vunpack.c.h.b16 %v6124
        %v6260 = vunpack.c.l.b16 %v6125
        %v6261 = vunpack.c.h.b16 %v6125
        %v6262 = vpack.c.b16 %v6200, %v6198
        %v6263 = vpack.c.b16 %v6201, %v6199
        %v6264 = vpack.c.b16 %v6204, %v6202
        %v6265 = vpack.c.b16 %v6205, %v6203
        %v6266 = vpack.c.b16 %v6208, %v6206
        %v6267 = vpack.c.b16 %v6209, %v6207
        %v6268 = vpack.c.b16 %v6212, %v6210
        %v6269 = vpack.c.b16 %v6213, %v6211
        %v6270 = vpack.c.b16 %v6216, %v6214
        %v6271 = vpack.c.b16 %v6217, %v6215
        %v6272 = vpack.c.b16 %v6220, %v6218
        %v6273 = vpack.c.b16 %v6221, %v6219
        %v6274 = vpack.c.b16 %v6224, %v6222
        %v6275 = vpack.c.b16 %v6225, %v6223
        %v6276 = vpack.c.b16 %v6228, %v6226
        %v6277 = vpack.c.b16 %v6229, %v6227
        %v6278 = vpack.c.b16 %v6232, %v6230
        %v6279 = vpack.c.b16 %v6233, %v6231
        %v6280 = vpack.c.b16 %v6236, %v6234
        %v6281 = vpack.c.b16 %v6237, %v6235
        %v6282 = vpack.c.b16 %v6240, %v6238
        %v6283 = vpack.c.b16 %v6241, %v6239
        %v6284 = vpack.c.b16 %v6244, %v6242
        %v6285 = vpack.c.b16 %v6245, %v6243
        %v6286 = vpack.c.b16 %v6248, %v6246
        %v6287 = vpack.c.b16 %v6249, %v6247
        %v6288 = vpack.c.b16 %v6252, %v6250
        %v6289 = vpack.c.b16 %v6253, %v6251
        %v6290 = vpack.c.b16 %v6256, %v6254
        %v6291 = vpack.c.b16 %v6257, %v6255
        %v6292 = vpack.c.b16 %v6260, %v6258
        %v6293 = vpack.c.b16 %v6261, %v6259
        %6326 = vmatpush.bf16.msra.mxu0 %v6276
        %6327 = vmatpush.bf16.msra.mxu0 %v6274
        %6328 = vmatpush.bf16.msra.mxu0 %v6272
        %6329 = vmatpush.bf16.msra.mxu0 %v6270
        %6330 = vmatpush.bf16.msra.mxu0 %v6268
        %6331 = vmatpush.bf16.msra.mxu0 %v6266
        %6332 = vmatpush.bf16.msra.mxu0 %v6264
        %6333 = vmatpush.bf16.msra.mxu0 %v6262
        %6334 = vmatmul.bf16.gmra.mxu0 %v6150
        %v6335 = vpop.f32.mrf.mxu0
        %v6336 = vadd.f32 0.0, %v6335
        %v6337 = vpop.f32.mrf.mxu0
        %v6338 = vadd.f32 0.0, %v6337
        %6339 = vmatmul.bf16.gmra.mxu0 %v6152
        %v6340 = vpop.f32.mrf.mxu0
        %v6341 = vadd.f32 0.0, %v6340
        %v6342 = vpop.f32.mrf.mxu0
        %v6343 = vadd.f32 0.0, %v6342
        %6344 = vmatmul.bf16.gmra.mxu0 %v6154
        %v6345 = vpop.f32.mrf.mxu0
        %v6346 = vadd.f32 0.0, %v6345
        %v6347 = vpop.f32.mrf.mxu0
        %v6348 = vadd.f32 0.0, %v6347
        %6349 = vmatmul.bf16.gmra.mxu0 %v6156
        %v6350 = vpop.f32.mrf.mxu0
        %v6351 = vadd.f32 0.0, %v6350
        %v6352 = vpop.f32.mrf.mxu0
        %v6353 = vadd.f32 0.0, %v6352
        %6354 = vdwg.mxu0
        %6355 = vmatpush.bf16.msra.mxu0 %v6292
        %6356 = vmatpush.bf16.msra.mxu0 %v6290
        %6357 = vmatpush.bf16.msra.mxu0 %v6288
        %6358 = vmatpush.bf16.msra.mxu0 %v6286
        %6359 = vmatpush.bf16.msra.mxu0 %v6284
        %6360 = vmatpush.bf16.msra.mxu0 %v6282
        %6361 = vmatpush.bf16.msra.mxu0 %v6280
        %6362 = vmatpush.bf16.msra.mxu0 %v6278
        %6363 = vmatmul.bf16.gmra.mxu0 %v6151
        %v6364 = vpop.f32.mrf.mxu0
        %v6365 = vadd.f32 %v6336, %v6364
        %v6366 = vpop.f32.mrf.mxu0
        %v6367 = vadd.f32 %v6338, %v6366
        %6368 = vmatmul.bf16.gmra.mxu0 %v6153
        %v6369 = vpop.f32.mrf.mxu0
        %v6370 = vadd.f32 %v6341, %v6369
        %v6371 = vpop.f32.mrf.mxu0
        %v6372 = vadd.f32 %v6343, %v6371
        %6373 = vmatmul.bf16.gmra.mxu0 %v6155
        %v6374 = vpop.f32.mrf.mxu0
        %v6375 = vadd.f32 %v6346, %v6374
        %v6376 = vpop.f32.mrf.mxu0
        %v6377 = vadd.f32 %v6348, %v6376
        %6378 = vmatmul.bf16.gmra.mxu0 %v6157
        %v6379 = vpop.f32.mrf.mxu0
        %v6380 = vadd.f32 %v6351, %v6379
        %v6381 = vpop.f32.mrf.mxu0
        %v6382 = vadd.f32 %v6353, %v6381
        %6383 = vdwg.mxu0
        %6384 = vmatpush.bf16.msra.mxu0 %v6277
        %6385 = vmatpush.bf16.msra.mxu0 %v6275
        %6386 = vmatpush.bf16.msra.mxu0 %v6273
        %6387 = vmatpush.bf16.msra.mxu0 %v6271
        %6388 = vmatpush.bf16.msra.mxu0 %v6269
        %6389 = vmatpush.bf16.msra.mxu0 %v6267
        %6390 = vmatpush.bf16.msra.mxu0 %v6265
        %6391 = vmatpush.bf16.msra.mxu0 %v6263
        %6392 = vmatmul.bf16.gmra.mxu0 %v6150
        %v6393 = vpop.f32.mrf.mxu0
        %v6394 = vadd.f32 0.0, %v6393
        %v6395 = vpop.f32.mrf.mxu0
        %v6396 = vadd.f32 0.0, %v6395
        %6397 = vmatmul.bf16.gmra.mxu0 %v6152
        %v6398 = vpop.f32.mrf.mxu0
        %v6399 = vadd.f32 0.0, %v6398
        %v6400 = vpop.f32.mrf.mxu0
        %v6401 = vadd.f32 0.0, %v6400
        %6402 = vmatmul.bf16.gmra.mxu0 %v6154
        %v6403 = vpop.f32.mrf.mxu0
        %v6404 = vadd.f32 0.0, %v6403
        %v6405 = vpop.f32.mrf.mxu0
        %v6406 = vadd.f32 0.0, %v6405
        %6407 = vmatmul.bf16.gmra.mxu0 %v6156
        %v6408 = vpop.f32.mrf.mxu0
        %v6409 = vadd.f32 0.0, %v6408
        %v6410 = vpop.f32.mrf.mxu0
        %v6411 = vadd.f32 0.0, %v6410
        %6412 = vdwg.mxu0
        %6413 = vmatpush.bf16.msra.mxu0 %v6293
        %6414 = vmatpush.bf16.msra.mxu0 %v6291
        %6415 = vmatpush.bf16.msra.mxu0 %v6289
        %6416 = vmatpush.bf16.msra.mxu0 %v6287
        %6417 = vmatpush.bf16.msra.mxu0 %v6285
        %6418 = vmatpush.bf16.msra.mxu0 %v6283
        %6419 = vmatpush.bf16.msra.mxu0 %v6281
        %6420 = vmatpush.bf16.msra.mxu0 %v6279
        %6421 = vmatmul.bf16.gmra.mxu0 %v6151
        %v6422 = vpop.f32.mrf.mxu0
        %v6423 = vadd.f32 %v6394, %v6422
        %v6424 = vpop.f32.mrf.mxu0
        %v6425 = vadd.f32 %v6396, %v6424
        %6426 = vmatmul.bf16.gmra.mxu0 %v6153
        %v6427 = vpop.f32.mrf.mxu0
        %v6428 = vadd.f32 %v6399, %v6427
        %v6429 = vpop.f32.mrf.mxu0
        %v6430 = vadd.f32 %v6401, %v6429
        %6431 = vmatmul.bf16.gmra.mxu0 %v6155
        %v6432 = vpop.f32.mrf.mxu0
        %v6433 = vadd.f32 %v6404, %v6432
        %v6434 = vpop.f32.mrf.mxu0
        %v6435 = vadd.f32 %v6406, %v6434
        %6436 = vmatmul.bf16.gmra.mxu0 %v6157
        %v6437 = vpop.f32.mrf.mxu0
        %v6438 = vadd.f32 %v6409, %v6437
        %v6439 = vpop.f32.mrf.mxu0
        %v6440 = vadd.f32 %v6411, %v6439
        %6441 = vdwg.mxu0
        %v6442 = vadd.f32 %v6069, %v6365
        %v6443 = vadd.f32 %v6070, %v6423
        %v6444 = vadd.f32 %v6071, %v6367
        %v6445 = vadd.f32 %v6072, %v6425
        %v6446 = vadd.f32 %v6073, %v6370
        %v6447 = vadd.f32 %v6074, %v6428
        %v6448 = vadd.f32 %v6075, %v6372
        %v6449 = vadd.f32 %v6076, %v6430
        %v6450 = vadd.f32 %v6077, %v6375
        %v6451 = vadd.f32 %v6078, %v6433
        %v6452 = vadd.f32 %v6079, %v6377
        %v6453 = vadd.f32 %v6080, %v6435
        %v6454 = vadd.f32 %v6081, %v6380
        %v6455 = vadd.f32 %v6082, %v6438
        %v6456 = vadd.f32 %v6083, %v6382
        %v6457 = vadd.f32 %v6084, %v6440
        %v6459 = vperm.slane %v2765, 0
        %v6460 = vperm.slane %v2765, 1
        %v6463 = vadd.f32 %v6442, %v6459
        %v6464 = vadd.f32 %v6443, %v6460
        %v6465 = vadd.f32 %v6444, %v6459
        %v6466 = vadd.f32 %v6445, %v6460
        %v6467 = vadd.f32 %v6446, %v6459
        %v6468 = vadd.f32 %v6447, %v6460
        %v6469 = vadd.f32 %v6448, %v6459
        %v6470 = vadd.f32 %v6449, %v6460
        %v6471 = vadd.f32 %v6450, %v6459
        %v6472 = vadd.f32 %v6451, %v6460
        %v6473 = vadd.f32 %v6452, %v6459
        %v6474 = vadd.f32 %v6453, %v6460
        %v6475 = vadd.f32 %v6454, %v6459
        %v6476 = vadd.f32 %v6455, %v6460
        %v6477 = vadd.f32 %v6456, %v6459
        %v6478 = vadd.f32 %v6457, %v6460
        %v6479 = vmax.f32 %v6463, 0.0
        %v6480 = vmax.f32 %v6464, 0.0
        %v6481 = vmax.f32 %v6465, 0.0
        %v6482 = vmax.f32 %v6466, 0.0
        %v6483 = vmax.f32 %v6467, 0.0
        %v6484 = vmax.f32 %v6468, 0.0
        %v6485 = vmax.f32 %v6469, 0.0
        %v6486 = vmax.f32 %v6470, 0.0
        %v6487 = vmax.f32 %v6471, 0.0
        %v6488 = vmax.f32 %v6472, 0.0
        %v6489 = vmax.f32 %v6473, 0.0
        %v6490 = vmax.f32 %v6474, 0.0
        %v6491 = vmax.f32 %v6475, 0.0
        %v6492 = vmax.f32 %v6476, 0.0
        %v6493 = vmax.f32 %v6477, 0.0
        %v6494 = vmax.f32 %v6478, 0.0
        %v6495 = vpack.c.bf16 %v6481, %v6479
        %v6496 = vpack.c.bf16 %v6482, %v6480
        %v6497 = vpack.c.bf16 %v6485, %v6483
        %v6498 = vpack.c.bf16 %v6486, %v6484
        %v6499 = vpack.c.bf16 %v6489, %v6487
        %v6500 = vpack.c.bf16 %v6490, %v6488
        %v6501 = vpack.c.bf16 %v6493, %v6491
        %v6502 = vpack.c.bf16 %v6494, %v6492
        %v6503 = vld [vmem:[#allocation11] sm:$0xf]
        %v6504 = vld [vmem:[#allocation11 + $0x4] sm:$0xf]
        %v6505 = vld [vmem:[#allocation11 + $0x8] sm:$0xf]
        %v6506 = vld [vmem:[#allocation11 + $0xc] sm:$0xf]
        %v6507 = vld [vmem:[#allocation11 + $0x10] sm:$0xf]
        %v6508 = vld [vmem:[#allocation11 + $0x14] sm:$0xf]
        %v6509 = vld [vmem:[#allocation11 + $0x18] sm:$0xf]
        %v6510 = vld [vmem:[#allocation11 + $0x1c] sm:$0xf]
        %v6511 = vld [vmem:[%s12] sm:$0xf]
        %v6512 = vld [vmem:[%s12 + $0x4] sm:$0xf]
        %v6513 = vld [vmem:[%s12 + $0x8] sm:$0xf]
        %v6514 = vld [vmem:[%s12 + $0xc] sm:$0xf]
        %v6515 = vld [vmem:[%s12 + $0x10] sm:$0xf]
        %v6516 = vld [vmem:[%s12 + $0x14] sm:$0xf]
        %v6517 = vld [vmem:[%s12 + $0x18] sm:$0xf]
        %v6518 = vld [vmem:[%s12 + $0x1c] sm:$0xf]
        %v6519 = vld [vmem:[%s12 + $0x20] sm:$0xf]
        %v6520 = vld [vmem:[%s12 + $0x24] sm:$0xf]
        %v6521 = vld [vmem:[%s12 + $0x28] sm:$0xf]
        %v6522 = vld [vmem:[%s12 + $0x2c] sm:$0xf]
        %v6523 = vld [vmem:[%s12 + $0x30] sm:$0xf]
        %v6524 = vld [vmem:[%s12 + $0x34] sm:$0xf]
        %v6525 = vld [vmem:[%s12 + $0x38] sm:$0xf]
        %v6526 = vld [vmem:[%s12 + $0x3c] sm:$0xf]
        %v6527 = vld [vmem:[%s12 + $0x40] sm:$0xf]
        %v6528 = vld [vmem:[%s12 + $0x44] sm:$0xf]
        %v6529 = vld [vmem:[%s12 + $0x48] sm:$0xf]
        %v6530 = vld [vmem:[%s12 + $0x4c] sm:$0xf]
        %v6531 = vld [vmem:[%s12 + $0x50] sm:$0xf]
        %v6532 = vld [vmem:[%s12 + $0x54] sm:$0xf]
        %v6533 = vld [vmem:[%s12 + $0x58] sm:$0xf]
        %v6534 = vld [vmem:[%s12 + $0x5c] sm:$0xf]
        %v6535 = vld [vmem:[%s12 + $0x60] sm:$0xf]
        %v6536 = vld [vmem:[%s12 + $0x64] sm:$0xf]
        %v6537 = vld [vmem:[%s12 + $0x68] sm:$0xf]
        %v6538 = vld [vmem:[%s12 + $0x6c] sm:$0xf]
        %v6539 = vld [vmem:[%s12 + $0x70] sm:$0xf]
        %v6540 = vld [vmem:[%s12 + $0x74] sm:$0xf]
        %v6541 = vld [vmem:[%s12 + $0x78] sm:$0xf]
        %v6542 = vld [vmem:[%s12 + $0x7c] sm:$0xf]
        %v6543 = vld [vmem:[#allocation24] sm:$0x1]
        %v6544 = vld [vmem:[#allocation27] sm:$0x1]
        %v6553 = vunpack.c.l.b16 %v6503
        %v6554 = vunpack.c.l.b16 %v6504
        %v6555 = vunpack.c.l.b16 %v6505
        %v6556 = vunpack.c.l.b16 %v6506
        %v6557 = vunpack.c.l.b16 %v6507
        %v6558 = vunpack.c.l.b16 %v6508
        %v6559 = vunpack.c.l.b16 %v6509
        %v6560 = vunpack.c.l.b16 %v6510
        %v6561 = vpack.c.b16 %v6554, %v6553
        %v6562 = vpack.c.b16 %v6556, %v6555
        %v6563 = vpack.c.b16 %v6558, %v6557
        %v6564 = vpack.c.b16 %v6560, %v6559
        %vm6565 = vcmask 523264
        %v6567 = vsel %vm6565, %v6561, 0
        %v6570 = vsel %vm6565, %v6562, 0
        %v6573 = vsel %vm6565, %v6563, 0
        %v6576 = vsel %vm6565, %v6564, 0
        %6578 = vmatpush.bf16.msra.mxu0 0
        %6579 = vmatpush.bf16.msra.mxu0 0
        %6580 = vmatpush.bf16.msra.mxu0 0
        %6581 = vmatpush.bf16.msra.mxu0 0
        %6582 = vmatpush.bf16.msra.mxu0 %v6501
        %6583 = vmatpush.bf16.msra.mxu0 %v6499
        %6584 = vmatpush.bf16.msra.mxu0 %v6497
        %6585 = vmatpush.bf16.msra.mxu0 %v6495
        %6586 = vmatmul.bf16.gmra.mxu0 %v6567
        %v6587 = vpop.f32.mrf.mxu0
        %v6588 = vadd.f32 0.0, %v6587
        %v6589 = vpop.f32.mrf.mxu0
        %v6590 = vadd.f32 0.0, %v6589
        %6591 = vmatmul.bf16.gmra.mxu0 %v6570
        %v6592 = vpop.f32.mrf.mxu0
        %v6593 = vadd.f32 0.0, %v6592
        %v6594 = vpop.f32.mrf.mxu0
        %v6595 = vadd.f32 0.0, %v6594
        %6596 = vmatmul.bf16.gmra.mxu0 %v6573
        %v6597 = vpop.f32.mrf.mxu0
        %v6598 = vadd.f32 0.0, %v6597
        %v6599 = vpop.f32.mrf.mxu0
        %v6600 = vadd.f32 0.0, %v6599
        %6601 = vmatmul.bf16.gmra.mxu0 %v6576
        %v6602 = vpop.f32.mrf.mxu0
        %v6603 = vadd.f32 0.0, %v6602
        %v6604 = vpop.f32.mrf.mxu0
        %v6605 = vadd.f32 0.0, %v6604
        %6606 = vdwg.mxu0
        %6607 = vmatpush.bf16.msra.mxu0 0
        %6608 = vmatpush.bf16.msra.mxu0 0
        %6609 = vmatpush.bf16.msra.mxu0 0
        %6610 = vmatpush.bf16.msra.mxu0 0
        %6611 = vmatpush.bf16.msra.mxu0 %v6502
        %6612 = vmatpush.bf16.msra.mxu0 %v6500
        %6613 = vmatpush.bf16.msra.mxu0 %v6498
        %6614 = vmatpush.bf16.msra.mxu0 %v6496
        %6615 = vmatmul.bf16.gmra.mxu0 %v6567
        %v6616 = vpop.f32.mrf.mxu0
        %v6617 = vadd.f32 0.0, %v6616
        %v6618 = vpop.f32.mrf.mxu0
        %v6619 = vadd.f32 0.0, %v6618
        %6620 = vmatmul.bf16.gmra.mxu0 %v6570
        %v6621 = vpop.f32.mrf.mxu0
        %v6622 = vadd.f32 0.0, %v6621
        %v6623 = vpop.f32.mrf.mxu0
        %v6624 = vadd.f32 0.0, %v6623
        %6625 = vmatmul.bf16.gmra.mxu0 %v6573
        %v6626 = vpop.f32.mrf.mxu0
        %v6627 = vadd.f32 0.0, %v6626
        %v6628 = vpop.f32.mrf.mxu0
        %v6629 = vadd.f32 0.0, %v6628
        %6630 = vmatmul.bf16.gmra.mxu0 %v6576
        %v6631 = vpop.f32.mrf.mxu0
        %v6632 = vadd.f32 0.0, %v6631
        %v6633 = vpop.f32.mrf.mxu0
        %v6634 = vadd.f32 0.0, %v6633
        %6635 = vdwg.mxu0
        %v6636 = vpack.c.bf16 %v6590, %v6588
        %v6637 = vpack.c.bf16 %v6619, %v6617
        %v6638 = vpack.c.bf16 %v6595, %v6593
        %v6639 = vpack.c.bf16 %v6624, %v6622
        %v6640 = vpack.c.bf16 %v6600, %v6598
        %v6641 = vpack.c.bf16 %v6629, %v6627
        %v6642 = vpack.c.bf16 %v6605, %v6603
        %v6643 = vpack.c.bf16 %v6634, %v6632
        %v6645 = vperm.slane %v6543, 0
        %v6679 = vunpack.c.l.b16 %v6511
        %v6680 = vunpack.c.l.b16 %v6512
        %v6681 = vunpack.c.l.b16 %v6513
        %v6682 = vunpack.c.l.b16 %v6514
        %v6683 = vunpack.c.l.b16 %v6515
        %v6684 = vunpack.c.l.b16 %v6516
        %v6685 = vunpack.c.l.b16 %v6517
        %v6686 = vunpack.c.l.b16 %v6518
        %v6687 = vunpack.c.l.b16 %v6519
        %v6688 = vunpack.c.l.b16 %v6520
        %v6689 = vunpack.c.l.b16 %v6521
        %v6690 = vunpack.c.l.b16 %v6522
        %v6691 = vunpack.c.l.b16 %v6523
        %v6692 = vunpack.c.l.b16 %v6524
        %v6693 = vunpack.c.l.b16 %v6525
        %v6694 = vunpack.c.l.b16 %v6526
        %v6695 = vunpack.c.l.b16 %v6527
        %v6696 = vunpack.c.l.b16 %v6528
        %v6697 = vunpack.c.l.b16 %v6529
        %v6698 = vunpack.c.l.b16 %v6530
        %v6699 = vunpack.c.l.b16 %v6531
        %v6700 = vunpack.c.l.b16 %v6532
        %v6701 = vunpack.c.l.b16 %v6533
        %v6702 = vunpack.c.l.b16 %v6534
        %v6703 = vunpack.c.l.b16 %v6535
        %v6704 = vunpack.c.l.b16 %v6536
        %v6705 = vunpack.c.l.b16 %v6537
        %v6706 = vunpack.c.l.b16 %v6538
        %v6707 = vunpack.c.l.b16 %v6539
        %v6708 = vunpack.c.l.b16 %v6540
        %v6709 = vunpack.c.l.b16 %v6541
        %v6710 = vunpack.c.l.b16 %v6542
        %v6711 = vpack.c.b16 %v6680, %v6679
        %v6712 = vpack.c.b16 %v6682, %v6681
        %v6713 = vpack.c.b16 %v6684, %v6683
        %v6714 = vpack.c.b16 %v6686, %v6685
        %v6715 = vpack.c.b16 %v6688, %v6687
        %v6716 = vpack.c.b16 %v6690, %v6689
        %v6717 = vpack.c.b16 %v6692, %v6691
        %v6718 = vpack.c.b16 %v6694, %v6693
        %v6719 = vpack.c.b16 %v6696, %v6695
        %v6720 = vpack.c.b16 %v6698, %v6697
        %v6721 = vpack.c.b16 %v6700, %v6699
        %v6722 = vpack.c.b16 %v6702, %v6701
        %v6723 = vpack.c.b16 %v6704, %v6703
        %v6724 = vpack.c.b16 %v6706, %v6705
        %v6725 = vpack.c.b16 %v6708, %v6707
        %v6726 = vpack.c.b16 %v6710, %v6709
        %6743 = vmatpush.bf16.msra.mxu0 %v6718
        %6744 = vmatpush.bf16.msra.mxu0 %v6717
        %6745 = vmatpush.bf16.msra.mxu0 %v6716
        %6746 = vmatpush.bf16.msra.mxu0 %v6715
        %6747 = vmatpush.bf16.msra.mxu0 %v6714
        %6748 = vmatpush.bf16.msra.mxu0 %v6713
        %6749 = vmatpush.bf16.msra.mxu0 %v6712
        %6750 = vmatpush.bf16.msra.mxu0 %v6711
        %6751 = vmatmul.bf16.gmra.mxu0 %v6636
        %v6752 = vpop.f32.mrf.mxu0
        %v6753 = vadd.f32 %v6645, %v6752
        %v6754 = vpop.f32.mrf.mxu0
        %v6755 = vadd.f32 %v6645, %v6754
        %6756 = vmatmul.bf16.gmra.mxu0 %v6638
        %v6757 = vpop.f32.mrf.mxu0
        %v6758 = vadd.f32 %v6645, %v6757
        %v6759 = vpop.f32.mrf.mxu0
        %v6760 = vadd.f32 %v6645, %v6759
        %6761 = vmatmul.bf16.gmra.mxu0 %v6640
        %v6762 = vpop.f32.mrf.mxu0
        %v6763 = vadd.f32 %v6645, %v6762
        %v6764 = vpop.f32.mrf.mxu0
        %v6765 = vadd.f32 %v6645, %v6764
        %6766 = vmatmul.bf16.gmra.mxu0 %v6642
        %v6767 = vpop.f32.mrf.mxu0
        %v6768 = vadd.f32 %v6645, %v6767
        %v6769 = vpop.f32.mrf.mxu0
        %v6770 = vadd.f32 %v6645, %v6769
        %6771 = vdwg.mxu0
        %6772 = vmatpush.bf16.msra.mxu0 %v6726
        %6773 = vmatpush.bf16.msra.mxu0 %v6725
        %6774 = vmatpush.bf16.msra.mxu0 %v6724
        %6775 = vmatpush.bf16.msra.mxu0 %v6723
        %6776 = vmatpush.bf16.msra.mxu0 %v6722
        %6777 = vmatpush.bf16.msra.mxu0 %v6721
        %6778 = vmatpush.bf16.msra.mxu0 %v6720
        %6779 = vmatpush.bf16.msra.mxu0 %v6719
        %6780 = vmatmul.bf16.gmra.mxu0 %v6637
        %v6781 = vpop.f32.mrf.mxu0
        %v6782 = vadd.f32 %v6753, %v6781
        %v6783 = vpop.f32.mrf.mxu0
        %v6784 = vadd.f32 %v6755, %v6783
        %6785 = vmatmul.bf16.gmra.mxu0 %v6639
        %v6786 = vpop.f32.mrf.mxu0
        %v6787 = vadd.f32 %v6758, %v6786
        %v6788 = vpop.f32.mrf.mxu0
        %v6789 = vadd.f32 %v6760, %v6788
        %6790 = vmatmul.bf16.gmra.mxu0 %v6641
        %v6791 = vpop.f32.mrf.mxu0
        %v6792 = vadd.f32 %v6763, %v6791
        %v6793 = vpop.f32.mrf.mxu0
        %v6794 = vadd.f32 %v6765, %v6793
        %6795 = vmatmul.bf16.gmra.mxu0 %v6643
        %v6796 = vpop.f32.mrf.mxu0
        %v6797 = vadd.f32 %v6768, %v6796
        %v6798 = vpop.f32.mrf.mxu0
        %v6799 = vadd.f32 %v6770, %v6798
        %6800 = vdwg.mxu0
        %v6801 = vmax.f32 %v6782, 0.0
        %v6802 = vmax.f32 %v6784, 0.0
        %v6803 = vmax.f32 %v6787, 0.0
        %v6804 = vmax.f32 %v6789, 0.0
        %v6805 = vmax.f32 %v6792, 0.0
        %v6806 = vmax.f32 %v6794, 0.0
        %v6807 = vmax.f32 %v6797, 0.0
        %v6808 = vmax.f32 %v6799, 0.0
        %v6809 = vpack.c.bf16 %v6801, %v6801
        %v6810 = vpack.c.bf16 %v6802, %v6802
        %v6811 = vpack.c.bf16 %v6803, %v6803
        %v6812 = vpack.c.bf16 %v6804, %v6804
        %v6813 = vpack.c.bf16 %v6805, %v6805
        %v6814 = vpack.c.bf16 %v6806, %v6806
        %v6815 = vpack.c.bf16 %v6807, %v6807
        %v6816 = vpack.c.bf16 %v6808, %v6808
        %vm6817 = vcmask 519168
        %6818 = vst.msk [vmem:[#allocation5] sm:$0xf] %vm6817, 0
        %6819 = vst.msk [vmem:[#allocation5 + $0x4] sm:$0xf] %vm6817, 0
        %6820 = vst.msk [vmem:[#allocation5 + $0x8] sm:$0xf] %vm6817, 0
        %6821 = vst.msk [vmem:[#allocation5 + $0xc] sm:$0xf] %vm6817, 0
        %6822 = vst.msk [vmem:[#allocation5 + $0x10] sm:$0xf] %vm6817, 0
        %6823 = vst.msk [vmem:[#allocation5 + $0x14] sm:$0xf] %vm6817, 0
        %6824 = vst.msk [vmem:[#allocation5 + $0x18] sm:$0xf] %vm6817, 0
        %6825 = vst.msk [vmem:[#allocation5 + $0x1c] sm:$0xf] %vm6817, 0
        %6826 = vst.msk [vmem:[#allocation5 + $0x20] sm:$0xf] %vm6817, %v6809
        %6827 = vst.msk [vmem:[#allocation5 + $0x24] sm:$0xf] %vm6817, %v6810
        %6828 = vst.msk [vmem:[#allocation5 + $0x28] sm:$0xf] %vm6817, %v6811
        %6829 = vst.msk [vmem:[#allocation5 + $0x2c] sm:$0xf] %vm6817, %v6812
        %6830 = vst.msk [vmem:[#allocation5 + $0x30] sm:$0xf] %vm6817, %v6813
        %6831 = vst.msk [vmem:[#allocation5 + $0x34] sm:$0xf] %vm6817, %v6814
        %6832 = vst.msk [vmem:[#allocation5 + $0x38] sm:$0xf] %vm6817, %v6815
        %6833 = vst.msk [vmem:[#allocation5 + $0x3c] sm:$0xf] %vm6817, %v6816
        %6834 = vst.msk [vmem:[#allocation5 + $0x40] sm:$0xf] %vm6817, 0
        %6835 = vst.msk [vmem:[#allocation5 + $0x44] sm:$0xf] %vm6817, 0
        %6836 = vst.msk [vmem:[#allocation5 + $0x48] sm:$0xf] %vm6817, 0
        %6837 = vst.msk [vmem:[#allocation5 + $0x4c] sm:$0xf] %vm6817, 0
        %6838 = vst.msk [vmem:[#allocation5 + $0x50] sm:$0xf] %vm6817, 0
        %6839 = vst.msk [vmem:[#allocation5 + $0x54] sm:$0xf] %vm6817, 0
        %6840 = vst.msk [vmem:[#allocation5 + $0x58] sm:$0xf] %vm6817, 0
        %6841 = vst.msk [vmem:[#allocation5 + $0x5c] sm:$0xf] %vm6817, 0
        %v6842 = vld [vmem:[#allocation5] sm:$0xf]
        %v6843 = vld [vmem:[#allocation5 + $0x4] sm:$0xf]
        %v6844 = vld [vmem:[#allocation5 + $0x8] sm:$0xf]
        %v6845 = vld [vmem:[#allocation5 + $0xc] sm:$0xf]
        %v6846 = vld [vmem:[#allocation5 + $0x10] sm:$0xf]
        %v6847 = vld [vmem:[#allocation5 + $0x14] sm:$0xf]
        %v6848 = vld [vmem:[#allocation5 + $0x18] sm:$0xf]
        %v6849 = vld [vmem:[#allocation5 + $0x1c] sm:$0xf]
        %v6850 = vld [vmem:[#allocation26] sm:$0xf]
        %v6851 = vld [vmem:[#allocation26 + $0x4] sm:$0xf]
        %v6852 = vld [vmem:[#allocation26 + $0x8] sm:$0xf]
        %v6853 = vld [vmem:[#allocation26 + $0xc] sm:$0xf]
        %v6854 = vld [vmem:[#allocation26 + $0x10] sm:$0xf]
        %v6855 = vld [vmem:[#allocation26 + $0x14] sm:$0xf]
        %v6856 = vld [vmem:[#allocation26 + $0x18] sm:$0xf]
        %v6857 = vld [vmem:[#allocation26 + $0x1c] sm:$0xf]
        %v6858 = vld [vmem:[#allocation5 + $0x20] sm:$0xf]
        %v6859 = vld [vmem:[#allocation5 + $0x24] sm:$0xf]
        %s6860 = scalar_lea.vmem [#allocation26], 32
        %v6861 = vld [vmem:[%s6860] sm:$0xf]
        %v6862 = vld [vmem:[%s6860 + $0x4] sm:$0xf]
        %v6863 = vld [vmem:[%s6860 + $0x8] sm:$0xf]
        %v6864 = vld [vmem:[%s6860 + $0xc] sm:$0xf]
        %v6865 = vld [vmem:[%s6860 + $0x10] sm:$0xf]
        %v6866 = vld [vmem:[%s6860 + $0x14] sm:$0xf]
        %v6867 = vld [vmem:[%s6860 + $0x18] sm:$0xf]
        %v6868 = vld [vmem:[%s6860 + $0x1c] sm:$0xf]
        %v6877 = vunpack.c.l.b16 %v6844
        %v6878 = vunpack.c.l.b16 %v6845
        %v6879 = vunpack.c.l.b16 %v6846
        %v6880 = vunpack.c.l.b16 %v6847
        %v6881 = vunpack.c.l.b16 %v6848
        %v6882 = vunpack.c.l.b16 %v6849
        %v6883 = vunpack.c.l.b16 %v6858
        %v6884 = vunpack.c.l.b16 %v6859
        %v6885 = vpack.c.b16 %v6878, %v6877
        %v6886 = vpack.c.b16 %v6880, %v6879
        %v6887 = vpack.c.b16 %v6882, %v6881
        %v6888 = vpack.c.b16 %v6884, %v6883
        %v6897 = vunpack.c.l.b16 %v6861
        %v6898 = vunpack.c.l.b16 %v6862
        %v6899 = vunpack.c.l.b16 %v6863
        %v6900 = vunpack.c.l.b16 %v6864
        %v6901 = vunpack.c.l.b16 %v6865
        %v6902 = vunpack.c.l.b16 %v6866
        %v6903 = vunpack.c.l.b16 %v6867
        %v6904 = vunpack.c.l.b16 %v6868
        %v6905 = vpack.c.b16 %v6898, %v6897
        %v6906 = vpack.c.b16 %v6900, %v6899
        %v6907 = vpack.c.b16 %v6902, %v6901
        %v6908 = vpack.c.b16 %v6904, %v6903
        %v6914 = vsel %vm6565, %v6885, 0
        %v6917 = vsel %vm6565, %v6886, 0
        %v6920 = vsel %vm6565, %v6887, 0
        %v6923 = vsel %vm6565, %v6888, 0
        %6925 = vmatpush.bf16.msra.mxu0 0
        %6926 = vmatpush.bf16.msra.mxu0 0
        %6927 = vmatpush.bf16.msra.mxu0 0
        %6928 = vmatpush.bf16.msra.mxu0 0
        %6929 = vmatpush.bf16.msra.mxu0 %v6908
        %6930 = vmatpush.bf16.msra.mxu0 %v6907
        %6931 = vmatpush.bf16.msra.mxu0 %v6906
        %6932 = vmatpush.bf16.msra.mxu0 %v6905
        %6933 = vmatmul.bf16.gmra.mxu0 %v6914
        %v6934 = vpop.f32.mrf.mxu0
        %v6935 = vadd.f32 0.0, %v6934
        %v6936 = vpop.f32.mrf.mxu0
        %v6937 = vadd.f32 0.0, %v6936
        %6938 = vmatmul.bf16.gmra.mxu0 %v6917
        %v6939 = vpop.f32.mrf.mxu0
        %v6940 = vadd.f32 0.0, %v6939
        %v6941 = vpop.f32.mrf.mxu0
        %v6942 = vadd.f32 0.0, %v6941
        %6943 = vmatmul.bf16.gmra.mxu0 %v6920
        %v6944 = vpop.f32.mrf.mxu0
        %v6945 = vadd.f32 0.0, %v6944
        %v6946 = vpop.f32.mrf.mxu0
        %v6947 = vadd.f32 0.0, %v6946
        %6948 = vmatmul.bf16.gmra.mxu0 %v6923
        %v6949 = vpop.f32.mrf.mxu0
        %v6950 = vadd.f32 0.0, %v6949
        %v6951 = vpop.f32.mrf.mxu0
        %v6952 = vadd.f32 0.0, %v6951
        %6953 = vdwg.mxu0
        %v6956 = vunpack.c.l.b16 %v6842
        %v6957 = vunpack.c.l.b16 %v6843
        %v6958 = vpack.c.b16 %v6957, %v6956
        %v6967 = vunpack.c.l.b16 %v6850
        %v6968 = vunpack.c.l.b16 %v6851
        %v6969 = vunpack.c.l.b16 %v6852
        %v6970 = vunpack.c.l.b16 %v6853
        %v6971 = vunpack.c.l.b16 %v6854
        %v6972 = vunpack.c.l.b16 %v6855
        %v6973 = vunpack.c.l.b16 %v6856
        %v6974 = vunpack.c.l.b16 %v6857
        %v6975 = vpack.c.b16 %v6968, %v6967
        %v6976 = vpack.c.b16 %v6970, %v6969
        %v6977 = vpack.c.b16 %v6972, %v6971
        %v6978 = vpack.c.b16 %v6974, %v6973
        %v6984 = vsel %vm6565, %v6958, 0
        %6986 = vmatpush.bf16.msra.mxu0 0
        %6987 = vmatpush.bf16.msra.mxu0 0
        %6988 = vmatpush.bf16.msra.mxu0 0
        %6989 = vmatpush.bf16.msra.mxu0 0
        %6990 = vmatpush.bf16.msra.mxu0 %v6978
        %6991 = vmatpush.bf16.msra.mxu0 %v6977
        %6992 = vmatpush.bf16.msra.mxu0 %v6976
        %6993 = vmatpush.bf16.msra.mxu0 %v6975
        %6994 = vmatmul.bf16.gmra.mxu0 %v6984
        %v6995 = vpop.f32.mrf.mxu0
        %v6996 = vadd.f32 %v6935, %v6995
        %v6997 = vpop.f32.mrf.mxu0
        %v6998 = vadd.f32 %v6937, %v6997
        %6999 = vmatmul.bf16.gmra.mxu0 %v6914
        %v7000 = vpop.f32.mrf.mxu0
        %v7001 = vadd.f32 %v6940, %v7000
        %v7002 = vpop.f32.mrf.mxu0
        %v7003 = vadd.f32 %v6942, %v7002
        %7004 = vmatmul.bf16.gmra.mxu0 %v6917
        %v7005 = vpop.f32.mrf.mxu0
        %v7006 = vadd.f32 %v6945, %v7005
        %v7007 = vpop.f32.mrf.mxu0
        %v7008 = vadd.f32 %v6947, %v7007
        %7009 = vmatmul.bf16.gmra.mxu0 %v6920
        %v7010 = vpop.f32.mrf.mxu0
        %v7011 = vadd.f32 %v6950, %v7010
        %v7012 = vpop.f32.mrf.mxu0
        %v7013 = vadd.f32 %v6952, %v7012
        %7014 = vdwg.mxu0
        %v7015 = vld [vmem:[#allocation5 + $0x10] sm:$0xf]
        %v7016 = vld [vmem:[#allocation5 + $0x14] sm:$0xf]
        %v7017 = vld [vmem:[#allocation5 + $0x18] sm:$0xf]
        %v7018 = vld [vmem:[#allocation5 + $0x1c] sm:$0xf]
        %v7019 = vld [vmem:[#allocation5 + $0x20] sm:$0xf]
        %v7020 = vld [vmem:[#allocation5 + $0x24] sm:$0xf]
        %v7021 = vld [vmem:[#allocation5 + $0x28] sm:$0xf]
        %v7022 = vld [vmem:[#allocation5 + $0x2c] sm:$0xf]
        %s7023 = scalar_lea.vmem [#allocation26], 64
        %v7024 = vld [vmem:[%s7023] sm:$0xf]
        %v7025 = vld [vmem:[%s7023 + $0x4] sm:$0xf]
        %v7026 = vld [vmem:[%s7023 + $0x8] sm:$0xf]
        %v7027 = vld [vmem:[%s7023 + $0xc] sm:$0xf]
        %v7028 = vld [vmem:[%s7023 + $0x10] sm:$0xf]
        %v7029 = vld [vmem:[%s7023 + $0x14] sm:$0xf]
        %v7030 = vld [vmem:[%s7023 + $0x18] sm:$0xf]
        %v7031 = vld [vmem:[%s7023 + $0x1c] sm:$0xf]
        %v7040 = vunpack.c.l.b16 %v7015
        %v7041 = vunpack.c.l.b16 %v7016
        %v7042 = vunpack.c.l.b16 %v7017
        %v7043 = vunpack.c.l.b16 %v7018
        %v7044 = vunpack.c.l.b16 %v7019
        %v7045 = vunpack.c.l.b16 %v7020
        %v7046 = vunpack.c.l.b16 %v7021
        %v7047 = vunpack.c.l.b16 %v7022
        %v7048 = vpack.c.b16 %v7041, %v7040
        %v7049 = vpack.c.b16 %v7043, %v7042
        %v7050 = vpack.c.b16 %v7045, %v7044
        %v7051 = vpack.c.b16 %v7047, %v7046
        %v7060 = vunpack.c.l.b16 %v7024
        %v7061 = vunpack.c.l.b16 %v7025
        %v7062 = vunpack.c.l.b16 %v7026
        %v7063 = vunpack.c.l.b16 %v7027
        %v7064 = vunpack.c.l.b16 %v7028
        %v7065 = vunpack.c.l.b16 %v7029
        %v7066 = vunpack.c.l.b16 %v7030
        %v7067 = vunpack.c.l.b16 %v7031
        %v7068 = vpack.c.b16 %v7061, %v7060
        %v7069 = vpack.c.b16 %v7063, %v7062
        %v7070 = vpack.c.b16 %v7065, %v7064
        %v7071 = vpack.c.b16 %v7067, %v7066
        %v7077 = vsel %vm6565, %v7048, 0
        %v7080 = vsel %vm6565, %v7049, 0
        %v7083 = vsel %vm6565, %v7050, 0
        %v7086 = vsel %vm6565, %v7051, 0
        %7088 = vmatpush.bf16.msra.mxu0 0
        %7089 = vmatpush.bf16.msra.mxu0 0
        %7090 = vmatpush.bf16.msra.mxu0 0
        %7091 = vmatpush.bf16.msra.mxu0 0
        %7092 = vmatpush.bf16.msra.mxu0 %v7071
        %7093 = vmatpush.bf16.msra.mxu0 %v7070
        %7094 = vmatpush.bf16.msra.mxu0 %v7069
        %7095 = vmatpush.bf16.msra.mxu0 %v7068
        %7096 = vmatmul.bf16.gmra.mxu0 %v7077
        %v7097 = vpop.f32.mrf.mxu0
        %v7098 = vadd.f32 0.0, %v7097
        %v7099 = vpop.f32.mrf.mxu0
        %v7100 = vadd.f32 0.0, %v7099
        %7101 = vmatmul.bf16.gmra.mxu0 %v7080
        %v7102 = vpop.f32.mrf.mxu0
        %v7103 = vadd.f32 0.0, %v7102
        %v7104 = vpop.f32.mrf.mxu0
        %v7105 = vadd.f32 0.0, %v7104
        %7106 = vmatmul.bf16.gmra.mxu0 %v7083
        %v7107 = vpop.f32.mrf.mxu0
        %v7108 = vadd.f32 0.0, %v7107
        %v7109 = vpop.f32.mrf.mxu0
        %v7110 = vadd.f32 0.0, %v7109
        %7111 = vmatmul.bf16.gmra.mxu0 %v7086
        %v7112 = vpop.f32.mrf.mxu0
        %v7113 = vadd.f32 0.0, %v7112
        %v7114 = vpop.f32.mrf.mxu0
        %v7115 = vadd.f32 0.0, %v7114
        %7116 = vdwg.mxu0
        %v7117 = vadd.f32 %v6996, %v7098
        %v7118 = vadd.f32 %v6998, %v7100
        %v7119 = vadd.f32 %v7001, %v7103
        %v7120 = vadd.f32 %v7003, %v7105
        %v7121 = vadd.f32 %v7006, %v7108
        %v7122 = vadd.f32 %v7008, %v7110
        %v7123 = vadd.f32 %v7011, %v7113
        %v7124 = vadd.f32 %v7013, %v7115
        %v7125 = vld [vmem:[#allocation5 + $0x18] sm:$0xf]
        %v7126 = vld [vmem:[#allocation5 + $0x1c] sm:$0xf]
        %v7127 = vld [vmem:[#allocation5 + $0x20] sm:$0xf]
        %v7128 = vld [vmem:[#allocation5 + $0x24] sm:$0xf]
        %v7129 = vld [vmem:[#allocation5 + $0x28] sm:$0xf]
        %v7130 = vld [vmem:[#allocation5 + $0x2c] sm:$0xf]
        %v7131 = vld [vmem:[#allocation5 + $0x30] sm:$0xf]
        %v7132 = vld [vmem:[#allocation5 + $0x34] sm:$0xf]
        %s7133 = scalar_lea.vmem [#allocation26], 96
        %v7134 = vld [vmem:[%s7133] sm:$0xf]
        %v7135 = vld [vmem:[%s7133 + $0x4] sm:$0xf]
        %v7136 = vld [vmem:[%s7133 + $0x8] sm:$0xf]
        %v7137 = vld [vmem:[%s7133 + $0xc] sm:$0xf]
        %v7138 = vld [vmem:[%s7133 + $0x10] sm:$0xf]
        %v7139 = vld [vmem:[%s7133 + $0x14] sm:$0xf]
        %v7140 = vld [vmem:[%s7133 + $0x18] sm:$0xf]
        %v7141 = vld [vmem:[%s7133 + $0x1c] sm:$0xf]
        %v7150 = vunpack.c.l.b16 %v7125
        %v7151 = vunpack.c.l.b16 %v7126
        %v7152 = vunpack.c.l.b16 %v7127
        %v7153 = vunpack.c.l.b16 %v7128
        %v7154 = vunpack.c.l.b16 %v7129
        %v7155 = vunpack.c.l.b16 %v7130
        %v7156 = vunpack.c.l.b16 %v7131
        %v7157 = vunpack.c.l.b16 %v7132
        %v7158 = vpack.c.b16 %v7151, %v7150
        %v7159 = vpack.c.b16 %v7153, %v7152
        %v7160 = vpack.c.b16 %v7155, %v7154
        %v7161 = vpack.c.b16 %v7157, %v7156
        %v7170 = vunpack.c.l.b16 %v7134
        %v7171 = vunpack.c.l.b16 %v7135
        %v7172 = vunpack.c.l.b16 %v7136
        %v7173 = vunpack.c.l.b16 %v7137
        %v7174 = vunpack.c.l.b16 %v7138
        %v7175 = vunpack.c.l.b16 %v7139
        %v7176 = vunpack.c.l.b16 %v7140
        %v7177 = vunpack.c.l.b16 %v7141
        %v7178 = vpack.c.b16 %v7171, %v7170
        %v7179 = vpack.c.b16 %v7173, %v7172
        %v7180 = vpack.c.b16 %v7175, %v7174
        %v7181 = vpack.c.b16 %v7177, %v7176
        %v7187 = vsel %vm6565, %v7158, 0
        %v7190 = vsel %vm6565, %v7159, 0
        %v7193 = vsel %vm6565, %v7160, 0
        %v7196 = vsel %vm6565, %v7161, 0
        %7198 = vmatpush.bf16.msra.mxu0 0
        %7199 = vmatpush.bf16.msra.mxu0 0
        %7200 = vmatpush.bf16.msra.mxu0 0
        %7201 = vmatpush.bf16.msra.mxu0 0
        %7202 = vmatpush.bf16.msra.mxu0 %v7181
        %7203 = vmatpush.bf16.msra.mxu0 %v7180
        %7204 = vmatpush.bf16.msra.mxu0 %v7179
        %7205 = vmatpush.bf16.msra.mxu0 %v7178
        %7206 = vmatmul.bf16.gmra.mxu0 %v7187
        %v7207 = vpop.f32.mrf.mxu0
        %v7208 = vadd.f32 0.0, %v7207
        %v7209 = vpop.f32.mrf.mxu0
        %v7210 = vadd.f32 0.0, %v7209
        %7211 = vmatmul.bf16.gmra.mxu0 %v7190
        %v7212 = vpop.f32.mrf.mxu0
        %v7213 = vadd.f32 0.0, %v7212
        %v7214 = vpop.f32.mrf.mxu0
        %v7215 = vadd.f32 0.0, %v7214
        %7216 = vmatmul.bf16.gmra.mxu0 %v7193
        %v7217 = vpop.f32.mrf.mxu0
        %v7218 = vadd.f32 0.0, %v7217
        %v7219 = vpop.f32.mrf.mxu0
        %v7220 = vadd.f32 0.0, %v7219
        %7221 = vmatmul.bf16.gmra.mxu0 %v7196
        %v7222 = vpop.f32.mrf.mxu0
        %v7223 = vadd.f32 0.0, %v7222
        %v7224 = vpop.f32.mrf.mxu0
        %v7225 = vadd.f32 0.0, %v7224
        %7226 = vdwg.mxu0
        %v7227 = vadd.f32 %v7117, %v7208
        %v7228 = vadd.f32 %v7118, %v7210
        %v7229 = vadd.f32 %v7119, %v7213
        %v7230 = vadd.f32 %v7120, %v7215
        %v7231 = vadd.f32 %v7121, %v7218
        %v7232 = vadd.f32 %v7122, %v7220
        %v7233 = vadd.f32 %v7123, %v7223
        %v7234 = vadd.f32 %v7124, %v7225
        %v7235 = vld [vmem:[#allocation5 + $0x20] sm:$0xf]
        %v7236 = vld [vmem:[#allocation5 + $0x24] sm:$0xf]
        %v7237 = vld [vmem:[#allocation5 + $0x28] sm:$0xf]
        %v7238 = vld [vmem:[#allocation5 + $0x2c] sm:$0xf]
        %v7239 = vld [vmem:[#allocation5 + $0x30] sm:$0xf]
        %v7240 = vld [vmem:[#allocation5 + $0x34] sm:$0xf]
        %v7241 = vld [vmem:[#allocation5 + $0x38] sm:$0xf]
        %v7242 = vld [vmem:[#allocation5 + $0x3c] sm:$0xf]
        %s7243 = scalar_lea.vmem [#allocation26], 128
        %v7244 = vld [vmem:[%s7243] sm:$0xf]
        %v7245 = vld [vmem:[%s7243 + $0x4] sm:$0xf]
        %v7246 = vld [vmem:[%s7243 + $0x8] sm:$0xf]
        %v7247 = vld [vmem:[%s7243 + $0xc] sm:$0xf]
        %v7248 = vld [vmem:[%s7243 + $0x10] sm:$0xf]
        %v7249 = vld [vmem:[%s7243 + $0x14] sm:$0xf]
        %v7250 = vld [vmem:[%s7243 + $0x18] sm:$0xf]
        %v7251 = vld [vmem:[%s7243 + $0x1c] sm:$0xf]
        %v7260 = vunpack.c.l.b16 %v7235
        %v7261 = vunpack.c.l.b16 %v7236
        %v7262 = vunpack.c.l.b16 %v7237
        %v7263 = vunpack.c.l.b16 %v7238
        %v7264 = vunpack.c.l.b16 %v7239
        %v7265 = vunpack.c.l.b16 %v7240
        %v7266 = vunpack.c.l.b16 %v7241
        %v7267 = vunpack.c.l.b16 %v7242
        %v7268 = vpack.c.b16 %v7261, %v7260
        %v7269 = vpack.c.b16 %v7263, %v7262
        %v7270 = vpack.c.b16 %v7265, %v7264
        %v7271 = vpack.c.b16 %v7267, %v7266
        %v7280 = vunpack.c.l.b16 %v7244
        %v7281 = vunpack.c.l.b16 %v7245
        %v7282 = vunpack.c.l.b16 %v7246
        %v7283 = vunpack.c.l.b16 %v7247
        %v7284 = vunpack.c.l.b16 %v7248
        %v7285 = vunpack.c.l.b16 %v7249
        %v7286 = vunpack.c.l.b16 %v7250
        %v7287 = vunpack.c.l.b16 %v7251
        %v7288 = vpack.c.b16 %v7281, %v7280
        %v7289 = vpack.c.b16 %v7283, %v7282
        %v7290 = vpack.c.b16 %v7285, %v7284
        %v7291 = vpack.c.b16 %v7287, %v7286
        %v7297 = vsel %vm6565, %v7268, 0
        %v7300 = vsel %vm6565, %v7269, 0
        %v7303 = vsel %vm6565, %v7270, 0
        %v7306 = vsel %vm6565, %v7271, 0
        %7308 = vmatpush.bf16.msra.mxu0 0
        %7309 = vmatpush.bf16.msra.mxu0 0
        %7310 = vmatpush.bf16.msra.mxu0 0
        %7311 = vmatpush.bf16.msra.mxu0 0
        %7312 = vmatpush.bf16.msra.mxu0 %v7291
        %7313 = vmatpush.bf16.msra.mxu0 %v7290
        %7314 = vmatpush.bf16.msra.mxu0 %v7289
        %7315 = vmatpush.bf16.msra.mxu0 %v7288
        %7316 = vmatmul.bf16.gmra.mxu0 %v7297
        %v7317 = vpop.f32.mrf.mxu0
        %v7318 = vadd.f32 0.0, %v7317
        %v7319 = vpop.f32.mrf.mxu0
        %v7320 = vadd.f32 0.0, %v7319
        %7321 = vmatmul.bf16.gmra.mxu0 %v7300
        %v7322 = vpop.f32.mrf.mxu0
        %v7323 = vadd.f32 0.0, %v7322
        %v7324 = vpop.f32.mrf.mxu0
        %v7325 = vadd.f32 0.0, %v7324
        %7326 = vmatmul.bf16.gmra.mxu0 %v7303
        %v7327 = vpop.f32.mrf.mxu0
        %v7328 = vadd.f32 0.0, %v7327
        %v7329 = vpop.f32.mrf.mxu0
        %v7330 = vadd.f32 0.0, %v7329
        %7331 = vmatmul.bf16.gmra.mxu0 %v7306
        %v7332 = vpop.f32.mrf.mxu0
        %v7333 = vadd.f32 0.0, %v7332
        %v7334 = vpop.f32.mrf.mxu0
        %v7335 = vadd.f32 0.0, %v7334
        %7336 = vdwg.mxu0
        %v7337 = vadd.f32 %v7227, %v7318
        %v7338 = vadd.f32 %v7228, %v7320
        %v7339 = vadd.f32 %v7229, %v7323
        %v7340 = vadd.f32 %v7230, %v7325
        %v7341 = vadd.f32 %v7231, %v7328
        %v7342 = vadd.f32 %v7232, %v7330
        %v7343 = vadd.f32 %v7233, %v7333
        %v7344 = vadd.f32 %v7234, %v7335
        %v7345 = vld [vmem:[#allocation5 + $0x28] sm:$0xf]
        %v7346 = vld [vmem:[#allocation5 + $0x2c] sm:$0xf]
        %v7347 = vld [vmem:[#allocation5 + $0x30] sm:$0xf]
        %v7348 = vld [vmem:[#allocation5 + $0x34] sm:$0xf]
        %v7349 = vld [vmem:[#allocation5 + $0x38] sm:$0xf]
        %v7350 = vld [vmem:[#allocation5 + $0x3c] sm:$0xf]
        %v7351 = vld [vmem:[#allocation5 + $0x40] sm:$0xf]
        %v7352 = vld [vmem:[#allocation5 + $0x44] sm:$0xf]
        %s7353 = scalar_lea.vmem [#allocation26], 160
        %v7354 = vld [vmem:[%s7353] sm:$0xf]
        %v7355 = vld [vmem:[%s7353 + $0x4] sm:$0xf]
        %v7356 = vld [vmem:[%s7353 + $0x8] sm:$0xf]
        %v7357 = vld [vmem:[%s7353 + $0xc] sm:$0xf]
        %v7358 = vld [vmem:[%s7353 + $0x10] sm:$0xf]
        %v7359 = vld [vmem:[%s7353 + $0x14] sm:$0xf]
        %v7360 = vld [vmem:[%s7353 + $0x18] sm:$0xf]
        %v7361 = vld [vmem:[%s7353 + $0x1c] sm:$0xf]
        %v7370 = vunpack.c.l.b16 %v7345
        %v7371 = vunpack.c.l.b16 %v7346
        %v7372 = vunpack.c.l.b16 %v7347
        %v7373 = vunpack.c.l.b16 %v7348
        %v7374 = vunpack.c.l.b16 %v7349
        %v7375 = vunpack.c.l.b16 %v7350
        %v7376 = vunpack.c.l.b16 %v7351
        %v7377 = vunpack.c.l.b16 %v7352
        %v7378 = vpack.c.b16 %v7371, %v7370
        %v7379 = vpack.c.b16 %v7373, %v7372
        %v7380 = vpack.c.b16 %v7375, %v7374
        %v7381 = vpack.c.b16 %v7377, %v7376
        %v7390 = vunpack.c.l.b16 %v7354
        %v7391 = vunpack.c.l.b16 %v7355
        %v7392 = vunpack.c.l.b16 %v7356
        %v7393 = vunpack.c.l.b16 %v7357
        %v7394 = vunpack.c.l.b16 %v7358
        %v7395 = vunpack.c.l.b16 %v7359
        %v7396 = vunpack.c.l.b16 %v7360
        %v7397 = vunpack.c.l.b16 %v7361
        %v7398 = vpack.c.b16 %v7391, %v7390
        %v7399 = vpack.c.b16 %v7393, %v7392
        %v7400 = vpack.c.b16 %v7395, %v7394
        %v7401 = vpack.c.b16 %v7397, %v7396
        %v7407 = vsel %vm6565, %v7378, 0
        %v7410 = vsel %vm6565, %v7379, 0
        %v7413 = vsel %vm6565, %v7380, 0
        %v7416 = vsel %vm6565, %v7381, 0
        %7418 = vmatpush.bf16.msra.mxu0 0
        %7419 = vmatpush.bf16.msra.mxu0 0
        %7420 = vmatpush.bf16.msra.mxu0 0
        %7421 = vmatpush.bf16.msra.mxu0 0
        %7422 = vmatpush.bf16.msra.mxu0 %v7401
        %7423 = vmatpush.bf16.msra.mxu0 %v7400
        %7424 = vmatpush.bf16.msra.mxu0 %v7399
        %7425 = vmatpush.bf16.msra.mxu0 %v7398
        %7426 = vmatmul.bf16.gmra.mxu0 %v7407
        %v7427 = vpop.f32.mrf.mxu0
        %v7428 = vadd.f32 0.0, %v7427
        %v7429 = vpop.f32.mrf.mxu0
        %v7430 = vadd.f32 0.0, %v7429
        %7431 = vmatmul.bf16.gmra.mxu0 %v7410
        %v7432 = vpop.f32.mrf.mxu0
        %v7433 = vadd.f32 0.0, %v7432
        %v7434 = vpop.f32.mrf.mxu0
        %v7435 = vadd.f32 0.0, %v7434
        %7436 = vmatmul.bf16.gmra.mxu0 %v7413
        %v7437 = vpop.f32.mrf.mxu0
        %v7438 = vadd.f32 0.0, %v7437
        %v7439 = vpop.f32.mrf.mxu0
        %v7440 = vadd.f32 0.0, %v7439
        %7441 = vmatmul.bf16.gmra.mxu0 %v7416
        %v7442 = vpop.f32.mrf.mxu0
        %v7443 = vadd.f32 0.0, %v7442
        %v7444 = vpop.f32.mrf.mxu0
        %v7445 = vadd.f32 0.0, %v7444
        %7446 = vdwg.mxu0
        %v7447 = vadd.f32 %v7337, %v7428
        %v7448 = vadd.f32 %v7338, %v7430
        %v7449 = vadd.f32 %v7339, %v7433
        %v7450 = vadd.f32 %v7340, %v7435
        %v7451 = vadd.f32 %v7341, %v7438
        %v7452 = vadd.f32 %v7342, %v7440
        %v7453 = vadd.f32 %v7343, %v7443
        %v7454 = vadd.f32 %v7344, %v7445
        %v7455 = vld [vmem:[#allocation5 + $0x30] sm:$0xf]
        %v7456 = vld [vmem:[#allocation5 + $0x34] sm:$0xf]
        %v7457 = vld [vmem:[#allocation5 + $0x38] sm:$0xf]
        %v7458 = vld [vmem:[#allocation5 + $0x3c] sm:$0xf]
        %v7459 = vld [vmem:[#allocation5 + $0x40] sm:$0xf]
        %v7460 = vld [vmem:[#allocation5 + $0x44] sm:$0xf]
        %v7461 = vld [vmem:[#allocation5 + $0x48] sm:$0xf]
        %v7462 = vld [vmem:[#allocation5 + $0x4c] sm:$0xf]
        %s7463 = scalar_lea.vmem [#allocation26], 192
        %v7464 = vld [vmem:[%s7463] sm:$0xf]
        %v7465 = vld [vmem:[%s7463 + $0x4] sm:$0xf]
        %v7466 = vld [vmem:[%s7463 + $0x8] sm:$0xf]
        %v7467 = vld [vmem:[%s7463 + $0xc] sm:$0xf]
        %v7468 = vld [vmem:[%s7463 + $0x10] sm:$0xf]
        %v7469 = vld [vmem:[%s7463 + $0x14] sm:$0xf]
        %v7470 = vld [vmem:[%s7463 + $0x18] sm:$0xf]
        %v7471 = vld [vmem:[%s7463 + $0x1c] sm:$0xf]
        %v7480 = vunpack.c.l.b16 %v7455
        %v7481 = vunpack.c.l.b16 %v7456
        %v7482 = vunpack.c.l.b16 %v7457
        %v7483 = vunpack.c.l.b16 %v7458
        %v7484 = vunpack.c.l.b16 %v7459
        %v7485 = vunpack.c.l.b16 %v7460
        %v7486 = vunpack.c.l.b16 %v7461
        %v7487 = vunpack.c.l.b16 %v7462
        %v7488 = vpack.c.b16 %v7481, %v7480
        %v7489 = vpack.c.b16 %v7483, %v7482
        %v7490 = vpack.c.b16 %v7485, %v7484
        %v7491 = vpack.c.b16 %v7487, %v7486
        %v7500 = vunpack.c.l.b16 %v7464
        %v7501 = vunpack.c.l.b16 %v7465
        %v7502 = vunpack.c.l.b16 %v7466
        %v7503 = vunpack.c.l.b16 %v7467
        %v7504 = vunpack.c.l.b16 %v7468
        %v7505 = vunpack.c.l.b16 %v7469
        %v7506 = vunpack.c.l.b16 %v7470
        %v7507 = vunpack.c.l.b16 %v7471
        %v7508 = vpack.c.b16 %v7501, %v7500
        %v7509 = vpack.c.b16 %v7503, %v7502
        %v7510 = vpack.c.b16 %v7505, %v7504
        %v7511 = vpack.c.b16 %v7507, %v7506
        %v7517 = vsel %vm6565, %v7488, 0
        %v7520 = vsel %vm6565, %v7489, 0
        %v7523 = vsel %vm6565, %v7490, 0
        %v7526 = vsel %vm6565, %v7491, 0
        %7528 = vmatpush.bf16.msra.mxu0 0
        %7529 = vmatpush.bf16.msra.mxu0 0
        %7530 = vmatpush.bf16.msra.mxu0 0
        %7531 = vmatpush.bf16.msra.mxu0 0
        %7532 = vmatpush.bf16.msra.mxu0 %v7511
        %7533 = vmatpush.bf16.msra.mxu0 %v7510
        %7534 = vmatpush.bf16.msra.mxu0 %v7509
        %7535 = vmatpush.bf16.msra.mxu0 %v7508
        %7536 = vmatmul.bf16.gmra.mxu0 %v7517
        %v7537 = vpop.f32.mrf.mxu0
        %v7538 = vadd.f32 0.0, %v7537
        %v7539 = vpop.f32.mrf.mxu0
        %v7540 = vadd.f32 0.0, %v7539
        %7541 = vmatmul.bf16.gmra.mxu0 %v7520
        %v7542 = vpop.f32.mrf.mxu0
        %v7543 = vadd.f32 0.0, %v7542
        %v7544 = vpop.f32.mrf.mxu0
        %v7545 = vadd.f32 0.0, %v7544
        %7546 = vmatmul.bf16.gmra.mxu0 %v7523
        %v7547 = vpop.f32.mrf.mxu0
        %v7548 = vadd.f32 0.0, %v7547
        %v7549 = vpop.f32.mrf.mxu0
        %v7550 = vadd.f32 0.0, %v7549
        %7551 = vmatmul.bf16.gmra.mxu0 %v7526
        %v7552 = vpop.f32.mrf.mxu0
        %v7553 = vadd.f32 0.0, %v7552
        %v7554 = vpop.f32.mrf.mxu0
        %v7555 = vadd.f32 0.0, %v7554
        %7556 = vdwg.mxu0
        %v7557 = vadd.f32 %v7447, %v7538
        %v7558 = vadd.f32 %v7448, %v7540
        %v7559 = vadd.f32 %v7449, %v7543
        %v7560 = vadd.f32 %v7450, %v7545
        %v7561 = vadd.f32 %v7451, %v7548
        %v7562 = vadd.f32 %v7452, %v7550
        %v7563 = vadd.f32 %v7453, %v7553
        %v7564 = vadd.f32 %v7454, %v7555
        %v7565 = vld [vmem:[#allocation5 + $0x38] sm:$0xf]
        %v7566 = vld [vmem:[#allocation5 + $0x3c] sm:$0xf]
        %v7567 = vld [vmem:[#allocation5 + $0x40] sm:$0xf]
        %v7568 = vld [vmem:[#allocation5 + $0x44] sm:$0xf]
        %v7569 = vld [vmem:[#allocation5 + $0x48] sm:$0xf]
        %v7570 = vld [vmem:[#allocation5 + $0x4c] sm:$0xf]
        %v7571 = vld [vmem:[#allocation5 + $0x50] sm:$0xf]
        %v7572 = vld [vmem:[#allocation5 + $0x54] sm:$0xf]
        %s7573 = scalar_lea.vmem [#allocation26], 224
        %v7574 = vld [vmem:[%s7573] sm:$0xf]
        %v7575 = vld [vmem:[%s7573 + $0x4] sm:$0xf]
        %v7576 = vld [vmem:[%s7573 + $0x8] sm:$0xf]
        %v7577 = vld [vmem:[%s7573 + $0xc] sm:$0xf]
        %v7578 = vld [vmem:[%s7573 + $0x10] sm:$0xf]
        %v7579 = vld [vmem:[%s7573 + $0x14] sm:$0xf]
        %v7580 = vld [vmem:[%s7573 + $0x18] sm:$0xf]
        %v7581 = vld [vmem:[%s7573 + $0x1c] sm:$0xf]
        %v7590 = vunpack.c.l.b16 %v7565
        %v7591 = vunpack.c.l.b16 %v7566
        %v7592 = vunpack.c.l.b16 %v7567
        %v7593 = vunpack.c.l.b16 %v7568
        %v7594 = vunpack.c.l.b16 %v7569
        %v7595 = vunpack.c.l.b16 %v7570
        %v7596 = vunpack.c.l.b16 %v7571
        %v7597 = vunpack.c.l.b16 %v7572
        %v7598 = vpack.c.b16 %v7591, %v7590
        %v7599 = vpack.c.b16 %v7593, %v7592
        %v7600 = vpack.c.b16 %v7595, %v7594
        %v7601 = vpack.c.b16 %v7597, %v7596
        %v7610 = vunpack.c.l.b16 %v7574
        %v7611 = vunpack.c.l.b16 %v7575
        %v7612 = vunpack.c.l.b16 %v7576
        %v7613 = vunpack.c.l.b16 %v7577
        %v7614 = vunpack.c.l.b16 %v7578
        %v7615 = vunpack.c.l.b16 %v7579
        %v7616 = vunpack.c.l.b16 %v7580
        %v7617 = vunpack.c.l.b16 %v7581
        %v7618 = vpack.c.b16 %v7611, %v7610
        %v7619 = vpack.c.b16 %v7613, %v7612
        %v7620 = vpack.c.b16 %v7615, %v7614
        %v7621 = vpack.c.b16 %v7617, %v7616
        %v7627 = vsel %vm6565, %v7598, 0
        %v7630 = vsel %vm6565, %v7599, 0
        %v7633 = vsel %vm6565, %v7600, 0
        %v7636 = vsel %vm6565, %v7601, 0
        %7638 = vmatpush.bf16.msra.mxu0 0
        %7639 = vmatpush.bf16.msra.mxu0 0
        %7640 = vmatpush.bf16.msra.mxu0 0
        %7641 = vmatpush.bf16.msra.mxu0 0
        %7642 = vmatpush.bf16.msra.mxu0 %v7621
        %7643 = vmatpush.bf16.msra.mxu0 %v7620
        %7644 = vmatpush.bf16.msra.mxu0 %v7619
        %7645 = vmatpush.bf16.msra.mxu0 %v7618
        %7646 = vmatmul.bf16.gmra.mxu0 %v7627
        %v7647 = vpop.f32.mrf.mxu0
        %v7648 = vadd.f32 0.0, %v7647
        %v7649 = vpop.f32.mrf.mxu0
        %v7650 = vadd.f32 0.0, %v7649
        %7651 = vmatmul.bf16.gmra.mxu0 %v7630
        %v7652 = vpop.f32.mrf.mxu0
        %v7653 = vadd.f32 0.0, %v7652
        %v7654 = vpop.f32.mrf.mxu0
        %v7655 = vadd.f32 0.0, %v7654
        %7656 = vmatmul.bf16.gmra.mxu0 %v7633
        %v7657 = vpop.f32.mrf.mxu0
        %v7658 = vadd.f32 0.0, %v7657
        %v7659 = vpop.f32.mrf.mxu0
        %v7660 = vadd.f32 0.0, %v7659
        %7661 = vmatmul.bf16.gmra.mxu0 %v7636
        %v7662 = vpop.f32.mrf.mxu0
        %v7663 = vadd.f32 0.0, %v7662
        %v7664 = vpop.f32.mrf.mxu0
        %v7665 = vadd.f32 0.0, %v7664
        %7666 = vdwg.mxu0
        %v7667 = vadd.f32 %v7557, %v7648
        %v7668 = vadd.f32 %v7558, %v7650
        %v7669 = vadd.f32 %v7559, %v7653
        %v7670 = vadd.f32 %v7560, %v7655
        %v7671 = vadd.f32 %v7561, %v7658
        %v7672 = vadd.f32 %v7562, %v7660
        %v7673 = vadd.f32 %v7563, %v7663
        %v7674 = vadd.f32 %v7564, %v7665
        %v7675 = vld [vmem:[#allocation5 + $0x40] sm:$0xf]
        %v7676 = vld [vmem:[#allocation5 + $0x44] sm:$0xf]
        %v7677 = vld [vmem:[#allocation5 + $0x48] sm:$0xf]
        %v7678 = vld [vmem:[#allocation5 + $0x4c] sm:$0xf]
        %v7679 = vld [vmem:[#allocation5 + $0x50] sm:$0xf]
        %v7680 = vld [vmem:[#allocation5 + $0x54] sm:$0xf]
        %v7681 = vld [vmem:[#allocation5 + $0x58] sm:$0xf]
        %v7682 = vld [vmem:[#allocation5 + $0x5c] sm:$0xf]
        %s7683 = scalar_lea.vmem [#allocation26], 256
        %v7684 = vld [vmem:[%s7683] sm:$0xf]
        %v7685 = vld [vmem:[%s7683 + $0x4] sm:$0xf]
        %v7686 = vld [vmem:[%s7683 + $0x8] sm:$0xf]
        %v7687 = vld [vmem:[%s7683 + $0xc] sm:$0xf]
        %v7688 = vld [vmem:[%s7683 + $0x10] sm:$0xf]
        %v7689 = vld [vmem:[%s7683 + $0x14] sm:$0xf]
        %v7690 = vld [vmem:[%s7683 + $0x18] sm:$0xf]
        %v7691 = vld [vmem:[%s7683 + $0x1c] sm:$0xf]
        %v7700 = vunpack.c.l.b16 %v7675
        %v7701 = vunpack.c.l.b16 %v7676
        %v7702 = vunpack.c.l.b16 %v7677
        %v7703 = vunpack.c.l.b16 %v7678
        %v7704 = vunpack.c.l.b16 %v7679
        %v7705 = vunpack.c.l.b16 %v7680
        %v7706 = vunpack.c.l.b16 %v7681
        %v7707 = vunpack.c.l.b16 %v7682
        %v7708 = vpack.c.b16 %v7701, %v7700
        %v7709 = vpack.c.b16 %v7703, %v7702
        %v7710 = vpack.c.b16 %v7705, %v7704
        %v7711 = vpack.c.b16 %v7707, %v7706
        %v7720 = vunpack.c.l.b16 %v7684
        %v7721 = vunpack.c.l.b16 %v7685
        %v7722 = vunpack.c.l.b16 %v7686
        %v7723 = vunpack.c.l.b16 %v7687
        %v7724 = vunpack.c.l.b16 %v7688
        %v7725 = vunpack.c.l.b16 %v7689
        %v7726 = vunpack.c.l.b16 %v7690
        %v7727 = vunpack.c.l.b16 %v7691
        %v7728 = vpack.c.b16 %v7721, %v7720
        %v7729 = vpack.c.b16 %v7723, %v7722
        %v7730 = vpack.c.b16 %v7725, %v7724
        %v7731 = vpack.c.b16 %v7727, %v7726
        %v7737 = vsel %vm6565, %v7708, 0
        %v7740 = vsel %vm6565, %v7709, 0
        %v7743 = vsel %vm6565, %v7710, 0
        %v7746 = vsel %vm6565, %v7711, 0
        %7748 = vmatpush.bf16.msra.mxu0 0
        %7749 = vmatpush.bf16.msra.mxu0 0
        %7750 = vmatpush.bf16.msra.mxu0 0
        %7751 = vmatpush.bf16.msra.mxu0 0
        %7752 = vmatpush.bf16.msra.mxu0 %v7731
        %7753 = vmatpush.bf16.msra.mxu0 %v7730
        %7754 = vmatpush.bf16.msra.mxu0 %v7729
        %7755 = vmatpush.bf16.msra.mxu0 %v7728
        %7756 = vmatmul.bf16.gmra.mxu0 %v7737
        %v7757 = vpop.f32.mrf.mxu0
        %v7758 = vadd.f32 0.0, %v7757
        %v7759 = vpop.f32.mrf.mxu0
        %v7760 = vadd.f32 0.0, %v7759
        %7761 = vmatmul.bf16.gmra.mxu0 %v7740
        %v7762 = vpop.f32.mrf.mxu0
        %v7763 = vadd.f32 0.0, %v7762
        %v7764 = vpop.f32.mrf.mxu0
        %v7765 = vadd.f32 0.0, %v7764
        %7766 = vmatmul.bf16.gmra.mxu0 %v7743
        %v7767 = vpop.f32.mrf.mxu0
        %v7768 = vadd.f32 0.0, %v7767
        %v7769 = vpop.f32.mrf.mxu0
        %v7770 = vadd.f32 0.0, %v7769
        %7771 = vmatmul.bf16.gmra.mxu0 %v7746
        %v7772 = vpop.f32.mrf.mxu0
        %v7773 = vadd.f32 0.0, %v7772
        %v7774 = vpop.f32.mrf.mxu0
        %v7775 = vadd.f32 0.0, %v7774
        %7776 = vdwg.mxu0
        %v7777 = vadd.f32 %v7667, %v7758
        %v7778 = vadd.f32 %v7668, %v7760
        %v7779 = vadd.f32 %v7669, %v7763
        %v7780 = vadd.f32 %v7670, %v7765
        %v7781 = vadd.f32 %v7671, %v7768
        %v7782 = vadd.f32 %v7672, %v7770
        %v7783 = vadd.f32 %v7673, %v7773
        %v7784 = vadd.f32 %v7674, %v7775
        %v7786 = vperm.slane %v6544, 0
        %v7788 = vadd.f32 %v7777, %v7786
        %v7789 = vadd.f32 %v7778, %v7786
        %v7790 = vadd.f32 %v7779, %v7786
        %v7791 = vadd.f32 %v7780, %v7786
        %v7792 = vadd.f32 %v7781, %v7786
        %v7793 = vadd.f32 %v7782, %v7786
        %v7794 = vadd.f32 %v7783, %v7786
        %v7795 = vadd.f32 %v7784, %v7786
        %v7796 = vmax.f32 %v7788, 0.0
        %v7797 = vmax.f32 %v7789, 0.0
        %v7798 = vmax.f32 %v7790, 0.0
        %v7799 = vmax.f32 %v7791, 0.0
        %v7800 = vmax.f32 %v7792, 0.0
        %v7801 = vmax.f32 %v7793, 0.0
        %v7802 = vmax.f32 %v7794, 0.0
        %v7803 = vmax.f32 %v7795, 0.0
        %v7804 = vadd.f32 %v7796, %v7798
        %v7805 = vadd.f32 %v7797, %v7799
        %v7806 = vadd.f32 %v7804, %v7800
        %v7807 = vadd.f32 %v7805, %v7801
        %v7808 = vadd.f32 %v7806, %v7802
        %v7809 = vadd.f32 %v7807, %v7803
        %v7810 = vmul.f32 %v7808, 0.25
        %v7811 = vmul.f32 %v7809, 0.25
        %7812 = vst.msk [vmem:[%s732] sm:$0xff] %vm6565, %v7810
        %7813 = vst.msk [vmem:[%s732 + $0x8] sm:$0xff] %vm6565, %v7811
        %s7814 = sand.u32 %s387, 1
        %s7815 = scalar_lea.sflag [#allocation8], %s7814
        %s7816 = sand.u32 %s387, 1
        %s7817 = smul.addr %s7816, 16
        %s7818 = scalar_lea.vmem [#allocation29], %s7817
        // Predicated region
        $region141: #{tpu_custom_call.1} parent=83 // pred_check
          %p7819 = pneg %p397
        $region142: #{tpu_custom_call.1} parent=83 // pred_check_branch
          %7821 = sbr.rel (%p7819) target = $region144
        $region143: #{tpu_custom_call.1} parent=83 // pred_region
          %7823 = vsyncadd %s7815, 0
          %s7824 = smul.addr %s38, 2
          %s7825 = smul.addr %s7824, 8
          %s7826 = scalar_lea.hbm %s16, %s7825
          %s7827 = sshll.u32 %s7818, 4
          %s7828 = int_to_ptr.vmem [resolvable:$true] %s7827
          %s7829 = sshll.u32 %s7826, 4
          %s7830 = int_to_ptr.hbm [resolvable:$true] %s7829
          %7835 = dma.vmem_to_hbm [thread:$0]  %s7828, 256, %s7830, %s7815, 128, 128, 8
        $region144: #{tpu_custom_call.1} parent=83 // pred_fallthru
          _
      $region84: #{tpu_custom_call.1} parent=5 // pred_fallthru
        _
      %p7836 = scmp.le.s32.totalorder 2, %s33
      // Predicated region
      $region145: #{tpu_custom_call.1} parent=5 // pred_check
        %p7837 = pneg %p7836
      $region146: #{tpu_custom_call.1} parent=5 // pred_check_branch
        %7839 = sbr.rel (%p7837) target = $region148
      $region147: #{tpu_custom_call.1} parent=5 // pred_region
        %s7840 = ssub.s32 %s33, 2
        // Predicated region
        $region149: #{tpu_custom_call.1} parent=147 // pred_check
          %p7841 = pneg %p403
        $region150: #{tpu_custom_call.1} parent=147 // pred_check_branch
          %7843 = sbr.rel (%p7841) target = $region152
        $region151: #{tpu_custom_call.1} parent=147 // pred_region
          %s7844 = sand.u32 %s388, 1
          %s7845 = scalar_lea.sflag [#allocation8], %s7844
          %s7846 = sand.u32 %s388, 1
          %s7847 = smul.addr %s7846, 16
          %s7848 = scalar_lea.vmem [#allocation29], %s7847
          %7850 = dma.done %s7845, 256
        $region152: #{tpu_custom_call.1} parent=147 // pred_fallthru
          _
      $region148: #{tpu_custom_call.1} parent=5 // pred_fallthru
        _
    $region6: #{tpu_custom_call.1} parent=1 // loop_footer
      %s37 = sadd.s32 1, %s33
    $region7: #{tpu_custom_call.1} parent=1 // loop_footer_branch
      %32 = sbr.rel target = $region3
    $region8: #{tpu_custom_call.1} parent=1 // loop_exit
      _
    %7851 = vsyncpa [#allocation7], 1
    %s7852 = scalar_lea.sflag [#allocation7], 1
    %7853 = vsyncpa %s7852, 1
    %7854 = vsyncpa [#allocation10], 1
    %7855 = vsyncpa [#allocation13], 1
    %7856 = vsyncpa [#allocation16], 1
    %7857 = vsyncpa [#allocation19], 1
    %7858 = vsyncpa [#allocation22], 1
    %7859 = vsyncpa [#allocation25], 1
    %7860 = vsyncpa [#allocation28], 1
    %7861 = vsyncpa [#allocation8], 1
    %s7862 = scalar_lea.sflag [#allocation8], 1
    %7863 = vsyncpa %s7862, 1

</llo_original>
